<compile_context>
chip_gen: v7x
topology: tpu7x:2x2x1
jax: 0.10.0
libtpu: 0.0.40
codegen_flags: <defaults>
</compile_context>

<pallas_src>
import functools
import math

import jax
import jax.numpy as jnp
from jax.experimental import pallas as pl
from jax.experimental.pallas import tpu as pltpu


# ----------------------------------------------------------------------------
# hardware-aware configuration
# ----------------------------------------------------------------------------

def _query_vmem_bytes():
    try:
        return int(pltpu.get_tpu_info().vmem_capacity_bytes)
    except Exception:
        return None


_VMEM_BYTES = _query_vmem_bytes()
# Scoped VMEM limit at 3/4 of physical (≈96 MiB v5e/v6e, ≈48 MiB v7x); leave headroom.
_VMEM_LIMIT = None if _VMEM_BYTES is None else (_VMEM_BYTES * 3) // 4


def _make_cparams(n_axes):
    kw = dict(dimension_semantics=("parallel",) * n_axes)
    if _VMEM_LIMIT is not None:
        kw["vmem_limit_bytes"] = int(_VMEM_LIMIT)
    return pltpu.CompilerParams(**kw)


_PAR1 = _make_cparams(1)
_PAR2 = _make_cparams(2)


def _divisor_tile(n, target):
    if n <= target:
        return n
    for t in range(target - target % 8, 7, -8):
        if n % t == 0:
            return t
    # TODO(synk): no multiple-of-8 divisor <= target; fall back to the full dim.
    # Awkward N at large scale would need padding / masked-remainder handling.
    return n


def _row_tile(rows, target=2048):
    return _divisor_tile(rows, target)


def _edge_row_tile(n, per_row_bytes):
    """VMEM-aware edge row tile: keep double-buffered blocks + live intermediates
    within ~1/4 of physical VMEM."""
    budget = (_VMEM_BYTES or (64 << 20)) // 4
    target = int(max(8, min(512, budget // max(per_row_bytes, 1))))
    return _divisor_tile(n, target)


# ----------------------------------------------------------------------------
# small compute helpers
# ----------------------------------------------------------------------------

def _wc(w, cdt):
    """Cast a weight matrix to the MXU compute dtype once (wrapper side)."""
    return w if cdt is None else w.astype(cdt)


def _mm(x, w, cdt):
    """MXU matmul, f32 accumulation.  Weights are pre-cast in the wrapper."""
    if cdt is not None:
        x = x.astype(cdt)
    return jnp.dot(x, w, preferred_element_type=jnp.float32)


def _ln(x, g, b, eps=1e-5):
    mu = jnp.mean(x, axis=-1, keepdims=True)
    xc = x - mu
    var = jnp.mean(xc * xc, axis=-1, keepdims=True)
    return xc * jax.lax.rsqrt(var + eps) * g + b


# ----------------------------------------------------------------------------
# Pallas kernels
# ----------------------------------------------------------------------------

def _node_proj_kernel(x_ref, nm_ref, g_ref, b_ref, wqkv_ref, bqkv_ref,
                      q_ref, k_ref, v_ref, *, cdt):
    # node LayerNorm + fused [q|k|v] projection; v masked by node mask.
    ce = q_ref.shape[-1]
    xn = _ln(x_ref[...], g_ref[...], b_ref[...])
    qkv = _mm(xn, wqkv_ref[...], cdt) + bqkv_ref[...]
    q_ref[...] = qkv[:, :ce]
    k_ref[...] = qkv[:, ce:2 * ce]
    v_ref[...] = qkv[:, 2 * ce:] * nm_ref[...]


def _edge_attn_kernel(e_ref, em_ref, cm_ref, xq_ref, xk_ref, xv_ref, x_ref, nm_ref,
                      g_ref, b_ref, weqk_ref, beqk_ref, wpost_ref, bpost_ref,
                      won_ref, bon_ref, eexp_ref,
                      eout_ref, xout_ref, *, cdt):
    # fused: edge LN -> [qk_edge] -> gating with (X_q + X_k) -> E_new ->
    #        [o_edge | v_edge | att_linear] concat matmul -> E residual,
    #        masked softmax over keys (head width H), head expansion (MXU),
    #        context = att@(X_v) + sum_k att*E_v, o_node, node-mask, X residual.
    _, TR, N, Ce = e_ref.shape
    Cn = xv_ref.shape[-1]
    H = eexp_ref.shape[0]
    e = e_ref[0]                                     # (TR, N, Ce)
    em = em_ref[0][..., None]                        # (TR, N, 1)
    cm = cm_ref[0][..., None]
    en = _ln(e, g_ref[...], b_ref[...])
    en2 = en.reshape(TR * N, Ce)
    eqk = _mm(en2, weqk_ref[...], cdt) + beqk_ref[...]
    e_q = eqk[:, :Ce].reshape(TR, N, Ce)
    e_k = eqk[:, Ce:].reshape(TR, N, Ce)
    s = xq_ref[0][:, None, :] + xk_ref[0][None, :, :]            # (TR, N, Ce)
    e_new = jax.nn.silu(e_k + jax.nn.silu(s) * e_q + s) * em
    post = _mm(e_new.reshape(TR * N, Ce), wpost_ref[...], cdt) + bpost_ref[...]
    oedge = post[:, :Ce].reshape(TR, N, Ce)
    ev = post[:, Ce:Ce + Cn].reshape(TR, N, Cn) * em
    logit = post[:, Ce + Cn:].reshape(TR, N, H)
    eout_ref[0] = e + oedge * em                                  # prenorm residual
    # masked softmax over keys (axis 1), per head
    logit = jnp.where(cm > 0, logit, -1e30)
    mx = jnp.max(logit, axis=1, keepdims=True)
    p = jnp.exp(logit - mx) * cm
    den = jnp.sum(p, axis=1, keepdims=True)
    p = p / jnp.where(den > 0, den, 1.0)             # fully-masked rows -> 0 (nan_to_num)
    # head expansion H -> Cn via tiny 0/1 MXU matmul (exact)
    p_exp = _mm(p.reshape(TR * N, H), eexp_ref[...], cdt).reshape(TR, N, Cn)
    ctx = jnp.sum(p_exp * (xv_ref[0][None, :, :] + ev), axis=1)   # (TR, Cn)
    xnew = (_mm(ctx, won_ref[...], cdt) + bon_ref[...]) * nm_ref[0]
    xout_ref[0] = x_ref[0] + xnew


def _ln_mlp_kernel(x_ref, m_ref, g_ref, b_ref, w1_ref, b1_ref, w2_ref, b2_ref,
                   o_ref, *, cdt, residual):
    # fused: LayerNorm -> linear1 -> silu -> linear2 -> *mask (-> + residual).
    x = x_ref[...]
    xn = _ln(x, g_ref[...], b_ref[...])
    h = jax.nn.silu(_mm(xn, w1_ref[...], cdt) + b1_ref[...])
    y = (_mm(h, w2_ref[...], cdt) + b2_ref[...]) * m_ref[...]
    o_ref[...] = x + y if residual else y


def _ppgn_pre_kernel(e_ref, em_ref, g_ref, b_ref, w1_ref, b1_ref,
                     w12_ref, b12_ref, w22_ref, b22_ref,
                     x1_ref, x2_ref, *, cdt):
    # fused: shared LayerNorm -> [mlp1|mlp2] first stage (concat) -> silu ->
    #        second stages -> silu -> *mask.
    _, TR, N, Ce = e_ref.shape
    em = em_ref[0][..., None]
    xin = _ln(e_ref[0], g_ref[...], b_ref[...]).reshape(TR * N, Ce)
    h = jax.nn.silu(_mm(xin, w1_ref[...], cdt) + b1_ref[...])     # (TR*N, 2*Ce)
    y1 = _mm(h[:, :Ce], w12_ref[...], cdt) + b12_ref[...]
    y2 = _mm(h[:, Ce:], w22_ref[...], cdt) + b22_ref[...]
    x1_ref[0] = jax.nn.silu(y1).reshape(TR, N, Ce) * em
    x2_ref[0] = jax.nn.silu(y2).reshape(TR, N, Ce) * em


def _ppgn_mult_kernel(x1_ref, x2_ref, cm_ref, cmt_ref, o_ref):
    # Causal PPGN product on the MXU, channel-batched (channel-major layout):
    #   xm = x1c @ (x2 - x2c) + x1 @ x2c   ==  x1c@x2 + x1@x2c - x1c@x2c
    x1 = x1_ref[0]                                  # (Ce, TR, N)
    x2 = x2_ref[0]                                  # (Ce, N,  N)
    dt = x1.dtype
    cmr = cm_ref[0].astype(dt)[None, :, :]          # (1, TR, N)
    cmt = cmt_ref[0].astype(dt)[None, :, :]         # (1, N,  N)
    x1c = x1 * cmr
    x2c = x2 * cmt
    o_ref[0] = (
        jnp.einsum('cik,ckj->cij', x1c, x2 - x2c,
                   preferred_element_type=jnp.float32)
        + jnp.einsum('cik,ckj->cij', x1, x2c,
                     preferred_element_type=jnp.float32))


def _ppgn_post_kernel(xm_ref, e_ref, m_ref, wl_ref, bl_ref, g_ref, b_ref,
                      w31_ref, b31_ref, w32_ref, b32_ref, o_ref, *, cdt):
    # fused: output linear -> *mask -> residual -> LN2 -> mlp3 -> *mask -> residual.
    em = m_ref[...]
    y = (_mm(xm_ref[...], wl_ref[...], cdt) + bl_ref[...]) * em + e_ref[...]
    yn = _ln(y, g_ref[...], b_ref[...])
    h = jax.nn.silu(_mm(yn, w31_ref[...], cdt) + b31_ref[...])
    o_ref[...] = (_mm(h, w32_ref[...], cdt) + b32_ref[...]) * em + y


# ----------------------------------------------------------------------------
# pallas_call wrappers
# ----------------------------------------------------------------------------

def node_proj(X, nm3, t, cdt):
    B, N, Cn = X.shape
    Ce = t["wq"].shape[1]
    rows = B * N
    TR = _row_tile(rows)
    x2 = X.reshape(rows, Cn)
    nm2 = nm3.reshape(rows, 1)
    wqkv = _wc(jnp.concatenate([t["wq"], t["wk"], t["wv"]], axis=1), cdt)
    bqkv = jnp.concatenate([t["bq"], t["bk"], t["bv"]], axis=1)
    wspec = lambda s: pl.BlockSpec(s, lambda i: (0, 0))
    q, k, v = pl.pallas_call(
        functools.partial(_node_proj_kernel, cdt=cdt),
        grid=(rows // TR,),
        in_specs=[pl.BlockSpec((TR, Cn), lambda i: (i, 0)),
                  pl.BlockSpec((TR, 1), lambda i: (i, 0)),
                  wspec((1, Cn)), wspec((1, Cn)),
                  wspec((Cn, 2 * Ce + Cn)), wspec((1, 2 * Ce + Cn))],
        out_specs=[pl.BlockSpec((TR, Ce), lambda i: (i, 0)),
                   pl.BlockSpec((TR, Ce), lambda i: (i, 0)),
                   pl.BlockSpec((TR, Cn), lambda i: (i, 0))],
        out_shape=[jax.ShapeDtypeStruct((rows, Ce), jnp.float32),
                   jax.ShapeDtypeStruct((rows, Ce), jnp.float32),
                   jax.ShapeDtypeStruct((rows, Cn), jnp.float32)],
        compiler_params=_PAR1,
    )(x2, nm2, t["node_ln_g"], t["node_ln_b"], wqkv, bqkv)
    return q.reshape(B, N, Ce), k.reshape(B, N, Ce), v.reshape(B, N, Cn)


def edge_attn(E, em, cm, Xq, Xk, Xv, X, nm3, t, n_head, cdt):
    B, N, _, Ce = E.shape
    Cn = Xv.shape[-1]
    H = n_head
    dh = Cn // H
    TR = _edge_row_tile(N, 4 * N * (8 * Ce + 3 * Cn + H))
    weqk = _wc(jnp.concatenate([t["weq"], t["wek"]], axis=1), cdt)
    beqk = jnp.concatenate([t["beq"], t["bek"]], axis=1)
    wpost = _wc(jnp.concatenate([t["woe"], t["wve"], t["wa"]], axis=1), cdt)
    bpost = jnp.concatenate([t["boe"], t["bve"], t["ba"]], axis=1)
    eexp = _wc((jnp.arange(Cn)[None, :] // dh
                == jnp.arange(H)[:, None]).astype(jnp.float32), cdt)
    wspec = lambda s: pl.BlockSpec(s, lambda b, r: (0, 0))
    cost = pl.CostEstimate(
        flops=int(2 * B * N * N * Ce * (3 * Ce + Cn + H)
                  + 2 * B * N * N * H * Cn + 4 * B * N * N * Cn
                  + 2 * B * N * Cn * Cn),
        transcendentals=int(B * N * N * (3 * Ce + H)),
        bytes_accessed=int(4 * B * N * N * (2 * Ce + 2)
                           + 4 * B * N * (2 * Ce + 3 * Cn)))
    e_out, x_out = pl.pallas_call(
        functools.partial(_edge_attn_kernel, cdt=cdt),
        grid=(B, N // TR),
        in_specs=[pl.BlockSpec((1, TR, N, Ce), lambda b, r: (b, r, 0, 0)),   # E
                  pl.BlockSpec((1, TR, N), lambda b, r: (b, r, 0)),          # edge mask
                  pl.BlockSpec((1, TR, N), lambda b, r: (b, r, 0)),          # causal mask
                  pl.BlockSpec((1, TR, Ce), lambda b, r: (b, r, 0)),         # Xq
                  pl.BlockSpec((1, N, Ce), lambda b, r: (b, 0, 0)),          # Xk (full)
                  pl.BlockSpec((1, N, Cn), lambda b, r: (b, 0, 0)),          # Xv (full)
                  pl.BlockSpec((1, TR, Cn), lambda b, r: (b, r, 0)),         # X
                  pl.BlockSpec((1, TR, 1), lambda b, r: (b, r, 0)),          # node mask
                  wspec((1, Ce)), wspec((1, Ce)),
                  wspec((Ce, 2 * Ce)), wspec((1, 2 * Ce)),
                  wspec((Ce, Ce + Cn + H)), wspec((1, Ce + Cn + H)),
                  wspec((Cn, Cn)), wspec((1, Cn)),
                  wspec((H, Cn))],
        out_specs=[pl.BlockSpec((1, TR, N, Ce), lambda b, r: (b, r, 0, 0)),
                   pl.BlockSpec((1, TR, Cn), lambda b, r: (b, r, 0))],
        out_shape=[jax.ShapeDtypeStruct((B, N, N, Ce), jnp.float32),
                   jax.ShapeDtypeStruct((B, N, Cn), jnp.float32)],
        compiler_params=_PAR2,
        cost_estimate=cost,
    )(E, em, cm, Xq, Xk, Xv, X, nm3,
      t["edge_ln_g"], t["edge_ln_b"], weqk, beqk, wpost, bpost,
      _wc(t["won"], cdt), t["bon"], eexp)
    return e_out, x_out


def ln_mlp(x, mask, g, b, w1, b1, w2, b2, *, residual, cdt):
    C = x.shape[-1]
    rows = math.prod(x.shape[:-1])
    hid = w1.shape[1]
    TR = _row_tile(rows)
    x2 = x.reshape(rows, C)
    m2 = jnp.broadcast_to(mask, x.shape[:-1] + (1,)).reshape(rows, 1)
    wspec = lambda s: pl.BlockSpec(s, lambda i: (0, 0))
    y = pl.pallas_call(
        functools.partial(_ln_mlp_kernel, cdt=cdt, residual=residual),
        grid=(rows // TR,),
        in_specs=[pl.BlockSpec((TR, C), lambda i: (i, 0)),
                  pl.BlockSpec((TR, 1), lambda i: (i, 0)),
                  wspec((1, C)), wspec((1, C)),
                  wspec((C, hid)), wspec((1, hid)),
                  wspec((hid, C)), wspec((1, C))],
        out_specs=pl.BlockSpec((TR, C), lambda i: (i, 0)),
        out_shape=jax.ShapeDtypeStruct((rows, C), jnp.float32),
        compiler_params=_PAR1,
    )(x2, m2, g, b, _wc(w1, cdt), b1, _wc(w2, cdt), b2)
    return y.reshape(x.shape)


def ppgn_pre(E, em, g, cdt):
    B, N, _, Ce = E.shape
    TR = _edge_row_tile(N, 4 * N * 8 * Ce)
    w1 = _wc(jnp.concatenate([g["w11"], g["w21"]], axis=1), cdt)
    b1 = jnp.concatenate([g["b11"], g["b21"]], axis=1)
    wspec = lambda s: pl.BlockSpec(s, lambda b, r: (0, 0))
    cost = pl.CostEstimate(
        flops=int(8 * B * N * N * Ce * Ce),
        transcendentals=int(4 * B * N * N * Ce),
        bytes_accessed=int(12 * B * N * N * Ce))
    x1, x2 = pl.pallas_call(
        functools.partial(_ppgn_pre_kernel, cdt=cdt),
        grid=(B, N // TR),
        in_specs=[pl.BlockSpec((1, TR, N, Ce), lambda b, r: (b, r, 0, 0)),
                  pl.BlockSpec((1, TR, N), lambda b, r: (b, r, 0)),
                  wspec((1, Ce)), wspec((1, Ce)),
                  wspec((Ce, 2 * Ce)), wspec((1, 2 * Ce)),
                  wspec((Ce, Ce)), wspec((1, Ce)),
                  wspec((Ce, Ce)), wspec((1, Ce))],
        out_specs=[pl.BlockSpec((1, TR, N, Ce), lambda b, r: (b, r, 0, 0)),
                   pl.BlockSpec((1, TR, N, Ce), lambda b, r: (b, r, 0, 0))],
        out_shape=[jax.ShapeDtypeStruct((B, N, N, Ce), jnp.float32),
                   jax.ShapeDtypeStruct((B, N, N, Ce), jnp.float32)],
        compiler_params=_PAR2,
        cost_estimate=cost,
    )(E, em, g["ln1_g"], g["ln1_b"], w1, b1,
      _wc(g["w12"], cdt), g["b12"], _wc(g["w22"], cdt), g["b22"])
    return x1, x2


def ppgn_mult(x1_cm, x2_cm, cm, cmT):
    B, Ce, N, _ = x1_cm.shape
    isz = x1_cm.dtype.itemsize
    TR = _edge_row_tile(N, 6 * Ce * N * isz)
    cost = pl.CostEstimate(
        flops=int(4 * B * Ce * N * N * N),
        transcendentals=0,
        bytes_accessed=int(B * Ce * N * N * (2 * isz + 4) + 8 * B * N * N))
    return pl.pallas_call(
        _ppgn_mult_kernel,
        grid=(B, N // TR),
        in_specs=[pl.BlockSpec((1, Ce, TR, N), lambda b, r: (b, 0, r, 0)),
                  pl.BlockSpec((1, Ce, N, N), lambda b, r: (b, 0, 0, 0)),
                  pl.BlockSpec((1, TR, N), lambda b, r: (b, r, 0)),
                  pl.BlockSpec((1, N, N), lambda b, r: (b, 0, 0))],
        out_specs=pl.BlockSpec((1, Ce, TR, N), lambda b, r: (b, 0, r, 0)),
        out_shape=jax.ShapeDtypeStruct((B, Ce, N, N), jnp.float32),
        compiler_params=_PAR2,
        cost_estimate=cost,
    )(x1_cm, x2_cm, cm, cmT)


def ppgn_post(xm, E, em, g, cdt):
    B, N, _, Ce = E.shape
    hid = g["w31"].shape[1]
    rows = B * N * N
    TR = _row_tile(rows)
    xm2 = xm.reshape(rows, Ce)
    e2 = E.reshape(rows, Ce)
    m2 = em.reshape(rows, 1)
    wspec = lambda s: pl.BlockSpec(s, lambda i: (0, 0))
    cost = pl.CostEstimate(
        flops=int(2 * rows * Ce * (Ce + 2 * hid)),
        transcendentals=int(rows * hid),
        bytes_accessed=int(12 * rows * Ce))
    y = pl.pallas_call(
        functools.partial(_ppgn_post_kernel, cdt=cdt),
        grid=(rows // TR,),
        in_specs=[pl.BlockSpec((TR, Ce), lambda i: (i, 0)),
                  pl.BlockSpec((TR, Ce), lambda i: (i, 0)),
                  pl.BlockSpec((TR, 1), lambda i: (i, 0)),
                  wspec((Ce, Ce)), wspec((1, Ce)),
                  wspec((1, Ce)), wspec((1, Ce)),
                  wspec((Ce, hid)), wspec((1, hid)),
                  wspec((hid, Ce)), wspec((1, Ce))],
        out_specs=pl.BlockSpec((TR, Ce), lambda i: (i, 0)),
        out_shape=jax.ShapeDtypeStruct((rows, Ce), jnp.float32),
        compiler_params=_PAR1,
        cost_estimate=cost,
    )(xm2, e2, m2, _wc(g["wl"], cdt), g["bl"], g["ln2_g"], g["ln2_b"],
      _wc(g["w31"], cdt), g["b31"], _wc(g["w32"], cdt), g["b32"])
    return y.reshape(B, N, N, Ce)


# ----------------------------------------------------------------------------
# full forward (Pallas)
# ----------------------------------------------------------------------------

def pallas_forward(params, X, E, edge_mask, edge_causal_mask, n_head,
                   compute_dtype=None):
    f32 = jnp.float32
    cdt = compute_dtype
    if edge_causal_mask is not None:
        edge_mask = edge_mask & (edge_causal_mask |
                                 jnp.swapaxes(edge_causal_mask, -1, -2))
    node_mask = jnp.any(edge_mask, axis=-1)
    nm3 = node_mask[..., None].astype(f32)          # (B, N, 1)
    em = edge_mask.astype(f32)                      # (B, N, N)
    cm = (edge_causal_mask if edge_causal_mask is not None else edge_mask).astype(f32)
    cmT = jnp.swapaxes(cm, -1, -2)
    X = X * nm3
    E = E * em[..., None]
    for blk in params["blocks"]:
        t = blk["transformer"]
        Xq, Xk, Xv = node_proj(X, nm3, t, cdt)
        E, X = edge_attn(E, em, cm, Xq, Xk, Xv, X, nm3, t, n_head, cdt)
        X = ln_mlp(X, nm3, t["ln2_g"], t["ln2_b"], t["w1"], t["b1"], t["w2"], t["b2"],
                   residual=True, cdt=cdt)
        g = blk["ppgn"]
        x1, x2 = ppgn_pre(E, em, g, cdt)
        # channel-major HBM transposes (XLA) so the PPGN product runs as batched
        # MXU matmuls without in-kernel minor-dim transposes.
        x1_cm = jnp.transpose(x1, (0, 3, 1, 2))
        x2_cm = jnp.transpose(x2, (0, 3, 1, 2))
        if cdt is not None:
            x1_cm = x1_cm.astype(cdt)
            x2_cm = x2_cm.astype(cdt)
        xm_cm = ppgn_mult(x1_cm, x2_cm, cm, cmT)
        xm = jnp.transpose(xm_cm, (0, 2, 3, 1))
        E = ppgn_post(xm, E, em, g, cdt)
    X = ln_mlp(X, nm3, params["node_ln_g"], params["node_ln_b"],
               params["nw1"], params["nb1"], params["nw2"], params["nb2"],
               residual=False, cdt=cdt)
    E = ln_mlp(E, em[..., None], params["edge_ln_g"], params["edge_ln_b"],
               params["ew1"], params["eb1"], params["ew2"], params["eb2"],
               residual=False, cdt=cdt)
    return X, E


# ----------------------------------------------------------------------------
# pure-jnp reference (mirrors the PyTorch module, channels-last)
# ----------------------------------------------------------------------------

def reference_forward(params, X, E, edge_mask, edge_causal_mask, n_head):
    f32 = jnp.float32
    hi = jax.lax.Precision.HIGHEST
    mm = lambda a, b: jnp.matmul(a, b, precision=hi)
    if edge_causal_mask is not None:
        edge_mask = edge_mask & (edge_causal_mask |
                                 jnp.swapaxes(edge_causal_mask, -1, -2))
    node_mask = jnp.any(edge_mask, axis=-1)
    nm = node_mask[..., None].astype(f32)
    em = edge_mask[..., None].astype(f32)
    cmb = edge_causal_mask if edge_causal_mask is not None else edge_mask
    B, N, Cn = X.shape
    dh = Cn // n_head
    X = X * nm
    E = E * em
    for blk in params["blocks"]:
        t = blk["transformer"]
        Xn = _ln(X, t["node_ln_g"], t["node_ln_b"])
        Xq = mm(Xn, t["wq"]) + t["bq"]
        Xk = mm(Xn, t["wk"]) + t["bk"]
        Xv = (mm(Xn, t["wv"]) + t["bv"]) * nm
        En = _ln(E, t["edge_ln_g"], t["edge_ln_b"])
        Eq = mm(En, t["weq"]) + t["beq"]
        Ek = mm(En, t["wek"]) + t["bek"]
        S = Xq[:, :, None, :] + Xk[:, None, :, :]
        E_new = jax.nn.silu(Ek + jax.nn.silu(S) * Eq + S) * em
        E = E + (mm(E_new, t["woe"]) + t["boe"]) * em
        att = mm(E_new, t["wa"]) + t["ba"]                      # (B, Nq, Nk, H)
        att = jnp.where(cmb[..., None], att, -jnp.inf)
        att = jax.nn.softmax(att, axis=2)
        att = jnp.nan_to_num(att)
        Ev = (mm(E_new, t["wve"]) + t["bve"]) * em              # (B, N, N, Cn)
        Xv_h = Xv.reshape(B, N, n_head, dh)
        Ev_h = Ev.reshape(B, N, N, n_head, dh)
        ctx = (jnp.einsum('bqkh,bkhd->bqhd', att, Xv_h, precision=hi)
               + jnp.einsum('bqkh,bqkhd->bqhd', att, Ev_h, precision=hi))
        ctx = ctx.reshape(B, N, Cn)
        X = X + (mm(ctx, t["won"]) + t["bon"]) * nm
        Xn2 = _ln(X, t["ln2_g"], t["ln2_b"])
        h = jax.nn.silu(mm(Xn2, t["w1"]) + t["b1"])
        X = X + (mm(h, t["w2"]) + t["b2"]) * nm
        g = blk["ppgn"]
        xin = _ln(E, g["ln1_g"], g["ln1_b"])
        h1 = jax.nn.silu(mm(xin, g["w11"]) + g["b11"])
        x1 = jax.nn.silu(mm(h1, g["w12"]) + g["b12"]) * em
        h2 = jax.nn.silu(mm(xin, g["w21"]) + g["b21"])
        x2 = jax.nn.silu(mm(h2, g["w22"]) + g["b22"]) * em
        a = x1.transpose(0, 3, 1, 2)
        bb = x2.transpose(0, 3, 1, 2)
        c = cmb.astype(f32)[:, None]
        ac = a * c
        bc = bb * jnp.swapaxes(c, -1, -2)
        xm = mm(ac, bb) + mm(a, bc) - mm(ac, bc)
        xm = xm.transpose(0, 2, 3, 1)
        E = (mm(xm, g["wl"]) + g["bl"]) * em + E
        xin2 = _ln(E, g["ln2_g"], g["ln2_b"])
        h3 = jax.nn.silu(mm(xin2, g["w31"]) + g["b31"])
        E = (mm(h3, g["w32"]) + g["b32"]) * em + E
    Xn = _ln(X, params["node_ln_g"], params["node_ln_b"])
    En = _ln(E, params["edge_ln_g"], params["edge_ln_b"])
    h = jax.nn.silu(mm(Xn, params["nw1"]) + params["nb1"])
    X = (mm(h, params["nw2"]) + params["nb2"]) * nm
    h = jax.nn.silu(mm(En, params["ew1"]) + params["eb1"])
    E = (mm(h, params["ew2"]) + params["eb2"]) * em
    return X, E


# ----------------------------------------------------------------------------
# parameter init
# ----------------------------------------------------------------------------

def _lin(key, cin, cout):
    k1, k2 = jax.random.split(key)
    w = jax.random.normal(k1, (cin, cout), jnp.float32) / jnp.sqrt(float(cin))
    b = 0.02 * jax.random.normal(k2, (1, cout), jnp.float32)
    return w, b


def _ones(c):
    return jnp.ones((1, c), jnp.float32)


def _zeros(c):
    return jnp.zeros((1, c), jnp.float32)


def init_transformer_block(key, cn, ce, h):
    ks = jax.random.split(key, 11)
    wq, bq = _lin(ks[0], cn, ce)
    wk, bk = _lin(ks[1], cn, ce)
    wv, bv = _lin(ks[2], cn, cn)
    weq, beq = _lin(ks[3], ce, ce)
    wek, bek = _lin(ks[4], ce, ce)
    woe, boe = _lin(ks[5], ce, ce)
    wa, ba = _lin(ks[6], ce, h)
    wve, bve = _lin(ks[7], ce, cn)
    won, bon = _lin(ks[8], cn, cn)
    w1, b1 = _lin(ks[9], cn, 2 * cn)
    w2, b2 = _lin(ks[10], 2 * cn, cn)
    return dict(node_ln_g=_ones(cn), node_ln_b=_zeros(cn),
                edge_ln_g=_ones(ce), edge_ln_b=_zeros(ce),
                ln2_g=_ones(cn), ln2_b=_zeros(cn),
                wq=wq, bq=bq, wk=wk, bk=bk, wv=wv, bv=bv,
                weq=weq, beq=beq, wek=wek, bek=bek, woe=woe, boe=boe,
                wa=wa, ba=ba, wve=wve, bve=bve, won=won, bon=bon,
                w1=w1, b1=b1, w2=w2, b2=b2)


def init_ppgn_block(key, ce):
    ks = jax.random.split(key, 7)
    w11, b11 = _lin(ks[0], ce, ce)
    w12, b12 = _lin(ks[1], ce, ce)
    w21, b21 = _lin(ks[2], ce, ce)
    w22, b22 = _lin(ks[3], ce, ce)
    wl, bl = _lin(ks[4], ce, ce)
    w31, b31 = _lin(ks[5], ce, 2 * ce)
    w32, b32 = _lin(ks[6], 2 * ce, ce)
    return dict(ln1_g=_ones(ce), ln1_b=_zeros(ce),
                ln2_g=_ones(ce), ln2_b=_zeros(ce),
                w11=w11, b11=b11, w12=w12, b12=b12,
                w21=w21, b21=b21, w22=w22, b22=b22,
                wl=wl, bl=bl, w31=w31, b31=b31, w32=w32, b32=b32)


def init_params(key, cn, ce, h, num_layers):
    keys = jax.random.split(key, 2 * num_layers + 4)
    blocks = []
    for l in range(num_layers):
        blocks.append(dict(transformer=init_transformer_block(keys[2 * l], cn, ce, h),
                           ppgn=init_ppgn_block(keys[2 * l + 1], ce)))
    nw1, nb1 = _lin(keys[-4], cn, cn)
    nw2, nb2 = _lin(keys[-3], cn, cn)
    ew1, eb1 = _lin(keys[-2], ce, ce)
    ew2, eb2 = _lin(keys[-1], ce, ce)
    return dict(blocks=blocks,
                node_ln_g=_ones(cn), node_ln_b=_zeros(cn),
                edge_ln_g=_ones(ce), edge_ln_b=_zeros(ce),
                nw1=nw1, nb1=nb1, nw2=nw2, nb2=nb2,
                ew1=ew1, eb1=eb1, ew2=ew2, eb2=eb2)


# ----------------------------------------------------------------------------
# main
# ----------------------------------------------------------------------------

if __name__ == "__main__":
    B, N, Cn, Ce, H, L = 2, 8, 32, 16, 4, 2

    key = jax.random.PRNGKey(0)
    kx, ke, kp = jax.random.split(key, 3)
    X = jax.random.normal(kx, (B, N, Cn), jnp.float32)
    E = jax.random.normal(ke, (B, N, N, Ce), jnp.float32)

    n_valid = jnp.array([N, N - 3])
    idx = jnp.arange(N)
    valid = idx[None, :] < n_valid[:, None]                    # (B, N)
    edge_mask = valid[:, :, None] & valid[:, None, :]          # (B, N, N)
    causal = (idx[:, None] >= idx[None, :])[None]              # lower triangular
    edge_causal_mask = edge_mask & causal

    params = init_params(kp, Cn, Ce, H, L)

    # f32 Pallas path (tight check against the pure-jnp reference).
    fwd = jax.jit(functools.partial(pallas_forward, n_head=H, compute_dtype=None))
    Xo, Eo = jax.block_until_ready(fwd(params, X, E, edge_mask, edge_causal_mask))
    assert bool(jnp.all(jnp.isfinite(Xo))) and bool(jnp.all(jnp.isfinite(Eo)))

    ref = jax.jit(functools.partial(reference_forward, n_head=H))
    Xr, Er = jax.block_until_ready(ref(params, X, E, edge_mask, edge_causal_mask))
    dx = float(jnp.max(jnp.abs(Xo - Xr)))
    de = float(jnp.max(jnp.abs(Eo - Er)))
    assert dx < 5e-2 and de < 5e-2, (dx, de)

    # bf16 MXU-operand variant (recommended on v6e/v7x), f32 accumulation:
    # checked against the reference with a loose normalized tolerance.
    fwd_bf16 = jax.jit(functools.partial(pallas_forward, n_head=H,
                                         compute_dtype=jnp.bfloat16))
    Xb, Eb = jax.block_until_ready(fwd_bf16(params, X, E, edge_mask, edge_causal_mask))
    assert bool(jnp.all(jnp.isfinite(Xb))) and bool(jnp.all(jnp.isfinite(Eb)))

    def _relerr(a, b):
        return float(jnp.max(jnp.abs(a - b)) / (jnp.max(jnp.abs(b)) + 1e-6))

    rx = _relerr(Xb, Xr)
    re = _relerr(Eb, Er)
    assert rx < 0.1 and re < 0.1, (rx, re)

    print("KERNEL_OK")
</pallas_src>

<mosaic_0001>
module attributes {stable_mosaic.version = 11 : i64} {
  func.func @_node_proj_kernel(%arg0: i32, %arg1: memref<16x32xf32, #tpu.memory_space<vmem>>, %arg2: memref<16x1xf32, #tpu.memory_space<vmem>>, %arg3: memref<1x32xf32, #tpu.memory_space<vmem>>, %arg4: memref<1x32xf32, #tpu.memory_space<vmem>>, %arg5: memref<32x64xf32, #tpu.memory_space<vmem>>, %arg6: memref<1x64xf32, #tpu.memory_space<vmem>>, %arg7: memref<16x16xf32, #tpu.memory_space<vmem>>, %arg8: memref<16x16xf32, #tpu.memory_space<vmem>>, %arg9: memref<16x32xf32, #tpu.memory_space<vmem>>) attributes {dimension_semantics = [#tpu.dimension_semantics<parallel>], iteration_bounds = array<i64: 1>, scalar_prefetch = 0 : i64, scratch_operands = 0 : i64, tpu.core_type = #tpu.core_type<tc>, window_params = [{transform_indices = @transform_0, window_bounds = array<i64: 16, 32>}, {transform_indices = @transform_1, window_bounds = array<i64: 16, 1>}, {pipeline_mode = #tpu.pipeline_mode<synchronous>, transform_indices = @transform_2, window_bounds = array<i64: 1, 32>}, {pipeline_mode = #tpu.pipeline_mode<synchronous>, transform_indices = @transform_3, window_bounds = array<i64: 1, 32>}, {pipeline_mode = #tpu.pipeline_mode<synchronous>, transform_indices = @transform_4, window_bounds = array<i64: 32, 64>}, {pipeline_mode = #tpu.pipeline_mode<synchronous>, transform_indices = @transform_5, window_bounds = array<i64: 1, 64>}, {transform_indices = @transform_6, window_bounds = array<i64: 16, 16>}, {transform_indices = @transform_7, window_bounds = array<i64: 16, 16>}, {transform_indices = @transform_8, window_bounds = array<i64: 16, 32>}]} {
    %c0 = arith.constant 0 : index
    %c0_0 = arith.constant 0 : index
    %0 = vector.load %arg1[%c0, %c0_0] : memref<16x32xf32, #tpu.memory_space<vmem>>, vector<16x32xf32>
    %c0_1 = arith.constant 0 : index
    %c0_2 = arith.constant 0 : index
    %1 = vector.load %arg3[%c0_1, %c0_2] : memref<1x32xf32, #tpu.memory_space<vmem>>, vector<1x32xf32>
    %c0_3 = arith.constant 0 : index
    %c0_4 = arith.constant 0 : index
    %2 = vector.load %arg4[%c0_3, %c0_4] : memref<1x32xf32, #tpu.memory_space<vmem>>, vector<1x32xf32>
    %cst = arith.constant dense<0.000000e+00> : vector<16xf32>
    %3 = vector.multi_reduction <add>, %0, %cst [1] : vector<16x32xf32> to vector<16xf32>
    %4 = vector.shape_cast %3 : vector<16xf32> to vector<16x1xf32>
    %cst_5 = arith.constant 3.200000e+01 : f32
    %5 = vector.broadcast %cst_5 : f32 to vector<16x1xf32>
    %6 = arith.divf %4, %5 : vector<16x1xf32>
    %7 = vector.broadcast %6 : vector<16x1xf32> to vector<16x32xf32>
    %8 = arith.subf %0, %7 : vector<16x32xf32>
    %9 = arith.mulf %8, %8 : vector<16x32xf32>
    %cst_6 = arith.constant dense<0.000000e+00> : vector<16xf32>
    %10 = vector.multi_reduction <add>, %9, %cst_6 [1] : vector<16x32xf32> to vector<16xf32>
    %11 = vector.shape_cast %10 : vector<16xf32> to vector<16x1xf32>
    %cst_7 = arith.constant 3.200000e+01 : f32
    %12 = vector.broadcast %cst_7 : f32 to vector<16x1xf32>
    %13 = arith.divf %11, %12 : vector<16x1xf32>
    %cst_8 = arith.constant 9.99999974E-6 : f32
    %14 = vector.broadcast %cst_8 : f32 to vector<16x1xf32>
    %15 = arith.addf %13, %14 : vector<16x1xf32>
    %16 = math.rsqrt %15 : vector<16x1xf32>
    %17 = vector.broadcast %16 : vector<16x1xf32> to vector<16x32xf32>
    %18 = arith.mulf %8, %17 : vector<16x32xf32>
    %19 = vector.broadcast %1 : vector<1x32xf32> to vector<16x32xf32>
    %20 = arith.mulf %18, %19 : vector<16x32xf32>
    %21 = vector.broadcast %2 : vector<1x32xf32> to vector<16x32xf32>
    %22 = arith.addf %20, %21 : vector<16x32xf32>
    %c0_9 = arith.constant 0 : index
    %c0_10 = arith.constant 0 : index
    %23 = vector.load %arg5[%c0_9, %c0_10] : memref<32x64xf32, #tpu.memory_space<vmem>>, vector<32x64xf32>
    %cst_11 = arith.constant dense<0.000000e+00> : vector<16x64xf32>
    %24 = tpu.matmul %22, %23, %cst_11 {dimension_numbers = #tpu.dot_dimension_numbers<[1], [0], [0], [1], [0, 0, 1, 1], [], []>} : vector<16x32xf32>, vector<32x64xf32>, vector<16x64xf32> -> vector<16x64xf32>
    %c0_12 = arith.constant 0 : index
    %c0_13 = arith.constant 0 : index
    %25 = vector.load %arg6[%c0_12, %c0_13] : memref<1x64xf32, #tpu.memory_space<vmem>>, vector<1x64xf32>
    %26 = vector.broadcast %25 : vector<1x64xf32> to vector<16x64xf32>
    %27 = arith.addf %24, %26 : vector<16x64xf32>
    %28 = vector.extract_strided_slice %27 {offsets = [0, 0], sizes = [16, 16], strides = [1, 1]} : vector<16x64xf32> to vector<16x16xf32>
    %c0_14 = arith.constant 0 : index
    %c0_15 = arith.constant 0 : index
    %29 = vector.load %arg7[%c0_14, %c0_15] : memref<16x16xf32, #tpu.memory_space<vmem>>, vector<16x16xf32>
    tpu.vector_store %arg7[%c0_14, %c0_15], %28 {strides = array<i32>} : memref<16x16xf32, #tpu.memory_space<vmem>>, vector<16x16xf32>,
    %30 = vector.extract_strided_slice %27 {offsets = [0, 16], sizes = [16, 16], strides = [1, 1]} : vector<16x64xf32> to vector<16x16xf32>
    %c0_16 = arith.constant 0 : index
    %c0_17 = arith.constant 0 : index
    %31 = vector.load %arg8[%c0_16, %c0_17] : memref<16x16xf32, #tpu.memory_space<vmem>>, vector<16x16xf32>
    tpu.vector_store %arg8[%c0_16, %c0_17], %30 {strides = array<i32>} : memref<16x16xf32, #tpu.memory_space<vmem>>, vector<16x16xf32>,
    %32 = vector.extract_strided_slice %27 {offsets = [0, 32], sizes = [16, 32], strides = [1, 1]} : vector<16x64xf32> to vector<16x32xf32>
    %c0_18 = arith.constant 0 : index
    %c0_19 = arith.constant 0 : index
    %33 = vector.load %arg2[%c0_18, %c0_19] : memref<16x1xf32, #tpu.memory_space<vmem>>, vector<16x1xf32>
    %34 = vector.broadcast %33 : vector<16x1xf32> to vector<16x32xf32>
    %35 = arith.mulf %32, %34 : vector<16x32xf32>
    %c0_20 = arith.constant 0 : index
    %c0_21 = arith.constant 0 : index
    %36 = vector.load %arg9[%c0_20, %c0_21] : memref<16x32xf32, #tpu.memory_space<vmem>>, vector<16x32xf32>
    tpu.vector_store %arg9[%c0_20, %c0_21], %35 {strides = array<i32>} : memref<16x32xf32, #tpu.memory_space<vmem>>, vector<16x32xf32>,
    return
  }
  func.func @transform_0(%arg0: i32) -> (i32, i32) {
    %c0_i32 = arith.constant 0 : i32
    %c0_i32_0 = arith.constant 0 : i32
    return %arg0, %c0_i32 : i32, i32
  }
  func.func @transform_1(%arg0: i32) -> (i32, i32) {
    %c0_i32 = arith.constant 0 : i32
    %c0_i32_0 = arith.constant 0 : i32
    return %arg0, %c0_i32 : i32, i32
  }
  func.func @transform_2(%arg0: i32) -> (i32, i32) {
    %c0_i32 = arith.constant 0 : i32
    %c0_i32_0 = arith.constant 0 : i32
    %c0_i32_1 = arith.constant 0 : i32
    return %c0_i32, %c0_i32_0 : i32, i32
  }
  func.func @transform_3(%arg0: i32) -> (i32, i32) {
    %c0_i32 = arith.constant 0 : i32
    %c0_i32_0 = arith.constant 0 : i32
    %c0_i32_1 = arith.constant 0 : i32
    return %c0_i32, %c0_i32_0 : i32, i32
  }
  func.func @transform_4(%arg0: i32) -> (i32, i32) {
    %c0_i32 = arith.constant 0 : i32
    %c0_i32_0 = arith.constant 0 : i32
    %c0_i32_1 = arith.constant 0 : i32
    return %c0_i32, %c0_i32_0 : i32, i32
  }
  func.func @transform_5(%arg0: i32) -> (i32, i32) {
    %c0_i32 = arith.constant 0 : i32
    %c0_i32_0 = arith.constant 0 : i32
    %c0_i32_1 = arith.constant 0 : i32
    return %c0_i32, %c0_i32_0 : i32, i32
  }
  func.func @transform_6(%arg0: i32) -> (i32, i32) {
    %c0_i32 = arith.constant 0 : i32
    %c0_i32_0 = arith.constant 0 : i32
    return %arg0, %c0_i32 : i32, i32
  }
  func.func @transform_7(%arg0: i32) -> (i32, i32) {
    %c0_i32 = arith.constant 0 : i32
    %c0_i32_0 = arith.constant 0 : i32
    return %arg0, %c0_i32 : i32, i32
  }
  func.func @transform_8(%arg0: i32) -> (i32, i32) {
    %c0_i32 = arith.constant 0 : i32
    %c0_i32_0 = arith.constant 0 : i32
    return %arg0, %c0_i32 : i32, i32
  }
}

module attributes {stable_mosaic.version = 11 : i64} {
  func.func @_edge_attn_kernel(%arg0: i32, %arg1: i32, %arg2: memref<1x8x8x16xf32, #tpu.memory_space<vmem>>, %arg3: memref<1x8x8xf32, #tpu.memory_space<vmem>>, %arg4: memref<1x8x8xf32, #tpu.memory_space<vmem>>, %arg5: memref<1x8x16xf32, #tpu.memory_space<vmem>>, %arg6: memref<1x8x16xf32, #tpu.memory_space<vmem>>, %arg7: memref<1x8x32xf32, #tpu.memory_space<vmem>>, %arg8: memref<1x8x32xf32, #tpu.memory_space<vmem>>, %arg9: memref<1x8x1xf32, #tpu.memory_space<vmem>>, %arg10: memref<1x16xf32, #tpu.memory_space<vmem>>, %arg11: memref<1x16xf32, #tpu.memory_space<vmem>>, %arg12: memref<16x32xf32, #tpu.memory_space<vmem>>, %arg13: memref<1x32xf32, #tpu.memory_space<vmem>>, %arg14: memref<16x52xf32, #tpu.memory_space<vmem>>, %arg15: memref<1x52xf32, #tpu.memory_space<vmem>>, %arg16: memref<32x32xf32, #tpu.memory_space<vmem>>, %arg17: memref<1x32xf32, #tpu.memory_space<vmem>>, %arg18: memref<4x32xf32, #tpu.memory_space<vmem>>, %arg19: memref<1x8x8x16xf32, #tpu.memory_space<vmem>>, %arg20: memref<1x8x32xf32, #tpu.memory_space<vmem>>) attributes {dimension_semantics = [#tpu.dimension_semantics<parallel>, #tpu.dimension_semantics<parallel>], iteration_bounds = array<i64: 2, 1>, scalar_prefetch = 0 : i64, scratch_operands = 0 : i64, tpu.core_type = #tpu.core_type<tc>, window_params = [{transform_indices = @transform_0, window_bounds = array<i64: 1, 8, 8, 16>}, {transform_indices = @transform_1, window_bounds = array<i64: 1, 8, 8>}, {transform_indices = @transform_2, window_bounds = array<i64: 1, 8, 8>}, {transform_indices = @transform_3, window_bounds = array<i64: 1, 8, 16>}, {transform_indices = @transform_4, window_bounds = array<i64: 1, 8, 16>}, {transform_indices = @transform_5, window_bounds = array<i64: 1, 8, 32>}, {transform_indices = @transform_6, window_bounds = array<i64: 1, 8, 32>}, {transform_indices = @transform_7, window_bounds = array<i64: 1, 8, 1>}, {pipeline_mode = #tpu.pipeline_mode<synchronous>, transform_indices = @transform_8, window_bounds = array<i64: 1, 16>}, {pipeline_mode = #tpu.pipeline_mode<synchronous>, transform_indices = @transform_9, window_bounds = array<i64: 1, 16>}, {pipeline_mode = #tpu.pipeline_mode<synchronous>, transform_indices = @transform_10, window_bounds = array<i64: 16, 32>}, {pipeline_mode = #tpu.pipeline_mode<synchronous>, transform_indices = @transform_11, window_bounds = array<i64: 1, 32>}, {pipeline_mode = #tpu.pipeline_mode<synchronous>, transform_indices = @transform_12, window_bounds = array<i64: 16, 52>}, {pipeline_mode = #tpu.pipeline_mode<synchronous>, transform_indices = @transform_13, window_bounds = array<i64: 1, 52>}, {pipeline_mode = #tpu.pipeline_mode<synchronous>, transform_indices = @transform_14, window_bounds = array<i64: 32, 32>}, {pipeline_mode = #tpu.pipeline_mode<synchronous>, transform_indices = @transform_15, window_bounds = array<i64: 1, 32>}, {pipeline_mode = #tpu.pipeline_mode<synchronous>, transform_indices = @transform_16, window_bounds = array<i64: 4, 32>}, {transform_indices = @transform_17, window_bounds = array<i64: 1, 8, 8, 16>}, {transform_indices = @transform_18, window_bounds = array<i64: 1, 8, 32>}]} {
    %c0 = arith.constant 0 : index
    %c0_0 = arith.constant 0 : index
    %c0_1 = arith.constant 0 : index
    %c0_2 = arith.constant 0 : index
    %0 = vector.load %arg2[%c0, %c0_0, %c0_1, %c0_2] : memref<1x8x8x16xf32, #tpu.memory_space<vmem>>, vector<1x8x8x16xf32>
    %1 = vector.shape_cast %0 : vector<1x8x8x16xf32> to vector<8x8x16xf32>
    %c0_3 = arith.constant 0 : index
    %c0_4 = arith.constant 0 : index
    %c0_5 = arith.constant 0 : index
    %2 = vector.load %arg3[%c0_3, %c0_4, %c0_5] : memref<1x8x8xf32, #tpu.memory_space<vmem>>, vector<1x8x8xf32>
    %3 = vector.shape_cast %2 : vector<1x8x8xf32> to vector<8x8xf32>
    %4 = vector.shape_cast %3 : vector<8x8xf32> to vector<8x8x1xf32>
    %c0_6 = arith.constant 0 : index
    %c0_7 = arith.constant 0 : index
    %c0_8 = arith.constant 0 : index
    %5 = vector.load %arg4[%c0_6, %c0_7, %c0_8] : memref<1x8x8xf32, #tpu.memory_space<vmem>>, vector<1x8x8xf32>
    %6 = vector.shape_cast %5 : vector<1x8x8xf32> to vector<8x8xf32>
    %7 = vector.shape_cast %6 : vector<8x8xf32> to vector<8x8x1xf32>
    %c0_9 = arith.constant 0 : index
    %c0_10 = arith.constant 0 : index
    %8 = vector.load %arg10[%c0_9, %c0_10] : memref<1x16xf32, #tpu.memory_space<vmem>>, vector<1x16xf32>
    %c0_11 = arith.constant 0 : index
    %c0_12 = arith.constant 0 : index
    %9 = vector.load %arg11[%c0_11, %c0_12] : memref<1x16xf32, #tpu.memory_space<vmem>>, vector<1x16xf32>
    %cst = arith.constant dense<0.000000e+00> : vector<8x8xf32>
    %10 = vector.multi_reduction <add>, %1, %cst [2] : vector<8x8x16xf32> to vector<8x8xf32>
    %11 = vector.shape_cast %10 : vector<8x8xf32> to vector<8x8x1xf32>
    %cst_13 = arith.constant 1.600000e+01 : f32
    %12 = vector.broadcast %cst_13 : f32 to vector<8x8x1xf32>
    %13 = arith.divf %11, %12 : vector<8x8x1xf32>
    %14 = vector.broadcast %13 : vector<8x8x1xf32> to vector<8x8x16xf32>
    %15 = arith.subf %1, %14 : vector<8x8x16xf32>
    %16 = arith.mulf %15, %15 : vector<8x8x16xf32>
    %cst_14 = arith.constant dense<0.000000e+00> : vector<8x8xf32>
    %17 = vector.multi_reduction <add>, %16, %cst_14 [2] : vector<8x8x16xf32> to vector<8x8xf32>
    %18 = vector.shape_cast %17 : vector<8x8xf32> to vector<8x8x1xf32>
    %cst_15 = arith.constant 1.600000e+01 : f32
    %19 = vector.broadcast %cst_15 : f32 to vector<8x8x1xf32>
    %20 = arith.divf %18, %19 : vector<8x8x1xf32>
    %cst_16 = arith.constant 9.99999974E-6 : f32
    %21 = vector.broadcast %cst_16 : f32 to vector<8x8x1xf32>
    %22 = arith.addf %20, %21 : vector<8x8x1xf32>
    %23 = math.rsqrt %22 : vector<8x8x1xf32>
    %24 = vector.broadcast %23 : vector<8x8x1xf32> to vector<8x8x16xf32>
    %25 = arith.mulf %15, %24 : vector<8x8x16xf32>
    %26 = vector.shape_cast %8 : vector<1x16xf32> to vector<1x1x16xf32>
    %27 = vector.broadcast %26 : vector<1x1x16xf32> to vector<8x8x16xf32>
    %28 = arith.mulf %25, %27 : vector<8x8x16xf32>
    %29 = vector.shape_cast %9 : vector<1x16xf32> to vector<1x1x16xf32>
    %30 = vector.broadcast %29 : vector<1x1x16xf32> to vector<8x8x16xf32>
    %31 = arith.addf %28, %30 : vector<8x8x16xf32>
    %32 = vector.shape_cast %31 : vector<8x8x16xf32> to vector<64x16xf32>
    %c0_17 = arith.constant 0 : index
    %c0_18 = arith.constant 0 : index
    %33 = vector.load %arg12[%c0_17, %c0_18] : memref<16x32xf32, #tpu.memory_space<vmem>>, vector<16x32xf32>
    %cst_19 = arith.constant dense<0.000000e+00> : vector<64x32xf32>
    %34 = tpu.matmul %32, %33, %cst_19 {dimension_numbers = #tpu.dot_dimension_numbers<[1], [0], [0], [1], [0, 0, 1, 1], [], []>} : vector<64x16xf32>, vector<16x32xf32>, vector<64x32xf32> -> vector<64x32xf32>
    %c0_20 = arith.constant 0 : index
    %c0_21 = arith.constant 0 : index
    %35 = vector.load %arg13[%c0_20, %c0_21] : memref<1x32xf32, #tpu.memory_space<vmem>>, vector<1x32xf32>
    %36 = vector.broadcast %35 : vector<1x32xf32> to vector<64x32xf32>
    %37 = arith.addf %34, %36 : vector<64x32xf32>
    %38 = vector.extract_strided_slice %37 {offsets = [0, 0], sizes = [64, 16], strides = [1, 1]} : vector<64x32xf32> to vector<64x16xf32>
    %39 = vector.shape_cast %38 : vector<64x16xf32> to vector<8x8x16xf32>
    %40 = vector.extract_strided_slice %37 {offsets = [0, 16], sizes = [64, 16], strides = [1, 1]} : vector<64x32xf32> to vector<64x16xf32>
    %41 = vector.shape_cast %40 : vector<64x16xf32> to vector<8x8x16xf32>
    %c0_22 = arith.constant 0 : index
    %c0_23 = arith.constant 0 : index
    %c0_24 = arith.constant 0 : index
    %42 = vector.load %arg5[%c0_22, %c0_23, %c0_24] : memref<1x8x16xf32, #tpu.memory_space<vmem>>, vector<1x8x16xf32>
    %43 = vector.shape_cast %42 : vector<1x8x16xf32> to vector<8x16xf32>
    %44 = vector.shape_cast %43 : vector<8x16xf32> to vector<8x1x16xf32>
    %c0_25 = arith.constant 0 : index
    %c0_26 = arith.constant 0 : index
    %c0_27 = arith.constant 0 : index
    %45 = vector.load %arg6[%c0_25, %c0_26, %c0_27] : memref<1x8x16xf32, #tpu.memory_space<vmem>>, vector<1x8x16xf32>
    %46 = vector.shape_cast %45 : vector<1x8x16xf32> to vector<8x16xf32>
    %47 = vector.shape_cast %46 : vector<8x16xf32> to vector<1x8x16xf32>
    %48 = vector.broadcast %44 : vector<8x1x16xf32> to vector<8x8x16xf32>
    %49 = vector.broadcast %47 : vector<1x8x16xf32> to vector<8x8x16xf32>
    %50 = arith.addf %48, %49 : vector<8x8x16xf32>
    %51 = arith.negf %50 : vector<8x8x16xf32>
    %52 = math.exp %51 : vector<8x8x16xf32>
    %cst_28 = arith.constant 1.000000e+00 : f32
    %53 = vector.broadcast %cst_28 : f32 to vector<8x8x16xf32>
    %54 = arith.addf %53, %52 : vector<8x8x16xf32>
    %55 = arith.divf %53, %54 : vector<8x8x16xf32>
    %56 = arith.mulf %50, %55 : vector<8x8x16xf32>
    %57 = arith.mulf %56, %39 : vector<8x8x16xf32>
    %58 = arith.addf %41, %57 : vector<8x8x16xf32>
    %59 = arith.addf %58, %50 : vector<8x8x16xf32>
    %60 = arith.negf %59 : vector<8x8x16xf32>
    %61 = math.exp %60 : vector<8x8x16xf32>
    %cst_29 = arith.constant 1.000000e+00 : f32
    %62 = vector.broadcast %cst_29 : f32 to vector<8x8x16xf32>
    %63 = arith.addf %62, %61 : vector<8x8x16xf32>
    %64 = arith.divf %62, %63 : vector<8x8x16xf32>
    %65 = arith.mulf %59, %64 : vector<8x8x16xf32>
    %66 = vector.broadcast %4 : vector<8x8x1xf32> to vector<8x8x16xf32>
    %67 = arith.mulf %65, %66 : vector<8x8x16xf32>
    %68 = vector.shape_cast %67 : vector<8x8x16xf32> to vector<64x16xf32>
    %c0_30 = arith.constant 0 : index
    %c0_31 = arith.constant 0 : index
    %69 = vector.load %arg14[%c0_30, %c0_31] : memref<16x52xf32, #tpu.memory_space<vmem>>, vector<16x52xf32>
    %cst_32 = arith.constant dense<0.000000e+00> : vector<64x52xf32>
    %70 = tpu.matmul %68, %69, %cst_32 {dimension_numbers = #tpu.dot_dimension_numbers<[1], [0], [0], [1], [0, 0, 1, 1], [], []>} : vector<64x16xf32>, vector<16x52xf32>, vector<64x52xf32> -> vector<64x52xf32>
    %c0_33 = arith.constant 0 : index
    %c0_34 = arith.constant 0 : index
    %71 = vector.load %arg15[%c0_33, %c0_34] : memref<1x52xf32, #tpu.memory_space<vmem>>, vector<1x52xf32>
    %72 = vector.broadcast %71 : vector<1x52xf32> to vector<64x52xf32>
    %73 = arith.addf %70, %72 : vector<64x52xf32>
    %74 = vector.extract_strided_slice %73 {offsets = [0, 0], sizes = [64, 16], strides = [1, 1]} : vector<64x52xf32> to vector<64x16xf32>
    %75 = vector.shape_cast %74 : vector<64x16xf32> to vector<8x8x16xf32>
    %76 = vector.extract_strided_slice %73 {offsets = [0, 16], sizes = [64, 32], strides = [1, 1]} : vector<64x52xf32> to vector<64x32xf32>
    %77 = vector.shape_cast %76 : vector<64x32xf32> to vector<8x8x32xf32>
    %78 = vector.broadcast %4 : vector<8x8x1xf32> to vector<8x8x32xf32>
    %79 = arith.mulf %77, %78 : vector<8x8x32xf32>
    %80 = vector.extract_strided_slice %73 {offsets = [0, 48], sizes = [64, 4], strides = [1, 1]} : vector<64x52xf32> to vector<64x4xf32>
    %81 = vector.shape_cast %80 : vector<64x4xf32> to vector<8x8x4xf32>
    %82 = vector.broadcast %4 : vector<8x8x1xf32> to vector<8x8x16xf32>
    %83 = arith.mulf %75, %82 : vector<8x8x16xf32>
    %84 = arith.addf %1, %83 : vector<8x8x16xf32>
    %c0_35 = arith.constant 0 : index
    %c0_36 = arith.constant 0 : index
    %c0_37 = arith.constant 0 : index
    %c0_38 = arith.constant 0 : index
    %85 = vector.load %arg19[%c0_35, %c0_36, %c0_37, %c0_38] : memref<1x8x8x16xf32, #tpu.memory_space<vmem>>, vector<1x8x8x16xf32>
    %86 = vector.shape_cast %85 : vector<1x8x8x16xf32> to vector<8x8x16xf32>
    %87 = vector.shape_cast %84 : vector<8x8x16xf32> to vector<1x8x8x16xf32>
    tpu.vector_store %arg19[%c0_35, %c0_36, %c0_37, %c0_38], %87 {strides = array<i32>} : memref<1x8x8x16xf32, #tpu.memory_space<vmem>>, vector<1x8x8x16xf32>,
    %cst_39 = arith.constant 0.000000e+00 : f32
    %88 = vector.broadcast %cst_39 : f32 to vector<8x8x1xf32>
    %89 = arith.cmpf ogt, %7, %88 : vector<8x8x1xf32>
    %cst_40 = arith.constant -1.000000e+30 : f32
    %90 = vector.shape_cast %89 : vector<8x8x1xi1> to vector<8x8x1xi1>
    %91 = vector.broadcast %90 : vector<8x8x1xi1> to vector<8x8x4xi1>
    %92 = vector.broadcast %cst_40 : f32 to vector<8x8x4xf32>
    %93 = arith.select %91, %81, %92 : vector<8x8x4xi1>, vector<8x8x4xf32>
    %cst_41 = arith.constant dense<0xFF800000> : vector<8x4xf32>
    %94 = vector.multi_reduction <maximumf>, %93, %cst_41 [1] : vector<8x8x4xf32> to vector<8x4xf32>
    %95 = vector.shape_cast %94 : vector<8x4xf32> to vector<8x1x4xf32>
    %96 = vector.broadcast %95 : vector<8x1x4xf32> to vector<8x8x4xf32>
    %97 = arith.subf %93, %96 : vector<8x8x4xf32>
    %98 = math.exp %97 : vector<8x8x4xf32>
    %99 = vector.broadcast %7 : vector<8x8x1xf32> to vector<8x8x4xf32>
    %100 = arith.mulf %98, %99 : vector<8x8x4xf32>
    %cst_42 = arith.constant dense<0.000000e+00> : vector<8x4xf32>
    %101 = vector.multi_reduction <add>, %100, %cst_42 [1] : vector<8x8x4xf32> to vector<8x4xf32>
    %102 = vector.shape_cast %101 : vector<8x4xf32> to vector<8x1x4xf32>
    %cst_43 = arith.constant 0.000000e+00 : f32
    %103 = vector.broadcast %cst_43 : f32 to vector<8x1x4xf32>
    %104 = arith.cmpf ogt, %102, %103 : vector<8x1x4xf32>
    %cst_44 = arith.constant 1.000000e+00 : f32
    %105 = vector.broadcast %cst_44 : f32 to vector<8x1x4xf32>
    %106 = arith.select %104, %102, %105 : vector<8x1x4xi1>, vector<8x1x4xf32>
    %107 = vector.broadcast %106 : vector<8x1x4xf32> to vector<8x8x4xf32>
    %108 = arith.divf %100, %107 : vector<8x8x4xf32>
    %109 = vector.shape_cast %108 : vector<8x8x4xf32> to vector<64x4xf32>
    %c0_45 = arith.constant 0 : index
    %c0_46 = arith.constant 0 : index
    %110 = vector.load %arg18[%c0_45, %c0_46] : memref<4x32xf32, #tpu.memory_space<vmem>>, vector<4x32xf32>
    %cst_47 = arith.constant dense<0.000000e+00> : vector<64x32xf32>
    %111 = tpu.matmul %109, %110, %cst_47 {dimension_numbers = #tpu.dot_dimension_numbers<[1], [0], [0], [1], [0, 0, 1, 1], [], []>} : vector<64x4xf32>, vector<4x32xf32>, vector<64x32xf32> -> vector<64x32xf32>
    %112 = vector.shape_cast %111 : vector<64x32xf32> to vector<8x8x32xf32>
    %c0_48 = arith.constant 0 : index
    %c0_49 = arith.constant 0 : index
    %c0_50 = arith.constant 0 : index
    %113 = vector.load %arg7[%c0_48, %c0_49, %c0_50] : memref<1x8x32xf32, #tpu.memory_space<vmem>>, vector<1x8x32xf32>
    %114 = vector.shape_cast %113 : vector<1x8x32xf32> to vector<8x32xf32>
    %115 = vector.shape_cast %114 : vector<8x32xf32> to vector<1x8x32xf32>
    %116 = vector.broadcast %115 : vector<1x8x32xf32> to vector<8x8x32xf32>
    %117 = arith.addf %116, %79 : vector<8x8x32xf32>
    %118 = arith.mulf %112, %117 : vector<8x8x32xf32>
    %cst_51 = arith.constant dense<0.000000e+00> : vector<8x32xf32>
    %119 = vector.multi_reduction <add>, %118, %cst_51 [1] : vector<8x8x32xf32> to vector<8x32xf32>
    %c0_52 = arith.constant 0 : index
    %c0_53 = arith.constant 0 : index
    %120 = vector.load %arg16[%c0_52, %c0_53] : memref<32x32xf32, #tpu.memory_space<vmem>>, vector<32x32xf32>
    %cst_54 = arith.constant dense<0.000000e+00> : vector<8x32xf32>
    %121 = tpu.matmul %119, %120, %cst_54 {dimension_numbers = #tpu.dot_dimension_numbers<[1], [0], [0], [1], [0, 0, 1, 1], [], []>} : vector<8x32xf32>, vector<32x32xf32>, vector<8x32xf32> -> vector<8x32xf32>
    %c0_55 = arith.constant 0 : index
    %c0_56 = arith.constant 0 : index
    %122 = vector.load %arg17[%c0_55, %c0_56] : memref<1x32xf32, #tpu.memory_space<vmem>>, vector<1x32xf32>
    %123 = vector.broadcast %122 : vector<1x32xf32> to vector<8x32xf32>
    %124 = arith.addf %121, %123 : vector<8x32xf32>
    %c0_57 = arith.constant 0 : index
    %c0_58 = arith.constant 0 : index
    %c0_59 = arith.constant 0 : index
    %125 = vector.load %arg9[%c0_57, %c0_58, %c0_59] : memref<1x8x1xf32, #tpu.memory_space<vmem>>, vector<1x8x1xf32>
    %126 = vector.shape_cast %125 : vector<1x8x1xf32> to vector<8x1xf32>
    %127 = vector.broadcast %126 : vector<8x1xf32> to vector<8x32xf32>
    %128 = arith.mulf %124, %127 : vector<8x32xf32>
    %c0_60 = arith.constant 0 : index
    %c0_61 = arith.constant 0 : index
    %c0_62 = arith.constant 0 : index
    %129 = vector.load %arg8[%c0_60, %c0_61, %c0_62] : memref<1x8x32xf32, #tpu.memory_space<vmem>>, vector<1x8x32xf32>
    %130 = vector.shape_cast %129 : vector<1x8x32xf32> to vector<8x32xf32>
    %131 = arith.addf %130, %128 : vector<8x32xf32>
    %c0_63 = arith.constant 0 : index
    %c0_64 = arith.constant 0 : index
    %c0_65 = arith.constant 0 : index
    %132 = vector.load %arg20[%c0_63, %c0_64, %c0_65] : memref<1x8x32xf32, #tpu.memory_space<vmem>>, vector<1x8x32xf32>
    %133 = vector.shape_cast %132 : vector<1x8x32xf32> to vector<8x32xf32>
    %134 = vector.shape_cast %131 : vector<8x32xf32> to vector<1x8x32xf32>
    tpu.vector_store %arg20[%c0_63, %c0_64, %c0_65], %134 {strides = array<i32>} : memref<1x8x32xf32, #tpu.memory_space<vmem>>, vector<1x8x32xf32>,
    return
  }
  func.func @transform_0(%arg0: i32, %arg1: i32) -> (i32, i32, i32, i32) {
    %c0_i32 = arith.constant 0 : i32
    %c0_i32_0 = arith.constant 0 : i32
    %c0_i32_1 = arith.constant 0 : i32
    return %arg0, %arg1, %c0_i32, %c0_i32_0 : i32, i32, i32, i32
  }
  func.func @transform_1(%arg0: i32, %arg1: i32) -> (i32, i32, i32) {
    %c0_i32 = arith.constant 0 : i32
    %c0_i32_0 = arith.constant 0 : i32
    return %arg0, %arg1, %c0_i32 : i32, i32, i32
  }
  func.func @transform_2(%arg0: i32, %arg1: i32) -> (i32, i32, i32) {
    %c0_i32 = arith.constant 0 : i32
    %c0_i32_0 = arith.constant 0 : i32
    return %arg0, %arg1, %c0_i32 : i32, i32, i32
  }
  func.func @transform_3(%arg0: i32, %arg1: i32) -> (i32, i32, i32) {
    %c0_i32 = arith.constant 0 : i32
    %c0_i32_0 = arith.constant 0 : i32
    return %arg0, %arg1, %c0_i32 : i32, i32, i32
  }
  func.func @transform_4(%arg0: i32, %arg1: i32) -> (i32, i32, i32) {
    %c0_i32 = arith.constant 0 : i32
    %c0_i32_0 = arith.constant 0 : i32
    %c0_i32_1 = arith.constant 0 : i32
    return %arg0, %c0_i32, %c0_i32_0 : i32, i32, i32
  }
  func.func @transform_5(%arg0: i32, %arg1: i32) -> (i32, i32, i32) {
    %c0_i32 = arith.constant 0 : i32
    %c0_i32_0 = arith.constant 0 : i32
    %c0_i32_1 = arith.constant 0 : i32
    return %arg0, %c0_i32, %c0_i32_0 : i32, i32, i32
  }
  func.func @transform_6(%arg0: i32, %arg1: i32) -> (i32, i32, i32) {
    %c0_i32 = arith.constant 0 : i32
    %c0_i32_0 = arith.constant 0 : i32
    return %arg0, %arg1, %c0_i32 : i32, i32, i32
  }
  func.func @transform_7(%arg0: i32, %arg1: i32) -> (i32, i32, i32) {
    %c0_i32 = arith.constant 0 : i32
    %c0_i32_0 = arith.constant 0 : i32
    return %arg0, %arg1, %c0_i32 : i32, i32, i32
  }
  func.func @transform_8(%arg0: i32, %arg1: i32) -> (i32, i32) {
    %c0_i32 = arith.constant 0 : i32
    %c0_i32_0 = arith.constant 0 : i32
    %c0_i32_1 = arith.constant 0 : i32
    return %c0_i32, %c0_i32_0 : i32, i32
  }
  func.func @transform_9(%arg0: i32, %arg1: i32) -> (i32, i32) {
    %c0_i32 = arith.constant 0 : i32
    %c0_i32_0 = arith.constant 0 : i32
    %c0_i32_1 = arith.constant 0 : i32
    return %c0_i32, %c0_i32_0 : i32, i32
  }
  func.func @transform_10(%arg0: i32, %arg1: i32) -> (i32, i32) {
    %c0_i32 = arith.constant 0 : i32
    %c0_i32_0 = arith.constant 0 : i32
    %c0_i32_1 = arith.constant 0 : i32
    return %c0_i32, %c0_i32_0 : i32, i32
  }
  func.func @transform_11(%arg0: i32, %arg1: i32) -> (i32, i32) {
    %c0_i32 = arith.constant 0 : i32
    %c0_i32_0 = arith.constant 0 : i32
    %c0_i32_1 = arith.constant 0 : i32
    return %c0_i32, %c0_i32_0 : i32, i32
  }
  func.func @transform_12(%arg0: i32, %arg1: i32) -> (i32, i32) {
    %c0_i32 = arith.constant 0 : i32
    %c0_i32_0 = arith.constant 0 : i32
    %c0_i32_1 = arith.constant 0 : i32
    return %c0_i32, %c0_i32_0 : i32, i32
  }
  func.func @transform_13(%arg0: i32, %arg1: i32) -> (i32, i32) {
    %c0_i32 = arith.constant 0 : i32
    %c0_i32_0 = arith.constant 0 : i32
    %c0_i32_1 = arith.constant 0 : i32
    return %c0_i32, %c0_i32_0 : i32, i32
  }
  func.func @transform_14(%arg0: i32, %arg1: i32) -> (i32, i32) {
    %c0_i32 = arith.constant 0 : i32
    %c0_i32_0 = arith.constant 0 : i32
    %c0_i32_1 = arith.constant 0 : i32
    return %c0_i32, %c0_i32_0 : i32, i32
  }
  func.func @transform_15(%arg0: i32, %arg1: i32) -> (i32, i32) {
    %c0_i32 = arith.constant 0 : i32
    %c0_i32_0 = arith.constant 0 : i32
    %c0_i32_1 = arith.constant 0 : i32
    return %c0_i32, %c0_i32_0 : i32, i32
  }
  func.func @transform_16(%arg0: i32, %arg1: i32) -> (i32, i32) {
    %c0_i32 = arith.constant 0 : i32
    %c0_i32_0 = arith.constant 0 : i32
    %c0_i32_1 = arith.constant 0 : i32
    return %c0_i32, %c0_i32_0 : i32, i32
  }
  func.func @transform_17(%arg0: i32, %arg1: i32) -> (i32, i32, i32, i32) {
    %c0_i32 = arith.constant 0 : i32
    %c0_i32_0 = arith.constant 0 : i32
    %c0_i32_1 = arith.constant 0 : i32
    return %arg0, %arg1, %c0_i32, %c0_i32_0 : i32, i32, i32, i32
  }
  func.func @transform_18(%arg0: i32, %arg1: i32) -> (i32, i32, i32) {
    %c0_i32 = arith.constant 0 : i32
    %c0_i32_0 = arith.constant 0 : i32
    return %arg0, %arg1, %c0_i32 : i32, i32, i32
  }
}

module attributes {stable_mosaic.version = 11 : i64} {
  func.func @_ppgn_pre_kernel(%arg0: i32, %arg1: i32, %arg2: memref<1x8x8x16xf32, #tpu.memory_space<vmem>>, %arg3: memref<1x8x8xf32, #tpu.memory_space<vmem>>, %arg4: memref<1x16xf32, #tpu.memory_space<vmem>>, %arg5: memref<1x16xf32, #tpu.memory_space<vmem>>, %arg6: memref<16x32xf32, #tpu.memory_space<vmem>>, %arg7: memref<1x32xf32, #tpu.memory_space<vmem>>, %arg8: memref<16x16xf32, #tpu.memory_space<vmem>>, %arg9: memref<1x16xf32, #tpu.memory_space<vmem>>, %arg10: memref<16x16xf32, #tpu.memory_space<vmem>>, %arg11: memref<1x16xf32, #tpu.memory_space<vmem>>, %arg12: memref<1x8x8x16xf32, #tpu.memory_space<vmem>>, %arg13: memref<1x8x8x16xf32, #tpu.memory_space<vmem>>) attributes {dimension_semantics = [#tpu.dimension_semantics<parallel>, #tpu.dimension_semantics<parallel>], iteration_bounds = array<i64: 2, 1>, scalar_prefetch = 0 : i64, scratch_operands = 0 : i64, tpu.core_type = #tpu.core_type<tc>, window_params = [{transform_indices = @transform_0, window_bounds = array<i64: 1, 8, 8, 16>}, {transform_indices = @transform_1, window_bounds = array<i64: 1, 8, 8>}, {pipeline_mode = #tpu.pipeline_mode<synchronous>, transform_indices = @transform_2, window_bounds = array<i64: 1, 16>}, {pipeline_mode = #tpu.pipeline_mode<synchronous>, transform_indices = @transform_3, window_bounds = array<i64: 1, 16>}, {pipeline_mode = #tpu.pipeline_mode<synchronous>, transform_indices = @transform_4, window_bounds = array<i64: 16, 32>}, {pipeline_mode = #tpu.pipeline_mode<synchronous>, transform_indices = @transform_5, window_bounds = array<i64: 1, 32>}, {pipeline_mode = #tpu.pipeline_mode<synchronous>, transform_indices = @transform_6, window_bounds = array<i64: 16, 16>}, {pipeline_mode = #tpu.pipeline_mode<synchronous>, transform_indices = @transform_7, window_bounds = array<i64: 1, 16>}, {pipeline_mode = #tpu.pipeline_mode<synchronous>, transform_indices = @transform_8, window_bounds = array<i64: 16, 16>}, {pipeline_mode = #tpu.pipeline_mode<synchronous>, transform_indices = @transform_9, window_bounds = array<i64: 1, 16>}, {transform_indices = @transform_10, window_bounds = array<i64: 1, 8, 8, 16>}, {transform_indices = @transform_11, window_bounds = array<i64: 1, 8, 8, 16>}]} {
    %c0 = arith.constant 0 : index
    %c0_0 = arith.constant 0 : index
    %c0_1 = arith.constant 0 : index
    %0 = vector.load %arg3[%c0, %c0_0, %c0_1] : memref<1x8x8xf32, #tpu.memory_space<vmem>>, vector<1x8x8xf32>
    %1 = vector.shape_cast %0 : vector<1x8x8xf32> to vector<8x8xf32>
    %2 = vector.shape_cast %1 : vector<8x8xf32> to vector<8x8x1xf32>
    %c0_2 = arith.constant 0 : index
    %c0_3 = arith.constant 0 : index
    %c0_4 = arith.constant 0 : index
    %c0_5 = arith.constant 0 : index
    %3 = vector.load %arg2[%c0_2, %c0_3, %c0_4, %c0_5] : memref<1x8x8x16xf32, #tpu.memory_space<vmem>>, vector<1x8x8x16xf32>
    %4 = vector.shape_cast %3 : vector<1x8x8x16xf32> to vector<8x8x16xf32>
    %c0_6 = arith.constant 0 : index
    %c0_7 = arith.constant 0 : index
    %5 = vector.load %arg4[%c0_6, %c0_7] : memref<1x16xf32, #tpu.memory_space<vmem>>, vector<1x16xf32>
    %c0_8 = arith.constant 0 : index
    %c0_9 = arith.constant 0 : index
    %6 = vector.load %arg5[%c0_8, %c0_9] : memref<1x16xf32, #tpu.memory_space<vmem>>, vector<1x16xf32>
    %cst = arith.constant dense<0.000000e+00> : vector<8x8xf32>
    %7 = vector.multi_reduction <add>, %4, %cst [2] : vector<8x8x16xf32> to vector<8x8xf32>
    %8 = vector.shape_cast %7 : vector<8x8xf32> to vector<8x8x1xf32>
    %cst_10 = arith.constant 1.600000e+01 : f32
    %9 = vector.broadcast %cst_10 : f32 to vector<8x8x1xf32>
    %10 = arith.divf %8, %9 : vector<8x8x1xf32>
    %11 = vector.broadcast %10 : vector<8x8x1xf32> to vector<8x8x16xf32>
    %12 = arith.subf %4, %11 : vector<8x8x16xf32>
    %13 = arith.mulf %12, %12 : vector<8x8x16xf32>
    %cst_11 = arith.constant dense<0.000000e+00> : vector<8x8xf32>
    %14 = vector.multi_reduction <add>, %13, %cst_11 [2] : vector<8x8x16xf32> to vector<8x8xf32>
    %15 = vector.shape_cast %14 : vector<8x8xf32> to vector<8x8x1xf32>
    %cst_12 = arith.constant 1.600000e+01 : f32
    %16 = vector.broadcast %cst_12 : f32 to vector<8x8x1xf32>
    %17 = arith.divf %15, %16 : vector<8x8x1xf32>
    %cst_13 = arith.constant 9.99999974E-6 : f32
    %18 = vector.broadcast %cst_13 : f32 to vector<8x8x1xf32>
    %19 = arith.addf %17, %18 : vector<8x8x1xf32>
    %20 = math.rsqrt %19 : vector<8x8x1xf32>
    %21 = vector.broadcast %20 : vector<8x8x1xf32> to vector<8x8x16xf32>
    %22 = arith.mulf %12, %21 : vector<8x8x16xf32>
    %23 = vector.shape_cast %5 : vector<1x16xf32> to vector<1x1x16xf32>
    %24 = vector.broadcast %23 : vector<1x1x16xf32> to vector<8x8x16xf32>
    %25 = arith.mulf %22, %24 : vector<8x8x16xf32>
    %26 = vector.shape_cast %6 : vector<1x16xf32> to vector<1x1x16xf32>
    %27 = vector.broadcast %26 : vector<1x1x16xf32> to vector<8x8x16xf32>
    %28 = arith.addf %25, %27 : vector<8x8x16xf32>
    %29 = vector.shape_cast %28 : vector<8x8x16xf32> to vector<64x16xf32>
    %c0_14 = arith.constant 0 : index
    %c0_15 = arith.constant 0 : index
    %30 = vector.load %arg6[%c0_14, %c0_15] : memref<16x32xf32, #tpu.memory_space<vmem>>, vector<16x32xf32>
    %cst_16 = arith.constant dense<0.000000e+00> : vector<64x32xf32>
    %31 = tpu.matmul %29, %30, %cst_16 {dimension_numbers = #tpu.dot_dimension_numbers<[1], [0], [0], [1], [0, 0, 1, 1], [], []>} : vector<64x16xf32>, vector<16x32xf32>, vector<64x32xf32> -> vector<64x32xf32>
    %c0_17 = arith.constant 0 : index
    %c0_18 = arith.constant 0 : index
    %32 = vector.load %arg7[%c0_17, %c0_18] : memref<1x32xf32, #tpu.memory_space<vmem>>, vector<1x32xf32>
    %33 = vector.broadcast %32 : vector<1x32xf32> to vector<64x32xf32>
    %34 = arith.addf %31, %33 : vector<64x32xf32>
    %35 = arith.negf %34 : vector<64x32xf32>
    %36 = math.exp %35 : vector<64x32xf32>
    %cst_19 = arith.constant 1.000000e+00 : f32
    %37 = vector.broadcast %cst_19 : f32 to vector<64x32xf32>
    %38 = arith.addf %37, %36 : vector<64x32xf32>
    %39 = arith.divf %37, %38 : vector<64x32xf32>
    %40 = arith.mulf %34, %39 : vector<64x32xf32>
    %41 = vector.extract_strided_slice %40 {offsets = [0, 0], sizes = [64, 16], strides = [1, 1]} : vector<64x32xf32> to vector<64x16xf32>
    %c0_20 = arith.constant 0 : index
    %c0_21 = arith.constant 0 : index
    %42 = vector.load %arg8[%c0_20, %c0_21] : memref<16x16xf32, #tpu.memory_space<vmem>>, vector<16x16xf32>
    %cst_22 = arith.constant dense<0.000000e+00> : vector<64x16xf32>
    %43 = tpu.matmul %41, %42, %cst_22 {dimension_numbers = #tpu.dot_dimension_numbers<[1], [0], [0], [1], [0, 0, 1, 1], [], []>} : vector<64x16xf32>, vector<16x16xf32>, vector<64x16xf32> -> vector<64x16xf32>
    %c0_23 = arith.constant 0 : index
    %c0_24 = arith.constant 0 : index
    %44 = vector.load %arg9[%c0_23, %c0_24] : memref<1x16xf32, #tpu.memory_space<vmem>>, vector<1x16xf32>
    %45 = vector.broadcast %44 : vector<1x16xf32> to vector<64x16xf32>
    %46 = arith.addf %43, %45 : vector<64x16xf32>
    %47 = vector.extract_strided_slice %40 {offsets = [0, 16], sizes = [64, 16], strides = [1, 1]} : vector<64x32xf32> to vector<64x16xf32>
    %c0_25 = arith.constant 0 : index
    %c0_26 = arith.constant 0 : index
    %48 = vector.load %arg10[%c0_25, %c0_26] : memref<16x16xf32, #tpu.memory_space<vmem>>, vector<16x16xf32>
    %cst_27 = arith.constant dense<0.000000e+00> : vector<64x16xf32>
    %49 = tpu.matmul %47, %48, %cst_27 {dimension_numbers = #tpu.dot_dimension_numbers<[1], [0], [0], [1], [0, 0, 1, 1], [], []>} : vector<64x16xf32>, vector<16x16xf32>, vector<64x16xf32> -> vector<64x16xf32>
    %c0_28 = arith.constant 0 : index
    %c0_29 = arith.constant 0 : index
    %50 = vector.load %arg11[%c0_28, %c0_29] : memref<1x16xf32, #tpu.memory_space<vmem>>, vector<1x16xf32>
    %51 = vector.broadcast %50 : vector<1x16xf32> to vector<64x16xf32>
    %52 = arith.addf %49, %51 : vector<64x16xf32>
    %53 = arith.negf %46 : vector<64x16xf32>
    %54 = math.exp %53 : vector<64x16xf32>
    %cst_30 = arith.constant 1.000000e+00 : f32
    %55 = vector.broadcast %cst_30 : f32 to vector<64x16xf32>
    %56 = arith.addf %55, %54 : vector<64x16xf32>
    %57 = arith.divf %55, %56 : vector<64x16xf32>
    %58 = arith.mulf %46, %57 : vector<64x16xf32>
    %59 = vector.shape_cast %58 : vector<64x16xf32> to vector<8x8x16xf32>
    %60 = vector.broadcast %2 : vector<8x8x1xf32> to vector<8x8x16xf32>
    %61 = arith.mulf %59, %60 : vector<8x8x16xf32>
    %c0_31 = arith.constant 0 : index
    %c0_32 = arith.constant 0 : index
    %c0_33 = arith.constant 0 : index
    %c0_34 = arith.constant 0 : index
    %62 = vector.load %arg12[%c0_31, %c0_32, %c0_33, %c0_34] : memref<1x8x8x16xf32, #tpu.memory_space<vmem>>, vector<1x8x8x16xf32>
    %63 = vector.shape_cast %62 : vector<1x8x8x16xf32> to vector<8x8x16xf32>
    %64 = vector.shape_cast %61 : vector<8x8x16xf32> to vector<1x8x8x16xf32>
    tpu.vector_store %arg12[%c0_31, %c0_32, %c0_33, %c0_34], %64 {strides = array<i32>} : memref<1x8x8x16xf32, #tpu.memory_space<vmem>>, vector<1x8x8x16xf32>,
    %65 = arith.negf %52 : vector<64x16xf32>
    %66 = math.exp %65 : vector<64x16xf32>
    %cst_35 = arith.constant 1.000000e+00 : f32
    %67 = vector.broadcast %cst_35 : f32 to vector<64x16xf32>
    %68 = arith.addf %67, %66 : vector<64x16xf32>
    %69 = arith.divf %67, %68 : vector<64x16xf32>
    %70 = arith.mulf %52, %69 : vector<64x16xf32>
    %71 = vector.shape_cast %70 : vector<64x16xf32> to vector<8x8x16xf32>
    %72 = vector.broadcast %2 : vector<8x8x1xf32> to vector<8x8x16xf32>
    %73 = arith.mulf %71, %72 : vector<8x8x16xf32>
    %c0_36 = arith.constant 0 : index
    %c0_37 = arith.constant 0 : index
    %c0_38 = arith.constant 0 : index
    %c0_39 = arith.constant 0 : index
    %74 = vector.load %arg13[%c0_36, %c0_37, %c0_38, %c0_39] : memref<1x8x8x16xf32, #tpu.memory_space<vmem>>, vector<1x8x8x16xf32>
    %75 = vector.shape_cast %74 : vector<1x8x8x16xf32> to vector<8x8x16xf32>
    %76 = vector.shape_cast %73 : vector<8x8x16xf32> to vector<1x8x8x16xf32>
    tpu.vector_store %arg13[%c0_36, %c0_37, %c0_38, %c0_39], %76 {strides = array<i32>} : memref<1x8x8x16xf32, #tpu.memory_space<vmem>>, vector<1x8x8x16xf32>,
    return
  }
  func.func @transform_0(%arg0: i32, %arg1: i32) -> (i32, i32, i32, i32) {
    %c0_i32 = arith.constant 0 : i32
    %c0_i32_0 = arith.constant 0 : i32
    %c0_i32_1 = arith.constant 0 : i32
    return %arg0, %arg1, %c0_i32, %c0_i32_0 : i32, i32, i32, i32
  }
  func.func @transform_1(%arg0: i32, %arg1: i32) -> (i32, i32, i32) {
    %c0_i32 = arith.constant 0 : i32
    %c0_i32_0 = arith.constant 0 : i32
    return %arg0, %arg1, %c0_i32 : i32, i32, i32
  }
  func.func @transform_2(%arg0: i32, %arg1: i32) -> (i32, i32) {
    %c0_i32 = arith.constant 0 : i32
    %c0_i32_0 = arith.constant 0 : i32
    %c0_i32_1 = arith.constant 0 : i32
    return %c0_i32, %c0_i32_0 : i32, i32
  }
  func.func @transform_3(%arg0: i32, %arg1: i32) -> (i32, i32) {
    %c0_i32 = arith.constant 0 : i32
    %c0_i32_0 = arith.constant 0 : i32
    %c0_i32_1 = arith.constant 0 : i32
    return %c0_i32, %c0_i32_0 : i32, i32
  }
  func.func @transform_4(%arg0: i32, %arg1: i32) -> (i32, i32) {
    %c0_i32 = arith.constant 0 : i32
    %c0_i32_0 = arith.constant 0 : i32
    %c0_i32_1 = arith.constant 0 : i32
    return %c0_i32, %c0_i32_0 : i32, i32
  }
  func.func @transform_5(%arg0: i32, %arg1: i32) -> (i32, i32) {
    %c0_i32 = arith.constant 0 : i32
    %c0_i32_0 = arith.constant 0 : i32
    %c0_i32_1 = arith.constant 0 : i32
    return %c0_i32, %c0_i32_0 : i32, i32
  }
  func.func @transform_6(%arg0: i32, %arg1: i32) -> (i32, i32) {
    %c0_i32 = arith.constant 0 : i32
    %c0_i32_0 = arith.constant 0 : i32
    %c0_i32_1 = arith.constant 0 : i32
    return %c0_i32, %c0_i32_0 : i32, i32
  }
  func.func @transform_7(%arg0: i32, %arg1: i32) -> (i32, i32) {
    %c0_i32 = arith.constant 0 : i32
    %c0_i32_0 = arith.constant 0 : i32
    %c0_i32_1 = arith.constant 0 : i32
    return %c0_i32, %c0_i32_0 : i32, i32
  }
  func.func @transform_8(%arg0: i32, %arg1: i32) -> (i32, i32) {
    %c0_i32 = arith.constant 0 : i32
    %c0_i32_0 = arith.constant 0 : i32
    %c0_i32_1 = arith.constant 0 : i32
    return %c0_i32, %c0_i32_0 : i32, i32
  }
  func.func @transform_9(%arg0: i32, %arg1: i32) -> (i32, i32) {
    %c0_i32 = arith.constant 0 : i32
    %c0_i32_0 = arith.constant 0 : i32
    %c0_i32_1 = arith.constant 0 : i32
    return %c0_i32, %c0_i32_0 : i32, i32
  }
  func.func @transform_10(%arg0: i32, %arg1: i32) -> (i32, i32, i32, i32) {
    %c0_i32 = arith.constant 0 : i32
    %c0_i32_0 = arith.constant 0 : i32
    %c0_i32_1 = arith.constant 0 : i32
    return %arg0, %arg1, %c0_i32, %c0_i32_0 : i32, i32, i32, i32
  }
  func.func @transform_11(%arg0: i32, %arg1: i32) -> (i32, i32, i32, i32) {
    %c0_i32 = arith.constant 0 : i32
    %c0_i32_0 = arith.constant 0 : i32
    %c0_i32_1 = arith.constant 0 : i32
    return %arg0, %arg1, %c0_i32, %c0_i32_0 : i32, i32, i32, i32
  }
}

module attributes {stable_mosaic.version = 11 : i64} {
  func.func @_ppgn_mult_kernel(%arg0: i32, %arg1: i32, %arg2: memref<1x16x8x8xf32, #tpu.memory_space<vmem>>, %arg3: memref<1x16x8x8xf32, #tpu.memory_space<vmem>>, %arg4: memref<1x8x8xf32, #tpu.memory_space<vmem>>, %arg5: memref<1x8x8xf32, #tpu.memory_space<vmem>>, %arg6: memref<1x16x8x8xf32, #tpu.memory_space<vmem>>) attributes {dimension_semantics = [#tpu.dimension_semantics<parallel>, #tpu.dimension_semantics<parallel>], iteration_bounds = array<i64: 2, 1>, scalar_prefetch = 0 : i64, scratch_operands = 0 : i64, tpu.core_type = #tpu.core_type<tc>, window_params = [{transform_indices = @transform_0, window_bounds = array<i64: 1, 16, 8, 8>}, {transform_indices = @transform_1, window_bounds = array<i64: 1, 16, 8, 8>}, {transform_indices = @transform_2, window_bounds = array<i64: 1, 8, 8>}, {transform_indices = @transform_3, window_bounds = array<i64: 1, 8, 8>}, {transform_indices = @transform_4, window_bounds = array<i64: 1, 16, 8, 8>}]} {
    %c0 = arith.constant 0 : index
    %c0_0 = arith.constant 0 : index
    %c0_1 = arith.constant 0 : index
    %c0_2 = arith.constant 0 : index
    %0 = vector.load %arg2[%c0, %c0_0, %c0_1, %c0_2] : memref<1x16x8x8xf32, #tpu.memory_space<vmem>>, vector<1x16x8x8xf32>
    %1 = vector.shape_cast %0 : vector<1x16x8x8xf32> to vector<16x8x8xf32>
    %c0_3 = arith.constant 0 : index
    %c0_4 = arith.constant 0 : index
    %c0_5 = arith.constant 0 : index
    %c0_6 = arith.constant 0 : index
    %2 = vector.load %arg3[%c0_3, %c0_4, %c0_5, %c0_6] : memref<1x16x8x8xf32, #tpu.memory_space<vmem>>, vector<1x16x8x8xf32>
    %3 = vector.shape_cast %2 : vector<1x16x8x8xf32> to vector<16x8x8xf32>
    %c0_7 = arith.constant 0 : index
    %c0_8 = arith.constant 0 : index
    %c0_9 = arith.constant 0 : index
    %4 = vector.load %arg4[%c0_7, %c0_8, %c0_9] : memref<1x8x8xf32, #tpu.memory_space<vmem>>, vector<1x8x8xf32>
    %5 = vector.shape_cast %4 : vector<1x8x8xf32> to vector<8x8xf32>
    %6 = vector.shape_cast %5 : vector<8x8xf32> to vector<1x8x8xf32>
    %c0_10 = arith.constant 0 : index
    %c0_11 = arith.constant 0 : index
    %c0_12 = arith.constant 0 : index
    %7 = vector.load %arg5[%c0_10, %c0_11, %c0_12] : memref<1x8x8xf32, #tpu.memory_space<vmem>>, vector<1x8x8xf32>
    %8 = vector.shape_cast %7 : vector<1x8x8xf32> to vector<8x8xf32>
    %9 = vector.shape_cast %8 : vector<8x8xf32> to vector<1x8x8xf32>
    %10 = vector.broadcast %6 : vector<1x8x8xf32> to vector<16x8x8xf32>
    %11 = arith.mulf %1, %10 : vector<16x8x8xf32>
    %12 = vector.broadcast %9 : vector<1x8x8xf32> to vector<16x8x8xf32>
    %13 = arith.mulf %3, %12 : vector<16x8x8xf32>
    %14 = arith.subf %3, %13 : vector<16x8x8xf32>
    "tpu.trace_start"() <{level = 10 : i32, message = "cik,ckj->cij"}> : () -> ()
    %cst = arith.constant dense<0.000000e+00> : vector<16x8x8xf32>
    %15 = tpu.matmul %11, %14, %cst {dimension_numbers = #tpu.dot_dimension_numbers<[2], [1], [1], [2], [0, 0, 0, 1, 1, 2], [0], [0]>} : vector<16x8x8xf32>, vector<16x8x8xf32>, vector<16x8x8xf32> -> vector<16x8x8xf32>
    %cst_13 = arith.constant dense<0.000000e+00> : vector<16x8x8xf32>
    %16 = tpu.matmul %1, %13, %cst_13 {dimension_numbers = #tpu.dot_dimension_numbers<[2], [1], [1], [2], [0, 0, 0, 1, 1, 2], [0], [0]>} : vector<16x8x8xf32>, vector<16x8x8xf32>, vector<16x8x8xf32> -> vector<16x8x8xf32>
    "tpu.trace_stop"() : () -> ()
    %17 = arith.addf %15, %16 : vector<16x8x8xf32>
    %c0_14 = arith.constant 0 : index
    %c0_15 = arith.constant 0 : index
    %c0_16 = arith.constant 0 : index
    %c0_17 = arith.constant 0 : index
    %18 = vector.load %arg6[%c0_14, %c0_15, %c0_16, %c0_17] : memref<1x16x8x8xf32, #tpu.memory_space<vmem>>, vector<1x16x8x8xf32>
    %19 = vector.shape_cast %18 : vector<1x16x8x8xf32> to vector<16x8x8xf32>
    %20 = vector.shape_cast %17 : vector<16x8x8xf32> to vector<1x16x8x8xf32>
    tpu.vector_store %arg6[%c0_14, %c0_15, %c0_16, %c0_17], %20 {strides = array<i32>} : memref<1x16x8x8xf32, #tpu.memory_space<vmem>>, vector<1x16x8x8xf32>,
    return
  }
  func.func @transform_0(%arg0: i32, %arg1: i32) -> (i32, i32, i32, i32) {
    %c0_i32 = arith.constant 0 : i32
    %c0_i32_0 = arith.constant 0 : i32
    %c0_i32_1 = arith.constant 0 : i32
    return %arg0, %c0_i32, %arg1, %c0_i32_0 : i32, i32, i32, i32
  }
  func.func @transform_1(%arg0: i32, %arg1: i32) -> (i32, i32, i32, i32) {
    %c0_i32 = arith.constant 0 : i32
    %c0_i32_0 = arith.constant 0 : i32
    %c0_i32_1 = arith.constant 0 : i32
    %c0_i32_2 = arith.constant 0 : i32
    return %arg0, %c0_i32, %c0_i32_0, %c0_i32_1 : i32, i32, i32, i32
  }
  func.func @transform_2(%arg0: i32, %arg1: i32) -> (i32, i32, i32) {
    %c0_i32 = arith.constant 0 : i32
    %c0_i32_0 = arith.constant 0 : i32
    return %arg0, %arg1, %c0_i32 : i32, i32, i32
  }
  func.func @transform_3(%arg0: i32, %arg1: i32) -> (i32, i32, i32) {
    %c0_i32 = arith.constant 0 : i32
    %c0_i32_0 = arith.constant 0 : i32
    %c0_i32_1 = arith.constant 0 : i32
    return %arg0, %c0_i32, %c0_i32_0 : i32, i32, i32
  }
  func.func @transform_4(%arg0: i32, %arg1: i32) -> (i32, i32, i32, i32) {
    %c0_i32 = arith.constant 0 : i32
    %c0_i32_0 = arith.constant 0 : i32
    %c0_i32_1 = arith.constant 0 : i32
    return %arg0, %c0_i32, %arg1, %c0_i32_0 : i32, i32, i32, i32
  }
}

module attributes {stable_mosaic.version = 11 : i64} {
  func.func @_ppgn_post_kernel(%arg0: i32, %arg1: memref<128x16xf32, #tpu.memory_space<vmem>>, %arg2: memref<128x16xf32, #tpu.memory_space<vmem>>, %arg3: memref<128x1xf32, #tpu.memory_space<vmem>>, %arg4: memref<16x16xf32, #tpu.memory_space<vmem>>, %arg5: memref<1x16xf32, #tpu.memory_space<vmem>>, %arg6: memref<1x16xf32, #tpu.memory_space<vmem>>, %arg7: memref<1x16xf32, #tpu.memory_space<vmem>>, %arg8: memref<16x32xf32, #tpu.memory_space<vmem>>, %arg9: memref<1x32xf32, #tpu.memory_space<vmem>>, %arg10: memref<32x16xf32, #tpu.memory_space<vmem>>, %arg11: memref<1x16xf32, #tpu.memory_space<vmem>>, %arg12: memref<128x16xf32, #tpu.memory_space<vmem>>) attributes {dimension_semantics = [#tpu.dimension_semantics<parallel>], iteration_bounds = array<i64: 1>, scalar_prefetch = 0 : i64, scratch_operands = 0 : i64, tpu.core_type = #tpu.core_type<tc>, window_params = [{transform_indices = @transform_0, window_bounds = array<i64: 128, 16>}, {transform_indices = @transform_1, window_bounds = array<i64: 128, 16>}, {transform_indices = @transform_2, window_bounds = array<i64: 128, 1>}, {pipeline_mode = #tpu.pipeline_mode<synchronous>, transform_indices = @transform_3, window_bounds = array<i64: 16, 16>}, {pipeline_mode = #tpu.pipeline_mode<synchronous>, transform_indices = @transform_4, window_bounds = array<i64: 1, 16>}, {pipeline_mode = #tpu.pipeline_mode<synchronous>, transform_indices = @transform_5, window_bounds = array<i64: 1, 16>}, {pipeline_mode = #tpu.pipeline_mode<synchronous>, transform_indices = @transform_6, window_bounds = array<i64: 1, 16>}, {pipeline_mode = #tpu.pipeline_mode<synchronous>, transform_indices = @transform_7, window_bounds = array<i64: 16, 32>}, {pipeline_mode = #tpu.pipeline_mode<synchronous>, transform_indices = @transform_8, window_bounds = array<i64: 1, 32>}, {pipeline_mode = #tpu.pipeline_mode<synchronous>, transform_indices = @transform_9, window_bounds = array<i64: 32, 16>}, {pipeline_mode = #tpu.pipeline_mode<synchronous>, transform_indices = @transform_10, window_bounds = array<i64: 1, 16>}, {transform_indices = @transform_11, window_bounds = array<i64: 128, 16>}]} {
    %c0 = arith.constant 0 : index
    %c0_0 = arith.constant 0 : index
    %0 = vector.load %arg3[%c0, %c0_0] : memref<128x1xf32, #tpu.memory_space<vmem>>, vector<128x1xf32>
    %c0_1 = arith.constant 0 : index
    %c0_2 = arith.constant 0 : index
    %1 = vector.load %arg1[%c0_1, %c0_2] : memref<128x16xf32, #tpu.memory_space<vmem>>, vector<128x16xf32>
    %c0_3 = arith.constant 0 : index
    %c0_4 = arith.constant 0 : index
    %2 = vector.load %arg4[%c0_3, %c0_4] : memref<16x16xf32, #tpu.memory_space<vmem>>, vector<16x16xf32>
    %cst = arith.constant dense<0.000000e+00> : vector<128x16xf32>
    %3 = tpu.matmul %1, %2, %cst {dimension_numbers = #tpu.dot_dimension_numbers<[1], [0], [0], [1], [0, 0, 1, 1], [], []>} : vector<128x16xf32>, vector<16x16xf32>, vector<128x16xf32> -> vector<128x16xf32>
    %c0_5 = arith.constant 0 : index
    %c0_6 = arith.constant 0 : index
    %4 = vector.load %arg5[%c0_5, %c0_6] : memref<1x16xf32, #tpu.memory_space<vmem>>, vector<1x16xf32>
    %5 = vector.broadcast %4 : vector<1x16xf32> to vector<128x16xf32>
    %6 = arith.addf %3, %5 : vector<128x16xf32>
    %7 = vector.broadcast %0 : vector<128x1xf32> to vector<128x16xf32>
    %8 = arith.mulf %6, %7 : vector<128x16xf32>
    %c0_7 = arith.constant 0 : index
    %c0_8 = arith.constant 0 : index
    %9 = vector.load %arg2[%c0_7, %c0_8] : memref<128x16xf32, #tpu.memory_space<vmem>>, vector<128x16xf32>
    %10 = arith.addf %8, %9 : vector<128x16xf32>
    %c0_9 = arith.constant 0 : index
    %c0_10 = arith.constant 0 : index
    %11 = vector.load %arg6[%c0_9, %c0_10] : memref<1x16xf32, #tpu.memory_space<vmem>>, vector<1x16xf32>
    %c0_11 = arith.constant 0 : index
    %c0_12 = arith.constant 0 : index
    %12 = vector.load %arg7[%c0_11, %c0_12] : memref<1x16xf32, #tpu.memory_space<vmem>>, vector<1x16xf32>
    %cst_13 = arith.constant dense<0.000000e+00> : vector<128xf32>
    %13 = vector.multi_reduction <add>, %10, %cst_13 [1] : vector<128x16xf32> to vector<128xf32>
    %14 = vector.shape_cast %13 : vector<128xf32> to vector<128x1xf32>
    %cst_14 = arith.constant 1.600000e+01 : f32
    %15 = vector.broadcast %cst_14 : f32 to vector<128x1xf32>
    %16 = arith.divf %14, %15 : vector<128x1xf32>
    %17 = vector.broadcast %16 : vector<128x1xf32> to vector<128x16xf32>
    %18 = arith.subf %10, %17 : vector<128x16xf32>
    %19 = arith.mulf %18, %18 : vector<128x16xf32>
    %cst_15 = arith.constant dense<0.000000e+00> : vector<128xf32>
    %20 = vector.multi_reduction <add>, %19, %cst_15 [1] : vector<128x16xf32> to vector<128xf32>
    %21 = vector.shape_cast %20 : vector<128xf32> to vector<128x1xf32>
    %cst_16 = arith.constant 1.600000e+01 : f32
    %22 = vector.broadcast %cst_16 : f32 to vector<128x1xf32>
    %23 = arith.divf %21, %22 : vector<128x1xf32>
    %cst_17 = arith.constant 9.99999974E-6 : f32
    %24 = vector.broadcast %cst_17 : f32 to vector<128x1xf32>
    %25 = arith.addf %23, %24 : vector<128x1xf32>
    %26 = math.rsqrt %25 : vector<128x1xf32>
    %27 = vector.broadcast %26 : vector<128x1xf32> to vector<128x16xf32>
    %28 = arith.mulf %18, %27 : vector<128x16xf32>
    %29 = vector.broadcast %11 : vector<1x16xf32> to vector<128x16xf32>
    %30 = arith.mulf %28, %29 : vector<128x16xf32>
    %31 = vector.broadcast %12 : vector<1x16xf32> to vector<128x16xf32>
    %32 = arith.addf %30, %31 : vector<128x16xf32>
    %c0_18 = arith.constant 0 : index
    %c0_19 = arith.constant 0 : index
    %33 = vector.load %arg8[%c0_18, %c0_19] : memref<16x32xf32, #tpu.memory_space<vmem>>, vector<16x32xf32>
    %cst_20 = arith.constant dense<0.000000e+00> : vector<128x32xf32>
    %34 = tpu.matmul %32, %33, %cst_20 {dimension_numbers = #tpu.dot_dimension_numbers<[1], [0], [0], [1], [0, 0, 1, 1], [], []>} : vector<128x16xf32>, vector<16x32xf32>, vector<128x32xf32> -> vector<128x32xf32>
    %c0_21 = arith.constant 0 : index
    %c0_22 = arith.constant 0 : index
    %35 = vector.load %arg9[%c0_21, %c0_22] : memref<1x32xf32, #tpu.memory_space<vmem>>, vector<1x32xf32>
    %36 = vector.broadcast %35 : vector<1x32xf32> to vector<128x32xf32>
    %37 = arith.addf %34, %36 : vector<128x32xf32>
    %38 = arith.negf %37 : vector<128x32xf32>
    %39 = math.exp %38 : vector<128x32xf32>
    %cst_23 = arith.constant 1.000000e+00 : f32
    %40 = vector.broadcast %cst_23 : f32 to vector<128x32xf32>
    %41 = arith.addf %40, %39 : vector<128x32xf32>
    %42 = arith.divf %40, %41 : vector<128x32xf32>
    %43 = arith.mulf %37, %42 : vector<128x32xf32>
    %c0_24 = arith.constant 0 : index
    %c0_25 = arith.constant 0 : index
    %44 = vector.load %arg10[%c0_24, %c0_25] : memref<32x16xf32, #tpu.memory_space<vmem>>, vector<32x16xf32>
    %cst_26 = arith.constant dense<0.000000e+00> : vector<128x16xf32>
    %45 = tpu.matmul %43, %44, %cst_26 {dimension_numbers = #tpu.dot_dimension_numbers<[1], [0], [0], [1], [0, 0, 1, 1], [], []>} : vector<128x32xf32>, vector<32x16xf32>, vector<128x16xf32> -> vector<128x16xf32>
    %c0_27 = arith.constant 0 : index
    %c0_28 = arith.constant 0 : index
    %46 = vector.load %arg11[%c0_27, %c0_28] : memref<1x16xf32, #tpu.memory_space<vmem>>, vector<1x16xf32>
    %47 = vector.broadcast %46 : vector<1x16xf32> to vector<128x16xf32>
    %48 = arith.addf %45, %47 : vector<128x16xf32>
    %49 = vector.broadcast %0 : vector<128x1xf32> to vector<128x16xf32>
    %50 = arith.mulf %48, %49 : vector<128x16xf32>
    %51 = arith.addf %50, %10 : vector<128x16xf32>
    %c0_29 = arith.constant 0 : index
    %c0_30 = arith.constant 0 : index
    %52 = vector.load %arg12[%c0_29, %c0_30] : memref<128x16xf32, #tpu.memory_space<vmem>>, vector<128x16xf32>
    tpu.vector_store %arg12[%c0_29, %c0_30], %51 {strides = array<i32>} : memref<128x16xf32, #tpu.memory_space<vmem>>, vector<128x16xf32>,
    return
  }
  func.func @transform_0(%arg0: i32) -> (i32, i32) {
    %c0_i32 = arith.constant 0 : i32
    %c0_i32_0 = arith.constant 0 : i32
    return %arg0, %c0_i32 : i32, i32
  }
  func.func @transform_1(%arg0: i32) -> (i32, i32) {
    %c0_i32 = arith.constant 0 : i32
    %c0_i32_0 = arith.constant 0 : i32
    return %arg0, %c0_i32 : i32, i32
  }
  func.func @transform_2(%arg0: i32) -> (i32, i32) {
    %c0_i32 = arith.constant 0 : i32
    %c0_i32_0 = arith.constant 0 : i32
    return %arg0, %c0_i32 : i32, i32
  }
  func.func @transform_3(%arg0: i32) -> (i32, i32) {
    %c0_i32 = arith.constant 0 : i32
    %c0_i32_0 = arith.constant 0 : i32
    %c0_i32_1 = arith.constant 0 : i32
    return %c0_i32, %c0_i32_0 : i32, i32
  }
  func.func @transform_4(%arg0: i32) -> (i32, i32) {
    %c0_i32 = arith.constant 0 : i32
    %c0_i32_0 = arith.constant 0 : i32
    %c0_i32_1 = arith.constant 0 : i32
    return %c0_i32, %c0_i32_0 : i32, i32
  }
  func.func @transform_5(%arg0: i32) -> (i32, i32) {
    %c0_i32 = arith.constant 0 : i32
    %c0_i32_0 = arith.constant 0 : i32
    %c0_i32_1 = arith.constant 0 : i32
    return %c0_i32, %c0_i32_0 : i32, i32
  }
  func.func @transform_6(%arg0: i32) -> (i32, i32) {
    %c0_i32 = arith.constant 0 : i32
    %c0_i32_0 = arith.constant 0 : i32
    %c0_i32_1 = arith.constant 0 : i32
    return %c0_i32, %c0_i32_0 : i32, i32
  }
  func.func @transform_7(%arg0: i32) -> (i32, i32) {
    %c0_i32 = arith.constant 0 : i32
    %c0_i32_0 = arith.constant 0 : i32
    %c0_i32_1 = arith.constant 0 : i32
    return %c0_i32, %c0_i32_0 : i32, i32
  }
  func.func @transform_8(%arg0: i32) -> (i32, i32) {
    %c0_i32 = arith.constant 0 : i32
    %c0_i32_0 = arith.constant 0 : i32
    %c0_i32_1 = arith.constant 0 : i32
    return %c0_i32, %c0_i32_0 : i32, i32
  }
  func.func @transform_9(%arg0: i32) -> (i32, i32) {
    %c0_i32 = arith.constant 0 : i32
    %c0_i32_0 = arith.constant 0 : i32
    %c0_i32_1 = arith.constant 0 : i32
    return %c0_i32, %c0_i32_0 : i32, i32
  }
  func.func @transform_10(%arg0: i32) -> (i32, i32) {
    %c0_i32 = arith.constant 0 : i32
    %c0_i32_0 = arith.constant 0 : i32
    %c0_i32_1 = arith.constant 0 : i32
    return %c0_i32, %c0_i32_0 : i32, i32
  }
  func.func @transform_11(%arg0: i32) -> (i32, i32) {
    %c0_i32 = arith.constant 0 : i32
    %c0_i32_0 = arith.constant 0 : i32
    return %arg0, %c0_i32 : i32, i32
  }
}

module attributes {stable_mosaic.version = 11 : i64} {
  func.func @_ln_mlp_kernel(%arg0: i32, %arg1: memref<16x32xf32, #tpu.memory_space<vmem>>, %arg2: memref<16x1xf32, #tpu.memory_space<vmem>>, %arg3: memref<1x32xf32, #tpu.memory_space<vmem>>, %arg4: memref<1x32xf32, #tpu.memory_space<vmem>>, %arg5: memref<32x32xf32, #tpu.memory_space<vmem>>, %arg6: memref<1x32xf32, #tpu.memory_space<vmem>>, %arg7: memref<32x32xf32, #tpu.memory_space<vmem>>, %arg8: memref<1x32xf32, #tpu.memory_space<vmem>>, %arg9: memref<16x32xf32, #tpu.memory_space<vmem>>) attributes {dimension_semantics = [#tpu.dimension_semantics<parallel>], iteration_bounds = array<i64: 1>, scalar_prefetch = 0 : i64, scratch_operands = 0 : i64, tpu.core_type = #tpu.core_type<tc>, window_params = [{transform_indices = @transform_0, window_bounds = array<i64: 16, 32>}, {transform_indices = @transform_1, window_bounds = array<i64: 16, 1>}, {pipeline_mode = #tpu.pipeline_mode<synchronous>, transform_indices = @transform_2, window_bounds = array<i64: 1, 32>}, {pipeline_mode = #tpu.pipeline_mode<synchronous>, transform_indices = @transform_3, window_bounds = array<i64: 1, 32>}, {pipeline_mode = #tpu.pipeline_mode<synchronous>, transform_indices = @transform_4, window_bounds = array<i64: 32, 32>}, {pipeline_mode = #tpu.pipeline_mode<synchronous>, transform_indices = @transform_5, window_bounds = array<i64: 1, 32>}, {pipeline_mode = #tpu.pipeline_mode<synchronous>, transform_indices = @transform_6, window_bounds = array<i64: 32, 32>}, {pipeline_mode = #tpu.pipeline_mode<synchronous>, transform_indices = @transform_7, window_bounds = array<i64: 1, 32>}, {transform_indices = @transform_8, window_bounds = array<i64: 16, 32>}]} {
    %c0 = arith.constant 0 : index
    %c0_0 = arith.constant 0 : index
    %0 = vector.load %arg1[%c0, %c0_0] : memref<16x32xf32, #tpu.memory_space<vmem>>, vector<16x32xf32>
    %c0_1 = arith.constant 0 : index
    %c0_2 = arith.constant 0 : index
    %1 = vector.load %arg3[%c0_1, %c0_2] : memref<1x32xf32, #tpu.memory_space<vmem>>, vector<1x32xf32>
    %c0_3 = arith.constant 0 : index
    %c0_4 = arith.constant 0 : index
    %2 = vector.load %arg4[%c0_3, %c0_4] : memref<1x32xf32, #tpu.memory_space<vmem>>, vector<1x32xf32>
    %cst = arith.constant dense<0.000000e+00> : vector<16xf32>
    %3 = vector.multi_reduction <add>, %0, %cst [1] : vector<16x32xf32> to vector<16xf32>
    %4 = vector.shape_cast %3 : vector<16xf32> to vector<16x1xf32>
    %cst_5 = arith.constant 3.200000e+01 : f32
    %5 = vector.broadcast %cst_5 : f32 to vector<16x1xf32>
    %6 = arith.divf %4, %5 : vector<16x1xf32>
    %7 = vector.broadcast %6 : vector<16x1xf32> to vector<16x32xf32>
    %8 = arith.subf %0, %7 : vector<16x32xf32>
    %9 = arith.mulf %8, %8 : vector<16x32xf32>
    %cst_6 = arith.constant dense<0.000000e+00> : vector<16xf32>
    %10 = vector.multi_reduction <add>, %9, %cst_6 [1] : vector<16x32xf32> to vector<16xf32>
    %11 = vector.shape_cast %10 : vector<16xf32> to vector<16x1xf32>
    %cst_7 = arith.constant 3.200000e+01 : f32
    %12 = vector.broadcast %cst_7 : f32 to vector<16x1xf32>
    %13 = arith.divf %11, %12 : vector<16x1xf32>
    %cst_8 = arith.constant 9.99999974E-6 : f32
    %14 = vector.broadcast %cst_8 : f32 to vector<16x1xf32>
    %15 = arith.addf %13, %14 : vector<16x1xf32>
    %16 = math.rsqrt %15 : vector<16x1xf32>
    %17 = vector.broadcast %16 : vector<16x1xf32> to vector<16x32xf32>
    %18 = arith.mulf %8, %17 : vector<16x32xf32>
    %19 = vector.broadcast %1 : vector<1x32xf32> to vector<16x32xf32>
    %20 = arith.mulf %18, %19 : vector<16x32xf32>
    %21 = vector.broadcast %2 : vector<1x32xf32> to vector<16x32xf32>
    %22 = arith.addf %20, %21 : vector<16x32xf32>
    %c0_9 = arith.constant 0 : index
    %c0_10 = arith.constant 0 : index
    %23 = vector.load %arg5[%c0_9, %c0_10] : memref<32x32xf32, #tpu.memory_space<vmem>>, vector<32x32xf32>
    %cst_11 = arith.constant dense<0.000000e+00> : vector<16x32xf32>
    %24 = tpu.matmul %22, %23, %cst_11 {dimension_numbers = #tpu.dot_dimension_numbers<[1], [0], [0], [1], [0, 0, 1, 1], [], []>} : vector<16x32xf32>, vector<32x32xf32>, vector<16x32xf32> -> vector<16x32xf32>
    %c0_12 = arith.constant 0 : index
    %c0_13 = arith.constant 0 : index
    %25 = vector.load %arg6[%c0_12, %c0_13] : memref<1x32xf32, #tpu.memory_space<vmem>>, vector<1x32xf32>
    %26 = vector.broadcast %25 : vector<1x32xf32> to vector<16x32xf32>
    %27 = arith.addf %24, %26 : vector<16x32xf32>
    %28 = arith.negf %27 : vector<16x32xf32>
    %29 = math.exp %28 : vector<16x32xf32>
    %cst_14 = arith.constant 1.000000e+00 : f32
    %30 = vector.broadcast %cst_14 : f32 to vector<16x32xf32>
    %31 = arith.addf %30, %29 : vector<16x32xf32>
    %32 = arith.divf %30, %31 : vector<16x32xf32>
    %33 = arith.mulf %27, %32 : vector<16x32xf32>
    %c0_15 = arith.constant 0 : index
    %c0_16 = arith.constant 0 : index
    %34 = vector.load %arg7[%c0_15, %c0_16] : memref<32x32xf32, #tpu.memory_space<vmem>>, vector<32x32xf32>
    %cst_17 = arith.constant dense<0.000000e+00> : vector<16x32xf32>
    %35 = tpu.matmul %33, %34, %cst_17 {dimension_numbers = #tpu.dot_dimension_numbers<[1], [0], [0], [1], [0, 0, 1, 1], [], []>} : vector<16x32xf32>, vector<32x32xf32>, vector<16x32xf32> -> vector<16x32xf32>
    %c0_18 = arith.constant 0 : index
    %c0_19 = arith.constant 0 : index
    %36 = vector.load %arg8[%c0_18, %c0_19] : memref<1x32xf32, #tpu.memory_space<vmem>>, vector<1x32xf32>
    %37 = vector.broadcast %36 : vector<1x32xf32> to vector<16x32xf32>
    %38 = arith.addf %35, %37 : vector<16x32xf32>
    %c0_20 = arith.constant 0 : index
    %c0_21 = arith.constant 0 : index
    %39 = vector.load %arg2[%c0_20, %c0_21] : memref<16x1xf32, #tpu.memory_space<vmem>>, vector<16x1xf32>
    %40 = vector.broadcast %39 : vector<16x1xf32> to vector<16x32xf32>
    %41 = arith.mulf %38, %40 : vector<16x32xf32>
    %c0_22 = arith.constant 0 : index
    %c0_23 = arith.constant 0 : index
    %42 = vector.load %arg9[%c0_22, %c0_23] : memref<16x32xf32, #tpu.memory_space<vmem>>, vector<16x32xf32>
    tpu.vector_store %arg9[%c0_22, %c0_23], %41 {strides = array<i32>} : memref<16x32xf32, #tpu.memory_space<vmem>>, vector<16x32xf32>,
    return
  }
  func.func @transform_0(%arg0: i32) -> (i32, i32) {
    %c0_i32 = arith.constant 0 : i32
    %c0_i32_0 = arith.constant 0 : i32
    return %arg0, %c0_i32 : i32, i32
  }
  func.func @transform_1(%arg0: i32) -> (i32, i32) {
    %c0_i32 = arith.constant 0 : i32
    %c0_i32_0 = arith.constant 0 : i32
    return %arg0, %c0_i32 : i32, i32
  }
  func.func @transform_2(%arg0: i32) -> (i32, i32) {
    %c0_i32 = arith.constant 0 : i32
    %c0_i32_0 = arith.constant 0 : i32
    %c0_i32_1 = arith.constant 0 : i32
    return %c0_i32, %c0_i32_0 : i32, i32
  }
  func.func @transform_3(%arg0: i32) -> (i32, i32) {
    %c0_i32 = arith.constant 0 : i32
    %c0_i32_0 = arith.constant 0 : i32
    %c0_i32_1 = arith.constant 0 : i32
    return %c0_i32, %c0_i32_0 : i32, i32
  }
  func.func @transform_4(%arg0: i32) -> (i32, i32) {
    %c0_i32 = arith.constant 0 : i32
    %c0_i32_0 = arith.constant 0 : i32
    %c0_i32_1 = arith.constant 0 : i32
    return %c0_i32, %c0_i32_0 : i32, i32
  }
  func.func @transform_5(%arg0: i32) -> (i32, i32) {
    %c0_i32 = arith.constant 0 : i32
    %c0_i32_0 = arith.constant 0 : i32
    %c0_i32_1 = arith.constant 0 : i32
    return %c0_i32, %c0_i32_0 : i32, i32
  }
  func.func @transform_6(%arg0: i32) -> (i32, i32) {
    %c0_i32 = arith.constant 0 : i32
    %c0_i32_0 = arith.constant 0 : i32
    %c0_i32_1 = arith.constant 0 : i32
    return %c0_i32, %c0_i32_0 : i32, i32
  }
  func.func @transform_7(%arg0: i32) -> (i32, i32) {
    %c0_i32 = arith.constant 0 : i32
    %c0_i32_0 = arith.constant 0 : i32
    %c0_i32_1 = arith.constant 0 : i32
    return %c0_i32, %c0_i32_0 : i32, i32
  }
  func.func @transform_8(%arg0: i32) -> (i32, i32) {
    %c0_i32 = arith.constant 0 : i32
    %c0_i32_0 = arith.constant 0 : i32
    return %arg0, %c0_i32 : i32, i32
  }
}

module attributes {stable_mosaic.version = 11 : i64} {
  func.func @_ln_mlp_kernel(%arg0: i32, %arg1: memref<128x16xf32, #tpu.memory_space<vmem>>, %arg2: memref<128x1xf32, #tpu.memory_space<vmem>>, %arg3: memref<1x16xf32, #tpu.memory_space<vmem>>, %arg4: memref<1x16xf32, #tpu.memory_space<vmem>>, %arg5: memref<16x16xf32, #tpu.memory_space<vmem>>, %arg6: memref<1x16xf32, #tpu.memory_space<vmem>>, %arg7: memref<16x16xf32, #tpu.memory_space<vmem>>, %arg8: memref<1x16xf32, #tpu.memory_space<vmem>>, %arg9: memref<128x16xf32, #tpu.memory_space<vmem>>) attributes {dimension_semantics = [#tpu.dimension_semantics<parallel>], iteration_bounds = array<i64: 1>, scalar_prefetch = 0 : i64, scratch_operands = 0 : i64, tpu.core_type = #tpu.core_type<tc>, window_params = [{transform_indices = @transform_0, window_bounds = array<i64: 128, 16>}, {transform_indices = @transform_1, window_bounds = array<i64: 128, 1>}, {pipeline_mode = #tpu.pipeline_mode<synchronous>, transform_indices = @transform_2, window_bounds = array<i64: 1, 16>}, {pipeline_mode = #tpu.pipeline_mode<synchronous>, transform_indices = @transform_3, window_bounds = array<i64: 1, 16>}, {pipeline_mode = #tpu.pipeline_mode<synchronous>, transform_indices = @transform_4, window_bounds = array<i64: 16, 16>}, {pipeline_mode = #tpu.pipeline_mode<synchronous>, transform_indices = @transform_5, window_bounds = array<i64: 1, 16>}, {pipeline_mode = #tpu.pipeline_mode<synchronous>, transform_indices = @transform_6, window_bounds = array<i64: 16, 16>}, {pipeline_mode = #tpu.pipeline_mode<synchronous>, transform_indices = @transform_7, window_bounds = array<i64: 1, 16>}, {transform_indices = @transform_8, window_bounds = array<i64: 128, 16>}]} {
    %c0 = arith.constant 0 : index
    %c0_0 = arith.constant 0 : index
    %0 = vector.load %arg1[%c0, %c0_0] : memref<128x16xf32, #tpu.memory_space<vmem>>, vector<128x16xf32>
    %c0_1 = arith.constant 0 : index
    %c0_2 = arith.constant 0 : index
    %1 = vector.load %arg3[%c0_1, %c0_2] : memref<1x16xf32, #tpu.memory_space<vmem>>, vector<1x16xf32>
    %c0_3 = arith.constant 0 : index
    %c0_4 = arith.constant 0 : index
    %2 = vector.load %arg4[%c0_3, %c0_4] : memref<1x16xf32, #tpu.memory_space<vmem>>, vector<1x16xf32>
    %cst = arith.constant dense<0.000000e+00> : vector<128xf32>
    %3 = vector.multi_reduction <add>, %0, %cst [1] : vector<128x16xf32> to vector<128xf32>
    %4 = vector.shape_cast %3 : vector<128xf32> to vector<128x1xf32>
    %cst_5 = arith.constant 1.600000e+01 : f32
    %5 = vector.broadcast %cst_5 : f32 to vector<128x1xf32>
    %6 = arith.divf %4, %5 : vector<128x1xf32>
    %7 = vector.broadcast %6 : vector<128x1xf32> to vector<128x16xf32>
    %8 = arith.subf %0, %7 : vector<128x16xf32>
    %9 = arith.mulf %8, %8 : vector<128x16xf32>
    %cst_6 = arith.constant dense<0.000000e+00> : vector<128xf32>
    %10 = vector.multi_reduction <add>, %9, %cst_6 [1] : vector<128x16xf32> to vector<128xf32>
    %11 = vector.shape_cast %10 : vector<128xf32> to vector<128x1xf32>
    %cst_7 = arith.constant 1.600000e+01 : f32
    %12 = vector.broadcast %cst_7 : f32 to vector<128x1xf32>
    %13 = arith.divf %11, %12 : vector<128x1xf32>
    %cst_8 = arith.constant 9.99999974E-6 : f32
    %14 = vector.broadcast %cst_8 : f32 to vector<128x1xf32>
    %15 = arith.addf %13, %14 : vector<128x1xf32>
    %16 = math.rsqrt %15 : vector<128x1xf32>
    %17 = vector.broadcast %16 : vector<128x1xf32> to vector<128x16xf32>
    %18 = arith.mulf %8, %17 : vector<128x16xf32>
    %19 = vector.broadcast %1 : vector<1x16xf32> to vector<128x16xf32>
    %20 = arith.mulf %18, %19 : vector<128x16xf32>
    %21 = vector.broadcast %2 : vector<1x16xf32> to vector<128x16xf32>
    %22 = arith.addf %20, %21 : vector<128x16xf32>
    %c0_9 = arith.constant 0 : index
    %c0_10 = arith.constant 0 : index
    %23 = vector.load %arg5[%c0_9, %c0_10] : memref<16x16xf32, #tpu.memory_space<vmem>>, vector<16x16xf32>
    %cst_11 = arith.constant dense<0.000000e+00> : vector<128x16xf32>
    %24 = tpu.matmul %22, %23, %cst_11 {dimension_numbers = #tpu.dot_dimension_numbers<[1], [0], [0], [1], [0, 0, 1, 1], [], []>} : vector<128x16xf32>, vector<16x16xf32>, vector<128x16xf32> -> vector<128x16xf32>
    %c0_12 = arith.constant 0 : index
    %c0_13 = arith.constant 0 : index
    %25 = vector.load %arg6[%c0_12, %c0_13] : memref<1x16xf32, #tpu.memory_space<vmem>>, vector<1x16xf32>
    %26 = vector.broadcast %25 : vector<1x16xf32> to vector<128x16xf32>
    %27 = arith.addf %24, %26 : vector<128x16xf32>
    %28 = arith.negf %27 : vector<128x16xf32>
    %29 = math.exp %28 : vector<128x16xf32>
    %cst_14 = arith.constant 1.000000e+00 : f32
    %30 = vector.broadcast %cst_14 : f32 to vector<128x16xf32>
    %31 = arith.addf %30, %29 : vector<128x16xf32>
    %32 = arith.divf %30, %31 : vector<128x16xf32>
    %33 = arith.mulf %27, %32 : vector<128x16xf32>
    %c0_15 = arith.constant 0 : index
    %c0_16 = arith.constant 0 : index
    %34 = vector.load %arg7[%c0_15, %c0_16] : memref<16x16xf32, #tpu.memory_space<vmem>>, vector<16x16xf32>
    %cst_17 = arith.constant dense<0.000000e+00> : vector<128x16xf32>
    %35 = tpu.matmul %33, %34, %cst_17 {dimension_numbers = #tpu.dot_dimension_numbers<[1], [0], [0], [1], [0, 0, 1, 1], [], []>} : vector<128x16xf32>, vector<16x16xf32>, vector<128x16xf32> -> vector<128x16xf32>
    %c0_18 = arith.constant 0 : index
    %c0_19 = arith.constant 0 : index
    %36 = vector.load %arg8[%c0_18, %c0_19] : memref<1x16xf32, #tpu.memory_space<vmem>>, vector<1x16xf32>
    %37 = vector.broadcast %36 : vector<1x16xf32> to vector<128x16xf32>
    %38 = arith.addf %35, %37 : vector<128x16xf32>
    %c0_20 = arith.constant 0 : index
    %c0_21 = arith.constant 0 : index
    %39 = vector.load %arg2[%c0_20, %c0_21] : memref<128x1xf32, #tpu.memory_space<vmem>>, vector<128x1xf32>
    %40 = vector.broadcast %39 : vector<128x1xf32> to vector<128x16xf32>
    %41 = arith.mulf %38, %40 : vector<128x16xf32>
    %c0_22 = arith.constant 0 : index
    %c0_23 = arith.constant 0 : index
    %42 = vector.load %arg9[%c0_22, %c0_23] : memref<128x16xf32, #tpu.memory_space<vmem>>, vector<128x16xf32>
    tpu.vector_store %arg9[%c0_22, %c0_23], %41 {strides = array<i32>} : memref<128x16xf32, #tpu.memory_space<vmem>>, vector<128x16xf32>,
    return
  }
  func.func @transform_0(%arg0: i32) -> (i32, i32) {
    %c0_i32 = arith.constant 0 : i32
    %c0_i32_0 = arith.constant 0 : i32
    return %arg0, %c0_i32 : i32, i32
  }
  func.func @transform_1(%arg0: i32) -> (i32, i32) {
    %c0_i32 = arith.constant 0 : i32
    %c0_i32_0 = arith.constant 0 : i32
    return %arg0, %c0_i32 : i32, i32
  }
  func.func @transform_2(%arg0: i32) -> (i32, i32) {
    %c0_i32 = arith.constant 0 : i32
    %c0_i32_0 = arith.constant 0 : i32
    %c0_i32_1 = arith.constant 0 : i32
    return %c0_i32, %c0_i32_0 : i32, i32
  }
  func.func @transform_3(%arg0: i32) -> (i32, i32) {
    %c0_i32 = arith.constant 0 : i32
    %c0_i32_0 = arith.constant 0 : i32
    %c0_i32_1 = arith.constant 0 : i32
    return %c0_i32, %c0_i32_0 : i32, i32
  }
  func.func @transform_4(%arg0: i32) -> (i32, i32) {
    %c0_i32 = arith.constant 0 : i32
    %c0_i32_0 = arith.constant 0 : i32
    %c0_i32_1 = arith.constant 0 : i32
    return %c0_i32, %c0_i32_0 : i32, i32
  }
  func.func @transform_5(%arg0: i32) -> (i32, i32) {
    %c0_i32 = arith.constant 0 : i32
    %c0_i32_0 = arith.constant 0 : i32
    %c0_i32_1 = arith.constant 0 : i32
    return %c0_i32, %c0_i32_0 : i32, i32
  }
  func.func @transform_6(%arg0: i32) -> (i32, i32) {
    %c0_i32 = arith.constant 0 : i32
    %c0_i32_0 = arith.constant 0 : i32
    %c0_i32_1 = arith.constant 0 : i32
    return %c0_i32, %c0_i32_0 : i32, i32
  }
  func.func @transform_7(%arg0: i32) -> (i32, i32) {
    %c0_i32 = arith.constant 0 : i32
    %c0_i32_0 = arith.constant 0 : i32
    %c0_i32_1 = arith.constant 0 : i32
    return %c0_i32, %c0_i32_0 : i32, i32
  }
  func.func @transform_8(%arg0: i32) -> (i32, i32) {
    %c0_i32 = arith.constant 0 : i32
    %c0_i32_0 = arith.constant 0 : i32
    return %arg0, %c0_i32 : i32, i32
  }
}

module attributes {stable_mosaic.version = 11 : i64} {
  func.func @_ln_mlp_kernel(%arg0: i32, %arg1: memref<16x32xf32, #tpu.memory_space<vmem>>, %arg2: memref<16x1xf32, #tpu.memory_space<vmem>>, %arg3: memref<1x32xf32, #tpu.memory_space<vmem>>, %arg4: memref<1x32xf32, #tpu.memory_space<vmem>>, %arg5: memref<32x64xf32, #tpu.memory_space<vmem>>, %arg6: memref<1x64xf32, #tpu.memory_space<vmem>>, %arg7: memref<64x32xf32, #tpu.memory_space<vmem>>, %arg8: memref<1x32xf32, #tpu.memory_space<vmem>>, %arg9: memref<16x32xf32, #tpu.memory_space<vmem>>) attributes {dimension_semantics = [#tpu.dimension_semantics<parallel>], iteration_bounds = array<i64: 1>, scalar_prefetch = 0 : i64, scratch_operands = 0 : i64, tpu.core_type = #tpu.core_type<tc>, window_params = [{transform_indices = @transform_0, window_bounds = array<i64: 16, 32>}, {transform_indices = @transform_1, window_bounds = array<i64: 16, 1>}, {pipeline_mode = #tpu.pipeline_mode<synchronous>, transform_indices = @transform_2, window_bounds = array<i64: 1, 32>}, {pipeline_mode = #tpu.pipeline_mode<synchronous>, transform_indices = @transform_3, window_bounds = array<i64: 1, 32>}, {pipeline_mode = #tpu.pipeline_mode<synchronous>, transform_indices = @transform_4, window_bounds = array<i64: 32, 64>}, {pipeline_mode = #tpu.pipeline_mode<synchronous>, transform_indices = @transform_5, window_bounds = array<i64: 1, 64>}, {pipeline_mode = #tpu.pipeline_mode<synchronous>, transform_indices = @transform_6, window_bounds = array<i64: 64, 32>}, {pipeline_mode = #tpu.pipeline_mode<synchronous>, transform_indices = @transform_7, window_bounds = array<i64: 1, 32>}, {transform_indices = @transform_8, window_bounds = array<i64: 16, 32>}]} {
    %c0 = arith.constant 0 : index
    %c0_0 = arith.constant 0 : index
    %0 = vector.load %arg1[%c0, %c0_0] : memref<16x32xf32, #tpu.memory_space<vmem>>, vector<16x32xf32>
    %c0_1 = arith.constant 0 : index
    %c0_2 = arith.constant 0 : index
    %1 = vector.load %arg3[%c0_1, %c0_2] : memref<1x32xf32, #tpu.memory_space<vmem>>, vector<1x32xf32>
    %c0_3 = arith.constant 0 : index
    %c0_4 = arith.constant 0 : index
    %2 = vector.load %arg4[%c0_3, %c0_4] : memref<1x32xf32, #tpu.memory_space<vmem>>, vector<1x32xf32>
    %cst = arith.constant dense<0.000000e+00> : vector<16xf32>
    %3 = vector.multi_reduction <add>, %0, %cst [1] : vector<16x32xf32> to vector<16xf32>
    %4 = vector.shape_cast %3 : vector<16xf32> to vector<16x1xf32>
    %cst_5 = arith.constant 3.200000e+01 : f32
    %5 = vector.broadcast %cst_5 : f32 to vector<16x1xf32>
    %6 = arith.divf %4, %5 : vector<16x1xf32>
    %7 = vector.broadcast %6 : vector<16x1xf32> to vector<16x32xf32>
    %8 = arith.subf %0, %7 : vector<16x32xf32>
    %9 = arith.mulf %8, %8 : vector<16x32xf32>
    %cst_6 = arith.constant dense<0.000000e+00> : vector<16xf32>
    %10 = vector.multi_reduction <add>, %9, %cst_6 [1] : vector<16x32xf32> to vector<16xf32>
    %11 = vector.shape_cast %10 : vector<16xf32> to vector<16x1xf32>
    %cst_7 = arith.constant 3.200000e+01 : f32
    %12 = vector.broadcast %cst_7 : f32 to vector<16x1xf32>
    %13 = arith.divf %11, %12 : vector<16x1xf32>
    %cst_8 = arith.constant 9.99999974E-6 : f32
    %14 = vector.broadcast %cst_8 : f32 to vector<16x1xf32>
    %15 = arith.addf %13, %14 : vector<16x1xf32>
    %16 = math.rsqrt %15 : vector<16x1xf32>
    %17 = vector.broadcast %16 : vector<16x1xf32> to vector<16x32xf32>
    %18 = arith.mulf %8, %17 : vector<16x32xf32>
    %19 = vector.broadcast %1 : vector<1x32xf32> to vector<16x32xf32>
    %20 = arith.mulf %18, %19 : vector<16x32xf32>
    %21 = vector.broadcast %2 : vector<1x32xf32> to vector<16x32xf32>
    %22 = arith.addf %20, %21 : vector<16x32xf32>
    %c0_9 = arith.constant 0 : index
    %c0_10 = arith.constant 0 : index
    %23 = vector.load %arg5[%c0_9, %c0_10] : memref<32x64xf32, #tpu.memory_space<vmem>>, vector<32x64xf32>
    %cst_11 = arith.constant dense<0.000000e+00> : vector<16x64xf32>
    %24 = tpu.matmul %22, %23, %cst_11 {dimension_numbers = #tpu.dot_dimension_numbers<[1], [0], [0], [1], [0, 0, 1, 1], [], []>} : vector<16x32xf32>, vector<32x64xf32>, vector<16x64xf32> -> vector<16x64xf32>
    %c0_12 = arith.constant 0 : index
    %c0_13 = arith.constant 0 : index
    %25 = vector.load %arg6[%c0_12, %c0_13] : memref<1x64xf32, #tpu.memory_space<vmem>>, vector<1x64xf32>
    %26 = vector.broadcast %25 : vector<1x64xf32> to vector<16x64xf32>
    %27 = arith.addf %24, %26 : vector<16x64xf32>
    %28 = arith.negf %27 : vector<16x64xf32>
    %29 = math.exp %28 : vector<16x64xf32>
    %cst_14 = arith.constant 1.000000e+00 : f32
    %30 = vector.broadcast %cst_14 : f32 to vector<16x64xf32>
    %31 = arith.addf %30, %29 : vector<16x64xf32>
    %32 = arith.divf %30, %31 : vector<16x64xf32>
    %33 = arith.mulf %27, %32 : vector<16x64xf32>
    %c0_15 = arith.constant 0 : index
    %c0_16 = arith.constant 0 : index
    %34 = vector.load %arg7[%c0_15, %c0_16] : memref<64x32xf32, #tpu.memory_space<vmem>>, vector<64x32xf32>
    %cst_17 = arith.constant dense<0.000000e+00> : vector<16x32xf32>
    %35 = tpu.matmul %33, %34, %cst_17 {dimension_numbers = #tpu.dot_dimension_numbers<[1], [0], [0], [1], [0, 0, 1, 1], [], []>} : vector<16x64xf32>, vector<64x32xf32>, vector<16x32xf32> -> vector<16x32xf32>
    %c0_18 = arith.constant 0 : index
    %c0_19 = arith.constant 0 : index
    %36 = vector.load %arg8[%c0_18, %c0_19] : memref<1x32xf32, #tpu.memory_space<vmem>>, vector<1x32xf32>
    %37 = vector.broadcast %36 : vector<1x32xf32> to vector<16x32xf32>
    %38 = arith.addf %35, %37 : vector<16x32xf32>
    %c0_20 = arith.constant 0 : index
    %c0_21 = arith.constant 0 : index
    %39 = vector.load %arg2[%c0_20, %c0_21] : memref<16x1xf32, #tpu.memory_space<vmem>>, vector<16x1xf32>
    %40 = vector.broadcast %39 : vector<16x1xf32> to vector<16x32xf32>
    %41 = arith.mulf %38, %40 : vector<16x32xf32>
    %42 = arith.addf %0, %41 : vector<16x32xf32>
    %c0_22 = arith.constant 0 : index
    %c0_23 = arith.constant 0 : index
    %43 = vector.load %arg9[%c0_22, %c0_23] : memref<16x32xf32, #tpu.memory_space<vmem>>, vector<16x32xf32>
    tpu.vector_store %arg9[%c0_22, %c0_23], %42 {strides = array<i32>} : memref<16x32xf32, #tpu.memory_space<vmem>>, vector<16x32xf32>,
    return
  }
  func.func @transform_0(%arg0: i32) -> (i32, i32) {
    %c0_i32 = arith.constant 0 : i32
    %c0_i32_0 = arith.constant 0 : i32
    return %arg0, %c0_i32 : i32, i32
  }
  func.func @transform_1(%arg0: i32) -> (i32, i32) {
    %c0_i32 = arith.constant 0 : i32
    %c0_i32_0 = arith.constant 0 : i32
    return %arg0, %c0_i32 : i32, i32
  }
  func.func @transform_2(%arg0: i32) -> (i32, i32) {
    %c0_i32 = arith.constant 0 : i32
    %c0_i32_0 = arith.constant 0 : i32
    %c0_i32_1 = arith.constant 0 : i32
    return %c0_i32, %c0_i32_0 : i32, i32
  }
  func.func @transform_3(%arg0: i32) -> (i32, i32) {
    %c0_i32 = arith.constant 0 : i32
    %c0_i32_0 = arith.constant 0 : i32
    %c0_i32_1 = arith.constant 0 : i32
    return %c0_i32, %c0_i32_0 : i32, i32
  }
  func.func @transform_4(%arg0: i32) -> (i32, i32) {
    %c0_i32 = arith.constant 0 : i32
    %c0_i32_0 = arith.constant 0 : i32
    %c0_i32_1 = arith.constant 0 : i32
    return %c0_i32, %c0_i32_0 : i32, i32
  }
  func.func @transform_5(%arg0: i32) -> (i32, i32) {
    %c0_i32 = arith.constant 0 : i32
    %c0_i32_0 = arith.constant 0 : i32
    %c0_i32_1 = arith.constant 0 : i32
    return %c0_i32, %c0_i32_0 : i32, i32
  }
  func.func @transform_6(%arg0: i32) -> (i32, i32) {
    %c0_i32 = arith.constant 0 : i32
    %c0_i32_0 = arith.constant 0 : i32
    %c0_i32_1 = arith.constant 0 : i32
    return %c0_i32, %c0_i32_0 : i32, i32
  }
  func.func @transform_7(%arg0: i32) -> (i32, i32) {
    %c0_i32 = arith.constant 0 : i32
    %c0_i32_0 = arith.constant 0 : i32
    %c0_i32_1 = arith.constant 0 : i32
    return %c0_i32, %c0_i32_0 : i32, i32
  }
  func.func @transform_8(%arg0: i32) -> (i32, i32) {
    %c0_i32 = arith.constant 0 : i32
    %c0_i32_0 = arith.constant 0 : i32
    return %arg0, %c0_i32 : i32, i32
  }
}

</mosaic_0001>

<llo_original>
// kernel: pallas_forward.14
$region0: #{pallas_forward.14}
  #allocation0 [shape = 'u32[]', space=smem, size = 0x4, offset = 0x4, fixed_abs, tag = 'smem constant byte address 0x4 - core index']
  #allocation1 [shape = 'u32[144,128]{1,0:T(1,128)}', space=vmem, size = 0x12000, scoped, tag = 'internal scratch']
  %s0 = inlined_call_operand.vmem [shape: f32[16,32], index: 0, kind: input, shape index: {}]
  %s1 = inlined_call_operand.vmem [shape: f32[16,1], index: 1, kind: input, shape index: {}]
  %s2 = inlined_call_operand.vmem [shape: f32[1,32], index: 2, kind: input, shape index: {}]
  %s3 = inlined_call_operand.vmem [shape: f32[1,32], index: 3, kind: input, shape index: {}]
  %s4 = inlined_call_operand.vmem [shape: f32[32,64], index: 4, kind: input, shape index: {}]
  %s5 = inlined_call_operand.vmem [shape: f32[1,64], index: 5, kind: input, shape index: {}]
  %s6 = inlined_call_operand.vmem [shape: f32[16,16], index: 6, kind: output, shape index: {0}]
  %s7 = inlined_call_operand.vmem [shape: f32[16,16], index: 7, kind: output, shape index: {1}]
  %s8 = inlined_call_operand.vmem [shape: f32[16,32], index: 8, kind: output, shape index: {2}]
  %9 = xla_tuple %s6, %s7, %s8
  %s10 = sld [smem:[#allocation0]]
  $region50: #{pallas_forward.14} parent=0
    _
  %s12 = ssub.s32 1, %s10
  %s13 = scalar_select 0, %s12, %s10
  // Predicated region
  $region2: #{pallas_forward.14} parent=0 // pred_check
    _
  $region3: #{pallas_forward.14} parent=0 // pred_check_branch
    %15 = sbr.rel (0) target = $region5
  $region4: #{pallas_forward.14} parent=0 // pred_region
    _
  $region5: #{pallas_forward.14} parent=0 // pred_fallthru
    _
  // Predicated region
  $region6: #{pallas_forward.14} parent=0 // pred_check
    _
  $region7: #{pallas_forward.14} parent=0 // pred_check_branch
    %17 = sbr.rel (0) target = $region9
  $region8: #{pallas_forward.14} parent=0 // pred_region
    _
  $region9: #{pallas_forward.14} parent=0 // pred_fallthru
    _
  // Predicated region
  $region10: #{pallas_forward.14} parent=0 // pred_check
    _
  $region11: #{pallas_forward.14} parent=0 // pred_check_branch
    %19 = sbr.rel (0) target = $region13
  $region12: #{pallas_forward.14} parent=0 // pred_region
    _
  $region13: #{pallas_forward.14} parent=0 // pred_fallthru
    _
  // Predicated region
  $region14: #{pallas_forward.14} parent=0 // pred_check
    _
  $region15: #{pallas_forward.14} parent=0 // pred_check_branch
    %21 = sbr.rel (0) target = $region17
  $region16: #{pallas_forward.14} parent=0 // pred_region
    _
  $region17: #{pallas_forward.14} parent=0 // pred_fallthru
    _
  // Predicated region
  $region18: #{pallas_forward.14} parent=0 // pred_check
    _
  $region19: #{pallas_forward.14} parent=0 // pred_check_branch
    %23 = sbr.rel (0) target = $region21
  $region20: #{pallas_forward.14} parent=0 // pred_region
    _
  $region21: #{pallas_forward.14} parent=0 // pred_fallthru
    _
  // Predicated region
  $region22: #{pallas_forward.14} parent=0 // pred_check
    _
  $region23: #{pallas_forward.14} parent=0 // pred_check_branch
    %25 = sbr.rel (0) target = $region25
  $region24: #{pallas_forward.14} parent=0 // pred_region
    _
  $region25: #{pallas_forward.14} parent=0 // pred_fallthru
    _
  %v26 = vld [vmem:[%s0] sm:$0xff]
  %v27 = vld [vmem:[%s0 + $0x8] sm:$0xff]
  %v28 = vld [vmem:[%s2] sm:$0x1]
  %v29 = vld [vmem:[%s3] sm:$0x1]
  %vm30 = vcmask 261120
  %v31 = vsel %vm30, %v26, 0.0
  %32 = vadd.xlane.f32.xlu0 %v31
  %v33 = vpop.xlane.xlu0 %32
  %v34 = vsel %vm30, %v27, 0.0
  %35 = vadd.xlane.f32.xlu0 %v34
  %v36 = vpop.xlane.xlu0 %35
  %v37 = vrcp.pop 32.0
  %v38 = vmul.f32 %v33, %v37
  %v39 = vmul.f32 %v36, %v37
  %v40 = vsub.f32 %v26, %v38
  %v41 = vsub.f32 %v27, %v39
  %v42 = vmul.f32 %v40, %v40
  %v43 = vmul.f32 %v41, %v41
  %v44 = vsel %vm30, %v42, 0.0
  %45 = vadd.xlane.f32.xlu0 %v44
  %v46 = vpop.xlane.xlu0 %45
  %v47 = vsel %vm30, %v43, 0.0
  %48 = vadd.xlane.f32.xlu0 %v47
  %v49 = vpop.xlane.xlu0 %48
  %v50 = vmul.f32 %v46, %v37
  %v51 = vmul.f32 %v49, %v37
  %v52 = vadd.f32 %v50, 1e-05
  %v53 = vadd.f32 %v51, 1e-05
  %v54 = vrsqrt.pop %v52
  %v55 = vrsqrt.pop %v53
  %v56 = vmul.f32 %v40, %v54
  %v57 = vmul.f32 %v41, %v55
  %v59 = vlaneseq
  %v60 = vshrl.u32 %v59, 7
  %v61 = vsub.s32 0, %v60
  %v62 = vrot.slane %v28, %v61
  %v64 = vmul.f32 %v56, %v62
  %v65 = vmul.f32 %v57, %v62
  %v67 = vlaneseq
  %v68 = vshrl.u32 %v67, 7
  %v69 = vsub.s32 0, %v68
  %v70 = vrot.slane %v29, %v69
  %v72 = vadd.f32 %v64, %v70
  %v73 = vadd.f32 %v65, %v70
  %v74 = vld [vmem:[%s4] sm:$0xff]
  %v75 = vld [vmem:[%s4 + $0x8] sm:$0xff]
  %v76 = vld [vmem:[%s4 + $0x10] sm:$0xff]
  %v77 = vld [vmem:[%s4 + $0x18] sm:$0xff]
  %v78 = vld [vmem:[%s5] sm:$0x1]
  %v80 = vlaneseq
  %v81 = vshrl.u32 %v80, 7
  %v82 = vsub.s32 0, %v81
  %v83 = vrot.slane %v78, %v82
  %v86 = vsel %vm30, %v72, 0
  %v89 = vsel %vm30, %v73, 0
  %91 = vmatprep.subr.mxu0 0.0
  %92 = vmatpush1.msra.mxu0 %v74
  %93 = vmatprep.subr.mxu0 0.0
  %94 = vmatpush1.msra.mxu0 %v75
  %95 = vmatprep.subr.mxu0 0.0
  %96 = vmatpush1.msra.mxu0 %v76
  %97 = vmatprep.subr.mxu0 0.0
  %98 = vmatpush1.msra.mxu0 %v77
  %99 = vmatprep.subr.mxu0 0.0
  %100 = vmatpush1.msra.mxu0 0.0
  %101 = vmatprep.subr.mxu0 0.0
  %102 = vmatpush1.msra.mxu0 0.0
  %103 = vmatprep.subr.mxu0 0.0
  %104 = vmatpush1.msra.mxu0 0.0
  %105 = vmatprep.subr.mxu0 0.0
  %106 = vmatpush1.msra.mxu0 0.0
  %107 = vmatprep.subr.mxu0 0.0
  %108 = vmatpush1.msra.mxu0 0.0
  %109 = vmatprep.subr.mxu0 0.0
  %110 = vmatpush1.msra.mxu0 0.0
  %111 = vmatprep.subr.mxu0 0.0
  %112 = vmatpush1.msra.mxu0 0.0
  %113 = vmatprep.subr.mxu0 0.0
  %114 = vmatpush1.msra.mxu0 0.0
  %115 = vmatprep.subr.mxu0 0.0
  %116 = vmatpush1.msra.mxu0 0.0
  %117 = vmatprep.subr.mxu0 0.0
  %118 = vmatpush1.msra.mxu0 0.0
  %119 = vmatprep.subr.mxu0 0.0
  %120 = vmatpush1.msra.mxu0 0.0
  %121 = vmatprep.subr.mxu0 0.0
  %122 = vmatpush1.msra.mxu0 0.0
  %123 = vmatprep.subr.mxu0 0.0
  %124 = vmatpush1.msra.mxu0 0.0
  %125 = vmatprep.subr.mxu0 0.0
  %126 = vmatpush1.msra.mxu0 0.0
  %127 = vmatprep.subr.mxu0 0.0
  %128 = vmatpush1.msra.mxu0 0.0
  %129 = vmatprep.subr.mxu0 0.0
  %130 = vmatpush1.msra.mxu0 0.0
  %131 = vmatprep.subr.mxu0 0.0
  %132 = vmatpush1.msra.mxu0 0.0
  %133 = vmatprep.subr.mxu0 0.0
  %134 = vmatpush1.msra.mxu0 0.0
  %135 = vmatprep.subr.mxu0 0.0
  %136 = vmatpush1.msra.mxu0 0.0
  %137 = vmatprep.subr.mxu0 0.0
  %138 = vmatpush1.msra.mxu0 0.0
  %139 = vmatprep.subr.mxu0 0.0
  %140 = vmatpush1.msra.mxu0 0.0
  %141 = vmatprep.subr.mxu0 0.0
  %142 = vmatpush1.msra.mxu0 0.0
  %143 = vmatprep.subr.mxu0 0.0
  %144 = vmatpush1.msra.mxu0 0.0
  %145 = vmatprep.subr.mxu0 0.0
  %146 = vmatpush1.msra.mxu0 0.0
  %147 = vmatprep.subr.mxu0 0.0
  %148 = vmatpush1.msra.mxu0 0.0
  %149 = vmatprep.subr.mxu0 0.0
  %150 = vmatpush1.msra.mxu0 0.0
  %151 = vmatprep.subr.mxu0 0.0
  %152 = vmatpush1.msra.mxu0 0.0
  %153 = vmatprep.subr.mxu0 0.0
  %154 = vmatpush1.msra.mxu0 0.0
  %155 = vmatprep.mubr.f32.mxu0 0.0
  %156 = vmatmul.mubr.f32.gmra.mrb[0].mxu0 %v86
  %v157 = vpop.f32.mrb[0].mxu0
  %v158 = vadd.f32 %v83, %v157
  %v159 = vpop.f32.mrb[0].mxu0
  %160 = vmatprep.mubr.f32.mxu0 0.0
  %161 = vmatmul.mubr.f32.gmra.mrb[0].mxu0 %v89
  %v162 = vpop.f32.mrb[0].mxu0
  %v163 = vadd.f32 %v83, %v162
  %v164 = vpop.f32.mrb[0].mxu0
  %165 = vdwg.mxu0
  %vm166 = vcmask 130048
  %167 = vst.msk [vmem:[%s6] sm:$0xff] %vm166, %v158
  %168 = vst.msk [vmem:[%s6 + $0x8] sm:$0xff] %vm166, %v163
  %171 = vrot.lane.b32.xlu0 %v158, 112
  %v172 = vpop.permute.xlu0 %171
  %173 = vrot.lane.b32.xlu0 %v163, 112
  %v174 = vpop.permute.xlu0 %173
  %177 = vst.msk [vmem:[%s7] sm:$0xff] %vm166, %v172
  %178 = vst.msk [vmem:[%s7 + $0x8] sm:$0xff] %vm166, %v174
  %v179 = vld [vmem:[%s1] sm:$0xff]
  %v180 = vld [vmem:[%s1 + $0x8] sm:$0xff]
  %182 = vset.pattern.permute.xlu0 0
  %183 = vperm.xlu0 %182, %v179
  %v184 = vpop.permute.xlu0 %183
  %187 = vset.pattern.permute.xlu0 0
  %188 = vperm.xlu0 %187, %v180
  %v189 = vpop.permute.xlu0 %188
  %v191 = vmul.f32 %v158, %v184
  %v192 = vmul.f32 %v163, %v189
  %195 = vrot.lane.b32.xlu0 %v191, 96
  %v196 = vpop.permute.xlu0 %195
  %197 = vrot.lane.b32.xlu0 %v192, 96
  %v198 = vpop.permute.xlu0 %197
  %201 = vst.msk [vmem:[%s8] sm:$0xff] %vm30, %v196
  %202 = vst.msk [vmem:[%s8 + $0x8] sm:$0xff] %vm30, %v198
  // Predicated region
  $region26: #{pallas_forward.14} parent=0 // pred_check
    _
  $region27: #{pallas_forward.14} parent=0 // pred_check_branch
    %204 = sbr.rel (0) target = $region29
  $region28: #{pallas_forward.14} parent=0 // pred_region
    _
  $region29: #{pallas_forward.14} parent=0 // pred_fallthru
    _
  // Predicated region
  $region30: #{pallas_forward.14} parent=0 // pred_check
    _
  $region31: #{pallas_forward.14} parent=0 // pred_check_branch
    %206 = sbr.rel (0) target = $region33
  $region32: #{pallas_forward.14} parent=0 // pred_region
    _
  $region33: #{pallas_forward.14} parent=0 // pred_fallthru
    _
  // Predicated region
  $region34: #{pallas_forward.14} parent=0 // pred_check
    _
  $region35: #{pallas_forward.14} parent=0 // pred_check_branch
    %208 = sbr.rel (0) target = $region37
  $region36: #{pallas_forward.14} parent=0 // pred_region
    _
  $region37: #{pallas_forward.14} parent=0 // pred_fallthru
    _
  // Predicated region
  $region38: #{pallas_forward.14} parent=0 // pred_check
    _
  $region39: #{pallas_forward.14} parent=0 // pred_check_branch
    %210 = sbr.rel (0) target = $region41
  $region40: #{pallas_forward.14} parent=0 // pred_region
    _
  $region41: #{pallas_forward.14} parent=0 // pred_fallthru
    _
  // Predicated region
  $region42: #{pallas_forward.14} parent=0 // pred_check
    _
  $region43: #{pallas_forward.14} parent=0 // pred_check_branch
    %212 = sbr.rel (0) target = $region45
  $region44: #{pallas_forward.14} parent=0 // pred_region
    _
  $region45: #{pallas_forward.14} parent=0 // pred_fallthru
    _
  // Predicated region
  $region46: #{pallas_forward.14} parent=0 // pred_check
    _
  $region47: #{pallas_forward.14} parent=0 // pred_check_branch
    %214 = sbr.rel (0) target = $region49
  $region48: #{pallas_forward.14} parent=0 // pred_region
    _
  $region49: #{pallas_forward.14} parent=0 // pred_fallthru
    _

// kernel: pallas_forward.17
$region0: #{pallas_forward.17}
  #allocation0 [shape = 'u32[]', space=smem, size = 0x4, offset = 0x4, fixed_abs, tag = 'smem constant byte address 0x4 - core index']
  #allocation1 [shape = 'u32[144,128]{1,0:T(1,128)}', space=vmem, size = 0x12000, scoped, tag = 'internal scratch']
  %s0 = inlined_call_operand.vmem [shape: f32[2,8,8,16], index: 0, kind: input, shape index: {}]
  %s1 = inlined_call_operand.vmem [shape: f32[2,8,8], index: 1, kind: input, shape index: {}]
  %s2 = inlined_call_operand.vmem [shape: f32[1,16], index: 2, kind: input, shape index: {}]
  %s3 = inlined_call_operand.vmem [shape: f32[1,16], index: 3, kind: input, shape index: {}]
  %s4 = inlined_call_operand.vmem [shape: f32[16,32], index: 4, kind: input, shape index: {}]
  %s5 = inlined_call_operand.vmem [shape: f32[1,32], index: 5, kind: input, shape index: {}]
  %s6 = inlined_call_operand.vmem [shape: f32[16,16], index: 6, kind: input, shape index: {}]
  %s7 = inlined_call_operand.vmem [shape: f32[1,16], index: 7, kind: input, shape index: {}]
  %s8 = inlined_call_operand.vmem [shape: f32[16,16], index: 8, kind: input, shape index: {}]
  %s9 = inlined_call_operand.vmem [shape: f32[1,16], index: 9, kind: input, shape index: {}]
  %s10 = inlined_call_operand.vmem [shape: f32[2,8,8,16], index: 10, kind: output, shape index: {0}]
  %s11 = inlined_call_operand.vmem [shape: f32[2,8,8,16], index: 11, kind: output, shape index: {1}]
  %12 = xla_tuple %s10, %s11
  %s13 = sld [smem:[#allocation0]]
  $region81: #{pallas_forward.17} parent=0
    _
  %s15 = ssub.s32 1, %s13
  %s16 = scalar_select 0, %s15, %s13
  loop: start=0, step=1, limit=4
  $region2: #{pallas_forward.17} parent=0 // loop_pre_header
    _
  $region3: #{pallas_forward.17} parent=0 // loop_header
    %s18 = sphi 0, %s22
    %p19 = scmp.ge.s32.totalorder %s18, 4
    %s25 = sphi 0, %s37
    %s26 = sphi 0, %s33
    %s27 = sphi 0, %s25
    %s28 = sphi 0, %s26
    %s29 = sphi 0, %s27
    %s30 = sphi 0, %s28
    %s42 = sphi 0, %s44
    %s45 = sphi 0, %s42
    %s46 = sphi 0, %s45
    %s62 = sphi 0, %s46
    %s70 = sphi 0, %s72
    %s73 = sphi 0, %s70
    %s74 = sphi 0, %s73
    %s90 = sphi 0, %s74
    %s94 = sphi 0, %s94
    %s96 = sphi 0, %s94
    %s97 = sphi 0, %s96
    %s111 = sphi 0, %s97
    %s115 = sphi 0, %s115
    %s117 = sphi 0, %s115
    %s118 = sphi 0, %s117
    %s132 = sphi 0, %s118
    %s136 = sphi 0, %s136
    %s138 = sphi 0, %s136
    %s139 = sphi 0, %s138
    %s153 = sphi 0, %s139
    %s157 = sphi 0, %s157
    %s159 = sphi 0, %s157
    %s160 = sphi 0, %s159
    %s174 = sphi 0, %s160
    %s178 = sphi 0, %s178
    %s180 = sphi 0, %s178
    %s181 = sphi 0, %s180
    %s195 = sphi 0, %s181
    %s199 = sphi 0, %s199
    %s201 = sphi 0, %s199
    %s202 = sphi 0, %s201
    %s216 = sphi 0, %s202
    %s220 = sphi 0, %s220
    %s222 = sphi 0, %s220
    %s223 = sphi 0, %s222
    %s237 = sphi 0, %s223
    %s241 = sphi 0, %s241
    %s243 = sphi 0, %s241
    %s244 = sphi 0, %s243
    %s258 = sphi 0, %s244
    %s266 = sphi 0, %s268
    %s269 = sphi 0, %s266
    %s270 = sphi 0, %s269
    %s286 = sphi 0, %s270
    %s294 = sphi 0, %s296
    %s297 = sphi 0, %s294
    %s298 = sphi 0, %s297
    %s314 = sphi 0, %s298
  $region4: #{pallas_forward.17} parent=0 // loop_header_branch
    %21 = sbr.rel (%p19) target = $region8
  $region5: #{pallas_forward.17} parent=0 // loop_body
    %s23 = ssub.s32 %s18, 1
    %s24 = ssub.s32 %s18, 2
    %s31 = sadd.s32 1, %s26
    %p32 = scmp.ge.s32.totalorder %s31, 1
    %s33 = scalar_select %p32, 0, %s31
    %s34 = sadd.s32 1, %s25
    %s35 = scalar_select %p32, %s34, %s25
    %p36 = scmp.ge.s32.totalorder %s35, 2
    %s37 = scalar_select %p36, 0, %s35
    %s38 = ssub.s32 %s25, %s37
    %s39 = ssub.s32 %s26, %s33
    %s40 = sor.u32 %s38, %s39
    %p41 = scmp.eq.s32.totalorder %s40, 0
    %s43 = sadd.s32 %s42, 1
    %s44 = scalar_select %p41, %s42, %s43
    %p47 = pneg %p41
    %p48 = scmp.eq.s32.totalorder %s18, 1
    %p49 = por %p47, %p48
    %p50 = scmp.ne.s32.totalorder %s42, %s45
    %p51 = scmp.eq.s32.totalorder %s18, 0
    %p52 = por %p50, %p51
    %p53 = scmp.ne.s32.totalorder %s42, %s45
    %p54 = scmp.eq.s32.totalorder %s23, 1
    %p55 = por %p53, %p54
    %p56 = scmp.ne.s32.totalorder %s45, %s46
    %p57 = scmp.eq.s32.totalorder %s23, 0
    %p58 = por %p56, %p57
    %p59 = scmp.ne.s32.totalorder %s45, %s46
    %p60 = scmp.eq.s32.totalorder %s24, 1
    %p61 = por %p59, %p60
    %p63 = scmp.ne.s32.totalorder %s46, %s62
    %p64 = scmp.eq.s32.totalorder %s24, 0
    %p65 = por %p63, %p64
    %s66 = ssub.s32 %s25, %s37
    %s67 = ssub.s32 %s26, %s33
    %s68 = sor.u32 %s66, %s67
    %p69 = scmp.eq.s32.totalorder %s68, 0
    %s71 = sadd.s32 %s70, 1
    %s72 = scalar_select %p69, %s70, %s71
    %p75 = pneg %p69
    %p76 = scmp.eq.s32.totalorder %s18, 1
    %p77 = por %p75, %p76
    %p78 = scmp.ne.s32.totalorder %s70, %s73
    %p79 = scmp.eq.s32.totalorder %s18, 0
    %p80 = por %p78, %p79
    %p81 = scmp.ne.s32.totalorder %s70, %s73
    %p82 = scmp.eq.s32.totalorder %s23, 1
    %p83 = por %p81, %p82
    %p84 = scmp.ne.s32.totalorder %s73, %s74
    %p85 = scmp.eq.s32.totalorder %s23, 0
    %p86 = por %p84, %p85
    %p87 = scmp.ne.s32.totalorder %s73, %s74
    %p88 = scmp.eq.s32.totalorder %s24, 1
    %p89 = por %p87, %p88
    %p91 = scmp.ne.s32.totalorder %s74, %s90
    %p92 = scmp.eq.s32.totalorder %s24, 0
    %p93 = por %p91, %p92
    %s95 = sadd.s32 %s94, 1
    %p98 = scmp.eq.s32.totalorder %s18, 1
    %p99 = scmp.ne.s32.totalorder %s94, %s96
    %p100 = scmp.eq.s32.totalorder %s18, 0
    %p101 = por %p99, %p100
    %p102 = scmp.ne.s32.totalorder %s94, %s96
    %p103 = scmp.eq.s32.totalorder %s23, 1
    %p104 = por %p102, %p103
    %p105 = scmp.ne.s32.totalorder %s96, %s97
    %p106 = scmp.eq.s32.totalorder %s23, 0
    %p107 = por %p105, %p106
    %p108 = scmp.ne.s32.totalorder %s96, %s97
    %p109 = scmp.eq.s32.totalorder %s24, 1
    %p110 = por %p108, %p109
    %p112 = scmp.ne.s32.totalorder %s97, %s111
    %p113 = scmp.eq.s32.totalorder %s24, 0
    %p114 = por %p112, %p113
    %s116 = sadd.s32 %s115, 1
    %p119 = scmp.eq.s32.totalorder %s18, 1
    %p120 = scmp.ne.s32.totalorder %s115, %s117
    %p121 = scmp.eq.s32.totalorder %s18, 0
    %p122 = por %p120, %p121
    %p123 = scmp.ne.s32.totalorder %s115, %s117
    %p124 = scmp.eq.s32.totalorder %s23, 1
    %p125 = por %p123, %p124
    %p126 = scmp.ne.s32.totalorder %s117, %s118
    %p127 = scmp.eq.s32.totalorder %s23, 0
    %p128 = por %p126, %p127
    %p129 = scmp.ne.s32.totalorder %s117, %s118
    %p130 = scmp.eq.s32.totalorder %s24, 1
    %p131 = por %p129, %p130
    %p133 = scmp.ne.s32.totalorder %s118, %s132
    %p134 = scmp.eq.s32.totalorder %s24, 0
    %p135 = por %p133, %p134
    %s137 = sadd.s32 %s136, 1
    %p140 = scmp.eq.s32.totalorder %s18, 1
    %p141 = scmp.ne.s32.totalorder %s136, %s138
    %p142 = scmp.eq.s32.totalorder %s18, 0
    %p143 = por %p141, %p142
    %p144 = scmp.ne.s32.totalorder %s136, %s138
    %p145 = scmp.eq.s32.totalorder %s23, 1
    %p146 = por %p144, %p145
    %p147 = scmp.ne.s32.totalorder %s138, %s139
    %p148 = scmp.eq.s32.totalorder %s23, 0
    %p149 = por %p147, %p148
    %p150 = scmp.ne.s32.totalorder %s138, %s139
    %p151 = scmp.eq.s32.totalorder %s24, 1
    %p152 = por %p150, %p151
    %p154 = scmp.ne.s32.totalorder %s139, %s153
    %p155 = scmp.eq.s32.totalorder %s24, 0
    %p156 = por %p154, %p155
    %s158 = sadd.s32 %s157, 1
    %p161 = scmp.eq.s32.totalorder %s18, 1
    %p162 = scmp.ne.s32.totalorder %s157, %s159
    %p163 = scmp.eq.s32.totalorder %s18, 0
    %p164 = por %p162, %p163
    %p165 = scmp.ne.s32.totalorder %s157, %s159
    %p166 = scmp.eq.s32.totalorder %s23, 1
    %p167 = por %p165, %p166
    %p168 = scmp.ne.s32.totalorder %s159, %s160
    %p169 = scmp.eq.s32.totalorder %s23, 0
    %p170 = por %p168, %p169
    %p171 = scmp.ne.s32.totalorder %s159, %s160
    %p172 = scmp.eq.s32.totalorder %s24, 1
    %p173 = por %p171, %p172
    %p175 = scmp.ne.s32.totalorder %s160, %s174
    %p176 = scmp.eq.s32.totalorder %s24, 0
    %p177 = por %p175, %p176
    %s179 = sadd.s32 %s178, 1
    %p182 = scmp.eq.s32.totalorder %s18, 1
    %p183 = scmp.ne.s32.totalorder %s178, %s180
    %p184 = scmp.eq.s32.totalorder %s18, 0
    %p185 = por %p183, %p184
    %p186 = scmp.ne.s32.totalorder %s178, %s180
    %p187 = scmp.eq.s32.totalorder %s23, 1
    %p188 = por %p186, %p187
    %p189 = scmp.ne.s32.totalorder %s180, %s181
    %p190 = scmp.eq.s32.totalorder %s23, 0
    %p191 = por %p189, %p190
    %p192 = scmp.ne.s32.totalorder %s180, %s181
    %p193 = scmp.eq.s32.totalorder %s24, 1
    %p194 = por %p192, %p193
    %p196 = scmp.ne.s32.totalorder %s181, %s195
    %p197 = scmp.eq.s32.totalorder %s24, 0
    %p198 = por %p196, %p197
    %s200 = sadd.s32 %s199, 1
    %p203 = scmp.eq.s32.totalorder %s18, 1
    %p204 = scmp.ne.s32.totalorder %s199, %s201
    %p205 = scmp.eq.s32.totalorder %s18, 0
    %p206 = por %p204, %p205
    %p207 = scmp.ne.s32.totalorder %s199, %s201
    %p208 = scmp.eq.s32.totalorder %s23, 1
    %p209 = por %p207, %p208
    %p210 = scmp.ne.s32.totalorder %s201, %s202
    %p211 = scmp.eq.s32.totalorder %s23, 0
    %p212 = por %p210, %p211
    %p213 = scmp.ne.s32.totalorder %s201, %s202
    %p214 = scmp.eq.s32.totalorder %s24, 1
    %p215 = por %p213, %p214
    %p217 = scmp.ne.s32.totalorder %s202, %s216
    %p218 = scmp.eq.s32.totalorder %s24, 0
    %p219 = por %p217, %p218
    %s221 = sadd.s32 %s220, 1
    %p224 = scmp.eq.s32.totalorder %s18, 1
    %p225 = scmp.ne.s32.totalorder %s220, %s222
    %p226 = scmp.eq.s32.totalorder %s18, 0
    %p227 = por %p225, %p226
    %p228 = scmp.ne.s32.totalorder %s220, %s222
    %p229 = scmp.eq.s32.totalorder %s23, 1
    %p230 = por %p228, %p229
    %p231 = scmp.ne.s32.totalorder %s222, %s223
    %p232 = scmp.eq.s32.totalorder %s23, 0
    %p233 = por %p231, %p232
    %p234 = scmp.ne.s32.totalorder %s222, %s223
    %p235 = scmp.eq.s32.totalorder %s24, 1
    %p236 = por %p234, %p235
    %p238 = scmp.ne.s32.totalorder %s223, %s237
    %p239 = scmp.eq.s32.totalorder %s24, 0
    %p240 = por %p238, %p239
    %s242 = sadd.s32 %s241, 1
    %p245 = scmp.eq.s32.totalorder %s18, 1
    %p246 = scmp.ne.s32.totalorder %s241, %s243
    %p247 = scmp.eq.s32.totalorder %s18, 0
    %p248 = por %p246, %p247
    %p249 = scmp.ne.s32.totalorder %s241, %s243
    %p250 = scmp.eq.s32.totalorder %s23, 1
    %p251 = por %p249, %p250
    %p252 = scmp.ne.s32.totalorder %s243, %s244
    %p253 = scmp.eq.s32.totalorder %s23, 0
    %p254 = por %p252, %p253
    %p255 = scmp.ne.s32.totalorder %s243, %s244
    %p256 = scmp.eq.s32.totalorder %s24, 1
    %p257 = por %p255, %p256
    %p259 = scmp.ne.s32.totalorder %s244, %s258
    %p260 = scmp.eq.s32.totalorder %s24, 0
    %p261 = por %p259, %p260
    %s262 = ssub.s32 %s25, %s37
    %s263 = ssub.s32 %s26, %s33
    %s264 = sor.u32 %s262, %s263
    %p265 = scmp.eq.s32.totalorder %s264, 0
    %s267 = sadd.s32 %s266, 1
    %s268 = scalar_select %p265, %s266, %s267
    %p271 = pneg %p265
    %p272 = scmp.eq.s32.totalorder %s18, 1
    %p273 = por %p271, %p272
    %p274 = scmp.ne.s32.totalorder %s266, %s269
    %p275 = scmp.eq.s32.totalorder %s18, 0
    %p276 = por %p274, %p275
    %p277 = scmp.ne.s32.totalorder %s266, %s269
    %p278 = scmp.eq.s32.totalorder %s23, 1
    %p279 = por %p277, %p278
    %p280 = scmp.ne.s32.totalorder %s269, %s270
    %p281 = scmp.eq.s32.totalorder %s23, 0
    %p282 = por %p280, %p281
    %p283 = scmp.ne.s32.totalorder %s269, %s270
    %p284 = scmp.eq.s32.totalorder %s24, 1
    %p285 = por %p283, %p284
    %p287 = scmp.ne.s32.totalorder %s270, %s286
    %p288 = scmp.eq.s32.totalorder %s24, 0
    %p289 = por %p287, %p288
    %s290 = ssub.s32 %s25, %s37
    %s291 = ssub.s32 %s26, %s33
    %s292 = sor.u32 %s290, %s291
    %p293 = scmp.eq.s32.totalorder %s292, 0
    %s295 = sadd.s32 %s294, 1
    %s296 = scalar_select %p293, %s294, %s295
    %p299 = pneg %p293
    %p300 = scmp.eq.s32.totalorder %s18, 1
    %p301 = por %p299, %p300
    %p302 = scmp.ne.s32.totalorder %s294, %s297
    %p303 = scmp.eq.s32.totalorder %s18, 0
    %p304 = por %p302, %p303
    %p305 = scmp.ne.s32.totalorder %s294, %s297
    %p306 = scmp.eq.s32.totalorder %s23, 1
    %p307 = por %p305, %p306
    %p308 = scmp.ne.s32.totalorder %s297, %s298
    %p309 = scmp.eq.s32.totalorder %s23, 0
    %p310 = por %p308, %p309
    %p311 = scmp.ne.s32.totalorder %s297, %s298
    %p312 = scmp.eq.s32.totalorder %s24, 1
    %p313 = por %p311, %p312
    %p315 = scmp.ne.s32.totalorder %s298, %s314
    %p316 = scmp.eq.s32.totalorder %s24, 0
    %p317 = por %p315, %p316
    %p318 = scmp.le.s32.totalorder 1, %s18
    %p319 = scmp.lt.s32.totalorder %s18, 3
    %p320 = pnand %p318, %p319
    %p321 = pneg %p320
    // Predicated region
    $region9: #{pallas_forward.17} parent=5 // pred_check
      _
    $region10: #{pallas_forward.17} parent=5 // pred_check_branch
      %323 = sbr.rel (%p320) target = $region12
    $region11: #{pallas_forward.17} parent=5 // pred_region
      %s324 = ssub.s32 %s18, 1
      // Predicated region
      $region13: #{pallas_forward.17} parent=11 // pred_check
        %p325 = pneg %p107
      $region14: #{pallas_forward.17} parent=11 // pred_check_branch
        %327 = sbr.rel (%p325) target = $region16
      $region15: #{pallas_forward.17} parent=11 // pred_region
        _
      $region16: #{pallas_forward.17} parent=11 // pred_fallthru
        _
      // Predicated region
      $region17: #{pallas_forward.17} parent=11 // pred_check
        %p328 = pneg %p128
      $region18: #{pallas_forward.17} parent=11 // pred_check_branch
        %330 = sbr.rel (%p328) target = $region20
      $region19: #{pallas_forward.17} parent=11 // pred_region
        _
      $region20: #{pallas_forward.17} parent=11 // pred_fallthru
        _
      // Predicated region
      $region21: #{pallas_forward.17} parent=11 // pred_check
        %p331 = pneg %p149
      $region22: #{pallas_forward.17} parent=11 // pred_check_branch
        %333 = sbr.rel (%p331) target = $region24
      $region23: #{pallas_forward.17} parent=11 // pred_region
        _
      $region24: #{pallas_forward.17} parent=11 // pred_fallthru
        _
      // Predicated region
      $region25: #{pallas_forward.17} parent=11 // pred_check
        %p334 = pneg %p170
      $region26: #{pallas_forward.17} parent=11 // pred_check_branch
        %336 = sbr.rel (%p334) target = $region28
      $region27: #{pallas_forward.17} parent=11 // pred_region
        _
      $region28: #{pallas_forward.17} parent=11 // pred_fallthru
        _
      // Predicated region
      $region29: #{pallas_forward.17} parent=11 // pred_check
        %p337 = pneg %p191
      $region30: #{pallas_forward.17} parent=11 // pred_check_branch
        %339 = sbr.rel (%p337) target = $region32
      $region31: #{pallas_forward.17} parent=11 // pred_region
        _
      $region32: #{pallas_forward.17} parent=11 // pred_fallthru
        _
      // Predicated region
      $region33: #{pallas_forward.17} parent=11 // pred_check
        %p340 = pneg %p212
      $region34: #{pallas_forward.17} parent=11 // pred_check_branch
        %342 = sbr.rel (%p340) target = $region36
      $region35: #{pallas_forward.17} parent=11 // pred_region
        _
      $region36: #{pallas_forward.17} parent=11 // pred_fallthru
        _
      // Predicated region
      $region37: #{pallas_forward.17} parent=11 // pred_check
        %p343 = pneg %p233
      $region38: #{pallas_forward.17} parent=11 // pred_check_branch
        %345 = sbr.rel (%p343) target = $region40
      $region39: #{pallas_forward.17} parent=11 // pred_region
        _
      $region40: #{pallas_forward.17} parent=11 // pred_fallthru
        _
      // Predicated region
      $region41: #{pallas_forward.17} parent=11 // pred_check
        %p346 = pneg %p254
      $region42: #{pallas_forward.17} parent=11 // pred_check_branch
        %348 = sbr.rel (%p346) target = $region44
      $region43: #{pallas_forward.17} parent=11 // pred_region
        _
      $region44: #{pallas_forward.17} parent=11 // pred_fallthru
        _
    $region12: #{pallas_forward.17} parent=5 // pred_fallthru
      _
    %p349 = scmp.lt.s32.totalorder %s18, 2
    // Predicated region
    $region45: #{pallas_forward.17} parent=5 // pred_check
      %p350 = pneg %p349
    $region46: #{pallas_forward.17} parent=5 // pred_check_branch
      %352 = sbr.rel (%p350) target = $region48
    $region47: #{pallas_forward.17} parent=5 // pred_region
      // Predicated region
      $region49: #{pallas_forward.17} parent=47 // pred_check
        %p353 = pneg %p52
      $region50: #{pallas_forward.17} parent=47 // pred_check_branch
        %355 = sbr.rel (%p353) target = $region52
      $region51: #{pallas_forward.17} parent=47 // pred_region
        %s356 = smul.u32 8, %s26
        %p357 = scmp.lt.s32.totalorder %s25, 1
        %s358 = scalar_select %p357, %s25, 1
        %p359 = scmp.lt.s32.totalorder %s356, 7
        %s360 = scalar_select %p359, %s356, 7
        %s361 = smul.addr %s358, 8
        %s362 = sadd.s32 %s360, %s361
        %s363 = smul.addr %s362, 8
        %s364 = scalar_lea.vmem %s0, %s363
        %s365 = smul.u32 8, %s26
      $region52: #{pallas_forward.17} parent=47 // pred_fallthru
        _
      // Predicated region
      $region53: #{pallas_forward.17} parent=47 // pred_check
        %p366 = pneg %p80
      $region54: #{pallas_forward.17} parent=47 // pred_check_branch
        %368 = sbr.rel (%p366) target = $region56
      $region55: #{pallas_forward.17} parent=47 // pred_region
        %p369 = scmp.lt.s32.totalorder %s25, 1
        %s370 = scalar_select %p369, %s25, 1
        %p371 = scmp.lt.s32.totalorder %s26, 0
        %s372 = scalar_select %p371, %s26, 0
        %s373 = sadd.s32 %s372, %s370
        %s374 = smul.addr %s373, 8
        %s375 = scalar_lea.vmem %s1, %s374
      $region56: #{pallas_forward.17} parent=47 // pred_fallthru
        _
    $region48: #{pallas_forward.17} parent=5 // pred_fallthru
      _
    %p376 = scmp.le.s32.totalorder 1, %s18
    %p377 = scmp.lt.s32.totalorder %s18, 3
    %p378 = pnand %p376, %p377
    %p379 = pneg %p378
    // Predicated region
    $region57: #{pallas_forward.17} parent=5 // pred_check
      _
    $region58: #{pallas_forward.17} parent=5 // pred_check_branch
      %381 = sbr.rel (%p378) target = $region60
    $region59: #{pallas_forward.17} parent=5 // pred_region
      %s382 = ssub.s32 %s18, 1
      %s383 = smul.u32 8, %s28
      %p384 = scmp.lt.s32.totalorder %s27, 1
      %s385 = scalar_select %p384, %s27, 1
      %p386 = scmp.lt.s32.totalorder %s383, 7
      %s387 = scalar_select %p386, %s383, 7
      %s388 = smul.addr %s385, 8
      %s389 = sadd.s32 %s387, %s388
      %s390 = smul.addr %s389, 8
      %s391 = scalar_lea.vmem %s0, %s390
      %p392 = pneg %p58
      %p393 = pneg %p55
      %p394 = scmp.lt.s32.totalorder %s27, 1
      %s395 = scalar_select %p394, %s27, 1
      %p396 = scmp.lt.s32.totalorder %s28, 0
      %s397 = scalar_select %p396, %s28, 0
      %s398 = sadd.s32 %s397, %s395
      %s399 = smul.addr %s398, 8
      %s400 = scalar_lea.vmem %s1, %s399
      %p401 = pneg %p86
      %p402 = pneg %p83
      %p403 = pneg %p107
      %p404 = pneg %p104
      %p405 = pneg %p128
      %p406 = pneg %p125
      %p407 = pneg %p149
      %p408 = pneg %p146
      %p409 = pneg %p170
      %p410 = pneg %p167
      %p411 = pneg %p191
      %p412 = pneg %p188
      %p413 = pneg %p212
      %p414 = pneg %p209
      %p415 = pneg %p233
      %p416 = pneg %p230
      %p417 = pneg %p254
      %p418 = pneg %p251
      %p419 = pneg %p282
      %p420 = pneg %p279
      %s421 = smul.u32 8, %s28
      %p422 = scmp.lt.s32.totalorder %s27, 1
      %s423 = scalar_select %p422, %s27, 1
      %p424 = scmp.lt.s32.totalorder %s421, 7
      %s425 = scalar_select %p424, %s421, 7
      %s426 = smul.addr %s423, 8
      %s427 = sadd.s32 %s425, %s426
      %s428 = smul.addr %s427, 8
      %s429 = scalar_lea.vmem %s10, %s428
      %p430 = pneg %p310
      %p431 = pneg %p307
      %s432 = smul.u32 8, %s28
      %p433 = scmp.lt.s32.totalorder %s27, 1
      %s434 = scalar_select %p433, %s27, 1
      %p435 = scmp.lt.s32.totalorder %s432, 7
      %s436 = scalar_select %p435, %s432, 7
      %s437 = smul.addr %s434, 8
      %s438 = sadd.s32 %s436, %s437
      %s439 = smul.addr %s438, 8
      %s440 = scalar_lea.vmem %s11, %s439
      %s441 = smul.u32 8, %s28
      %p442 = scmp.lt.s32.totalorder %s27, 1
      %s443 = scalar_select %p442, %s27, 1
      %p444 = scmp.lt.s32.totalorder %s441, 7
      %s445 = scalar_select %p444, %s441, 7
      %s446 = smul.addr %s443, 8
      %s447 = sadd.s32 %s445, %s446
      %s448 = smul.addr %s447, 8
      %s449 = scalar_lea.vmem %s0, %s448
      %s450 = smul.u32 8, %s28
      %p451 = scmp.lt.s32.totalorder %s27, 1
      %s452 = scalar_select %p451, %s27, 1
      %p453 = scmp.lt.s32.totalorder %s28, 0
      %s454 = scalar_select %p453, %s28, 0
      %s455 = sadd.s32 %s454, %s452
      %s456 = smul.addr %s455, 8
      %s457 = scalar_lea.vmem %s1, %s456
      %s458 = smul.u32 8, %s28
      %p459 = scmp.lt.s32.totalorder %s27, 1
      %s460 = scalar_select %p459, %s27, 1
      %p461 = scmp.lt.s32.totalorder %s458, 7
      %s462 = scalar_select %p461, %s458, 7
      %s463 = smul.addr %s460, 8
      %s464 = sadd.s32 %s462, %s463
      %s465 = smul.addr %s464, 8
      %s466 = scalar_lea.vmem %s10, %s465
      %s467 = smul.u32 8, %s28
      %s468 = smul.u32 8, %s28
      %p469 = scmp.lt.s32.totalorder %s27, 1
      %s470 = scalar_select %p469, %s27, 1
      %p471 = scmp.lt.s32.totalorder %s468, 7
      %s472 = scalar_select %p471, %s468, 7
      %s473 = smul.addr %s470, 8
      %s474 = sadd.s32 %s472, %s473
      %s475 = smul.addr %s474, 8
      %s476 = scalar_lea.vmem %s11, %s475
      %s477 = smul.u32 8, %s28
      %v478 = vld [vmem:[%s457] sm:$0xff]
      %v479 = vlaneseq
      %v480 = vshrl.u32 %v479, 7
      %v481 = vsub.s32 0, %v480
      %v482 = vrot.slane %v478, %v481
      %484 = vbcast.lane.b32.xlu0 %v482, 256
      %v485 = vpop.permute.xlu0 %484
      %v486 = vlaneseq
      %v487 = vshrl.u32 %v486, 7
      %v488 = vsub.s32 1, %v487
      %v489 = vrot.slane %v478, %v488
      %491 = vbcast.lane.b32.xlu0 %v489, 256
      %v492 = vpop.permute.xlu0 %491
      %v493 = vlaneseq
      %v494 = vshrl.u32 %v493, 7
      %v495 = vsub.s32 2, %v494
      %v496 = vrot.slane %v478, %v495
      %498 = vbcast.lane.b32.xlu0 %v496, 256
      %v499 = vpop.permute.xlu0 %498
      %v500 = vlaneseq
      %v501 = vshrl.u32 %v500, 7
      %v502 = vsub.s32 3, %v501
      %v503 = vrot.slane %v478, %v502
      %505 = vbcast.lane.b32.xlu0 %v503, 256
      %v506 = vpop.permute.xlu0 %505
      %v507 = vlaneseq
      %v508 = vshrl.u32 %v507, 7
      %v509 = vsub.s32 4, %v508
      %v510 = vrot.slane %v478, %v509
      %512 = vbcast.lane.b32.xlu0 %v510, 256
      %v513 = vpop.permute.xlu0 %512
      %v514 = vlaneseq
      %v515 = vshrl.u32 %v514, 7
      %v516 = vsub.s32 5, %v515
      %v517 = vrot.slane %v478, %v516
      %519 = vbcast.lane.b32.xlu0 %v517, 256
      %v520 = vpop.permute.xlu0 %519
      %v521 = vlaneseq
      %v522 = vshrl.u32 %v521, 7
      %v523 = vsub.s32 6, %v522
      %v524 = vrot.slane %v478, %v523
      %526 = vbcast.lane.b32.xlu0 %v524, 256
      %v527 = vpop.permute.xlu0 %526
      %v528 = vlaneseq
      %v529 = vshrl.u32 %v528, 7
      %v530 = vsub.s32 7, %v529
      %v531 = vrot.slane %v478, %v530
      %533 = vbcast.lane.b32.xlu0 %v531, 256
      %v534 = vpop.permute.xlu0 %533
      %v535 = vld [vmem:[%s449] sm:$0xff]
      %v536 = vld [vmem:[%s449 + $0x8] sm:$0xff]
      %v537 = vld [vmem:[%s449 + $0x10] sm:$0xff]
      %v538 = vld [vmem:[%s449 + $0x18] sm:$0xff]
      %v539 = vld [vmem:[%s449 + $0x20] sm:$0xff]
      %v540 = vld [vmem:[%s449 + $0x28] sm:$0xff]
      %v541 = vld [vmem:[%s449 + $0x30] sm:$0xff]
      %v542 = vld [vmem:[%s449 + $0x38] sm:$0xff]
      %v543 = vld [vmem:[%s2] sm:$0x1]
      %v544 = vld [vmem:[%s3] sm:$0x1]
      %vm545 = vcmask 130048
      %v546 = vsel %vm545, %v535, 0.0
      %547 = vadd.xlane.f32.xlu0 %v546
      %v548 = vpop.xlane.xlu0 %547
      %v549 = vsel %vm545, %v536, 0.0
      %550 = vadd.xlane.f32.xlu0 %v549
      %v551 = vpop.xlane.xlu0 %550
      %v552 = vsel %vm545, %v537, 0.0
      %553 = vadd.xlane.f32.xlu0 %v552
      %v554 = vpop.xlane.xlu0 %553
      %v555 = vsel %vm545, %v538, 0.0
      %556 = vadd.xlane.f32.xlu0 %v555
      %v557 = vpop.xlane.xlu0 %556
      %v558 = vsel %vm545, %v539, 0.0
      %559 = vadd.xlane.f32.xlu0 %v558
      %v560 = vpop.xlane.xlu0 %559
      %v561 = vsel %vm545, %v540, 0.0
      %562 = vadd.xlane.f32.xlu0 %v561
      %v563 = vpop.xlane.xlu0 %562
      %v564 = vsel %vm545, %v541, 0.0
      %565 = vadd.xlane.f32.xlu0 %v564
      %v566 = vpop.xlane.xlu0 %565
      %v567 = vsel %vm545, %v542, 0.0
      %568 = vadd.xlane.f32.xlu0 %v567
      %v569 = vpop.xlane.xlu0 %568
      %v570 = vrcp.pop 16.0
      %v571 = vmul.f32 %v548, %v570
      %v572 = vmul.f32 %v551, %v570
      %v573 = vmul.f32 %v554, %v570
      %v574 = vmul.f32 %v557, %v570
      %v575 = vmul.f32 %v560, %v570
      %v576 = vmul.f32 %v563, %v570
      %v577 = vmul.f32 %v566, %v570
      %v578 = vmul.f32 %v569, %v570
      %v579 = vsub.f32 %v535, %v571
      %v580 = vsub.f32 %v536, %v572
      %v581 = vsub.f32 %v537, %v573
      %v582 = vsub.f32 %v538, %v574
      %v583 = vsub.f32 %v539, %v575
      %v584 = vsub.f32 %v540, %v576
      %v585 = vsub.f32 %v541, %v577
      %v586 = vsub.f32 %v542, %v578
      %v587 = vmul.f32 %v579, %v579
      %v588 = vmul.f32 %v580, %v580
      %v589 = vmul.f32 %v581, %v581
      %v590 = vmul.f32 %v582, %v582
      %v591 = vmul.f32 %v583, %v583
      %v592 = vmul.f32 %v584, %v584
      %v593 = vmul.f32 %v585, %v585
      %v594 = vmul.f32 %v586, %v586
      %v595 = vsel %vm545, %v587, 0.0
      %596 = vadd.xlane.f32.xlu0 %v595
      %v597 = vpop.xlane.xlu0 %596
      %v598 = vsel %vm545, %v588, 0.0
      %599 = vadd.xlane.f32.xlu0 %v598
      %v600 = vpop.xlane.xlu0 %599
      %v601 = vsel %vm545, %v589, 0.0
      %602 = vadd.xlane.f32.xlu0 %v601
      %v603 = vpop.xlane.xlu0 %602
      %v604 = vsel %vm545, %v590, 0.0
      %605 = vadd.xlane.f32.xlu0 %v604
      %v606 = vpop.xlane.xlu0 %605
      %v607 = vsel %vm545, %v591, 0.0
      %608 = vadd.xlane.f32.xlu0 %v607
      %v609 = vpop.xlane.xlu0 %608
      %v610 = vsel %vm545, %v592, 0.0
      %611 = vadd.xlane.f32.xlu0 %v610
      %v612 = vpop.xlane.xlu0 %611
      %v613 = vsel %vm545, %v593, 0.0
      %614 = vadd.xlane.f32.xlu0 %v613
      %v615 = vpop.xlane.xlu0 %614
      %v616 = vsel %vm545, %v594, 0.0
      %617 = vadd.xlane.f32.xlu0 %v616
      %v618 = vpop.xlane.xlu0 %617
      %v619 = vmul.f32 %v597, %v570
      %v620 = vmul.f32 %v600, %v570
      %v621 = vmul.f32 %v603, %v570
      %v622 = vmul.f32 %v606, %v570
      %v623 = vmul.f32 %v609, %v570
      %v624 = vmul.f32 %v612, %v570
      %v625 = vmul.f32 %v615, %v570
      %v626 = vmul.f32 %v618, %v570
      %v627 = vadd.f32 %v619, 1e-05
      %v628 = vadd.f32 %v620, 1e-05
      %v629 = vadd.f32 %v621, 1e-05
      %v630 = vadd.f32 %v622, 1e-05
      %v631 = vadd.f32 %v623, 1e-05
      %v632 = vadd.f32 %v624, 1e-05
      %v633 = vadd.f32 %v625, 1e-05
      %v634 = vadd.f32 %v626, 1e-05
      %v635 = vrsqrt.pop %v627
      %v636 = vrsqrt.pop %v628
      %v637 = vrsqrt.pop %v629
      %v638 = vrsqrt.pop %v630
      %v639 = vrsqrt.pop %v631
      %v640 = vrsqrt.pop %v632
      %v641 = vrsqrt.pop %v633
      %v642 = vrsqrt.pop %v634
      %v643 = vmul.f32 %v579, %v635
      %v644 = vmul.f32 %v580, %v636
      %v645 = vmul.f32 %v581, %v637
      %v646 = vmul.f32 %v582, %v638
      %v647 = vmul.f32 %v583, %v639
      %v648 = vmul.f32 %v584, %v640
      %v649 = vmul.f32 %v585, %v641
      %v650 = vmul.f32 %v586, %v642
      %v652 = vlaneseq
      %v653 = vshrl.u32 %v652, 7
      %v654 = vsub.s32 0, %v653
      %v655 = vrot.slane %v543, %v654
      %v657 = vmul.f32 %v643, %v655
      %v658 = vmul.f32 %v644, %v655
      %v659 = vmul.f32 %v645, %v655
      %v660 = vmul.f32 %v646, %v655
      %v661 = vmul.f32 %v647, %v655
      %v662 = vmul.f32 %v648, %v655
      %v663 = vmul.f32 %v649, %v655
      %v664 = vmul.f32 %v650, %v655
      %v666 = vlaneseq
      %v667 = vshrl.u32 %v666, 7
      %v668 = vsub.s32 0, %v667
      %v669 = vrot.slane %v544, %v668
      %v671 = vadd.f32 %v657, %v669
      %v672 = vadd.f32 %v658, %v669
      %v673 = vadd.f32 %v659, %v669
      %v674 = vadd.f32 %v660, %v669
      %v675 = vadd.f32 %v661, %v669
      %v676 = vadd.f32 %v662, %v669
      %v677 = vadd.f32 %v663, %v669
      %v678 = vadd.f32 %v664, %v669
      %v679 = vld [vmem:[%s4] sm:$0xff]
      %v680 = vld [vmem:[%s4 + $0x8] sm:$0xff]
      %v681 = vld [vmem:[%s5] sm:$0x1]
      %v683 = vlaneseq
      %v684 = vshrl.u32 %v683, 7
      %v685 = vsub.s32 0, %v684
      %v686 = vrot.slane %v681, %v685
      %v689 = vsel %vm545, %v671, 0
      %v692 = vsel %vm545, %v672, 0
      %v695 = vsel %vm545, %v673, 0
      %v698 = vsel %vm545, %v674, 0
      %v701 = vsel %vm545, %v675, 0
      %v704 = vsel %vm545, %v676, 0
      %v707 = vsel %vm545, %v677, 0
      %v710 = vsel %vm545, %v678, 0
      %712 = vmatprep.subr.mxu0 0.0
      %713 = vmatpush1.msra.mxu0 %v679
      %714 = vmatprep.subr.mxu0 0.0
      %715 = vmatpush1.msra.mxu0 %v680
      %716 = vmatprep.subr.mxu0 0.0
      %717 = vmatpush1.msra.mxu0 0.0
      %718 = vmatprep.subr.mxu0 0.0
      %719 = vmatpush1.msra.mxu0 0.0
      %720 = vmatprep.subr.mxu0 0.0
      %721 = vmatpush1.msra.mxu0 0.0
      %722 = vmatprep.subr.mxu0 0.0
      %723 = vmatpush1.msra.mxu0 0.0
      %724 = vmatprep.subr.mxu0 0.0
      %725 = vmatpush1.msra.mxu0 0.0
      %726 = vmatprep.subr.mxu0 0.0
      %727 = vmatpush1.msra.mxu0 0.0
      %728 = vmatprep.subr.mxu0 0.0
      %729 = vmatpush1.msra.mxu0 0.0
      %730 = vmatprep.subr.mxu0 0.0
      %731 = vmatpush1.msra.mxu0 0.0
      %732 = vmatprep.subr.mxu0 0.0
      %733 = vmatpush1.msra.mxu0 0.0
      %734 = vmatprep.subr.mxu0 0.0
      %735 = vmatpush1.msra.mxu0 0.0
      %736 = vmatprep.subr.mxu0 0.0
      %737 = vmatpush1.msra.mxu0 0.0
      %738 = vmatprep.subr.mxu0 0.0
      %739 = vmatpush1.msra.mxu0 0.0
      %740 = vmatprep.subr.mxu0 0.0
      %741 = vmatpush1.msra.mxu0 0.0
      %742 = vmatprep.subr.mxu0 0.0
      %743 = vmatpush1.msra.mxu0 0.0
      %744 = vmatprep.subr.mxu0 0.0
      %745 = vmatpush1.msra.mxu0 0.0
      %746 = vmatprep.subr.mxu0 0.0
      %747 = vmatpush1.msra.mxu0 0.0
      %748 = vmatprep.subr.mxu0 0.0
      %749 = vmatpush1.msra.mxu0 0.0
      %750 = vmatprep.subr.mxu0 0.0
      %751 = vmatpush1.msra.mxu0 0.0
      %752 = vmatprep.subr.mxu0 0.0
      %753 = vmatpush1.msra.mxu0 0.0
      %754 = vmatprep.subr.mxu0 0.0
      %755 = vmatpush1.msra.mxu0 0.0
      %756 = vmatprep.subr.mxu0 0.0
      %757 = vmatpush1.msra.mxu0 0.0
      %758 = vmatprep.subr.mxu0 0.0
      %759 = vmatpush1.msra.mxu0 0.0
      %760 = vmatprep.subr.mxu0 0.0
      %761 = vmatpush1.msra.mxu0 0.0
      %762 = vmatprep.subr.mxu0 0.0
      %763 = vmatpush1.msra.mxu0 0.0
      %764 = vmatprep.subr.mxu0 0.0
      %765 = vmatpush1.msra.mxu0 0.0
      %766 = vmatprep.subr.mxu0 0.0
      %767 = vmatpush1.msra.mxu0 0.0
      %768 = vmatprep.subr.mxu0 0.0
      %769 = vmatpush1.msra.mxu0 0.0
      %770 = vmatprep.subr.mxu0 0.0
      %771 = vmatpush1.msra.mxu0 0.0
      %772 = vmatprep.subr.mxu0 0.0
      %773 = vmatpush1.msra.mxu0 0.0
      %774 = vmatprep.subr.mxu0 0.0
      %775 = vmatpush1.msra.mxu0 0.0
      %776 = vmatprep.mubr.f32.mxu0 0.0
      %777 = vmatmul.mubr.f32.gmra.mrb[0].mxu0 %v689
      %v778 = vpop.f32.mrb[0].mxu0
      %v779 = vadd.f32 %v686, %v778
      %v780 = vpop.f32.mrb[0].mxu0
      %781 = vmatprep.mubr.f32.mxu0 0.0
      %782 = vmatmul.mubr.f32.gmra.mrb[0].mxu0 %v692
      %v783 = vpop.f32.mrb[0].mxu0
      %v784 = vadd.f32 %v686, %v783
      %v785 = vpop.f32.mrb[0].mxu0
      %786 = vmatprep.mubr.f32.mxu0 0.0
      %787 = vmatmul.mubr.f32.gmra.mrb[0].mxu0 %v695
      %v788 = vpop.f32.mrb[0].mxu0
      %v789 = vadd.f32 %v686, %v788
      %v790 = vpop.f32.mrb[0].mxu0
      %791 = vmatprep.mubr.f32.mxu0 0.0
      %792 = vmatmul.mubr.f32.gmra.mrb[0].mxu0 %v698
      %v793 = vpop.f32.mrb[0].mxu0
      %v794 = vadd.f32 %v686, %v793
      %v795 = vpop.f32.mrb[0].mxu0
      %796 = vmatprep.mubr.f32.mxu0 0.0
      %797 = vmatmul.mubr.f32.gmra.mrb[0].mxu0 %v701
      %v798 = vpop.f32.mrb[0].mxu0
      %v799 = vadd.f32 %v686, %v798
      %v800 = vpop.f32.mrb[0].mxu0
      %801 = vmatprep.mubr.f32.mxu0 0.0
      %802 = vmatmul.mubr.f32.gmra.mrb[0].mxu0 %v704
      %v803 = vpop.f32.mrb[0].mxu0
      %v804 = vadd.f32 %v686, %v803
      %v805 = vpop.f32.mrb[0].mxu0
      %806 = vmatprep.mubr.f32.mxu0 0.0
      %807 = vmatmul.mubr.f32.gmra.mrb[0].mxu0 %v707
      %v808 = vpop.f32.mrb[0].mxu0
      %v809 = vadd.f32 %v686, %v808
      %v810 = vpop.f32.mrb[0].mxu0
      %811 = vmatprep.mubr.f32.mxu0 0.0
      %812 = vmatmul.mubr.f32.gmra.mrb[0].mxu0 %v710
      %v813 = vpop.f32.mrb[0].mxu0
      %v814 = vadd.f32 %v686, %v813
      %v815 = vpop.f32.mrb[0].mxu0
      %816 = vdwg.mxu0
      %v817 = vxor.u32 %v779, 2147483648
      %v818 = vxor.u32 %v784, 2147483648
      %v819 = vxor.u32 %v789, 2147483648
      %v820 = vxor.u32 %v794, 2147483648
      %v821 = vxor.u32 %v799, 2147483648
      %v822 = vxor.u32 %v804, 2147483648
      %v823 = vxor.u32 %v809, 2147483648
      %v824 = vxor.u32 %v814, 2147483648
      %v825 = vmul.f32 %v817, 1.442695
      %v826 = vpow.pop %v825
      %v827 = vmul.f32 %v818, 1.442695
      %v828 = vpow.pop %v827
      %v829 = vmul.f32 %v819, 1.442695
      %v830 = vpow.pop %v829
      %v831 = vmul.f32 %v820, 1.442695
      %v832 = vpow.pop %v831
      %v833 = vmul.f32 %v821, 1.442695
      %v834 = vpow.pop %v833
      %v835 = vmul.f32 %v822, 1.442695
      %v836 = vpow.pop %v835
      %v837 = vmul.f32 %v823, 1.442695
      %v838 = vpow.pop %v837
      %v839 = vmul.f32 %v824, 1.442695
      %v840 = vpow.pop %v839
      %v841 = vadd.f32 %v826, 1.0
      %v842 = vadd.f32 %v828, 1.0
      %v843 = vadd.f32 %v830, 1.0
      %v844 = vadd.f32 %v832, 1.0
      %v845 = vadd.f32 %v834, 1.0
      %v846 = vadd.f32 %v836, 1.0
      %v847 = vadd.f32 %v838, 1.0
      %v848 = vadd.f32 %v840, 1.0
      %v849 = vrcp.pop %v841
      %v850 = vmul.f32 1.0, %v849
      %v851 = vrcp.pop %v842
      %v852 = vmul.f32 1.0, %v851
      %v853 = vrcp.pop %v843
      %v854 = vmul.f32 1.0, %v853
      %v855 = vrcp.pop %v844
      %v856 = vmul.f32 1.0, %v855
      %v857 = vrcp.pop %v845
      %v858 = vmul.f32 1.0, %v857
      %v859 = vrcp.pop %v846
      %v860 = vmul.f32 1.0, %v859
      %v861 = vrcp.pop %v847
      %v862 = vmul.f32 1.0, %v861
      %v863 = vrcp.pop %v848
      %v864 = vmul.f32 1.0, %v863
      %v865 = vmul.f32 %v779, %v850
      %v866 = vmul.f32 %v784, %v852
      %v867 = vmul.f32 %v789, %v854
      %v868 = vmul.f32 %v794, %v856
      %v869 = vmul.f32 %v799, %v858
      %v870 = vmul.f32 %v804, %v860
      %v871 = vmul.f32 %v809, %v862
      %v872 = vmul.f32 %v814, %v864
      %v873 = vld [vmem:[%s6] sm:$0xff]
      %v874 = vld [vmem:[%s6 + $0x8] sm:$0xff]
      %v875 = vld [vmem:[%s7] sm:$0x1]
      %v877 = vlaneseq
      %v878 = vshrl.u32 %v877, 7
      %v879 = vsub.s32 0, %v878
      %v880 = vrot.slane %v875, %v879
      %v883 = vsel %vm545, %v865, 0
      %v886 = vsel %vm545, %v866, 0
      %v889 = vsel %vm545, %v867, 0
      %v892 = vsel %vm545, %v868, 0
      %v895 = vsel %vm545, %v869, 0
      %v898 = vsel %vm545, %v870, 0
      %v901 = vsel %vm545, %v871, 0
      %v904 = vsel %vm545, %v872, 0
      %906 = vmatprep.subr.mxu0 0.0
      %907 = vmatpush1.msra.mxu0 %v873
      %908 = vmatprep.subr.mxu0 0.0
      %909 = vmatpush1.msra.mxu0 %v874
      %910 = vmatprep.subr.mxu0 0.0
      %911 = vmatpush1.msra.mxu0 0.0
      %912 = vmatprep.subr.mxu0 0.0
      %913 = vmatpush1.msra.mxu0 0.0
      %914 = vmatprep.subr.mxu0 0.0
      %915 = vmatpush1.msra.mxu0 0.0
      %916 = vmatprep.subr.mxu0 0.0
      %917 = vmatpush1.msra.mxu0 0.0
      %918 = vmatprep.subr.mxu0 0.0
      %919 = vmatpush1.msra.mxu0 0.0
      %920 = vmatprep.subr.mxu0 0.0
      %921 = vmatpush1.msra.mxu0 0.0
      %922 = vmatprep.subr.mxu0 0.0
      %923 = vmatpush1.msra.mxu0 0.0
      %924 = vmatprep.subr.mxu0 0.0
      %925 = vmatpush1.msra.mxu0 0.0
      %926 = vmatprep.subr.mxu0 0.0
      %927 = vmatpush1.msra.mxu0 0.0
      %928 = vmatprep.subr.mxu0 0.0
      %929 = vmatpush1.msra.mxu0 0.0
      %930 = vmatprep.subr.mxu0 0.0
      %931 = vmatpush1.msra.mxu0 0.0
      %932 = vmatprep.subr.mxu0 0.0
      %933 = vmatpush1.msra.mxu0 0.0
      %934 = vmatprep.subr.mxu0 0.0
      %935 = vmatpush1.msra.mxu0 0.0
      %936 = vmatprep.subr.mxu0 0.0
      %937 = vmatpush1.msra.mxu0 0.0
      %938 = vmatprep.subr.mxu0 0.0
      %939 = vmatpush1.msra.mxu0 0.0
      %940 = vmatprep.subr.mxu0 0.0
      %941 = vmatpush1.msra.mxu0 0.0
      %942 = vmatprep.subr.mxu0 0.0
      %943 = vmatpush1.msra.mxu0 0.0
      %944 = vmatprep.subr.mxu0 0.0
      %945 = vmatpush1.msra.mxu0 0.0
      %946 = vmatprep.subr.mxu0 0.0
      %947 = vmatpush1.msra.mxu0 0.0
      %948 = vmatprep.subr.mxu0 0.0
      %949 = vmatpush1.msra.mxu0 0.0
      %950 = vmatprep.subr.mxu0 0.0
      %951 = vmatpush1.msra.mxu0 0.0
      %952 = vmatprep.subr.mxu0 0.0
      %953 = vmatpush1.msra.mxu0 0.0
      %954 = vmatprep.subr.mxu0 0.0
      %955 = vmatpush1.msra.mxu0 0.0
      %956 = vmatprep.subr.mxu0 0.0
      %957 = vmatpush1.msra.mxu0 0.0
      %958 = vmatprep.subr.mxu0 0.0
      %959 = vmatpush1.msra.mxu0 0.0
      %960 = vmatprep.subr.mxu0 0.0
      %961 = vmatpush1.msra.mxu0 0.0
      %962 = vmatprep.subr.mxu0 0.0
      %963 = vmatpush1.msra.mxu0 0.0
      %964 = vmatprep.subr.mxu0 0.0
      %965 = vmatpush1.msra.mxu0 0.0
      %966 = vmatprep.subr.mxu0 0.0
      %967 = vmatpush1.msra.mxu0 0.0
      %968 = vmatprep.subr.mxu0 0.0
      %969 = vmatpush1.msra.mxu0 0.0
      %970 = vmatprep.mubr.f32.mxu0 0.0
      %971 = vmatmul.mubr.f32.gmra.mrb[0].mxu0 %v883
      %v972 = vpop.f32.mrb[0].mxu0
      %v973 = vadd.f32 %v880, %v972
      %v974 = vpop.f32.mrb[0].mxu0
      %975 = vmatprep.mubr.f32.mxu0 0.0
      %976 = vmatmul.mubr.f32.gmra.mrb[0].mxu0 %v886
      %v977 = vpop.f32.mrb[0].mxu0
      %v978 = vadd.f32 %v880, %v977
      %v979 = vpop.f32.mrb[0].mxu0
      %980 = vmatprep.mubr.f32.mxu0 0.0
      %981 = vmatmul.mubr.f32.gmra.mrb[0].mxu0 %v889
      %v982 = vpop.f32.mrb[0].mxu0
      %v983 = vadd.f32 %v880, %v982
      %v984 = vpop.f32.mrb[0].mxu0
      %985 = vmatprep.mubr.f32.mxu0 0.0
      %986 = vmatmul.mubr.f32.gmra.mrb[0].mxu0 %v892
      %v987 = vpop.f32.mrb[0].mxu0
      %v988 = vadd.f32 %v880, %v987
      %v989 = vpop.f32.mrb[0].mxu0
      %990 = vmatprep.mubr.f32.mxu0 0.0
      %991 = vmatmul.mubr.f32.gmra.mrb[0].mxu0 %v895
      %v992 = vpop.f32.mrb[0].mxu0
      %v993 = vadd.f32 %v880, %v992
      %v994 = vpop.f32.mrb[0].mxu0
      %995 = vmatprep.mubr.f32.mxu0 0.0
      %996 = vmatmul.mubr.f32.gmra.mrb[0].mxu0 %v898
      %v997 = vpop.f32.mrb[0].mxu0
      %v998 = vadd.f32 %v880, %v997
      %v999 = vpop.f32.mrb[0].mxu0
      %1000 = vmatprep.mubr.f32.mxu0 0.0
      %1001 = vmatmul.mubr.f32.gmra.mrb[0].mxu0 %v901
      %v1002 = vpop.f32.mrb[0].mxu0
      %v1003 = vadd.f32 %v880, %v1002
      %v1004 = vpop.f32.mrb[0].mxu0
      %1005 = vmatprep.mubr.f32.mxu0 0.0
      %1006 = vmatmul.mubr.f32.gmra.mrb[0].mxu0 %v904
      %v1007 = vpop.f32.mrb[0].mxu0
      %v1008 = vadd.f32 %v880, %v1007
      %v1009 = vpop.f32.mrb[0].mxu0
      %1010 = vdwg.mxu0
      %v1011 = vld [vmem:[%s8] sm:$0xff]
      %v1012 = vld [vmem:[%s8 + $0x8] sm:$0xff]
      %v1013 = vld [vmem:[%s9] sm:$0x1]
      %v1015 = vlaneseq
      %v1016 = vshrl.u32 %v1015, 7
      %v1017 = vsub.s32 0, %v1016
      %v1018 = vrot.slane %v1013, %v1017
      %1020 = vrot.lane.b32.xlu0 %v865, 112
      %v1021 = vpop.permute.xlu0 %1020
      %1022 = vrot.lane.b32.xlu0 %v866, 112
      %v1023 = vpop.permute.xlu0 %1022
      %1024 = vrot.lane.b32.xlu0 %v867, 112
      %v1025 = vpop.permute.xlu0 %1024
      %1026 = vrot.lane.b32.xlu0 %v868, 112
      %v1027 = vpop.permute.xlu0 %1026
      %1028 = vrot.lane.b32.xlu0 %v869, 112
      %v1029 = vpop.permute.xlu0 %1028
      %1030 = vrot.lane.b32.xlu0 %v870, 112
      %v1031 = vpop.permute.xlu0 %1030
      %1032 = vrot.lane.b32.xlu0 %v871, 112
      %v1033 = vpop.permute.xlu0 %1032
      %1034 = vrot.lane.b32.xlu0 %v872, 112
      %v1035 = vpop.permute.xlu0 %1034
      %v1036 = vsel %vm545, %v1021, 0
      %v1038 = vsel %vm545, %v1023, 0
      %v1040 = vsel %vm545, %v1025, 0
      %v1042 = vsel %vm545, %v1027, 0
      %v1044 = vsel %vm545, %v1029, 0
      %v1046 = vsel %vm545, %v1031, 0
      %v1048 = vsel %vm545, %v1033, 0
      %v1050 = vsel %vm545, %v1035, 0
      %1052 = vmatprep.subr.mxu0 0.0
      %1053 = vmatpush1.msra.mxu0 %v1011
      %1054 = vmatprep.subr.mxu0 0.0
      %1055 = vmatpush1.msra.mxu0 %v1012
      %1056 = vmatprep.subr.mxu0 0.0
      %1057 = vmatpush1.msra.mxu0 0.0
      %1058 = vmatprep.subr.mxu0 0.0
      %1059 = vmatpush1.msra.mxu0 0.0
      %1060 = vmatprep.subr.mxu0 0.0
      %1061 = vmatpush1.msra.mxu0 0.0
      %1062 = vmatprep.subr.mxu0 0.0
      %1063 = vmatpush1.msra.mxu0 0.0
      %1064 = vmatprep.subr.mxu0 0.0
      %1065 = vmatpush1.msra.mxu0 0.0
      %1066 = vmatprep.subr.mxu0 0.0
      %1067 = vmatpush1.msra.mxu0 0.0
      %1068 = vmatprep.subr.mxu0 0.0
      %1069 = vmatpush1.msra.mxu0 0.0
      %1070 = vmatprep.subr.mxu0 0.0
      %1071 = vmatpush1.msra.mxu0 0.0
      %1072 = vmatprep.subr.mxu0 0.0
      %1073 = vmatpush1.msra.mxu0 0.0
      %1074 = vmatprep.subr.mxu0 0.0
      %1075 = vmatpush1.msra.mxu0 0.0
      %1076 = vmatprep.subr.mxu0 0.0
      %1077 = vmatpush1.msra.mxu0 0.0
      %1078 = vmatprep.subr.mxu0 0.0
      %1079 = vmatpush1.msra.mxu0 0.0
      %1080 = vmatprep.subr.mxu0 0.0
      %1081 = vmatpush1.msra.mxu0 0.0
      %1082 = vmatprep.subr.mxu0 0.0
      %1083 = vmatpush1.msra.mxu0 0.0
      %1084 = vmatprep.subr.mxu0 0.0
      %1085 = vmatpush1.msra.mxu0 0.0
      %1086 = vmatprep.subr.mxu0 0.0
      %1087 = vmatpush1.msra.mxu0 0.0
      %1088 = vmatprep.subr.mxu0 0.0
      %1089 = vmatpush1.msra.mxu0 0.0
      %1090 = vmatprep.subr.mxu0 0.0
      %1091 = vmatpush1.msra.mxu0 0.0
      %1092 = vmatprep.subr.mxu0 0.0
      %1093 = vmatpush1.msra.mxu0 0.0
      %1094 = vmatprep.subr.mxu0 0.0
      %1095 = vmatpush1.msra.mxu0 0.0
      %1096 = vmatprep.subr.mxu0 0.0
      %1097 = vmatpush1.msra.mxu0 0.0
      %1098 = vmatprep.subr.mxu0 0.0
      %1099 = vmatpush1.msra.mxu0 0.0
      %1100 = vmatprep.subr.mxu0 0.0
      %1101 = vmatpush1.msra.mxu0 0.0
      %1102 = vmatprep.subr.mxu0 0.0
      %1103 = vmatpush1.msra.mxu0 0.0
      %1104 = vmatprep.subr.mxu0 0.0
      %1105 = vmatpush1.msra.mxu0 0.0
      %1106 = vmatprep.subr.mxu0 0.0
      %1107 = vmatpush1.msra.mxu0 0.0
      %1108 = vmatprep.subr.mxu0 0.0
      %1109 = vmatpush1.msra.mxu0 0.0
      %1110 = vmatprep.subr.mxu0 0.0
      %1111 = vmatpush1.msra.mxu0 0.0
      %1112 = vmatprep.subr.mxu0 0.0
      %1113 = vmatpush1.msra.mxu0 0.0
      %1114 = vmatprep.subr.mxu0 0.0
      %1115 = vmatpush1.msra.mxu0 0.0
      %1116 = vmatprep.mubr.f32.mxu0 0.0
      %1117 = vmatmul.mubr.f32.gmra.mrb[0].mxu0 %v1036
      %v1118 = vpop.f32.mrb[0].mxu0
      %v1119 = vadd.f32 %v1018, %v1118
      %v1120 = vpop.f32.mrb[0].mxu0
      %1121 = vmatprep.mubr.f32.mxu0 0.0
      %1122 = vmatmul.mubr.f32.gmra.mrb[0].mxu0 %v1038
      %v1123 = vpop.f32.mrb[0].mxu0
      %v1124 = vadd.f32 %v1018, %v1123
      %v1125 = vpop.f32.mrb[0].mxu0
      %1126 = vmatprep.mubr.f32.mxu0 0.0
      %1127 = vmatmul.mubr.f32.gmra.mrb[0].mxu0 %v1040
      %v1128 = vpop.f32.mrb[0].mxu0
      %v1129 = vadd.f32 %v1018, %v1128
      %v1130 = vpop.f32.mrb[0].mxu0
      %1131 = vmatprep.mubr.f32.mxu0 0.0
      %1132 = vmatmul.mubr.f32.gmra.mrb[0].mxu0 %v1042
      %v1133 = vpop.f32.mrb[0].mxu0
      %v1134 = vadd.f32 %v1018, %v1133
      %v1135 = vpop.f32.mrb[0].mxu0
      %1136 = vmatprep.mubr.f32.mxu0 0.0
      %1137 = vmatmul.mubr.f32.gmra.mrb[0].mxu0 %v1044
      %v1138 = vpop.f32.mrb[0].mxu0
      %v1139 = vadd.f32 %v1018, %v1138
      %v1140 = vpop.f32.mrb[0].mxu0
      %1141 = vmatprep.mubr.f32.mxu0 0.0
      %1142 = vmatmul.mubr.f32.gmra.mrb[0].mxu0 %v1046
      %v1143 = vpop.f32.mrb[0].mxu0
      %v1144 = vadd.f32 %v1018, %v1143
      %v1145 = vpop.f32.mrb[0].mxu0
      %1146 = vmatprep.mubr.f32.mxu0 0.0
      %1147 = vmatmul.mubr.f32.gmra.mrb[0].mxu0 %v1048
      %v1148 = vpop.f32.mrb[0].mxu0
      %v1149 = vadd.f32 %v1018, %v1148
      %v1150 = vpop.f32.mrb[0].mxu0
      %1151 = vmatprep.mubr.f32.mxu0 0.0
      %1152 = vmatmul.mubr.f32.gmra.mrb[0].mxu0 %v1050
      %v1153 = vpop.f32.mrb[0].mxu0
      %v1154 = vadd.f32 %v1018, %v1153
      %v1155 = vpop.f32.mrb[0].mxu0
      %1156 = vdwg.mxu0
      %v1157 = vxor.u32 %v973, 2147483648
      %v1158 = vxor.u32 %v978, 2147483648
      %v1159 = vxor.u32 %v983, 2147483648
      %v1160 = vxor.u32 %v988, 2147483648
      %v1161 = vxor.u32 %v993, 2147483648
      %v1162 = vxor.u32 %v998, 2147483648
      %v1163 = vxor.u32 %v1003, 2147483648
      %v1164 = vxor.u32 %v1008, 2147483648
      %v1165 = vmul.f32 %v1157, 1.442695
      %v1166 = vpow.pop %v1165
      %v1167 = vmul.f32 %v1158, 1.442695
      %v1168 = vpow.pop %v1167
      %v1169 = vmul.f32 %v1159, 1.442695
      %v1170 = vpow.pop %v1169
      %v1171 = vmul.f32 %v1160, 1.442695
      %v1172 = vpow.pop %v1171
      %v1173 = vmul.f32 %v1161, 1.442695
      %v1174 = vpow.pop %v1173
      %v1175 = vmul.f32 %v1162, 1.442695
      %v1176 = vpow.pop %v1175
      %v1177 = vmul.f32 %v1163, 1.442695
      %v1178 = vpow.pop %v1177
      %v1179 = vmul.f32 %v1164, 1.442695
      %v1180 = vpow.pop %v1179
      %v1181 = vadd.f32 %v1166, 1.0
      %v1182 = vadd.f32 %v1168, 1.0
      %v1183 = vadd.f32 %v1170, 1.0
      %v1184 = vadd.f32 %v1172, 1.0
      %v1185 = vadd.f32 %v1174, 1.0
      %v1186 = vadd.f32 %v1176, 1.0
      %v1187 = vadd.f32 %v1178, 1.0
      %v1188 = vadd.f32 %v1180, 1.0
      %v1189 = vrcp.pop %v1181
      %v1190 = vmul.f32 1.0, %v1189
      %v1191 = vrcp.pop %v1182
      %v1192 = vmul.f32 1.0, %v1191
      %v1193 = vrcp.pop %v1183
      %v1194 = vmul.f32 1.0, %v1193
      %v1195 = vrcp.pop %v1184
      %v1196 = vmul.f32 1.0, %v1195
      %v1197 = vrcp.pop %v1185
      %v1198 = vmul.f32 1.0, %v1197
      %v1199 = vrcp.pop %v1186
      %v1200 = vmul.f32 1.0, %v1199
      %v1201 = vrcp.pop %v1187
      %v1202 = vmul.f32 1.0, %v1201
      %v1203 = vrcp.pop %v1188
      %v1204 = vmul.f32 1.0, %v1203
      %v1205 = vmul.f32 %v973, %v1190
      %v1206 = vmul.f32 %v978, %v1192
      %v1207 = vmul.f32 %v983, %v1194
      %v1208 = vmul.f32 %v988, %v1196
      %v1209 = vmul.f32 %v993, %v1198
      %v1210 = vmul.f32 %v998, %v1200
      %v1211 = vmul.f32 %v1003, %v1202
      %v1212 = vmul.f32 %v1008, %v1204
      %v1213 = vmul.f32 %v1205, %v485
      %v1214 = vmul.f32 %v1206, %v492
      %v1215 = vmul.f32 %v1207, %v499
      %v1216 = vmul.f32 %v1208, %v506
      %v1217 = vmul.f32 %v1209, %v513
      %v1218 = vmul.f32 %v1210, %v520
      %v1219 = vmul.f32 %v1211, %v527
      %v1220 = vmul.f32 %v1212, %v534
      %1221 = vst.msk [vmem:[%s466] sm:$0xff] %vm545, %v1213
      %1222 = vst.msk [vmem:[%s466 + $0x8] sm:$0xff] %vm545, %v1214
      %1223 = vst.msk [vmem:[%s466 + $0x10] sm:$0xff] %vm545, %v1215
      %1224 = vst.msk [vmem:[%s466 + $0x18] sm:$0xff] %vm545, %v1216
      %1225 = vst.msk [vmem:[%s466 + $0x20] sm:$0xff] %vm545, %v1217
      %1226 = vst.msk [vmem:[%s466 + $0x28] sm:$0xff] %vm545, %v1218
      %1227 = vst.msk [vmem:[%s466 + $0x30] sm:$0xff] %vm545, %v1219
      %1228 = vst.msk [vmem:[%s466 + $0x38] sm:$0xff] %vm545, %v1220
      %v1229 = vxor.u32 %v1119, 2147483648
      %v1230 = vxor.u32 %v1124, 2147483648
      %v1231 = vxor.u32 %v1129, 2147483648
      %v1232 = vxor.u32 %v1134, 2147483648
      %v1233 = vxor.u32 %v1139, 2147483648
      %v1234 = vxor.u32 %v1144, 2147483648
      %v1235 = vxor.u32 %v1149, 2147483648
      %v1236 = vxor.u32 %v1154, 2147483648
      %v1237 = vmul.f32 %v1229, 1.442695
      %v1238 = vpow.pop %v1237
      %v1239 = vmul.f32 %v1230, 1.442695
      %v1240 = vpow.pop %v1239
      %v1241 = vmul.f32 %v1231, 1.442695
      %v1242 = vpow.pop %v1241
      %v1243 = vmul.f32 %v1232, 1.442695
      %v1244 = vpow.pop %v1243
      %v1245 = vmul.f32 %v1233, 1.442695
      %v1246 = vpow.pop %v1245
      %v1247 = vmul.f32 %v1234, 1.442695
      %v1248 = vpow.pop %v1247
      %v1249 = vmul.f32 %v1235, 1.442695
      %v1250 = vpow.pop %v1249
      %v1251 = vmul.f32 %v1236, 1.442695
      %v1252 = vpow.pop %v1251
      %v1253 = vadd.f32 %v1238, 1.0
      %v1254 = vadd.f32 %v1240, 1.0
      %v1255 = vadd.f32 %v1242, 1.0
      %v1256 = vadd.f32 %v1244, 1.0
      %v1257 = vadd.f32 %v1246, 1.0
      %v1258 = vadd.f32 %v1248, 1.0
      %v1259 = vadd.f32 %v1250, 1.0
      %v1260 = vadd.f32 %v1252, 1.0
      %v1261 = vrcp.pop %v1253
      %v1262 = vmul.f32 1.0, %v1261
      %v1263 = vrcp.pop %v1254
      %v1264 = vmul.f32 1.0, %v1263
      %v1265 = vrcp.pop %v1255
      %v1266 = vmul.f32 1.0, %v1265
      %v1267 = vrcp.pop %v1256
      %v1268 = vmul.f32 1.0, %v1267
      %v1269 = vrcp.pop %v1257
      %v1270 = vmul.f32 1.0, %v1269
      %v1271 = vrcp.pop %v1258
      %v1272 = vmul.f32 1.0, %v1271
      %v1273 = vrcp.pop %v1259
      %v1274 = vmul.f32 1.0, %v1273
      %v1275 = vrcp.pop %v1260
      %v1276 = vmul.f32 1.0, %v1275
      %v1277 = vmul.f32 %v1119, %v1262
      %v1278 = vmul.f32 %v1124, %v1264
      %v1279 = vmul.f32 %v1129, %v1266
      %v1280 = vmul.f32 %v1134, %v1268
      %v1281 = vmul.f32 %v1139, %v1270
      %v1282 = vmul.f32 %v1144, %v1272
      %v1283 = vmul.f32 %v1149, %v1274
      %v1284 = vmul.f32 %v1154, %v1276
      %v1285 = vmul.f32 %v1277, %v485
      %v1286 = vmul.f32 %v1278, %v492
      %v1287 = vmul.f32 %v1279, %v499
      %v1288 = vmul.f32 %v1280, %v506
      %v1289 = vmul.f32 %v1281, %v513
      %v1290 = vmul.f32 %v1282, %v520
      %v1291 = vmul.f32 %v1283, %v527
      %v1292 = vmul.f32 %v1284, %v534
      %1293 = vst.msk [vmem:[%s476] sm:$0xff] %vm545, %v1285
      %1294 = vst.msk [vmem:[%s476 + $0x8] sm:$0xff] %vm545, %v1286
      %1295 = vst.msk [vmem:[%s476 + $0x10] sm:$0xff] %vm545, %v1287
      %1296 = vst.msk [vmem:[%s476 + $0x18] sm:$0xff] %vm545, %v1288
      %1297 = vst.msk [vmem:[%s476 + $0x20] sm:$0xff] %vm545, %v1289
      %1298 = vst.msk [vmem:[%s476 + $0x28] sm:$0xff] %vm545, %v1290
      %1299 = vst.msk [vmem:[%s476 + $0x30] sm:$0xff] %vm545, %v1291
      %1300 = vst.msk [vmem:[%s476 + $0x38] sm:$0xff] %vm545, %v1292
      %s1301 = smul.u32 8, %s28
      %p1302 = scmp.lt.s32.totalorder %s27, 1
      %s1303 = scalar_select %p1302, %s27, 1
      %p1304 = scmp.lt.s32.totalorder %s1301, 7
      %s1305 = scalar_select %p1304, %s1301, 7
      %s1306 = smul.addr %s1303, 8
      %s1307 = sadd.s32 %s1305, %s1306
      %s1308 = smul.addr %s1307, 8
      %s1309 = scalar_lea.vmem %s10, %s1308
      %s1310 = smul.u32 8, %s28
      %p1311 = scmp.lt.s32.totalorder %s27, 1
      %s1312 = scalar_select %p1311, %s27, 1
      %p1313 = scmp.lt.s32.totalorder %s1310, 7
      %s1314 = scalar_select %p1313, %s1310, 7
      %s1315 = smul.addr %s1312, 8
      %s1316 = sadd.s32 %s1314, %s1315
      %s1317 = smul.addr %s1316, 8
      %s1318 = scalar_lea.vmem %s11, %s1317
      // Predicated region
      $region61: #{pallas_forward.17} parent=59 // pred_check
        %p1319 = pneg %p279
      $region62: #{pallas_forward.17} parent=59 // pred_check_branch
        %1321 = sbr.rel (%p1319) target = $region64
      $region63: #{pallas_forward.17} parent=59 // pred_region
        %s1322 = smul.u32 8, %s28
      $region64: #{pallas_forward.17} parent=59 // pred_fallthru
        _
      // Predicated region
      $region65: #{pallas_forward.17} parent=59 // pred_check
        %p1323 = pneg %p307
      $region66: #{pallas_forward.17} parent=59 // pred_check_branch
        %1325 = sbr.rel (%p1323) target = $region68
      $region67: #{pallas_forward.17} parent=59 // pred_region
        %s1326 = smul.u32 8, %s28
      $region68: #{pallas_forward.17} parent=59 // pred_fallthru
        _
    $region60: #{pallas_forward.17} parent=5 // pred_fallthru
      _
    %p1327 = scmp.le.s32.totalorder 2, %s18
    // Predicated region
    $region69: #{pallas_forward.17} parent=5 // pred_check
      %p1328 = pneg %p1327
    $region70: #{pallas_forward.17} parent=5 // pred_check_branch
      %1330 = sbr.rel (%p1328) target = $region72
    $region71: #{pallas_forward.17} parent=5 // pred_region
      %s1331 = ssub.s32 %s18, 2
      // Predicated region
      $region73: #{pallas_forward.17} parent=71 // pred_check
        %p1332 = pneg %p285
      $region74: #{pallas_forward.17} parent=71 // pred_check_branch
        %1334 = sbr.rel (%p1332) target = $region76
      $region75: #{pallas_forward.17} parent=71 // pred_region
        %s1335 = smul.u32 8, %s30
        %p1336 = scmp.lt.s32.totalorder %s29, 1
        %s1337 = scalar_select %p1336, %s29, 1
        %p1338 = scmp.lt.s32.totalorder %s1335, 7
        %s1339 = scalar_select %p1338, %s1335, 7
        %s1340 = smul.addr %s1337, 8
        %s1341 = sadd.s32 %s1339, %s1340
        %s1342 = smul.addr %s1341, 8
        %s1343 = scalar_lea.vmem %s10, %s1342
      $region76: #{pallas_forward.17} parent=71 // pred_fallthru
        _
      // Predicated region
      $region77: #{pallas_forward.17} parent=71 // pred_check
        %p1344 = pneg %p313
      $region78: #{pallas_forward.17} parent=71 // pred_check_branch
        %1346 = sbr.rel (%p1344) target = $region80
      $region79: #{pallas_forward.17} parent=71 // pred_region
        %s1347 = smul.u32 8, %s30
        %p1348 = scmp.lt.s32.totalorder %s29, 1
        %s1349 = scalar_select %p1348, %s29, 1
        %p1350 = scmp.lt.s32.totalorder %s1347, 7
        %s1351 = scalar_select %p1350, %s1347, 7
        %s1352 = smul.addr %s1349, 8
        %s1353 = sadd.s32 %s1351, %s1352
        %s1354 = smul.addr %s1353, 8
        %s1355 = scalar_lea.vmem %s11, %s1354
      $region80: #{pallas_forward.17} parent=71 // pred_fallthru
        _
    $region72: #{pallas_forward.17} parent=5 // pred_fallthru
      _
  $region6: #{pallas_forward.17} parent=0 // loop_footer
    %s22 = sadd.s32 1, %s18
  $region7: #{pallas_forward.17} parent=0 // loop_footer_branch
    %17 = sbr.rel target = $region3
  $region8: #{pallas_forward.17} parent=0 // loop_exit
    _

// kernel: pallas_forward.15
$region0: #{pallas_forward.15}
  #allocation0 [shape = 'u32[]', space=smem, size = 0x4, offset = 0x4, fixed_abs, tag = 'smem constant byte address 0x4 - core index']
  #allocation1 [shape = 'u32[144,128]{1,0:T(1,128)}', space=vmem, size = 0x12000, scoped, tag = 'internal scratch']
  %s0 = inlined_call_operand.vmem [shape: f32[2,8,8,16], index: 0, kind: input, shape index: {}]
  %s1 = inlined_call_operand.vmem [shape: f32[2,8,8], index: 1, kind: input, shape index: {}]
  %s2 = inlined_call_operand.vmem [shape: f32[2,8,8], index: 2, kind: input, shape index: {}]
  %s3 = inlined_call_operand.vmem [shape: f32[2,8,16], index: 3, kind: input, shape index: {}]
  %s4 = inlined_call_operand.vmem [shape: f32[2,8,16], index: 4, kind: input, shape index: {}]
  %s5 = inlined_call_operand.vmem [shape: f32[2,8,32], index: 5, kind: input, shape index: {}]
  %s6 = inlined_call_operand.vmem [shape: f32[2,8,32], index: 6, kind: input, shape index: {}]
  %s7 = inlined_call_operand.vmem [shape: f32[2,8,1], index: 7, kind: input, shape index: {}]
  %s8 = inlined_call_operand.vmem [shape: f32[1,16], index: 8, kind: input, shape index: {}]
  %s9 = inlined_call_operand.vmem [shape: f32[1,16], index: 9, kind: input, shape index: {}]
  %s10 = inlined_call_operand.vmem [shape: f32[16,32], index: 10, kind: input, shape index: {}]
  %s11 = inlined_call_operand.vmem [shape: f32[1,32], index: 11, kind: input, shape index: {}]
  %s12 = inlined_call_operand.vmem [shape: f32[16,52], index: 12, kind: input, shape index: {}]
  %s13 = inlined_call_operand.vmem [shape: f32[1,52], index: 13, kind: input, shape index: {}]
  %s14 = inlined_call_operand.vmem [shape: f32[32,32], index: 14, kind: input, shape index: {}]
  %s15 = inlined_call_operand.vmem [shape: f32[1,32], index: 15, kind: input, shape index: {}]
  %s16 = inlined_call_operand.vmem [shape: f32[4,32], index: 16, kind: input, shape index: {}]
  %s17 = inlined_call_operand.vmem [shape: f32[2,8,8,16], index: 17, kind: output, shape index: {0}]
  %s18 = inlined_call_operand.vmem [shape: f32[2,8,32], index: 18, kind: output, shape index: {1}]
  %19 = xla_tuple %s17, %s18
  %s20 = sld [smem:[#allocation0]]
  $region109: #{pallas_forward.15} parent=0
    _
  %s22 = ssub.s32 1, %s20
  %s23 = scalar_select 0, %s22, %s20
  loop: start=0, step=1, limit=4
  $region2: #{pallas_forward.15} parent=0 // loop_pre_header
    _
  $region3: #{pallas_forward.15} parent=0 // loop_header
    %s25 = sphi 0, %s29
    %p26 = scmp.ge.s32.totalorder %s25, 4
    %s32 = sphi 0, %s44
    %s33 = sphi 0, %s40
    %s34 = sphi 0, %s32
    %s35 = sphi 0, %s33
    %s36 = sphi 0, %s34
    %s37 = sphi 0, %s35
    %s49 = sphi 0, %s51
    %s52 = sphi 0, %s49
    %s53 = sphi 0, %s52
    %s69 = sphi 0, %s53
    %s77 = sphi 0, %s79
    %s80 = sphi 0, %s77
    %s81 = sphi 0, %s80
    %s97 = sphi 0, %s81
    %s105 = sphi 0, %s107
    %s108 = sphi 0, %s105
    %s109 = sphi 0, %s108
    %s125 = sphi 0, %s109
    %s133 = sphi 0, %s135
    %s136 = sphi 0, %s133
    %s137 = sphi 0, %s136
    %s153 = sphi 0, %s137
    %s159 = sphi 0, %s161
    %s162 = sphi 0, %s159
    %s163 = sphi 0, %s162
    %s179 = sphi 0, %s163
    %s185 = sphi 0, %s187
    %s188 = sphi 0, %s185
    %s189 = sphi 0, %s188
    %s205 = sphi 0, %s189
    %s213 = sphi 0, %s215
    %s216 = sphi 0, %s213
    %s217 = sphi 0, %s216
    %s233 = sphi 0, %s217
    %s241 = sphi 0, %s243
    %s244 = sphi 0, %s241
    %s245 = sphi 0, %s244
    %s261 = sphi 0, %s245
    %s265 = sphi 0, %s265
    %s267 = sphi 0, %s265
    %s268 = sphi 0, %s267
    %s282 = sphi 0, %s268
    %s286 = sphi 0, %s286
    %s288 = sphi 0, %s286
    %s289 = sphi 0, %s288
    %s303 = sphi 0, %s289
    %s307 = sphi 0, %s307
    %s309 = sphi 0, %s307
    %s310 = sphi 0, %s309
    %s324 = sphi 0, %s310
    %s328 = sphi 0, %s328
    %s330 = sphi 0, %s328
    %s331 = sphi 0, %s330
    %s345 = sphi 0, %s331
    %s349 = sphi 0, %s349
    %s351 = sphi 0, %s349
    %s352 = sphi 0, %s351
    %s366 = sphi 0, %s352
    %s370 = sphi 0, %s370
    %s372 = sphi 0, %s370
    %s373 = sphi 0, %s372
    %s387 = sphi 0, %s373
    %s391 = sphi 0, %s391
    %s393 = sphi 0, %s391
    %s394 = sphi 0, %s393
    %s408 = sphi 0, %s394
    %s412 = sphi 0, %s412
    %s414 = sphi 0, %s412
    %s415 = sphi 0, %s414
    %s429 = sphi 0, %s415
    %s433 = sphi 0, %s433
    %s435 = sphi 0, %s433
    %s436 = sphi 0, %s435
    %s450 = sphi 0, %s436
    %s458 = sphi 0, %s460
    %s461 = sphi 0, %s458
    %s462 = sphi 0, %s461
    %s478 = sphi 0, %s462
    %s486 = sphi 0, %s488
    %s489 = sphi 0, %s486
    %s490 = sphi 0, %s489
    %s506 = sphi 0, %s490
  $region4: #{pallas_forward.15} parent=0 // loop_header_branch
    %28 = sbr.rel (%p26) target = $region8
  $region5: #{pallas_forward.15} parent=0 // loop_body
    %s30 = ssub.s32 %s25, 1
    %s31 = ssub.s32 %s25, 2
    %s38 = sadd.s32 1, %s33
    %p39 = scmp.ge.s32.totalorder %s38, 1
    %s40 = scalar_select %p39, 0, %s38
    %s41 = sadd.s32 1, %s32
    %s42 = scalar_select %p39, %s41, %s32
    %p43 = scmp.ge.s32.totalorder %s42, 2
    %s44 = scalar_select %p43, 0, %s42
    %s45 = ssub.s32 %s32, %s44
    %s46 = ssub.s32 %s33, %s40
    %s47 = sor.u32 %s45, %s46
    %p48 = scmp.eq.s32.totalorder %s47, 0
    %s50 = sadd.s32 %s49, 1
    %s51 = scalar_select %p48, %s49, %s50
    %p54 = pneg %p48
    %p55 = scmp.eq.s32.totalorder %s25, 1
    %p56 = por %p54, %p55
    %p57 = scmp.ne.s32.totalorder %s49, %s52
    %p58 = scmp.eq.s32.totalorder %s25, 0
    %p59 = por %p57, %p58
    %p60 = scmp.ne.s32.totalorder %s49, %s52
    %p61 = scmp.eq.s32.totalorder %s30, 1
    %p62 = por %p60, %p61
    %p63 = scmp.ne.s32.totalorder %s52, %s53
    %p64 = scmp.eq.s32.totalorder %s30, 0
    %p65 = por %p63, %p64
    %p66 = scmp.ne.s32.totalorder %s52, %s53
    %p67 = scmp.eq.s32.totalorder %s31, 1
    %p68 = por %p66, %p67
    %p70 = scmp.ne.s32.totalorder %s53, %s69
    %p71 = scmp.eq.s32.totalorder %s31, 0
    %p72 = por %p70, %p71
    %s73 = ssub.s32 %s32, %s44
    %s74 = ssub.s32 %s33, %s40
    %s75 = sor.u32 %s73, %s74
    %p76 = scmp.eq.s32.totalorder %s75, 0
    %s78 = sadd.s32 %s77, 1
    %s79 = scalar_select %p76, %s77, %s78
    %p82 = pneg %p76
    %p83 = scmp.eq.s32.totalorder %s25, 1
    %p84 = por %p82, %p83
    %p85 = scmp.ne.s32.totalorder %s77, %s80
    %p86 = scmp.eq.s32.totalorder %s25, 0
    %p87 = por %p85, %p86
    %p88 = scmp.ne.s32.totalorder %s77, %s80
    %p89 = scmp.eq.s32.totalorder %s30, 1
    %p90 = por %p88, %p89
    %p91 = scmp.ne.s32.totalorder %s80, %s81
    %p92 = scmp.eq.s32.totalorder %s30, 0
    %p93 = por %p91, %p92
    %p94 = scmp.ne.s32.totalorder %s80, %s81
    %p95 = scmp.eq.s32.totalorder %s31, 1
    %p96 = por %p94, %p95
    %p98 = scmp.ne.s32.totalorder %s81, %s97
    %p99 = scmp.eq.s32.totalorder %s31, 0
    %p100 = por %p98, %p99
    %s101 = ssub.s32 %s32, %s44
    %s102 = ssub.s32 %s33, %s40
    %s103 = sor.u32 %s101, %s102
    %p104 = scmp.eq.s32.totalorder %s103, 0
    %s106 = sadd.s32 %s105, 1
    %s107 = scalar_select %p104, %s105, %s106
    %p110 = pneg %p104
    %p111 = scmp.eq.s32.totalorder %s25, 1
    %p112 = por %p110, %p111
    %p113 = scmp.ne.s32.totalorder %s105, %s108
    %p114 = scmp.eq.s32.totalorder %s25, 0
    %p115 = por %p113, %p114
    %p116 = scmp.ne.s32.totalorder %s105, %s108
    %p117 = scmp.eq.s32.totalorder %s30, 1
    %p118 = por %p116, %p117
    %p119 = scmp.ne.s32.totalorder %s108, %s109
    %p120 = scmp.eq.s32.totalorder %s30, 0
    %p121 = por %p119, %p120
    %p122 = scmp.ne.s32.totalorder %s108, %s109
    %p123 = scmp.eq.s32.totalorder %s31, 1
    %p124 = por %p122, %p123
    %p126 = scmp.ne.s32.totalorder %s109, %s125
    %p127 = scmp.eq.s32.totalorder %s31, 0
    %p128 = por %p126, %p127
    %s129 = ssub.s32 %s32, %s44
    %s130 = ssub.s32 %s33, %s40
    %s131 = sor.u32 %s129, %s130
    %p132 = scmp.eq.s32.totalorder %s131, 0
    %s134 = sadd.s32 %s133, 1
    %s135 = scalar_select %p132, %s133, %s134
    %p138 = pneg %p132
    %p139 = scmp.eq.s32.totalorder %s25, 1
    %p140 = por %p138, %p139
    %p141 = scmp.ne.s32.totalorder %s133, %s136
    %p142 = scmp.eq.s32.totalorder %s25, 0
    %p143 = por %p141, %p142
    %p144 = scmp.ne.s32.totalorder %s133, %s136
    %p145 = scmp.eq.s32.totalorder %s30, 1
    %p146 = por %p144, %p145
    %p147 = scmp.ne.s32.totalorder %s136, %s137
    %p148 = scmp.eq.s32.totalorder %s30, 0
    %p149 = por %p147, %p148
    %p150 = scmp.ne.s32.totalorder %s136, %s137
    %p151 = scmp.eq.s32.totalorder %s31, 1
    %p152 = por %p150, %p151
    %p154 = scmp.ne.s32.totalorder %s137, %s153
    %p155 = scmp.eq.s32.totalorder %s31, 0
    %p156 = por %p154, %p155
    %s157 = ssub.s32 %s32, %s44
    %p158 = scmp.eq.s32.totalorder %s157, 0
    %s160 = sadd.s32 %s159, 1
    %s161 = scalar_select %p158, %s159, %s160
    %p164 = pneg %p158
    %p165 = scmp.eq.s32.totalorder %s25, 1
    %p166 = por %p164, %p165
    %p167 = scmp.ne.s32.totalorder %s159, %s162
    %p168 = scmp.eq.s32.totalorder %s25, 0
    %p169 = por %p167, %p168
    %p170 = scmp.ne.s32.totalorder %s159, %s162
    %p171 = scmp.eq.s32.totalorder %s30, 1
    %p172 = por %p170, %p171
    %p173 = scmp.ne.s32.totalorder %s162, %s163
    %p174 = scmp.eq.s32.totalorder %s30, 0
    %p175 = por %p173, %p174
    %p176 = scmp.ne.s32.totalorder %s162, %s163
    %p177 = scmp.eq.s32.totalorder %s31, 1
    %p178 = por %p176, %p177
    %p180 = scmp.ne.s32.totalorder %s163, %s179
    %p181 = scmp.eq.s32.totalorder %s31, 0
    %p182 = por %p180, %p181
    %s183 = ssub.s32 %s32, %s44
    %p184 = scmp.eq.s32.totalorder %s183, 0
    %s186 = sadd.s32 %s185, 1
    %s187 = scalar_select %p184, %s185, %s186
    %p190 = pneg %p184
    %p191 = scmp.eq.s32.totalorder %s25, 1
    %p192 = por %p190, %p191
    %p193 = scmp.ne.s32.totalorder %s185, %s188
    %p194 = scmp.eq.s32.totalorder %s25, 0
    %p195 = por %p193, %p194
    %p196 = scmp.ne.s32.totalorder %s185, %s188
    %p197 = scmp.eq.s32.totalorder %s30, 1
    %p198 = por %p196, %p197
    %p199 = scmp.ne.s32.totalorder %s188, %s189
    %p200 = scmp.eq.s32.totalorder %s30, 0
    %p201 = por %p199, %p200
    %p202 = scmp.ne.s32.totalorder %s188, %s189
    %p203 = scmp.eq.s32.totalorder %s31, 1
    %p204 = por %p202, %p203
    %p206 = scmp.ne.s32.totalorder %s189, %s205
    %p207 = scmp.eq.s32.totalorder %s31, 0
    %p208 = por %p206, %p207
    %s209 = ssub.s32 %s32, %s44
    %s210 = ssub.s32 %s33, %s40
    %s211 = sor.u32 %s209, %s210
    %p212 = scmp.eq.s32.totalorder %s211, 0
    %s214 = sadd.s32 %s213, 1
    %s215 = scalar_select %p212, %s213, %s214
    %p218 = pneg %p212
    %p219 = scmp.eq.s32.totalorder %s25, 1
    %p220 = por %p218, %p219
    %p221 = scmp.ne.s32.totalorder %s213, %s216
    %p222 = scmp.eq.s32.totalorder %s25, 0
    %p223 = por %p221, %p222
    %p224 = scmp.ne.s32.totalorder %s213, %s216
    %p225 = scmp.eq.s32.totalorder %s30, 1
    %p226 = por %p224, %p225
    %p227 = scmp.ne.s32.totalorder %s216, %s217
    %p228 = scmp.eq.s32.totalorder %s30, 0
    %p229 = por %p227, %p228
    %p230 = scmp.ne.s32.totalorder %s216, %s217
    %p231 = scmp.eq.s32.totalorder %s31, 1
    %p232 = por %p230, %p231
    %p234 = scmp.ne.s32.totalorder %s217, %s233
    %p235 = scmp.eq.s32.totalorder %s31, 0
    %p236 = por %p234, %p235
    %s237 = ssub.s32 %s32, %s44
    %s238 = ssub.s32 %s33, %s40
    %s239 = sor.u32 %s237, %s238
    %p240 = scmp.eq.s32.totalorder %s239, 0
    %s242 = sadd.s32 %s241, 1
    %s243 = scalar_select %p240, %s241, %s242
    %p246 = pneg %p240
    %p247 = scmp.eq.s32.totalorder %s25, 1
    %p248 = por %p246, %p247
    %p249 = scmp.ne.s32.totalorder %s241, %s244
    %p250 = scmp.eq.s32.totalorder %s25, 0
    %p251 = por %p249, %p250
    %p252 = scmp.ne.s32.totalorder %s241, %s244
    %p253 = scmp.eq.s32.totalorder %s30, 1
    %p254 = por %p252, %p253
    %p255 = scmp.ne.s32.totalorder %s244, %s245
    %p256 = scmp.eq.s32.totalorder %s30, 0
    %p257 = por %p255, %p256
    %p258 = scmp.ne.s32.totalorder %s244, %s245
    %p259 = scmp.eq.s32.totalorder %s31, 1
    %p260 = por %p258, %p259
    %p262 = scmp.ne.s32.totalorder %s245, %s261
    %p263 = scmp.eq.s32.totalorder %s31, 0
    %p264 = por %p262, %p263
    %s266 = sadd.s32 %s265, 1
    %p269 = scmp.eq.s32.totalorder %s25, 1
    %p270 = scmp.ne.s32.totalorder %s265, %s267
    %p271 = scmp.eq.s32.totalorder %s25, 0
    %p272 = por %p270, %p271
    %p273 = scmp.ne.s32.totalorder %s265, %s267
    %p274 = scmp.eq.s32.totalorder %s30, 1
    %p275 = por %p273, %p274
    %p276 = scmp.ne.s32.totalorder %s267, %s268
    %p277 = scmp.eq.s32.totalorder %s30, 0
    %p278 = por %p276, %p277
    %p279 = scmp.ne.s32.totalorder %s267, %s268
    %p280 = scmp.eq.s32.totalorder %s31, 1
    %p281 = por %p279, %p280
    %p283 = scmp.ne.s32.totalorder %s268, %s282
    %p284 = scmp.eq.s32.totalorder %s31, 0
    %p285 = por %p283, %p284
    %s287 = sadd.s32 %s286, 1
    %p290 = scmp.eq.s32.totalorder %s25, 1
    %p291 = scmp.ne.s32.totalorder %s286, %s288
    %p292 = scmp.eq.s32.totalorder %s25, 0
    %p293 = por %p291, %p292
    %p294 = scmp.ne.s32.totalorder %s286, %s288
    %p295 = scmp.eq.s32.totalorder %s30, 1
    %p296 = por %p294, %p295
    %p297 = scmp.ne.s32.totalorder %s288, %s289
    %p298 = scmp.eq.s32.totalorder %s30, 0
    %p299 = por %p297, %p298
    %p300 = scmp.ne.s32.totalorder %s288, %s289
    %p301 = scmp.eq.s32.totalorder %s31, 1
    %p302 = por %p300, %p301
    %p304 = scmp.ne.s32.totalorder %s289, %s303
    %p305 = scmp.eq.s32.totalorder %s31, 0
    %p306 = por %p304, %p305
    %s308 = sadd.s32 %s307, 1
    %p311 = scmp.eq.s32.totalorder %s25, 1
    %p312 = scmp.ne.s32.totalorder %s307, %s309
    %p313 = scmp.eq.s32.totalorder %s25, 0
    %p314 = por %p312, %p313
    %p315 = scmp.ne.s32.totalorder %s307, %s309
    %p316 = scmp.eq.s32.totalorder %s30, 1
    %p317 = por %p315, %p316
    %p318 = scmp.ne.s32.totalorder %s309, %s310
    %p319 = scmp.eq.s32.totalorder %s30, 0
    %p320 = por %p318, %p319
    %p321 = scmp.ne.s32.totalorder %s309, %s310
    %p322 = scmp.eq.s32.totalorder %s31, 1
    %p323 = por %p321, %p322
    %p325 = scmp.ne.s32.totalorder %s310, %s324
    %p326 = scmp.eq.s32.totalorder %s31, 0
    %p327 = por %p325, %p326
    %s329 = sadd.s32 %s328, 1
    %p332 = scmp.eq.s32.totalorder %s25, 1
    %p333 = scmp.ne.s32.totalorder %s328, %s330
    %p334 = scmp.eq.s32.totalorder %s25, 0
    %p335 = por %p333, %p334
    %p336 = scmp.ne.s32.totalorder %s328, %s330
    %p337 = scmp.eq.s32.totalorder %s30, 1
    %p338 = por %p336, %p337
    %p339 = scmp.ne.s32.totalorder %s330, %s331
    %p340 = scmp.eq.s32.totalorder %s30, 0
    %p341 = por %p339, %p340
    %p342 = scmp.ne.s32.totalorder %s330, %s331
    %p343 = scmp.eq.s32.totalorder %s31, 1
    %p344 = por %p342, %p343
    %p346 = scmp.ne.s32.totalorder %s331, %s345
    %p347 = scmp.eq.s32.totalorder %s31, 0
    %p348 = por %p346, %p347
    %s350 = sadd.s32 %s349, 1
    %p353 = scmp.eq.s32.totalorder %s25, 1
    %p354 = scmp.ne.s32.totalorder %s349, %s351
    %p355 = scmp.eq.s32.totalorder %s25, 0
    %p356 = por %p354, %p355
    %p357 = scmp.ne.s32.totalorder %s349, %s351
    %p358 = scmp.eq.s32.totalorder %s30, 1
    %p359 = por %p357, %p358
    %p360 = scmp.ne.s32.totalorder %s351, %s352
    %p361 = scmp.eq.s32.totalorder %s30, 0
    %p362 = por %p360, %p361
    %p363 = scmp.ne.s32.totalorder %s351, %s352
    %p364 = scmp.eq.s32.totalorder %s31, 1
    %p365 = por %p363, %p364
    %p367 = scmp.ne.s32.totalorder %s352, %s366
    %p368 = scmp.eq.s32.totalorder %s31, 0
    %p369 = por %p367, %p368
    %s371 = sadd.s32 %s370, 1
    %p374 = scmp.eq.s32.totalorder %s25, 1
    %p375 = scmp.ne.s32.totalorder %s370, %s372
    %p376 = scmp.eq.s32.totalorder %s25, 0
    %p377 = por %p375, %p376
    %p378 = scmp.ne.s32.totalorder %s370, %s372
    %p379 = scmp.eq.s32.totalorder %s30, 1
    %p380 = por %p378, %p379
    %p381 = scmp.ne.s32.totalorder %s372, %s373
    %p382 = scmp.eq.s32.totalorder %s30, 0
    %p383 = por %p381, %p382
    %p384 = scmp.ne.s32.totalorder %s372, %s373
    %p385 = scmp.eq.s32.totalorder %s31, 1
    %p386 = por %p384, %p385
    %p388 = scmp.ne.s32.totalorder %s373, %s387
    %p389 = scmp.eq.s32.totalorder %s31, 0
    %p390 = por %p388, %p389
    %s392 = sadd.s32 %s391, 1
    %p395 = scmp.eq.s32.totalorder %s25, 1
    %p396 = scmp.ne.s32.totalorder %s391, %s393
    %p397 = scmp.eq.s32.totalorder %s25, 0
    %p398 = por %p396, %p397
    %p399 = scmp.ne.s32.totalorder %s391, %s393
    %p400 = scmp.eq.s32.totalorder %s30, 1
    %p401 = por %p399, %p400
    %p402 = scmp.ne.s32.totalorder %s393, %s394
    %p403 = scmp.eq.s32.totalorder %s30, 0
    %p404 = por %p402, %p403
    %p405 = scmp.ne.s32.totalorder %s393, %s394
    %p406 = scmp.eq.s32.totalorder %s31, 1
    %p407 = por %p405, %p406
    %p409 = scmp.ne.s32.totalorder %s394, %s408
    %p410 = scmp.eq.s32.totalorder %s31, 0
    %p411 = por %p409, %p410
    %s413 = sadd.s32 %s412, 1
    %p416 = scmp.eq.s32.totalorder %s25, 1
    %p417 = scmp.ne.s32.totalorder %s412, %s414
    %p418 = scmp.eq.s32.totalorder %s25, 0
    %p419 = por %p417, %p418
    %p420 = scmp.ne.s32.totalorder %s412, %s414
    %p421 = scmp.eq.s32.totalorder %s30, 1
    %p422 = por %p420, %p421
    %p423 = scmp.ne.s32.totalorder %s414, %s415
    %p424 = scmp.eq.s32.totalorder %s30, 0
    %p425 = por %p423, %p424
    %p426 = scmp.ne.s32.totalorder %s414, %s415
    %p427 = scmp.eq.s32.totalorder %s31, 1
    %p428 = por %p426, %p427
    %p430 = scmp.ne.s32.totalorder %s415, %s429
    %p431 = scmp.eq.s32.totalorder %s31, 0
    %p432 = por %p430, %p431
    %s434 = sadd.s32 %s433, 1
    %p437 = scmp.eq.s32.totalorder %s25, 1
    %p438 = scmp.ne.s32.totalorder %s433, %s435
    %p439 = scmp.eq.s32.totalorder %s25, 0
    %p440 = por %p438, %p439
    %p441 = scmp.ne.s32.totalorder %s433, %s435
    %p442 = scmp.eq.s32.totalorder %s30, 1
    %p443 = por %p441, %p442
    %p444 = scmp.ne.s32.totalorder %s435, %s436
    %p445 = scmp.eq.s32.totalorder %s30, 0
    %p446 = por %p444, %p445
    %p447 = scmp.ne.s32.totalorder %s435, %s436
    %p448 = scmp.eq.s32.totalorder %s31, 1
    %p449 = por %p447, %p448
    %p451 = scmp.ne.s32.totalorder %s436, %s450
    %p452 = scmp.eq.s32.totalorder %s31, 0
    %p453 = por %p451, %p452
    %s454 = ssub.s32 %s32, %s44
    %s455 = ssub.s32 %s33, %s40
    %s456 = sor.u32 %s454, %s455
    %p457 = scmp.eq.s32.totalorder %s456, 0
    %s459 = sadd.s32 %s458, 1
    %s460 = scalar_select %p457, %s458, %s459
    %p463 = pneg %p457
    %p464 = scmp.eq.s32.totalorder %s25, 1
    %p465 = por %p463, %p464
    %p466 = scmp.ne.s32.totalorder %s458, %s461
    %p467 = scmp.eq.s32.totalorder %s25, 0
    %p468 = por %p466, %p467
    %p469 = scmp.ne.s32.totalorder %s458, %s461
    %p470 = scmp.eq.s32.totalorder %s30, 1
    %p471 = por %p469, %p470
    %p472 = scmp.ne.s32.totalorder %s461, %s462
    %p473 = scmp.eq.s32.totalorder %s30, 0
    %p474 = por %p472, %p473
    %p475 = scmp.ne.s32.totalorder %s461, %s462
    %p476 = scmp.eq.s32.totalorder %s31, 1
    %p477 = por %p475, %p476
    %p479 = scmp.ne.s32.totalorder %s462, %s478
    %p480 = scmp.eq.s32.totalorder %s31, 0
    %p481 = por %p479, %p480
    %s482 = ssub.s32 %s32, %s44
    %s483 = ssub.s32 %s33, %s40
    %s484 = sor.u32 %s482, %s483
    %p485 = scmp.eq.s32.totalorder %s484, 0
    %s487 = sadd.s32 %s486, 1
    %s488 = scalar_select %p485, %s486, %s487
    %p491 = pneg %p485
    %p492 = scmp.eq.s32.totalorder %s25, 1
    %p493 = por %p491, %p492
    %p494 = scmp.ne.s32.totalorder %s486, %s489
    %p495 = scmp.eq.s32.totalorder %s25, 0
    %p496 = por %p494, %p495
    %p497 = scmp.ne.s32.totalorder %s486, %s489
    %p498 = scmp.eq.s32.totalorder %s30, 1
    %p499 = por %p497, %p498
    %p500 = scmp.ne.s32.totalorder %s489, %s490
    %p501 = scmp.eq.s32.totalorder %s30, 0
    %p502 = por %p500, %p501
    %p503 = scmp.ne.s32.totalorder %s489, %s490
    %p504 = scmp.eq.s32.totalorder %s31, 1
    %p505 = por %p503, %p504
    %p507 = scmp.ne.s32.totalorder %s490, %s506
    %p508 = scmp.eq.s32.totalorder %s31, 0
    %p509 = por %p507, %p508
    %p510 = scmp.le.s32.totalorder 1, %s25
    %p511 = scmp.lt.s32.totalorder %s25, 3
    %p512 = pnand %p510, %p511
    %p513 = pneg %p512
    // Predicated region
    $region9: #{pallas_forward.15} parent=5 // pred_check
      _
    $region10: #{pallas_forward.15} parent=5 // pred_check_branch
      %515 = sbr.rel (%p512) target = $region12
    $region11: #{pallas_forward.15} parent=5 // pred_region
      %s516 = ssub.s32 %s25, 1
      // Predicated region
      $region13: #{pallas_forward.15} parent=11 // pred_check
        %p517 = pneg %p278
      $region14: #{pallas_forward.15} parent=11 // pred_check_branch
        %519 = sbr.rel (%p517) target = $region16
      $region15: #{pallas_forward.15} parent=11 // pred_region
        _
      $region16: #{pallas_forward.15} parent=11 // pred_fallthru
        _
      // Predicated region
      $region17: #{pallas_forward.15} parent=11 // pred_check
        %p520 = pneg %p299
      $region18: #{pallas_forward.15} parent=11 // pred_check_branch
        %522 = sbr.rel (%p520) target = $region20
      $region19: #{pallas_forward.15} parent=11 // pred_region
        _
      $region20: #{pallas_forward.15} parent=11 // pred_fallthru
        _
      // Predicated region
      $region21: #{pallas_forward.15} parent=11 // pred_check
        %p523 = pneg %p320
      $region22: #{pallas_forward.15} parent=11 // pred_check_branch
        %525 = sbr.rel (%p523) target = $region24
      $region23: #{pallas_forward.15} parent=11 // pred_region
        _
      $region24: #{pallas_forward.15} parent=11 // pred_fallthru
        _
      // Predicated region
      $region25: #{pallas_forward.15} parent=11 // pred_check
        %p526 = pneg %p341
      $region26: #{pallas_forward.15} parent=11 // pred_check_branch
        %528 = sbr.rel (%p526) target = $region28
      $region27: #{pallas_forward.15} parent=11 // pred_region
        _
      $region28: #{pallas_forward.15} parent=11 // pred_fallthru
        _
      // Predicated region
      $region29: #{pallas_forward.15} parent=11 // pred_check
        %p529 = pneg %p362
      $region30: #{pallas_forward.15} parent=11 // pred_check_branch
        %531 = sbr.rel (%p529) target = $region32
      $region31: #{pallas_forward.15} parent=11 // pred_region
        _
      $region32: #{pallas_forward.15} parent=11 // pred_fallthru
        _
      // Predicated region
      $region33: #{pallas_forward.15} parent=11 // pred_check
        %p532 = pneg %p383
      $region34: #{pallas_forward.15} parent=11 // pred_check_branch
        %534 = sbr.rel (%p532) target = $region36
      $region35: #{pallas_forward.15} parent=11 // pred_region
        _
      $region36: #{pallas_forward.15} parent=11 // pred_fallthru
        _
      // Predicated region
      $region37: #{pallas_forward.15} parent=11 // pred_check
        %p535 = pneg %p404
      $region38: #{pallas_forward.15} parent=11 // pred_check_branch
        %537 = sbr.rel (%p535) target = $region40
      $region39: #{pallas_forward.15} parent=11 // pred_region
        _
      $region40: #{pallas_forward.15} parent=11 // pred_fallthru
        _
      // Predicated region
      $region41: #{pallas_forward.15} parent=11 // pred_check
        %p538 = pneg %p425
      $region42: #{pallas_forward.15} parent=11 // pred_check_branch
        %540 = sbr.rel (%p538) target = $region44
      $region43: #{pallas_forward.15} parent=11 // pred_region
        _
      $region44: #{pallas_forward.15} parent=11 // pred_fallthru
        _
      // Predicated region
      $region45: #{pallas_forward.15} parent=11 // pred_check
        %p541 = pneg %p446
      $region46: #{pallas_forward.15} parent=11 // pred_check_branch
        %543 = sbr.rel (%p541) target = $region48
      $region47: #{pallas_forward.15} parent=11 // pred_region
        _
      $region48: #{pallas_forward.15} parent=11 // pred_fallthru
        _
    $region12: #{pallas_forward.15} parent=5 // pred_fallthru
      _
    %p544 = scmp.lt.s32.totalorder %s25, 2
    // Predicated region
    $region49: #{pallas_forward.15} parent=5 // pred_check
      %p545 = pneg %p544
    $region50: #{pallas_forward.15} parent=5 // pred_check_branch
      %547 = sbr.rel (%p545) target = $region52
    $region51: #{pallas_forward.15} parent=5 // pred_region
      // Predicated region
      $region53: #{pallas_forward.15} parent=51 // pred_check
        %p548 = pneg %p59
      $region54: #{pallas_forward.15} parent=51 // pred_check_branch
        %550 = sbr.rel (%p548) target = $region56
      $region55: #{pallas_forward.15} parent=51 // pred_region
        %s551 = smul.u32 8, %s33
        %p552 = scmp.lt.s32.totalorder %s32, 1
        %s553 = scalar_select %p552, %s32, 1
        %p554 = scmp.lt.s32.totalorder %s551, 7
        %s555 = scalar_select %p554, %s551, 7
        %s556 = smul.addr %s553, 8
        %s557 = sadd.s32 %s555, %s556
        %s558 = smul.addr %s557, 8
        %s559 = scalar_lea.vmem %s0, %s558
        %s560 = smul.u32 8, %s33
      $region56: #{pallas_forward.15} parent=51 // pred_fallthru
        _
      // Predicated region
      $region57: #{pallas_forward.15} parent=51 // pred_check
        %p561 = pneg %p87
      $region58: #{pallas_forward.15} parent=51 // pred_check_branch
        %563 = sbr.rel (%p561) target = $region60
      $region59: #{pallas_forward.15} parent=51 // pred_region
        %p564 = scmp.lt.s32.totalorder %s32, 1
        %s565 = scalar_select %p564, %s32, 1
        %p566 = scmp.lt.s32.totalorder %s33, 0
        %s567 = scalar_select %p566, %s33, 0
        %s568 = sadd.s32 %s567, %s565
        %s569 = smul.addr %s568, 8
        %s570 = scalar_lea.vmem %s1, %s569
      $region60: #{pallas_forward.15} parent=51 // pred_fallthru
        _
      // Predicated region
      $region61: #{pallas_forward.15} parent=51 // pred_check
        %p571 = pneg %p115
      $region62: #{pallas_forward.15} parent=51 // pred_check_branch
        %573 = sbr.rel (%p571) target = $region64
      $region63: #{pallas_forward.15} parent=51 // pred_region
        %p574 = scmp.lt.s32.totalorder %s32, 1
        %s575 = scalar_select %p574, %s32, 1
        %p576 = scmp.lt.s32.totalorder %s33, 0
        %s577 = scalar_select %p576, %s33, 0
        %s578 = sadd.s32 %s577, %s575
        %s579 = smul.addr %s578, 8
        %s580 = scalar_lea.vmem %s2, %s579
      $region64: #{pallas_forward.15} parent=51 // pred_fallthru
        _
      // Predicated region
      $region65: #{pallas_forward.15} parent=51 // pred_check
        %p581 = pneg %p143
      $region66: #{pallas_forward.15} parent=51 // pred_check_branch
        %583 = sbr.rel (%p581) target = $region68
      $region67: #{pallas_forward.15} parent=51 // pred_region
        %p584 = scmp.lt.s32.totalorder %s32, 1
        %s585 = scalar_select %p584, %s32, 1
        %p586 = scmp.lt.s32.totalorder %s33, 0
        %s587 = scalar_select %p586, %s33, 0
        %s588 = sadd.s32 %s587, %s585
        %s589 = smul.addr %s588, 8
        %s590 = scalar_lea.vmem %s3, %s589
      $region68: #{pallas_forward.15} parent=51 // pred_fallthru
        _
      // Predicated region
      $region69: #{pallas_forward.15} parent=51 // pred_check
        %p591 = pneg %p169
      $region70: #{pallas_forward.15} parent=51 // pred_check_branch
        %593 = sbr.rel (%p591) target = $region72
      $region71: #{pallas_forward.15} parent=51 // pred_region
        %p594 = scmp.lt.s32.totalorder %s32, 1
        %s595 = scalar_select %p594, %s32, 1
        %s596 = smul.addr %s595, 8
        %s597 = scalar_lea.vmem %s4, %s596
      $region72: #{pallas_forward.15} parent=51 // pred_fallthru
        _
      // Predicated region
      $region73: #{pallas_forward.15} parent=51 // pred_check
        %p598 = pneg %p195
      $region74: #{pallas_forward.15} parent=51 // pred_check_branch
        %600 = sbr.rel (%p598) target = $region76
      $region75: #{pallas_forward.15} parent=51 // pred_region
        %p601 = scmp.lt.s32.totalorder %s32, 1
        %s602 = scalar_select %p601, %s32, 1
        %s603 = smul.addr %s602, 8
        %s604 = scalar_lea.vmem %s5, %s603
      $region76: #{pallas_forward.15} parent=51 // pred_fallthru
        _
      // Predicated region
      $region77: #{pallas_forward.15} parent=51 // pred_check
        %p605 = pneg %p223
      $region78: #{pallas_forward.15} parent=51 // pred_check_branch
        %607 = sbr.rel (%p605) target = $region80
      $region79: #{pallas_forward.15} parent=51 // pred_region
        %p608 = scmp.lt.s32.totalorder %s32, 1
        %s609 = scalar_select %p608, %s32, 1
        %p610 = scmp.lt.s32.totalorder %s33, 0
        %s611 = scalar_select %p610, %s33, 0
        %s612 = sadd.s32 %s611, %s609
        %s613 = smul.addr %s612, 8
        %s614 = scalar_lea.vmem %s6, %s613
      $region80: #{pallas_forward.15} parent=51 // pred_fallthru
        _
      // Predicated region
      $region81: #{pallas_forward.15} parent=51 // pred_check
        %p615 = pneg %p251
      $region82: #{pallas_forward.15} parent=51 // pred_check_branch
        %617 = sbr.rel (%p615) target = $region84
      $region83: #{pallas_forward.15} parent=51 // pred_region
        %p618 = scmp.lt.s32.totalorder %s32, 1
        %s619 = scalar_select %p618, %s32, 1
        %p620 = scmp.lt.s32.totalorder %s33, 0
        %s621 = scalar_select %p620, %s33, 0
        %s622 = sadd.s32 %s621, %s619
        %s623 = smul.addr %s622, 8
        %s624 = scalar_lea.vmem %s7, %s623
      $region84: #{pallas_forward.15} parent=51 // pred_fallthru
        _
    $region52: #{pallas_forward.15} parent=5 // pred_fallthru
      _
    %p625 = scmp.le.s32.totalorder 1, %s25
    %p626 = scmp.lt.s32.totalorder %s25, 3
    %p627 = pnand %p625, %p626
    %p628 = pneg %p627
    // Predicated region
    $region85: #{pallas_forward.15} parent=5 // pred_check
      _
    $region86: #{pallas_forward.15} parent=5 // pred_check_branch
      %630 = sbr.rel (%p627) target = $region88
    $region87: #{pallas_forward.15} parent=5 // pred_region
      %s631 = ssub.s32 %s25, 1
      %s632 = smul.u32 8, %s35
      %p633 = scmp.lt.s32.totalorder %s34, 1
      %s634 = scalar_select %p633, %s34, 1
      %p635 = scmp.lt.s32.totalorder %s632, 7
      %s636 = scalar_select %p635, %s632, 7
      %s637 = smul.addr %s634, 8
      %s638 = sadd.s32 %s636, %s637
      %s639 = smul.addr %s638, 8
      %s640 = scalar_lea.vmem %s0, %s639
      %p641 = pneg %p65
      %p642 = pneg %p62
      %p643 = scmp.lt.s32.totalorder %s34, 1
      %s644 = scalar_select %p643, %s34, 1
      %p645 = scmp.lt.s32.totalorder %s35, 0
      %s646 = scalar_select %p645, %s35, 0
      %s647 = sadd.s32 %s646, %s644
      %s648 = smul.addr %s647, 8
      %s649 = scalar_lea.vmem %s1, %s648
      %p650 = pneg %p93
      %p651 = pneg %p90
      %p652 = scmp.lt.s32.totalorder %s34, 1
      %s653 = scalar_select %p652, %s34, 1
      %p654 = scmp.lt.s32.totalorder %s35, 0
      %s655 = scalar_select %p654, %s35, 0
      %s656 = sadd.s32 %s655, %s653
      %s657 = smul.addr %s656, 8
      %s658 = scalar_lea.vmem %s2, %s657
      %p659 = pneg %p121
      %p660 = pneg %p118
      %p661 = scmp.lt.s32.totalorder %s34, 1
      %s662 = scalar_select %p661, %s34, 1
      %p663 = scmp.lt.s32.totalorder %s35, 0
      %s664 = scalar_select %p663, %s35, 0
      %s665 = sadd.s32 %s664, %s662
      %s666 = smul.addr %s665, 8
      %s667 = scalar_lea.vmem %s3, %s666
      %p668 = pneg %p149
      %p669 = pneg %p146
      %p670 = scmp.lt.s32.totalorder %s34, 1
      %s671 = scalar_select %p670, %s34, 1
      %s672 = smul.addr %s671, 8
      %s673 = scalar_lea.vmem %s4, %s672
      %p674 = pneg %p175
      %p675 = pneg %p172
      %p676 = scmp.lt.s32.totalorder %s34, 1
      %s677 = scalar_select %p676, %s34, 1
      %s678 = smul.addr %s677, 8
      %s679 = scalar_lea.vmem %s5, %s678
      %p680 = pneg %p201
      %p681 = pneg %p198
      %p682 = scmp.lt.s32.totalorder %s34, 1
      %s683 = scalar_select %p682, %s34, 1
      %p684 = scmp.lt.s32.totalorder %s35, 0
      %s685 = scalar_select %p684, %s35, 0
      %s686 = sadd.s32 %s685, %s683
      %s687 = smul.addr %s686, 8
      %s688 = scalar_lea.vmem %s6, %s687
      %p689 = pneg %p229
      %p690 = pneg %p226
      %p691 = scmp.lt.s32.totalorder %s34, 1
      %s692 = scalar_select %p691, %s34, 1
      %p693 = scmp.lt.s32.totalorder %s35, 0
      %s694 = scalar_select %p693, %s35, 0
      %s695 = sadd.s32 %s694, %s692
      %s696 = smul.addr %s695, 8
      %s697 = scalar_lea.vmem %s7, %s696
      %p698 = pneg %p257
      %p699 = pneg %p254
      %p700 = pneg %p278
      %p701 = pneg %p275
      %p702 = pneg %p299
      %p703 = pneg %p296
      %p704 = pneg %p320
      %p705 = pneg %p317
      %p706 = pneg %p341
      %p707 = pneg %p338
      %p708 = pneg %p362
      %p709 = pneg %p359
      %p710 = pneg %p383
      %p711 = pneg %p380
      %p712 = pneg %p404
      %p713 = pneg %p401
      %p714 = pneg %p425
      %p715 = pneg %p422
      %p716 = pneg %p446
      %p717 = pneg %p443
      %p718 = pneg %p474
      %p719 = pneg %p471
      %s720 = smul.u32 8, %s35
      %p721 = scmp.lt.s32.totalorder %s34, 1
      %s722 = scalar_select %p721, %s34, 1
      %p723 = scmp.lt.s32.totalorder %s720, 7
      %s724 = scalar_select %p723, %s720, 7
      %s725 = smul.addr %s722, 8
      %s726 = sadd.s32 %s724, %s725
      %s727 = smul.addr %s726, 8
      %s728 = scalar_lea.vmem %s17, %s727
      %p729 = pneg %p502
      %p730 = pneg %p499
      %p731 = scmp.lt.s32.totalorder %s34, 1
      %s732 = scalar_select %p731, %s34, 1
      %p733 = scmp.lt.s32.totalorder %s35, 0
      %s734 = scalar_select %p733, %s35, 0
      %s735 = sadd.s32 %s734, %s732
      %s736 = smul.addr %s735, 8
      %s737 = scalar_lea.vmem %s18, %s736
      %s738 = smul.u32 8, %s35
      %p739 = scmp.lt.s32.totalorder %s34, 1
      %s740 = scalar_select %p739, %s34, 1
      %p741 = scmp.lt.s32.totalorder %s738, 7
      %s742 = scalar_select %p741, %s738, 7
      %s743 = smul.addr %s740, 8
      %s744 = sadd.s32 %s742, %s743
      %s745 = smul.addr %s744, 8
      %s746 = scalar_lea.vmem %s0, %s745
      %s747 = smul.u32 8, %s35
      %p748 = scmp.lt.s32.totalorder %s34, 1
      %s749 = scalar_select %p748, %s34, 1
      %p750 = scmp.lt.s32.totalorder %s35, 0
      %s751 = scalar_select %p750, %s35, 0
      %s752 = sadd.s32 %s751, %s749
      %s753 = smul.addr %s752, 8
      %s754 = scalar_lea.vmem %s1, %s753
      %p755 = scmp.lt.s32.totalorder %s34, 1
      %s756 = scalar_select %p755, %s34, 1
      %p757 = scmp.lt.s32.totalorder %s35, 0
      %s758 = scalar_select %p757, %s35, 0
      %s759 = sadd.s32 %s758, %s756
      %s760 = smul.addr %s759, 8
      %s761 = scalar_lea.vmem %s2, %s760
      %p762 = scmp.lt.s32.totalorder %s34, 1
      %s763 = scalar_select %p762, %s34, 1
      %p764 = scmp.lt.s32.totalorder %s35, 0
      %s765 = scalar_select %p764, %s35, 0
      %s766 = sadd.s32 %s765, %s763
      %s767 = smul.addr %s766, 8
      %s768 = scalar_lea.vmem %s3, %s767
      %p769 = scmp.lt.s32.totalorder %s34, 1
      %s770 = scalar_select %p769, %s34, 1
      %s771 = smul.addr %s770, 8
      %s772 = scalar_lea.vmem %s4, %s771
      %p773 = scmp.lt.s32.totalorder %s34, 1
      %s774 = scalar_select %p773, %s34, 1
      %s775 = smul.addr %s774, 8
      %s776 = scalar_lea.vmem %s5, %s775
      %p777 = scmp.lt.s32.totalorder %s34, 1
      %s778 = scalar_select %p777, %s34, 1
      %p779 = scmp.lt.s32.totalorder %s35, 0
      %s780 = scalar_select %p779, %s35, 0
      %s781 = sadd.s32 %s780, %s778
      %s782 = smul.addr %s781, 8
      %s783 = scalar_lea.vmem %s6, %s782
      %p784 = scmp.lt.s32.totalorder %s34, 1
      %s785 = scalar_select %p784, %s34, 1
      %p786 = scmp.lt.s32.totalorder %s35, 0
      %s787 = scalar_select %p786, %s35, 0
      %s788 = sadd.s32 %s787, %s785
      %s789 = smul.addr %s788, 8
      %s790 = scalar_lea.vmem %s7, %s789
      %s791 = smul.u32 8, %s35
      %p792 = scmp.lt.s32.totalorder %s34, 1
      %s793 = scalar_select %p792, %s34, 1
      %p794 = scmp.lt.s32.totalorder %s791, 7
      %s795 = scalar_select %p794, %s791, 7
      %s796 = smul.addr %s793, 8
      %s797 = sadd.s32 %s795, %s796
      %s798 = smul.addr %s797, 8
      %s799 = scalar_lea.vmem %s17, %s798
      %s800 = smul.u32 8, %s35
      %p801 = scmp.lt.s32.totalorder %s34, 1
      %s802 = scalar_select %p801, %s34, 1
      %p803 = scmp.lt.s32.totalorder %s35, 0
      %s804 = scalar_select %p803, %s35, 0
      %s805 = sadd.s32 %s804, %s802
      %s806 = smul.addr %s805, 8
      %s807 = scalar_lea.vmem %s18, %s806
      %v808 = vld [vmem:[%s746] sm:$0xff]
      %v809 = vld [vmem:[%s746 + $0x8] sm:$0xff]
      %v810 = vld [vmem:[%s746 + $0x10] sm:$0xff]
      %v811 = vld [vmem:[%s746 + $0x18] sm:$0xff]
      %v812 = vld [vmem:[%s746 + $0x20] sm:$0xff]
      %v813 = vld [vmem:[%s746 + $0x28] sm:$0xff]
      %v814 = vld [vmem:[%s746 + $0x30] sm:$0xff]
      %v815 = vld [vmem:[%s746 + $0x38] sm:$0xff]
      %v816 = vld [vmem:[%s754] sm:$0xff]
      %v817 = vlaneseq
      %v818 = vshrl.u32 %v817, 7
      %v819 = vsub.s32 0, %v818
      %v820 = vrot.slane %v816, %v819
      %822 = vbcast.lane.b32.xlu0 %v820, 256
      %v823 = vpop.permute.xlu0 %822
      %v824 = vlaneseq
      %v825 = vshrl.u32 %v824, 7
      %v826 = vsub.s32 1, %v825
      %v827 = vrot.slane %v816, %v826
      %829 = vbcast.lane.b32.xlu0 %v827, 256
      %v830 = vpop.permute.xlu0 %829
      %v831 = vlaneseq
      %v832 = vshrl.u32 %v831, 7
      %v833 = vsub.s32 2, %v832
      %v834 = vrot.slane %v816, %v833
      %836 = vbcast.lane.b32.xlu0 %v834, 256
      %v837 = vpop.permute.xlu0 %836
      %v838 = vlaneseq
      %v839 = vshrl.u32 %v838, 7
      %v840 = vsub.s32 3, %v839
      %v841 = vrot.slane %v816, %v840
      %843 = vbcast.lane.b32.xlu0 %v841, 256
      %v844 = vpop.permute.xlu0 %843
      %v845 = vlaneseq
      %v846 = vshrl.u32 %v845, 7
      %v847 = vsub.s32 4, %v846
      %v848 = vrot.slane %v816, %v847
      %850 = vbcast.lane.b32.xlu0 %v848, 256
      %v851 = vpop.permute.xlu0 %850
      %v852 = vlaneseq
      %v853 = vshrl.u32 %v852, 7
      %v854 = vsub.s32 5, %v853
      %v855 = vrot.slane %v816, %v854
      %857 = vbcast.lane.b32.xlu0 %v855, 256
      %v858 = vpop.permute.xlu0 %857
      %v859 = vlaneseq
      %v860 = vshrl.u32 %v859, 7
      %v861 = vsub.s32 6, %v860
      %v862 = vrot.slane %v816, %v861
      %864 = vbcast.lane.b32.xlu0 %v862, 256
      %v865 = vpop.permute.xlu0 %864
      %v866 = vlaneseq
      %v867 = vshrl.u32 %v866, 7
      %v868 = vsub.s32 7, %v867
      %v869 = vrot.slane %v816, %v868
      %871 = vbcast.lane.b32.xlu0 %v869, 256
      %v872 = vpop.permute.xlu0 %871
      %v873 = vld [vmem:[%s761] sm:$0xff]
      %v874 = vlaneseq
      %v875 = vshrl.u32 %v874, 7
      %v876 = vsub.s32 0, %v875
      %v877 = vrot.slane %v873, %v876
      %879 = vbcast.lane.b32.xlu0 %v877, 256
      %v880 = vpop.permute.xlu0 %879
      %v881 = vlaneseq
      %v882 = vshrl.u32 %v881, 7
      %v883 = vsub.s32 1, %v882
      %v884 = vrot.slane %v873, %v883
      %886 = vbcast.lane.b32.xlu0 %v884, 256
      %v887 = vpop.permute.xlu0 %886
      %v888 = vlaneseq
      %v889 = vshrl.u32 %v888, 7
      %v890 = vsub.s32 2, %v889
      %v891 = vrot.slane %v873, %v890
      %893 = vbcast.lane.b32.xlu0 %v891, 256
      %v894 = vpop.permute.xlu0 %893
      %v895 = vlaneseq
      %v896 = vshrl.u32 %v895, 7
      %v897 = vsub.s32 3, %v896
      %v898 = vrot.slane %v873, %v897
      %900 = vbcast.lane.b32.xlu0 %v898, 256
      %v901 = vpop.permute.xlu0 %900
      %v902 = vlaneseq
      %v903 = vshrl.u32 %v902, 7
      %v904 = vsub.s32 4, %v903
      %v905 = vrot.slane %v873, %v904
      %907 = vbcast.lane.b32.xlu0 %v905, 256
      %v908 = vpop.permute.xlu0 %907
      %v909 = vlaneseq
      %v910 = vshrl.u32 %v909, 7
      %v911 = vsub.s32 5, %v910
      %v912 = vrot.slane %v873, %v911
      %914 = vbcast.lane.b32.xlu0 %v912, 256
      %v915 = vpop.permute.xlu0 %914
      %v916 = vlaneseq
      %v917 = vshrl.u32 %v916, 7
      %v918 = vsub.s32 6, %v917
      %v919 = vrot.slane %v873, %v918
      %921 = vbcast.lane.b32.xlu0 %v919, 256
      %v922 = vpop.permute.xlu0 %921
      %v923 = vlaneseq
      %v924 = vshrl.u32 %v923, 7
      %v925 = vsub.s32 7, %v924
      %v926 = vrot.slane %v873, %v925
      %928 = vbcast.lane.b32.xlu0 %v926, 256
      %v929 = vpop.permute.xlu0 %928
      %v930 = vld [vmem:[%s8] sm:$0x1]
      %v931 = vld [vmem:[%s9] sm:$0x1]
      %vm932 = vcmask 130048
      %v933 = vsel %vm932, %v808, 0.0
      %934 = vadd.xlane.f32.xlu0 %v933
      %v935 = vpop.xlane.xlu0 %934
      %v936 = vsel %vm932, %v809, 0.0
      %937 = vadd.xlane.f32.xlu0 %v936
      %v938 = vpop.xlane.xlu0 %937
      %v939 = vsel %vm932, %v810, 0.0
      %940 = vadd.xlane.f32.xlu0 %v939
      %v941 = vpop.xlane.xlu0 %940
      %v942 = vsel %vm932, %v811, 0.0
      %943 = vadd.xlane.f32.xlu0 %v942
      %v944 = vpop.xlane.xlu0 %943
      %v945 = vsel %vm932, %v812, 0.0
      %946 = vadd.xlane.f32.xlu0 %v945
      %v947 = vpop.xlane.xlu0 %946
      %v948 = vsel %vm932, %v813, 0.0
      %949 = vadd.xlane.f32.xlu0 %v948
      %v950 = vpop.xlane.xlu0 %949
      %v951 = vsel %vm932, %v814, 0.0
      %952 = vadd.xlane.f32.xlu0 %v951
      %v953 = vpop.xlane.xlu0 %952
      %v954 = vsel %vm932, %v815, 0.0
      %955 = vadd.xlane.f32.xlu0 %v954
      %v956 = vpop.xlane.xlu0 %955
      %v957 = vrcp.pop 16.0
      %v958 = vmul.f32 %v935, %v957
      %v959 = vmul.f32 %v938, %v957
      %v960 = vmul.f32 %v941, %v957
      %v961 = vmul.f32 %v944, %v957
      %v962 = vmul.f32 %v947, %v957
      %v963 = vmul.f32 %v950, %v957
      %v964 = vmul.f32 %v953, %v957
      %v965 = vmul.f32 %v956, %v957
      %v966 = vsub.f32 %v808, %v958
      %v967 = vsub.f32 %v809, %v959
      %v968 = vsub.f32 %v810, %v960
      %v969 = vsub.f32 %v811, %v961
      %v970 = vsub.f32 %v812, %v962
      %v971 = vsub.f32 %v813, %v963
      %v972 = vsub.f32 %v814, %v964
      %v973 = vsub.f32 %v815, %v965
      %v974 = vmul.f32 %v966, %v966
      %v975 = vmul.f32 %v967, %v967
      %v976 = vmul.f32 %v968, %v968
      %v977 = vmul.f32 %v969, %v969
      %v978 = vmul.f32 %v970, %v970
      %v979 = vmul.f32 %v971, %v971
      %v980 = vmul.f32 %v972, %v972
      %v981 = vmul.f32 %v973, %v973
      %v982 = vsel %vm932, %v974, 0.0
      %983 = vadd.xlane.f32.xlu0 %v982
      %v984 = vpop.xlane.xlu0 %983
      %v985 = vsel %vm932, %v975, 0.0
      %986 = vadd.xlane.f32.xlu0 %v985
      %v987 = vpop.xlane.xlu0 %986
      %v988 = vsel %vm932, %v976, 0.0
      %989 = vadd.xlane.f32.xlu0 %v988
      %v990 = vpop.xlane.xlu0 %989
      %v991 = vsel %vm932, %v977, 0.0
      %992 = vadd.xlane.f32.xlu0 %v991
      %v993 = vpop.xlane.xlu0 %992
      %v994 = vsel %vm932, %v978, 0.0
      %995 = vadd.xlane.f32.xlu0 %v994
      %v996 = vpop.xlane.xlu0 %995
      %v997 = vsel %vm932, %v979, 0.0
      %998 = vadd.xlane.f32.xlu0 %v997
      %v999 = vpop.xlane.xlu0 %998
      %v1000 = vsel %vm932, %v980, 0.0
      %1001 = vadd.xlane.f32.xlu0 %v1000
      %v1002 = vpop.xlane.xlu0 %1001
      %v1003 = vsel %vm932, %v981, 0.0
      %1004 = vadd.xlane.f32.xlu0 %v1003
      %v1005 = vpop.xlane.xlu0 %1004
      %v1006 = vmul.f32 %v984, %v957
      %v1007 = vmul.f32 %v987, %v957
      %v1008 = vmul.f32 %v990, %v957
      %v1009 = vmul.f32 %v993, %v957
      %v1010 = vmul.f32 %v996, %v957
      %v1011 = vmul.f32 %v999, %v957
      %v1012 = vmul.f32 %v1002, %v957
      %v1013 = vmul.f32 %v1005, %v957
      %v1014 = vadd.f32 %v1006, 1e-05
      %v1015 = vadd.f32 %v1007, 1e-05
      %v1016 = vadd.f32 %v1008, 1e-05
      %v1017 = vadd.f32 %v1009, 1e-05
      %v1018 = vadd.f32 %v1010, 1e-05
      %v1019 = vadd.f32 %v1011, 1e-05
      %v1020 = vadd.f32 %v1012, 1e-05
      %v1021 = vadd.f32 %v1013, 1e-05
      %v1022 = vrsqrt.pop %v1014
      %v1023 = vrsqrt.pop %v1015
      %v1024 = vrsqrt.pop %v1016
      %v1025 = vrsqrt.pop %v1017
      %v1026 = vrsqrt.pop %v1018
      %v1027 = vrsqrt.pop %v1019
      %v1028 = vrsqrt.pop %v1020
      %v1029 = vrsqrt.pop %v1021
      %v1030 = vmul.f32 %v966, %v1022
      %v1031 = vmul.f32 %v967, %v1023
      %v1032 = vmul.f32 %v968, %v1024
      %v1033 = vmul.f32 %v969, %v1025
      %v1034 = vmul.f32 %v970, %v1026
      %v1035 = vmul.f32 %v971, %v1027
      %v1036 = vmul.f32 %v972, %v1028
      %v1037 = vmul.f32 %v973, %v1029
      %v1039 = vlaneseq
      %v1040 = vshrl.u32 %v1039, 7
      %v1041 = vsub.s32 0, %v1040
      %v1042 = vrot.slane %v930, %v1041
      %v1044 = vmul.f32 %v1030, %v1042
      %v1045 = vmul.f32 %v1031, %v1042
      %v1046 = vmul.f32 %v1032, %v1042
      %v1047 = vmul.f32 %v1033, %v1042
      %v1048 = vmul.f32 %v1034, %v1042
      %v1049 = vmul.f32 %v1035, %v1042
      %v1050 = vmul.f32 %v1036, %v1042
      %v1051 = vmul.f32 %v1037, %v1042
      %v1053 = vlaneseq
      %v1054 = vshrl.u32 %v1053, 7
      %v1055 = vsub.s32 0, %v1054
      %v1056 = vrot.slane %v931, %v1055
      %v1058 = vadd.f32 %v1044, %v1056
      %v1059 = vadd.f32 %v1045, %v1056
      %v1060 = vadd.f32 %v1046, %v1056
      %v1061 = vadd.f32 %v1047, %v1056
      %v1062 = vadd.f32 %v1048, %v1056
      %v1063 = vadd.f32 %v1049, %v1056
      %v1064 = vadd.f32 %v1050, %v1056
      %v1065 = vadd.f32 %v1051, %v1056
      %v1066 = vld [vmem:[%s10] sm:$0xff]
      %v1067 = vld [vmem:[%s10 + $0x8] sm:$0xff]
      %v1068 = vld [vmem:[%s11] sm:$0x1]
      %v1070 = vlaneseq
      %v1071 = vshrl.u32 %v1070, 7
      %v1072 = vsub.s32 0, %v1071
      %v1073 = vrot.slane %v1068, %v1072
      %v1076 = vsel %vm932, %v1058, 0
      %v1079 = vsel %vm932, %v1059, 0
      %v1082 = vsel %vm932, %v1060, 0
      %v1085 = vsel %vm932, %v1061, 0
      %v1088 = vsel %vm932, %v1062, 0
      %v1091 = vsel %vm932, %v1063, 0
      %v1094 = vsel %vm932, %v1064, 0
      %v1097 = vsel %vm932, %v1065, 0
      %1099 = vmatprep.subr.mxu0 0.0
      %1100 = vmatpush1.msra.mxu0 %v1066
      %1101 = vmatprep.subr.mxu0 0.0
      %1102 = vmatpush1.msra.mxu0 %v1067
      %1103 = vmatprep.subr.mxu0 0.0
      %1104 = vmatpush1.msra.mxu0 0.0
      %1105 = vmatprep.subr.mxu0 0.0
      %1106 = vmatpush1.msra.mxu0 0.0
      %1107 = vmatprep.subr.mxu0 0.0
      %1108 = vmatpush1.msra.mxu0 0.0
      %1109 = vmatprep.subr.mxu0 0.0
      %1110 = vmatpush1.msra.mxu0 0.0
      %1111 = vmatprep.subr.mxu0 0.0
      %1112 = vmatpush1.msra.mxu0 0.0
      %1113 = vmatprep.subr.mxu0 0.0
      %1114 = vmatpush1.msra.mxu0 0.0
      %1115 = vmatprep.subr.mxu0 0.0
      %1116 = vmatpush1.msra.mxu0 0.0
      %1117 = vmatprep.subr.mxu0 0.0
      %1118 = vmatpush1.msra.mxu0 0.0
      %1119 = vmatprep.subr.mxu0 0.0
      %1120 = vmatpush1.msra.mxu0 0.0
      %1121 = vmatprep.subr.mxu0 0.0
      %1122 = vmatpush1.msra.mxu0 0.0
      %1123 = vmatprep.subr.mxu0 0.0
      %1124 = vmatpush1.msra.mxu0 0.0
      %1125 = vmatprep.subr.mxu0 0.0
      %1126 = vmatpush1.msra.mxu0 0.0
      %1127 = vmatprep.subr.mxu0 0.0
      %1128 = vmatpush1.msra.mxu0 0.0
      %1129 = vmatprep.subr.mxu0 0.0
      %1130 = vmatpush1.msra.mxu0 0.0
      %1131 = vmatprep.subr.mxu0 0.0
      %1132 = vmatpush1.msra.mxu0 0.0
      %1133 = vmatprep.subr.mxu0 0.0
      %1134 = vmatpush1.msra.mxu0 0.0
      %1135 = vmatprep.subr.mxu0 0.0
      %1136 = vmatpush1.msra.mxu0 0.0
      %1137 = vmatprep.subr.mxu0 0.0
      %1138 = vmatpush1.msra.mxu0 0.0
      %1139 = vmatprep.subr.mxu0 0.0
      %1140 = vmatpush1.msra.mxu0 0.0
      %1141 = vmatprep.subr.mxu0 0.0
      %1142 = vmatpush1.msra.mxu0 0.0
      %1143 = vmatprep.subr.mxu0 0.0
      %1144 = vmatpush1.msra.mxu0 0.0
      %1145 = vmatprep.subr.mxu0 0.0
      %1146 = vmatpush1.msra.mxu0 0.0
      %1147 = vmatprep.subr.mxu0 0.0
      %1148 = vmatpush1.msra.mxu0 0.0
      %1149 = vmatprep.subr.mxu0 0.0
      %1150 = vmatpush1.msra.mxu0 0.0
      %1151 = vmatprep.subr.mxu0 0.0
      %1152 = vmatpush1.msra.mxu0 0.0
      %1153 = vmatprep.subr.mxu0 0.0
      %1154 = vmatpush1.msra.mxu0 0.0
      %1155 = vmatprep.subr.mxu0 0.0
      %1156 = vmatpush1.msra.mxu0 0.0
      %1157 = vmatprep.subr.mxu0 0.0
      %1158 = vmatpush1.msra.mxu0 0.0
      %1159 = vmatprep.subr.mxu0 0.0
      %1160 = vmatpush1.msra.mxu0 0.0
      %1161 = vmatprep.subr.mxu0 0.0
      %1162 = vmatpush1.msra.mxu0 0.0
      %1163 = vmatprep.mubr.f32.mxu0 0.0
      %1164 = vmatmul.mubr.f32.gmra.mrb[0].mxu0 %v1076
      %v1165 = vpop.f32.mrb[0].mxu0
      %v1166 = vadd.f32 %v1073, %v1165
      %v1167 = vpop.f32.mrb[0].mxu0
      %1168 = vmatprep.mubr.f32.mxu0 0.0
      %1169 = vmatmul.mubr.f32.gmra.mrb[0].mxu0 %v1079
      %v1170 = vpop.f32.mrb[0].mxu0
      %v1171 = vadd.f32 %v1073, %v1170
      %v1172 = vpop.f32.mrb[0].mxu0
      %1173 = vmatprep.mubr.f32.mxu0 0.0
      %1174 = vmatmul.mubr.f32.gmra.mrb[0].mxu0 %v1082
      %v1175 = vpop.f32.mrb[0].mxu0
      %v1176 = vadd.f32 %v1073, %v1175
      %v1177 = vpop.f32.mrb[0].mxu0
      %1178 = vmatprep.mubr.f32.mxu0 0.0
      %1179 = vmatmul.mubr.f32.gmra.mrb[0].mxu0 %v1085
      %v1180 = vpop.f32.mrb[0].mxu0
      %v1181 = vadd.f32 %v1073, %v1180
      %v1182 = vpop.f32.mrb[0].mxu0
      %1183 = vmatprep.mubr.f32.mxu0 0.0
      %1184 = vmatmul.mubr.f32.gmra.mrb[0].mxu0 %v1088
      %v1185 = vpop.f32.mrb[0].mxu0
      %v1186 = vadd.f32 %v1073, %v1185
      %v1187 = vpop.f32.mrb[0].mxu0
      %1188 = vmatprep.mubr.f32.mxu0 0.0
      %1189 = vmatmul.mubr.f32.gmra.mrb[0].mxu0 %v1091
      %v1190 = vpop.f32.mrb[0].mxu0
      %v1191 = vadd.f32 %v1073, %v1190
      %v1192 = vpop.f32.mrb[0].mxu0
      %1193 = vmatprep.mubr.f32.mxu0 0.0
      %1194 = vmatmul.mubr.f32.gmra.mrb[0].mxu0 %v1094
      %v1195 = vpop.f32.mrb[0].mxu0
      %v1196 = vadd.f32 %v1073, %v1195
      %v1197 = vpop.f32.mrb[0].mxu0
      %1198 = vmatprep.mubr.f32.mxu0 0.0
      %1199 = vmatmul.mubr.f32.gmra.mrb[0].mxu0 %v1097
      %v1200 = vpop.f32.mrb[0].mxu0
      %v1201 = vadd.f32 %v1073, %v1200
      %v1202 = vpop.f32.mrb[0].mxu0
      %1203 = vdwg.mxu0
      %v1204 = vld [vmem:[%s768] sm:$0xff]
      %v1206 = vcombine.high %v1204, %v1204
      %v1208 = vunpack.c.l.s4 1966171168
      %v1209 = vunpack.c.0.s8 %v1208
      %v1210 = vlaneseq
      %v1211 = vshrl.u32 %v1210, 7
      %v1212 = vsub.s32 %v1209, %v1211
      %v1213 = vrot.slane %v1204, %v1212
      %v1215 = vunpack.c.l.s4 1966171168
      %v1216 = vunpack.c.0.s8 %v1215
      %v1217 = vlaneseq
      %v1218 = vshrl.u32 %v1217, 7
      %v1219 = vsub.s32 %v1216, %v1218
      %v1220 = vrot.slane %v1206, %v1219
      %v1221 = vcombine.high %v1213, %v1213
      %v1222 = vcombine.high %v1220, %v1220
      %v1224 = vunpack.c.l.s4 1966171168
      %v1225 = vunpack.c.0.s8 %v1224
      %v1226 = vlaneseq
      %v1227 = vshrl.u32 %v1226, 7
      %v1228 = vsub.s32 %v1225, %v1227
      %v1229 = vrot.slane %v1213, %v1228
      %v1231 = vunpack.c.l.s4 1966171168
      %v1232 = vunpack.c.0.s8 %v1231
      %v1233 = vlaneseq
      %v1234 = vshrl.u32 %v1233, 7
      %v1235 = vsub.s32 %v1232, %v1234
      %v1236 = vrot.slane %v1220, %v1235
      %v1238 = vunpack.c.l.s4 1966171168
      %v1239 = vunpack.c.0.s8 %v1238
      %v1240 = vlaneseq
      %v1241 = vshrl.u32 %v1240, 7
      %v1242 = vsub.s32 %v1239, %v1241
      %v1243 = vrot.slane %v1221, %v1242
      %v1245 = vunpack.c.l.s4 1966171168
      %v1246 = vunpack.c.0.s8 %v1245
      %v1247 = vlaneseq
      %v1248 = vshrl.u32 %v1247, 7
      %v1249 = vsub.s32 %v1246, %v1248
      %v1250 = vrot.slane %v1222, %v1249
      %v1251 = vcombine.high %v1229, %v1229
      %v1252 = vcombine.high %v1236, %v1236
      %v1253 = vcombine.high %v1243, %v1243
      %v1254 = vcombine.high %v1250, %v1250
      %v1255 = vld [vmem:[%s772] sm:$0xff]
      %v1256 = vlaneseq
      %v1257 = vshrl.u32 %v1256, 7
      %v1258 = vsub.s32 0, %v1257
      %v1259 = vrot.slane %v1229, %v1258
      %v1260 = vlaneseq
      %v1261 = vshrl.u32 %v1260, 7
      %v1262 = vsub.s32 0, %v1261
      %v1263 = vrot.slane %v1243, %v1262
      %v1264 = vlaneseq
      %v1265 = vshrl.u32 %v1264, 7
      %v1266 = vsub.s32 0, %v1265
      %v1267 = vrot.slane %v1251, %v1266
      %v1268 = vlaneseq
      %v1269 = vshrl.u32 %v1268, 7
      %v1270 = vsub.s32 0, %v1269
      %v1271 = vrot.slane %v1253, %v1270
      %v1272 = vlaneseq
      %v1273 = vshrl.u32 %v1272, 7
      %v1274 = vsub.s32 0, %v1273
      %v1275 = vrot.slane %v1236, %v1274
      %v1276 = vlaneseq
      %v1277 = vshrl.u32 %v1276, 7
      %v1278 = vsub.s32 0, %v1277
      %v1279 = vrot.slane %v1250, %v1278
      %v1280 = vlaneseq
      %v1281 = vshrl.u32 %v1280, 7
      %v1282 = vsub.s32 0, %v1281
      %v1283 = vrot.slane %v1252, %v1282
      %v1284 = vlaneseq
      %v1285 = vshrl.u32 %v1284, 7
      %v1286 = vsub.s32 0, %v1285
      %v1287 = vrot.slane %v1254, %v1286
      %v1296 = vadd.f32 %v1259, %v1255
      %v1297 = vadd.f32 %v1263, %v1255
      %v1298 = vadd.f32 %v1267, %v1255
      %v1299 = vadd.f32 %v1271, %v1255
      %v1300 = vadd.f32 %v1275, %v1255
      %v1301 = vadd.f32 %v1279, %v1255
      %v1302 = vadd.f32 %v1283, %v1255
      %v1303 = vadd.f32 %v1287, %v1255
      %v1304 = vxor.u32 %v1296, 2147483648
      %v1305 = vxor.u32 %v1297, 2147483648
      %v1306 = vxor.u32 %v1298, 2147483648
      %v1307 = vxor.u32 %v1299, 2147483648
      %v1308 = vxor.u32 %v1300, 2147483648
      %v1309 = vxor.u32 %v1301, 2147483648
      %v1310 = vxor.u32 %v1302, 2147483648
      %v1311 = vxor.u32 %v1303, 2147483648
      %v1312 = vmul.f32 %v1304, 1.442695
      %v1313 = vpow.pop %v1312
      %v1314 = vmul.f32 %v1305, 1.442695
      %v1315 = vpow.pop %v1314
      %v1316 = vmul.f32 %v1306, 1.442695
      %v1317 = vpow.pop %v1316
      %v1318 = vmul.f32 %v1307, 1.442695
      %v1319 = vpow.pop %v1318
      %v1320 = vmul.f32 %v1308, 1.442695
      %v1321 = vpow.pop %v1320
      %v1322 = vmul.f32 %v1309, 1.442695
      %v1323 = vpow.pop %v1322
      %v1324 = vmul.f32 %v1310, 1.442695
      %v1325 = vpow.pop %v1324
      %v1326 = vmul.f32 %v1311, 1.442695
      %v1327 = vpow.pop %v1326
      %v1328 = vadd.f32 %v1313, 1.0
      %v1329 = vadd.f32 %v1315, 1.0
      %v1330 = vadd.f32 %v1317, 1.0
      %v1331 = vadd.f32 %v1319, 1.0
      %v1332 = vadd.f32 %v1321, 1.0
      %v1333 = vadd.f32 %v1323, 1.0
      %v1334 = vadd.f32 %v1325, 1.0
      %v1335 = vadd.f32 %v1327, 1.0
      %v1336 = vrcp.pop %v1328
      %v1337 = vmul.f32 1.0, %v1336
      %v1338 = vrcp.pop %v1329
      %v1339 = vmul.f32 1.0, %v1338
      %v1340 = vrcp.pop %v1330
      %v1341 = vmul.f32 1.0, %v1340
      %v1342 = vrcp.pop %v1331
      %v1343 = vmul.f32 1.0, %v1342
      %v1344 = vrcp.pop %v1332
      %v1345 = vmul.f32 1.0, %v1344
      %v1346 = vrcp.pop %v1333
      %v1347 = vmul.f32 1.0, %v1346
      %v1348 = vrcp.pop %v1334
      %v1349 = vmul.f32 1.0, %v1348
      %v1350 = vrcp.pop %v1335
      %v1351 = vmul.f32 1.0, %v1350
      %v1352 = vmul.f32 %v1296, %v1337
      %v1353 = vmul.f32 %v1297, %v1339
      %v1354 = vmul.f32 %v1298, %v1341
      %v1355 = vmul.f32 %v1299, %v1343
      %v1356 = vmul.f32 %v1300, %v1345
      %v1357 = vmul.f32 %v1301, %v1347
      %v1358 = vmul.f32 %v1302, %v1349
      %v1359 = vmul.f32 %v1303, %v1351
      %v1360 = vmul.f32 %v1352, %v1166
      %v1361 = vmul.f32 %v1353, %v1171
      %v1362 = vmul.f32 %v1354, %v1176
      %v1363 = vmul.f32 %v1355, %v1181
      %v1364 = vmul.f32 %v1356, %v1186
      %v1365 = vmul.f32 %v1357, %v1191
      %v1366 = vmul.f32 %v1358, %v1196
      %v1367 = vmul.f32 %v1359, %v1201
      %1376 = vrot.lane.b32.xlu0 %v1360, 16
      %v1377 = vpop.permute.xlu0 %1376
      %1378 = vrot.lane.b32.xlu0 %v1361, 16
      %v1379 = vpop.permute.xlu0 %1378
      %1380 = vrot.lane.b32.xlu0 %v1362, 16
      %v1381 = vpop.permute.xlu0 %1380
      %1382 = vrot.lane.b32.xlu0 %v1363, 16
      %v1383 = vpop.permute.xlu0 %1382
      %1384 = vrot.lane.b32.xlu0 %v1364, 16
      %v1385 = vpop.permute.xlu0 %1384
      %1386 = vrot.lane.b32.xlu0 %v1365, 16
      %v1387 = vpop.permute.xlu0 %1386
      %1388 = vrot.lane.b32.xlu0 %v1366, 16
      %v1389 = vpop.permute.xlu0 %1388
      %1390 = vrot.lane.b32.xlu0 %v1367, 16
      %v1391 = vpop.permute.xlu0 %1390
      %v1400 = vadd.f32 %v1166, %v1377
      %v1401 = vadd.f32 %v1171, %v1379
      %v1402 = vadd.f32 %v1176, %v1381
      %v1403 = vadd.f32 %v1181, %v1383
      %v1404 = vadd.f32 %v1186, %v1385
      %v1405 = vadd.f32 %v1191, %v1387
      %v1406 = vadd.f32 %v1196, %v1389
      %v1407 = vadd.f32 %v1201, %v1391
      %1416 = vrot.lane.b32.xlu0 %v1296, 16
      %v1417 = vpop.permute.xlu0 %1416
      %1418 = vrot.lane.b32.xlu0 %v1297, 16
      %v1419 = vpop.permute.xlu0 %1418
      %1420 = vrot.lane.b32.xlu0 %v1298, 16
      %v1421 = vpop.permute.xlu0 %1420
      %1422 = vrot.lane.b32.xlu0 %v1299, 16
      %v1423 = vpop.permute.xlu0 %1422
      %1424 = vrot.lane.b32.xlu0 %v1300, 16
      %v1425 = vpop.permute.xlu0 %1424
      %1426 = vrot.lane.b32.xlu0 %v1301, 16
      %v1427 = vpop.permute.xlu0 %1426
      %1428 = vrot.lane.b32.xlu0 %v1302, 16
      %v1429 = vpop.permute.xlu0 %1428
      %1430 = vrot.lane.b32.xlu0 %v1303, 16
      %v1431 = vpop.permute.xlu0 %1430
      %v1440 = vadd.f32 %v1400, %v1417
      %v1441 = vadd.f32 %v1401, %v1419
      %v1442 = vadd.f32 %v1402, %v1421
      %v1443 = vadd.f32 %v1403, %v1423
      %v1444 = vadd.f32 %v1404, %v1425
      %v1445 = vadd.f32 %v1405, %v1427
      %v1446 = vadd.f32 %v1406, %v1429
      %v1447 = vadd.f32 %v1407, %v1431
      %v1448 = vxor.u32 %v1440, 2147483648
      %v1449 = vxor.u32 %v1441, 2147483648
      %v1450 = vxor.u32 %v1442, 2147483648
      %v1451 = vxor.u32 %v1443, 2147483648
      %v1452 = vxor.u32 %v1444, 2147483648
      %v1453 = vxor.u32 %v1445, 2147483648
      %v1454 = vxor.u32 %v1446, 2147483648
      %v1455 = vxor.u32 %v1447, 2147483648
      %v1456 = vmul.f32 %v1448, 1.442695
      %v1457 = vpow.pop %v1456
      %v1458 = vmul.f32 %v1449, 1.442695
      %v1459 = vpow.pop %v1458
      %v1460 = vmul.f32 %v1450, 1.442695
      %v1461 = vpow.pop %v1460
      %v1462 = vmul.f32 %v1451, 1.442695
      %v1463 = vpow.pop %v1462
      %v1464 = vmul.f32 %v1452, 1.442695
      %v1465 = vpow.pop %v1464
      %v1466 = vmul.f32 %v1453, 1.442695
      %v1467 = vpow.pop %v1466
      %v1468 = vmul.f32 %v1454, 1.442695
      %v1469 = vpow.pop %v1468
      %v1470 = vmul.f32 %v1455, 1.442695
      %v1471 = vpow.pop %v1470
      %v1472 = vadd.f32 %v1457, 1.0
      %v1473 = vadd.f32 %v1459, 1.0
      %v1474 = vadd.f32 %v1461, 1.0
      %v1475 = vadd.f32 %v1463, 1.0
      %v1476 = vadd.f32 %v1465, 1.0
      %v1477 = vadd.f32 %v1467, 1.0
      %v1478 = vadd.f32 %v1469, 1.0
      %v1479 = vadd.f32 %v1471, 1.0
      %v1480 = vrcp.pop %v1472
      %v1481 = vmul.f32 1.0, %v1480
      %v1482 = vrcp.pop %v1473
      %v1483 = vmul.f32 1.0, %v1482
      %v1484 = vrcp.pop %v1474
      %v1485 = vmul.f32 1.0, %v1484
      %v1486 = vrcp.pop %v1475
      %v1487 = vmul.f32 1.0, %v1486
      %v1488 = vrcp.pop %v1476
      %v1489 = vmul.f32 1.0, %v1488
      %v1490 = vrcp.pop %v1477
      %v1491 = vmul.f32 1.0, %v1490
      %v1492 = vrcp.pop %v1478
      %v1493 = vmul.f32 1.0, %v1492
      %v1494 = vrcp.pop %v1479
      %v1495 = vmul.f32 1.0, %v1494
      %v1496 = vmul.f32 %v1440, %v1481
      %v1497 = vmul.f32 %v1441, %v1483
      %v1498 = vmul.f32 %v1442, %v1485
      %v1499 = vmul.f32 %v1443, %v1487
      %v1500 = vmul.f32 %v1444, %v1489
      %v1501 = vmul.f32 %v1445, %v1491
      %v1502 = vmul.f32 %v1446, %v1493
      %v1503 = vmul.f32 %v1447, %v1495
      %v1504 = vmul.f32 %v1496, %v823
      %v1505 = vmul.f32 %v1497, %v830
      %v1506 = vmul.f32 %v1498, %v837
      %v1507 = vmul.f32 %v1499, %v844
      %v1508 = vmul.f32 %v1500, %v851
      %v1509 = vmul.f32 %v1501, %v858
      %v1510 = vmul.f32 %v1502, %v865
      %v1511 = vmul.f32 %v1503, %v872
      %v1512 = vld [vmem:[%s12] sm:$0xff]
      %v1513 = vld [vmem:[%s12 + $0x8] sm:$0xff]
      %v1514 = vld [vmem:[%s13] sm:$0x1]
      %v1516 = vlaneseq
      %v1517 = vshrl.u32 %v1516, 7
      %v1518 = vsub.s32 0, %v1517
      %v1519 = vrot.slane %v1514, %v1518
      %1529 = vrot.lane.b32.xlu0 %v1504, 112
      %v1530 = vpop.permute.xlu0 %1529
      %1531 = vrot.lane.b32.xlu0 %v1505, 112
      %v1532 = vpop.permute.xlu0 %1531
      %1533 = vrot.lane.b32.xlu0 %v1506, 112
      %v1534 = vpop.permute.xlu0 %1533
      %1535 = vrot.lane.b32.xlu0 %v1507, 112
      %v1536 = vpop.permute.xlu0 %1535
      %1537 = vrot.lane.b32.xlu0 %v1508, 112
      %v1538 = vpop.permute.xlu0 %1537
      %1539 = vrot.lane.b32.xlu0 %v1509, 112
      %v1540 = vpop.permute.xlu0 %1539
      %1541 = vrot.lane.b32.xlu0 %v1510, 112
      %v1542 = vpop.permute.xlu0 %1541
      %1543 = vrot.lane.b32.xlu0 %v1511, 112
      %v1544 = vpop.permute.xlu0 %1543
      %v1545 = vsel %vm932, %v1530, 0
      %v1547 = vsel %vm932, %v1532, 0
      %v1549 = vsel %vm932, %v1534, 0
      %v1551 = vsel %vm932, %v1536, 0
      %v1553 = vsel %vm932, %v1538, 0
      %v1555 = vsel %vm932, %v1540, 0
      %v1557 = vsel %vm932, %v1542, 0
      %v1559 = vsel %vm932, %v1544, 0
      %1561 = vmatprep.subr.mxu0 0.0
      %1562 = vmatpush1.msra.mxu0 %v1512
      %1563 = vmatprep.subr.mxu0 0.0
      %1564 = vmatpush1.msra.mxu0 %v1513
      %1565 = vmatprep.subr.mxu0 0.0
      %1566 = vmatpush1.msra.mxu0 0.0
      %1567 = vmatprep.subr.mxu0 0.0
      %1568 = vmatpush1.msra.mxu0 0.0
      %1569 = vmatprep.subr.mxu0 0.0
      %1570 = vmatpush1.msra.mxu0 0.0
      %1571 = vmatprep.subr.mxu0 0.0
      %1572 = vmatpush1.msra.mxu0 0.0
      %1573 = vmatprep.subr.mxu0 0.0
      %1574 = vmatpush1.msra.mxu0 0.0
      %1575 = vmatprep.subr.mxu0 0.0
      %1576 = vmatpush1.msra.mxu0 0.0
      %1577 = vmatprep.subr.mxu0 0.0
      %1578 = vmatpush1.msra.mxu0 0.0
      %1579 = vmatprep.subr.mxu0 0.0
      %1580 = vmatpush1.msra.mxu0 0.0
      %1581 = vmatprep.subr.mxu0 0.0
      %1582 = vmatpush1.msra.mxu0 0.0
      %1583 = vmatprep.subr.mxu0 0.0
      %1584 = vmatpush1.msra.mxu0 0.0
      %1585 = vmatprep.subr.mxu0 0.0
      %1586 = vmatpush1.msra.mxu0 0.0
      %1587 = vmatprep.subr.mxu0 0.0
      %1588 = vmatpush1.msra.mxu0 0.0
      %1589 = vmatprep.subr.mxu0 0.0
      %1590 = vmatpush1.msra.mxu0 0.0
      %1591 = vmatprep.subr.mxu0 0.0
      %1592 = vmatpush1.msra.mxu0 0.0
      %1593 = vmatprep.subr.mxu0 0.0
      %1594 = vmatpush1.msra.mxu0 0.0
      %1595 = vmatprep.subr.mxu0 0.0
      %1596 = vmatpush1.msra.mxu0 0.0
      %1597 = vmatprep.subr.mxu0 0.0
      %1598 = vmatpush1.msra.mxu0 0.0
      %1599 = vmatprep.subr.mxu0 0.0
      %1600 = vmatpush1.msra.mxu0 0.0
      %1601 = vmatprep.subr.mxu0 0.0
      %1602 = vmatpush1.msra.mxu0 0.0
      %1603 = vmatprep.subr.mxu0 0.0
      %1604 = vmatpush1.msra.mxu0 0.0
      %1605 = vmatprep.subr.mxu0 0.0
      %1606 = vmatpush1.msra.mxu0 0.0
      %1607 = vmatprep.subr.mxu0 0.0
      %1608 = vmatpush1.msra.mxu0 0.0
      %1609 = vmatprep.subr.mxu0 0.0
      %1610 = vmatpush1.msra.mxu0 0.0
      %1611 = vmatprep.subr.mxu0 0.0
      %1612 = vmatpush1.msra.mxu0 0.0
      %1613 = vmatprep.subr.mxu0 0.0
      %1614 = vmatpush1.msra.mxu0 0.0
      %1615 = vmatprep.subr.mxu0 0.0
      %1616 = vmatpush1.msra.mxu0 0.0
      %1617 = vmatprep.subr.mxu0 0.0
      %1618 = vmatpush1.msra.mxu0 0.0
      %1619 = vmatprep.subr.mxu0 0.0
      %1620 = vmatpush1.msra.mxu0 0.0
      %1621 = vmatprep.subr.mxu0 0.0
      %1622 = vmatpush1.msra.mxu0 0.0
      %1623 = vmatprep.subr.mxu0 0.0
      %1624 = vmatpush1.msra.mxu0 0.0
      %1625 = vmatprep.mubr.f32.mxu0 0.0
      %1626 = vmatmul.mubr.f32.gmra.mrb[0].mxu0 %v1545
      %v1627 = vpop.f32.mrb[0].mxu0
      %v1628 = vadd.f32 %v1519, %v1627
      %v1629 = vpop.f32.mrb[0].mxu0
      %1630 = vmatprep.mubr.f32.mxu0 0.0
      %1631 = vmatmul.mubr.f32.gmra.mrb[0].mxu0 %v1547
      %v1632 = vpop.f32.mrb[0].mxu0
      %v1633 = vadd.f32 %v1519, %v1632
      %v1634 = vpop.f32.mrb[0].mxu0
      %1635 = vmatprep.mubr.f32.mxu0 0.0
      %1636 = vmatmul.mubr.f32.gmra.mrb[0].mxu0 %v1549
      %v1637 = vpop.f32.mrb[0].mxu0
      %v1638 = vadd.f32 %v1519, %v1637
      %v1639 = vpop.f32.mrb[0].mxu0
      %1640 = vmatprep.mubr.f32.mxu0 0.0
      %1641 = vmatmul.mubr.f32.gmra.mrb[0].mxu0 %v1551
      %v1642 = vpop.f32.mrb[0].mxu0
      %v1643 = vadd.f32 %v1519, %v1642
      %v1644 = vpop.f32.mrb[0].mxu0
      %1645 = vmatprep.mubr.f32.mxu0 0.0
      %1646 = vmatmul.mubr.f32.gmra.mrb[0].mxu0 %v1553
      %v1647 = vpop.f32.mrb[0].mxu0
      %v1648 = vadd.f32 %v1519, %v1647
      %v1649 = vpop.f32.mrb[0].mxu0
      %1650 = vmatprep.mubr.f32.mxu0 0.0
      %1651 = vmatmul.mubr.f32.gmra.mrb[0].mxu0 %v1555
      %v1652 = vpop.f32.mrb[0].mxu0
      %v1653 = vadd.f32 %v1519, %v1652
      %v1654 = vpop.f32.mrb[0].mxu0
      %1655 = vmatprep.mubr.f32.mxu0 0.0
      %1656 = vmatmul.mubr.f32.gmra.mrb[0].mxu0 %v1557
      %v1657 = vpop.f32.mrb[0].mxu0
      %v1658 = vadd.f32 %v1519, %v1657
      %v1659 = vpop.f32.mrb[0].mxu0
      %1660 = vmatprep.mubr.f32.mxu0 0.0
      %1661 = vmatmul.mubr.f32.gmra.mrb[0].mxu0 %v1559
      %v1662 = vpop.f32.mrb[0].mxu0
      %v1663 = vadd.f32 %v1519, %v1662
      %v1664 = vpop.f32.mrb[0].mxu0
      %1665 = vdwg.mxu0
      %v1666 = vmul.f32 %v1628, %v823
      %v1667 = vmul.f32 %v1633, %v830
      %v1668 = vmul.f32 %v1638, %v837
      %v1669 = vmul.f32 %v1643, %v844
      %v1670 = vmul.f32 %v1648, %v851
      %v1671 = vmul.f32 %v1653, %v858
      %v1672 = vmul.f32 %v1658, %v865
      %v1673 = vmul.f32 %v1663, %v872
      %v1674 = vadd.f32 %v808, %v1666
      %v1675 = vadd.f32 %v809, %v1667
      %v1676 = vadd.f32 %v810, %v1668
      %v1677 = vadd.f32 %v811, %v1669
      %v1678 = vadd.f32 %v812, %v1670
      %v1679 = vadd.f32 %v813, %v1671
      %v1680 = vadd.f32 %v814, %v1672
      %v1681 = vadd.f32 %v815, %v1673
      %1682 = vst.msk [vmem:[%s799] sm:$0xff] %vm932, %v1674
      %1683 = vst.msk [vmem:[%s799 + $0x8] sm:$0xff] %vm932, %v1675
      %1684 = vst.msk [vmem:[%s799 + $0x10] sm:$0xff] %vm932, %v1676
      %1685 = vst.msk [vmem:[%s799 + $0x18] sm:$0xff] %vm932, %v1677
      %1686 = vst.msk [vmem:[%s799 + $0x20] sm:$0xff] %vm932, %v1678
      %1687 = vst.msk [vmem:[%s799 + $0x28] sm:$0xff] %vm932, %v1679
      %1688 = vst.msk [vmem:[%s799 + $0x30] sm:$0xff] %vm932, %v1680
      %1689 = vst.msk [vmem:[%s799 + $0x38] sm:$0xff] %vm932, %v1681
      %vm1690 = vcmp.gt.f32.partialorder %v880, 0.0
      %vm1691 = vcmp.gt.f32.partialorder %v887, 0.0
      %vm1692 = vcmp.gt.f32.partialorder %v894, 0.0
      %vm1693 = vcmp.gt.f32.partialorder %v901, 0.0
      %vm1694 = vcmp.gt.f32.partialorder %v908, 0.0
      %vm1695 = vcmp.gt.f32.partialorder %v915, 0.0
      %vm1696 = vcmp.gt.f32.partialorder %v922, 0.0
      %vm1697 = vcmp.gt.f32.partialorder %v929, 0.0
      %v1698 = vsel %vm1690, 1, 0
      %v1699 = vsel %vm1691, 1, 0
      %v1700 = vsel %vm1692, 1, 0
      %v1701 = vsel %vm1693, 1, 0
      %v1702 = vsel %vm1694, 1, 0
      %v1703 = vsel %vm1695, 1, 0
      %v1704 = vsel %vm1696, 1, 0
      %v1705 = vsel %vm1697, 1, 0
      %vm1706 = vcmp.eq.s32.totalorder %v1698, 1
      %vm1707 = vcmp.eq.s32.totalorder %v1699, 1
      %vm1708 = vcmp.eq.s32.totalorder %v1700, 1
      %vm1709 = vcmp.eq.s32.totalorder %v1701, 1
      %vm1710 = vcmp.eq.s32.totalorder %v1702, 1
      %vm1711 = vcmp.eq.s32.totalorder %v1703, 1
      %vm1712 = vcmp.eq.s32.totalorder %v1704, 1
      %vm1713 = vcmp.eq.s32.totalorder %v1705, 1
      %v1714 = vsel %vm1706, %v1628, -1e+30
      %v1715 = vsel %vm1707, %v1633, -1e+30
      %v1716 = vsel %vm1708, %v1638, -1e+30
      %v1717 = vsel %vm1709, %v1643, -1e+30
      %v1718 = vsel %vm1710, %v1648, -1e+30
      %v1719 = vsel %vm1711, %v1653, -1e+30
      %v1720 = vsel %vm1712, %v1658, -1e+30
      %v1721 = vsel %vm1713, %v1663, -1e+30
      %vm1722 = vcmask 425344
      %v1723 = vsel %vm1722, %v1714, -inf
      %v1724 = vrot.slane %v1723, 4
      %v1725 = vmax.f32 %v1723, %v1724
      %v1726 = vrot.slane %v1725, 2
      %v1727 = vmax.f32 %v1725, %v1726
      %v1728 = vrot.slane %v1727, 1
      %v1729 = vmax.f32 %v1727, %v1728
      %v1730 = vsel %vm1722, %v1715, -inf
      %v1731 = vrot.slane %v1730, 4
      %v1732 = vmax.f32 %v1730, %v1731
      %v1733 = vrot.slane %v1732, 2
      %v1734 = vmax.f32 %v1732, %v1733
      %v1735 = vrot.slane %v1734, 1
      %v1736 = vmax.f32 %v1734, %v1735
      %v1737 = vsel %vm1722, %v1716, -inf
      %v1738 = vrot.slane %v1737, 4
      %v1739 = vmax.f32 %v1737, %v1738
      %v1740 = vrot.slane %v1739, 2
      %v1741 = vmax.f32 %v1739, %v1740
      %v1742 = vrot.slane %v1741, 1
      %v1743 = vmax.f32 %v1741, %v1742
      %v1744 = vsel %vm1722, %v1717, -inf
      %v1745 = vrot.slane %v1744, 4
      %v1746 = vmax.f32 %v1744, %v1745
      %v1747 = vrot.slane %v1746, 2
      %v1748 = vmax.f32 %v1746, %v1747
      %v1749 = vrot.slane %v1748, 1
      %v1750 = vmax.f32 %v1748, %v1749
      %v1751 = vsel %vm1722, %v1718, -inf
      %v1752 = vrot.slane %v1751, 4
      %v1753 = vmax.f32 %v1751, %v1752
      %v1754 = vrot.slane %v1753, 2
      %v1755 = vmax.f32 %v1753, %v1754
      %v1756 = vrot.slane %v1755, 1
      %v1757 = vmax.f32 %v1755, %v1756
      %v1758 = vsel %vm1722, %v1719, -inf
      %v1759 = vrot.slane %v1758, 4
      %v1760 = vmax.f32 %v1758, %v1759
      %v1761 = vrot.slane %v1760, 2
      %v1762 = vmax.f32 %v1760, %v1761
      %v1763 = vrot.slane %v1762, 1
      %v1764 = vmax.f32 %v1762, %v1763
      %v1765 = vsel %vm1722, %v1720, -inf
      %v1766 = vrot.slane %v1765, 4
      %v1767 = vmax.f32 %v1765, %v1766
      %v1768 = vrot.slane %v1767, 2
      %v1769 = vmax.f32 %v1767, %v1768
      %v1770 = vrot.slane %v1769, 1
      %v1771 = vmax.f32 %v1769, %v1770
      %v1772 = vsel %vm1722, %v1721, -inf
      %v1773 = vrot.slane %v1772, 4
      %v1774 = vmax.f32 %v1772, %v1773
      %v1775 = vrot.slane %v1774, 2
      %v1776 = vmax.f32 %v1774, %v1775
      %v1777 = vrot.slane %v1776, 1
      %v1778 = vmax.f32 %v1776, %v1777
      %v1779 = vsub.f32 %v1714, %v1729
      %v1780 = vsub.f32 %v1715, %v1736
      %v1781 = vsub.f32 %v1716, %v1743
      %v1782 = vsub.f32 %v1717, %v1750
      %v1783 = vsub.f32 %v1718, %v1757
      %v1784 = vsub.f32 %v1719, %v1764
      %v1785 = vsub.f32 %v1720, %v1771
      %v1786 = vsub.f32 %v1721, %v1778
      %v1787 = vmul.f32 %v1779, 1.442695
      %v1788 = vpow.pop %v1787
      %v1789 = vmul.f32 %v1780, 1.442695
      %v1790 = vpow.pop %v1789
      %v1791 = vmul.f32 %v1781, 1.442695
      %v1792 = vpow.pop %v1791
      %v1793 = vmul.f32 %v1782, 1.442695
      %v1794 = vpow.pop %v1793
      %v1795 = vmul.f32 %v1783, 1.442695
      %v1796 = vpow.pop %v1795
      %v1797 = vmul.f32 %v1784, 1.442695
      %v1798 = vpow.pop %v1797
      %v1799 = vmul.f32 %v1785, 1.442695
      %v1800 = vpow.pop %v1799
      %v1801 = vmul.f32 %v1786, 1.442695
      %v1802 = vpow.pop %v1801
      %v1803 = vmul.f32 %v1788, %v880
      %v1804 = vmul.f32 %v1790, %v887
      %v1805 = vmul.f32 %v1792, %v894
      %v1806 = vmul.f32 %v1794, %v901
      %v1807 = vmul.f32 %v1796, %v908
      %v1808 = vmul.f32 %v1798, %v915
      %v1809 = vmul.f32 %v1800, %v922
      %v1810 = vmul.f32 %v1802, %v929
      %v1811 = vsel %vm1722, %v1803, 0.0
      %v1812 = vrot.slane %v1811, 4
      %v1813 = vadd.f32 %v1811, %v1812
      %v1814 = vrot.slane %v1813, 2
      %v1815 = vadd.f32 %v1813, %v1814
      %v1816 = vrot.slane %v1815, 1
      %v1817 = vadd.f32 %v1815, %v1816
      %v1818 = vsel %vm1722, %v1804, 0.0
      %v1819 = vrot.slane %v1818, 4
      %v1820 = vadd.f32 %v1818, %v1819
      %v1821 = vrot.slane %v1820, 2
      %v1822 = vadd.f32 %v1820, %v1821
      %v1823 = vrot.slane %v1822, 1
      %v1824 = vadd.f32 %v1822, %v1823
      %v1825 = vsel %vm1722, %v1805, 0.0
      %v1826 = vrot.slane %v1825, 4
      %v1827 = vadd.f32 %v1825, %v1826
      %v1828 = vrot.slane %v1827, 2
      %v1829 = vadd.f32 %v1827, %v1828
      %v1830 = vrot.slane %v1829, 1
      %v1831 = vadd.f32 %v1829, %v1830
      %v1832 = vsel %vm1722, %v1806, 0.0
      %v1833 = vrot.slane %v1832, 4
      %v1834 = vadd.f32 %v1832, %v1833
      %v1835 = vrot.slane %v1834, 2
      %v1836 = vadd.f32 %v1834, %v1835
      %v1837 = vrot.slane %v1836, 1
      %v1838 = vadd.f32 %v1836, %v1837
      %v1839 = vsel %vm1722, %v1807, 0.0
      %v1840 = vrot.slane %v1839, 4
      %v1841 = vadd.f32 %v1839, %v1840
      %v1842 = vrot.slane %v1841, 2
      %v1843 = vadd.f32 %v1841, %v1842
      %v1844 = vrot.slane %v1843, 1
      %v1845 = vadd.f32 %v1843, %v1844
      %v1846 = vsel %vm1722, %v1808, 0.0
      %v1847 = vrot.slane %v1846, 4
      %v1848 = vadd.f32 %v1846, %v1847
      %v1849 = vrot.slane %v1848, 2
      %v1850 = vadd.f32 %v1848, %v1849
      %v1851 = vrot.slane %v1850, 1
      %v1852 = vadd.f32 %v1850, %v1851
      %v1853 = vsel %vm1722, %v1809, 0.0
      %v1854 = vrot.slane %v1853, 4
      %v1855 = vadd.f32 %v1853, %v1854
      %v1856 = vrot.slane %v1855, 2
      %v1857 = vadd.f32 %v1855, %v1856
      %v1858 = vrot.slane %v1857, 1
      %v1859 = vadd.f32 %v1857, %v1858
      %v1860 = vsel %vm1722, %v1810, 0.0
      %v1861 = vrot.slane %v1860, 4
      %v1862 = vadd.f32 %v1860, %v1861
      %v1863 = vrot.slane %v1862, 2
      %v1864 = vadd.f32 %v1862, %v1863
      %v1865 = vrot.slane %v1864, 1
      %v1866 = vadd.f32 %v1864, %v1865
      %vm1867 = vcmp.gt.f32.partialorder %v1817, 0.0
      %vm1868 = vcmp.gt.f32.partialorder %v1824, 0.0
      %vm1869 = vcmp.gt.f32.partialorder %v1831, 0.0
      %vm1870 = vcmp.gt.f32.partialorder %v1838, 0.0
      %vm1871 = vcmp.gt.f32.partialorder %v1845, 0.0
      %vm1872 = vcmp.gt.f32.partialorder %v1852, 0.0
      %vm1873 = vcmp.gt.f32.partialorder %v1859, 0.0
      %vm1874 = vcmp.gt.f32.partialorder %v1866, 0.0
      %v1875 = vsel %vm1867, %v1817, 1.0
      %v1876 = vsel %vm1868, %v1824, 1.0
      %v1877 = vsel %vm1869, %v1831, 1.0
      %v1878 = vsel %vm1870, %v1838, 1.0
      %v1879 = vsel %vm1871, %v1845, 1.0
      %v1880 = vsel %vm1872, %v1852, 1.0
      %v1881 = vsel %vm1873, %v1859, 1.0
      %v1882 = vsel %vm1874, %v1866, 1.0
      %v1883 = vrcp.pop %v1875
      %v1884 = vmul.f32 %v1803, %v1883
      %v1885 = vrcp.pop %v1876
      %v1886 = vmul.f32 %v1804, %v1885
      %v1887 = vrcp.pop %v1877
      %v1888 = vmul.f32 %v1805, %v1887
      %v1889 = vrcp.pop %v1878
      %v1890 = vmul.f32 %v1806, %v1889
      %v1891 = vrcp.pop %v1879
      %v1892 = vmul.f32 %v1807, %v1891
      %v1893 = vrcp.pop %v1880
      %v1894 = vmul.f32 %v1808, %v1893
      %v1895 = vrcp.pop %v1881
      %v1896 = vmul.f32 %v1809, %v1895
      %v1897 = vrcp.pop %v1882
      %v1898 = vmul.f32 %v1810, %v1897
      %v1899 = vld [vmem:[%s16] sm:$0xf]
      %1908 = vrot.lane.b32.xlu0 %v1884, 80
      %v1909 = vpop.permute.xlu0 %1908
      %1910 = vrot.lane.b32.xlu0 %v1886, 80
      %v1911 = vpop.permute.xlu0 %1910
      %1912 = vrot.lane.b32.xlu0 %v1888, 80
      %v1913 = vpop.permute.xlu0 %1912
      %1914 = vrot.lane.b32.xlu0 %v1890, 80
      %v1915 = vpop.permute.xlu0 %1914
      %1916 = vrot.lane.b32.xlu0 %v1892, 80
      %v1917 = vpop.permute.xlu0 %1916
      %1918 = vrot.lane.b32.xlu0 %v1894, 80
      %v1919 = vpop.permute.xlu0 %1918
      %1920 = vrot.lane.b32.xlu0 %v1896, 80
      %v1921 = vpop.permute.xlu0 %1920
      %1922 = vrot.lane.b32.xlu0 %v1898, 80
      %v1923 = vpop.permute.xlu0 %1922
      %vm1924 = vcmask 31744
      %v1925 = vsel %vm1924, %v1909, 0
      %v1927 = vsel %vm1924, %v1911, 0
      %v1929 = vsel %vm1924, %v1913, 0
      %v1931 = vsel %vm1924, %v1915, 0
      %v1933 = vsel %vm1924, %v1917, 0
      %v1935 = vsel %vm1924, %v1919, 0
      %v1937 = vsel %vm1924, %v1921, 0
      %v1939 = vsel %vm1924, %v1923, 0
      %vm1941 = vcmask 1043456
      %v1943 = vsel %vm1941, %v1899, 0
      %1945 = vmatprep.subr.mxu0 0.0
      %1946 = vmatpush1.msra.mxu0 %v1943
      %1947 = vmatprep.subr.mxu0 0.0
      %1948 = vmatpush1.msra.mxu0 0.0
      %1949 = vmatprep.subr.mxu0 0.0
      %1950 = vmatpush1.msra.mxu0 0.0
      %1951 = vmatprep.subr.mxu0 0.0
      %1952 = vmatpush1.msra.mxu0 0.0
      %1953 = vmatprep.subr.mxu0 0.0
      %1954 = vmatpush1.msra.mxu0 0.0
      %1955 = vmatprep.subr.mxu0 0.0
      %1956 = vmatpush1.msra.mxu0 0.0
      %1957 = vmatprep.subr.mxu0 0.0
      %1958 = vmatpush1.msra.mxu0 0.0
      %1959 = vmatprep.subr.mxu0 0.0
      %1960 = vmatpush1.msra.mxu0 0.0
      %1961 = vmatprep.subr.mxu0 0.0
      %1962 = vmatpush1.msra.mxu0 0.0
      %1963 = vmatprep.subr.mxu0 0.0
      %1964 = vmatpush1.msra.mxu0 0.0
      %1965 = vmatprep.subr.mxu0 0.0
      %1966 = vmatpush1.msra.mxu0 0.0
      %1967 = vmatprep.subr.mxu0 0.0
      %1968 = vmatpush1.msra.mxu0 0.0
      %1969 = vmatprep.subr.mxu0 0.0
      %1970 = vmatpush1.msra.mxu0 0.0
      %1971 = vmatprep.subr.mxu0 0.0
      %1972 = vmatpush1.msra.mxu0 0.0
      %1973 = vmatprep.subr.mxu0 0.0
      %1974 = vmatpush1.msra.mxu0 0.0
      %1975 = vmatprep.subr.mxu0 0.0
      %1976 = vmatpush1.msra.mxu0 0.0
      %1977 = vmatprep.subr.mxu0 0.0
      %1978 = vmatpush1.msra.mxu0 0.0
      %1979 = vmatprep.subr.mxu0 0.0
      %1980 = vmatpush1.msra.mxu0 0.0
      %1981 = vmatprep.subr.mxu0 0.0
      %1982 = vmatpush1.msra.mxu0 0.0
      %1983 = vmatprep.subr.mxu0 0.0
      %1984 = vmatpush1.msra.mxu0 0.0
      %1985 = vmatprep.subr.mxu0 0.0
      %1986 = vmatpush1.msra.mxu0 0.0
      %1987 = vmatprep.subr.mxu0 0.0
      %1988 = vmatpush1.msra.mxu0 0.0
      %1989 = vmatprep.subr.mxu0 0.0
      %1990 = vmatpush1.msra.mxu0 0.0
      %1991 = vmatprep.subr.mxu0 0.0
      %1992 = vmatpush1.msra.mxu0 0.0
      %1993 = vmatprep.subr.mxu0 0.0
      %1994 = vmatpush1.msra.mxu0 0.0
      %1995 = vmatprep.subr.mxu0 0.0
      %1996 = vmatpush1.msra.mxu0 0.0
      %1997 = vmatprep.subr.mxu0 0.0
      %1998 = vmatpush1.msra.mxu0 0.0
      %1999 = vmatprep.subr.mxu0 0.0
      %2000 = vmatpush1.msra.mxu0 0.0
      %2001 = vmatprep.subr.mxu0 0.0
      %2002 = vmatpush1.msra.mxu0 0.0
      %2003 = vmatprep.subr.mxu0 0.0
      %2004 = vmatpush1.msra.mxu0 0.0
      %2005 = vmatprep.subr.mxu0 0.0
      %2006 = vmatpush1.msra.mxu0 0.0
      %2007 = vmatprep.subr.mxu0 0.0
      %2008 = vmatpush1.msra.mxu0 0.0
      %2009 = vmatprep.mubr.f32.mxu0 0.0
      %2010 = vmatmul.mubr.f32.gmra.mrb[0].mxu0 %v1925
      %v2011 = vpop.f32.mrb[0].mxu0
      %v2012 = vadd.f32 0.0, %v2011
      %v2013 = vpop.f32.mrb[0].mxu0
      %2014 = vmatprep.mubr.f32.mxu0 0.0
      %2015 = vmatmul.mubr.f32.gmra.mrb[0].mxu0 %v1927
      %v2016 = vpop.f32.mrb[0].mxu0
      %v2017 = vadd.f32 0.0, %v2016
      %v2018 = vpop.f32.mrb[0].mxu0
      %2019 = vmatprep.mubr.f32.mxu0 0.0
      %2020 = vmatmul.mubr.f32.gmra.mrb[0].mxu0 %v1929
      %v2021 = vpop.f32.mrb[0].mxu0
      %v2022 = vadd.f32 0.0, %v2021
      %v2023 = vpop.f32.mrb[0].mxu0
      %2024 = vmatprep.mubr.f32.mxu0 0.0
      %2025 = vmatmul.mubr.f32.gmra.mrb[0].mxu0 %v1931
      %v2026 = vpop.f32.mrb[0].mxu0
      %v2027 = vadd.f32 0.0, %v2026
      %v2028 = vpop.f32.mrb[0].mxu0
      %2029 = vmatprep.mubr.f32.mxu0 0.0
      %2030 = vmatmul.mubr.f32.gmra.mrb[0].mxu0 %v1933
      %v2031 = vpop.f32.mrb[0].mxu0
      %v2032 = vadd.f32 0.0, %v2031
      %v2033 = vpop.f32.mrb[0].mxu0
      %2034 = vmatprep.mubr.f32.mxu0 0.0
      %2035 = vmatmul.mubr.f32.gmra.mrb[0].mxu0 %v1935
      %v2036 = vpop.f32.mrb[0].mxu0
      %v2037 = vadd.f32 0.0, %v2036
      %v2038 = vpop.f32.mrb[0].mxu0
      %2039 = vmatprep.mubr.f32.mxu0 0.0
      %2040 = vmatmul.mubr.f32.gmra.mrb[0].mxu0 %v1937
      %v2041 = vpop.f32.mrb[0].mxu0
      %v2042 = vadd.f32 0.0, %v2041
      %v2043 = vpop.f32.mrb[0].mxu0
      %2044 = vmatprep.mubr.f32.mxu0 0.0
      %2045 = vmatmul.mubr.f32.gmra.mrb[0].mxu0 %v1939
      %v2046 = vpop.f32.mrb[0].mxu0
      %v2047 = vadd.f32 0.0, %v2046
      %v2048 = vpop.f32.mrb[0].mxu0
      %2049 = vdwg.mxu0
      %v2050 = vld [vmem:[%s776] sm:$0xff]
      %2059 = vrot.lane.b32.xlu0 %v1666, 112
      %v2060 = vpop.permute.xlu0 %2059
      %2061 = vrot.lane.b32.xlu0 %v1667, 112
      %v2062 = vpop.permute.xlu0 %2061
      %2063 = vrot.lane.b32.xlu0 %v1668, 112
      %v2064 = vpop.permute.xlu0 %2063
      %2065 = vrot.lane.b32.xlu0 %v1669, 112
      %v2066 = vpop.permute.xlu0 %2065
      %2067 = vrot.lane.b32.xlu0 %v1670, 112
      %v2068 = vpop.permute.xlu0 %2067
      %2069 = vrot.lane.b32.xlu0 %v1671, 112
      %v2070 = vpop.permute.xlu0 %2069
      %2071 = vrot.lane.b32.xlu0 %v1672, 112
      %v2072 = vpop.permute.xlu0 %2071
      %2073 = vrot.lane.b32.xlu0 %v1673, 112
      %v2074 = vpop.permute.xlu0 %2073
      %v2083 = vadd.f32 %v2050, %v2060
      %v2084 = vadd.f32 %v2050, %v2062
      %v2085 = vadd.f32 %v2050, %v2064
      %v2086 = vadd.f32 %v2050, %v2066
      %v2087 = vadd.f32 %v2050, %v2068
      %v2088 = vadd.f32 %v2050, %v2070
      %v2089 = vadd.f32 %v2050, %v2072
      %v2090 = vadd.f32 %v2050, %v2074
      %v2091 = vmul.f32 %v2012, %v2083
      %v2092 = vmul.f32 %v2017, %v2084
      %v2093 = vmul.f32 %v2022, %v2085
      %v2094 = vmul.f32 %v2027, %v2086
      %v2095 = vmul.f32 %v2032, %v2087
      %v2096 = vmul.f32 %v2037, %v2088
      %v2097 = vmul.f32 %v2042, %v2089
      %v2098 = vmul.f32 %v2047, %v2090
      %vm2099 = vcmask 261120
      %v2100 = vsel %vm2099, %v2091, 0.0
      %v2101 = vrot.slane %v2100, 4
      %v2102 = vadd.f32 %v2100, %v2101
      %v2103 = vrot.slane %v2102, 2
      %v2104 = vadd.f32 %v2102, %v2103
      %v2105 = vrot.slane %v2104, 1
      %v2106 = vadd.f32 %v2104, %v2105
      %v2107 = vsel %vm2099, %v2092, 0.0
      %v2108 = vrot.slane %v2107, 4
      %v2109 = vadd.f32 %v2107, %v2108
      %v2110 = vrot.slane %v2109, 2
      %v2111 = vadd.f32 %v2109, %v2110
      %v2112 = vrot.slane %v2111, 1
      %v2113 = vadd.f32 %v2111, %v2112
      %v2114 = vsel %vm2099, %v2093, 0.0
      %v2115 = vrot.slane %v2114, 4
      %v2116 = vadd.f32 %v2114, %v2115
      %v2117 = vrot.slane %v2116, 2
      %v2118 = vadd.f32 %v2116, %v2117
      %v2119 = vrot.slane %v2118, 1
      %v2120 = vadd.f32 %v2118, %v2119
      %v2121 = vsel %vm2099, %v2094, 0.0
      %v2122 = vrot.slane %v2121, 4
      %v2123 = vadd.f32 %v2121, %v2122
      %v2124 = vrot.slane %v2123, 2
      %v2125 = vadd.f32 %v2123, %v2124
      %v2126 = vrot.slane %v2125, 1
      %v2127 = vadd.f32 %v2125, %v2126
      %v2128 = vsel %vm2099, %v2095, 0.0
      %v2129 = vrot.slane %v2128, 4
      %v2130 = vadd.f32 %v2128, %v2129
      %v2131 = vrot.slane %v2130, 2
      %v2132 = vadd.f32 %v2130, %v2131
      %v2133 = vrot.slane %v2132, 1
      %v2134 = vadd.f32 %v2132, %v2133
      %v2135 = vsel %vm2099, %v2096, 0.0
      %v2136 = vrot.slane %v2135, 4
      %v2137 = vadd.f32 %v2135, %v2136
      %v2138 = vrot.slane %v2137, 2
      %v2139 = vadd.f32 %v2137, %v2138
      %v2140 = vrot.slane %v2139, 1
      %v2141 = vadd.f32 %v2139, %v2140
      %v2142 = vsel %vm2099, %v2097, 0.0
      %v2143 = vrot.slane %v2142, 4
      %v2144 = vadd.f32 %v2142, %v2143
      %v2145 = vrot.slane %v2144, 2
      %v2146 = vadd.f32 %v2144, %v2145
      %v2147 = vrot.slane %v2146, 1
      %v2148 = vadd.f32 %v2146, %v2147
      %v2149 = vsel %vm2099, %v2098, 0.0
      %v2150 = vrot.slane %v2149, 4
      %v2151 = vadd.f32 %v2149, %v2150
      %v2152 = vrot.slane %v2151, 2
      %v2153 = vadd.f32 %v2151, %v2152
      %v2154 = vrot.slane %v2153, 1
      %v2155 = vadd.f32 %v2153, %v2154
      %v2156 = vld [vmem:[%s14] sm:$0xff]
      %v2157 = vld [vmem:[%s14 + $0x8] sm:$0xff]
      %v2158 = vld [vmem:[%s14 + $0x10] sm:$0xff]
      %v2159 = vld [vmem:[%s14 + $0x18] sm:$0xff]
      %v2160 = vld [vmem:[%s15] sm:$0x1]
      %v2162 = vlaneseq
      %v2163 = vshrl.u32 %v2162, 7
      %v2164 = vsub.s32 0, %v2163
      %v2165 = vrot.slane %v2160, %v2164
      %vm2175 = vcmask 1041409
      %v2176 = vsel %vm2175, %v2113, %v2106
      %vm2177 = vcmask 1042434
      %v2178 = vsel %vm2177, %v2120, %v2176
      %vm2179 = vcmask 1043459
      %v2180 = vsel %vm2179, %v2127, %v2178
      %vm2181 = vcmask 1044484
      %v2182 = vsel %vm2181, %v2134, %v2180
      %vm2183 = vcmask 1045509
      %v2184 = vsel %vm2183, %v2141, %v2182
      %vm2185 = vcmask 1046534
      %v2186 = vsel %vm2185, %v2148, %v2184
      %vm2187 = vcmask 1047559
      %v2188 = vsel %vm2187, %v2155, %v2186
      %v2189 = vsel %vm2099, %v2188, 0
      %2191 = vmatprep.subr.mxu0 0.0
      %2192 = vmatpush1.msra.mxu0 %v2156
      %2193 = vmatprep.subr.mxu0 0.0
      %2194 = vmatpush1.msra.mxu0 %v2157
      %2195 = vmatprep.subr.mxu0 0.0
      %2196 = vmatpush1.msra.mxu0 %v2158
      %2197 = vmatprep.subr.mxu0 0.0
      %2198 = vmatpush1.msra.mxu0 %v2159
      %2199 = vmatprep.subr.mxu0 0.0
      %2200 = vmatpush1.msra.mxu0 0.0
      %2201 = vmatprep.subr.mxu0 0.0
      %2202 = vmatpush1.msra.mxu0 0.0
      %2203 = vmatprep.subr.mxu0 0.0
      %2204 = vmatpush1.msra.mxu0 0.0
      %2205 = vmatprep.subr.mxu0 0.0
      %2206 = vmatpush1.msra.mxu0 0.0
      %2207 = vmatprep.subr.mxu0 0.0
      %2208 = vmatpush1.msra.mxu0 0.0
      %2209 = vmatprep.subr.mxu0 0.0
      %2210 = vmatpush1.msra.mxu0 0.0
      %2211 = vmatprep.subr.mxu0 0.0
      %2212 = vmatpush1.msra.mxu0 0.0
      %2213 = vmatprep.subr.mxu0 0.0
      %2214 = vmatpush1.msra.mxu0 0.0
      %2215 = vmatprep.subr.mxu0 0.0
      %2216 = vmatpush1.msra.mxu0 0.0
      %2217 = vmatprep.subr.mxu0 0.0
      %2218 = vmatpush1.msra.mxu0 0.0
      %2219 = vmatprep.subr.mxu0 0.0
      %2220 = vmatpush1.msra.mxu0 0.0
      %2221 = vmatprep.subr.mxu0 0.0
      %2222 = vmatpush1.msra.mxu0 0.0
      %2223 = vmatprep.subr.mxu0 0.0
      %2224 = vmatpush1.msra.mxu0 0.0
      %2225 = vmatprep.subr.mxu0 0.0
      %2226 = vmatpush1.msra.mxu0 0.0
      %2227 = vmatprep.subr.mxu0 0.0
      %2228 = vmatpush1.msra.mxu0 0.0
      %2229 = vmatprep.subr.mxu0 0.0
      %2230 = vmatpush1.msra.mxu0 0.0
      %2231 = vmatprep.subr.mxu0 0.0
      %2232 = vmatpush1.msra.mxu0 0.0
      %2233 = vmatprep.subr.mxu0 0.0
      %2234 = vmatpush1.msra.mxu0 0.0
      %2235 = vmatprep.subr.mxu0 0.0
      %2236 = vmatpush1.msra.mxu0 0.0
      %2237 = vmatprep.subr.mxu0 0.0
      %2238 = vmatpush1.msra.mxu0 0.0
      %2239 = vmatprep.subr.mxu0 0.0
      %2240 = vmatpush1.msra.mxu0 0.0
      %2241 = vmatprep.subr.mxu0 0.0
      %2242 = vmatpush1.msra.mxu0 0.0
      %2243 = vmatprep.subr.mxu0 0.0
      %2244 = vmatpush1.msra.mxu0 0.0
      %2245 = vmatprep.subr.mxu0 0.0
      %2246 = vmatpush1.msra.mxu0 0.0
      %2247 = vmatprep.subr.mxu0 0.0
      %2248 = vmatpush1.msra.mxu0 0.0
      %2249 = vmatprep.subr.mxu0 0.0
      %2250 = vmatpush1.msra.mxu0 0.0
      %2251 = vmatprep.subr.mxu0 0.0
      %2252 = vmatpush1.msra.mxu0 0.0
      %2253 = vmatprep.subr.mxu0 0.0
      %2254 = vmatpush1.msra.mxu0 0.0
      %2255 = vmatprep.mubr.f32.mxu0 0.0
      %2256 = vmatmul.mubr.f32.gmra.mrb[0].mxu0 %v2189
      %v2257 = vpop.f32.mrb[0].mxu0
      %v2258 = vadd.f32 %v2165, %v2257
      %v2259 = vpop.f32.mrb[0].mxu0
      %2260 = vdwg.mxu0
      %v2261 = vld [vmem:[%s790] sm:$0xff]
      %2263 = vset.pattern.permute.xlu0 0
      %2264 = vperm.xlu0 %2263, %v2261
      %v2265 = vpop.permute.xlu0 %2264
      %v2267 = vmul.f32 %v2258, %v2265
      %v2268 = vld [vmem:[%s783] sm:$0xff]
      %v2269 = vadd.f32 %v2268, %v2267
      %2270 = vst.msk [vmem:[%s807] sm:$0xff] %vm2099, %v2269
      %s2271 = smul.u32 8, %s35
      %p2272 = scmp.lt.s32.totalorder %s34, 1
      %s2273 = scalar_select %p2272, %s34, 1
      %p2274 = scmp.lt.s32.totalorder %s2271, 7
      %s2275 = scalar_select %p2274, %s2271, 7
      %s2276 = smul.addr %s2273, 8
      %s2277 = sadd.s32 %s2275, %s2276
      %s2278 = smul.addr %s2277, 8
      %s2279 = scalar_lea.vmem %s17, %s2278
      %p2280 = scmp.lt.s32.totalorder %s34, 1
      %s2281 = scalar_select %p2280, %s34, 1
      %p2282 = scmp.lt.s32.totalorder %s35, 0
      %s2283 = scalar_select %p2282, %s35, 0
      %s2284 = sadd.s32 %s2283, %s2281
      %s2285 = smul.addr %s2284, 8
      %s2286 = scalar_lea.vmem %s18, %s2285
      // Predicated region
      $region89: #{pallas_forward.15} parent=87 // pred_check
        %p2287 = pneg %p471
      $region90: #{pallas_forward.15} parent=87 // pred_check_branch
        %2289 = sbr.rel (%p2287) target = $region92
      $region91: #{pallas_forward.15} parent=87 // pred_region
        %s2290 = smul.u32 8, %s35
      $region92: #{pallas_forward.15} parent=87 // pred_fallthru
        _
      // Predicated region
      $region93: #{pallas_forward.15} parent=87 // pred_check
        %p2291 = pneg %p499
      $region94: #{pallas_forward.15} parent=87 // pred_check_branch
        %2293 = sbr.rel (%p2291) target = $region96
      $region95: #{pallas_forward.15} parent=87 // pred_region
        _
      $region96: #{pallas_forward.15} parent=87 // pred_fallthru
        _
    $region88: #{pallas_forward.15} parent=5 // pred_fallthru
      _
    %p2294 = scmp.le.s32.totalorder 2, %s25
    // Predicated region
    $region97: #{pallas_forward.15} parent=5 // pred_check
      %p2295 = pneg %p2294
    $region98: #{pallas_forward.15} parent=5 // pred_check_branch
      %2297 = sbr.rel (%p2295) target = $region100
    $region99: #{pallas_forward.15} parent=5 // pred_region
      %s2298 = ssub.s32 %s25, 2
      // Predicated region
      $region101: #{pallas_forward.15} parent=99 // pred_check
        %p2299 = pneg %p477
      $region102: #{pallas_forward.15} parent=99 // pred_check_branch
        %2301 = sbr.rel (%p2299) target = $region104
      $region103: #{pallas_forward.15} parent=99 // pred_region
        %s2302 = smul.u32 8, %s37
        %p2303 = scmp.lt.s32.totalorder %s36, 1
        %s2304 = scalar_select %p2303, %s36, 1
        %p2305 = scmp.lt.s32.totalorder %s2302, 7
        %s2306 = scalar_select %p2305, %s2302, 7
        %s2307 = smul.addr %s2304, 8
        %s2308 = sadd.s32 %s2306, %s2307
        %s2309 = smul.addr %s2308, 8
        %s2310 = scalar_lea.vmem %s17, %s2309
      $region104: #{pallas_forward.15} parent=99 // pred_fallthru
        _
      // Predicated region
      $region105: #{pallas_forward.15} parent=99 // pred_check
        %p2311 = pneg %p505
      $region106: #{pallas_forward.15} parent=99 // pred_check_branch
        %2313 = sbr.rel (%p2311) target = $region108
      $region107: #{pallas_forward.15} parent=99 // pred_region
        %p2314 = scmp.lt.s32.totalorder %s36, 1
        %s2315 = scalar_select %p2314, %s36, 1
        %p2316 = scmp.lt.s32.totalorder %s37, 0
        %s2317 = scalar_select %p2316, %s37, 0
        %s2318 = sadd.s32 %s2317, %s2315
        %s2319 = smul.addr %s2318, 8
        %s2320 = scalar_lea.vmem %s18, %s2319
      $region108: #{pallas_forward.15} parent=99 // pred_fallthru
        _
    $region100: #{pallas_forward.15} parent=5 // pred_fallthru
      _
  $region6: #{pallas_forward.15} parent=0 // loop_footer
    %s29 = sadd.s32 1, %s25
  $region7: #{pallas_forward.15} parent=0 // loop_footer_branch
    %24 = sbr.rel target = $region3
  $region8: #{pallas_forward.15} parent=0 // loop_exit
    _

// kernel: pallas_forward.18
$region0: #{pallas_forward.18}
  #allocation0 [shape = 'u32[]', space=smem, size = 0x4, offset = 0x4, fixed_abs, tag = 'smem constant byte address 0x4 - core index']
  #allocation1 [shape = 'u32[144,128]{1,0:T(1,128)}', space=vmem, size = 0x12000, scoped, tag = 'internal scratch']
  %s0 = inlined_call_operand.vmem [shape: f32[2,16,8,8], index: 0, kind: input, shape index: {}]
  %s1 = inlined_call_operand.vmem [shape: f32[2,16,8,8], index: 1, kind: input, shape index: {}]
  %s2 = inlined_call_operand.vmem [shape: f32[2,8,8], index: 2, kind: input, shape index: {}]
  %s3 = inlined_call_operand.vmem [shape: f32[2,8,8], index: 3, kind: input, shape index: {}]
  %s4 = inlined_call_operand.vmem [shape: f32[2,16,8,8], index: 4, kind: output, shape index: {}]
  %s5 = sld [smem:[#allocation0]]
  $region49: #{pallas_forward.18} parent=0
    _
  %s7 = ssub.s32 1, %s5
  %s8 = scalar_select 0, %s7, %s5
  loop: start=0, step=1, limit=4
  $region2: #{pallas_forward.18} parent=0 // loop_pre_header
    _
  $region3: #{pallas_forward.18} parent=0 // loop_header
    %s10 = sphi 0, %s14
    %p11 = scmp.ge.s32.totalorder %s10, 4
    %s17 = sphi 0, %s29
    %s18 = sphi 0, %s25
    %s19 = sphi 0, %s17
    %s20 = sphi 0, %s18
    %s21 = sphi 0, %s19
    %s22 = sphi 0, %s20
    %s34 = sphi 0, %s36
    %s37 = sphi 0, %s34
    %s38 = sphi 0, %s37
    %s54 = sphi 0, %s38
    %s60 = sphi 0, %s62
    %s63 = sphi 0, %s60
    %s64 = sphi 0, %s63
    %s80 = sphi 0, %s64
    %s88 = sphi 0, %s90
    %s91 = sphi 0, %s88
    %s92 = sphi 0, %s91
    %s108 = sphi 0, %s92
    %s114 = sphi 0, %s116
    %s117 = sphi 0, %s114
    %s118 = sphi 0, %s117
    %s134 = sphi 0, %s118
    %s142 = sphi 0, %s144
    %s145 = sphi 0, %s142
    %s146 = sphi 0, %s145
    %s162 = sphi 0, %s146
  $region4: #{pallas_forward.18} parent=0 // loop_header_branch
    %13 = sbr.rel (%p11) target = $region8
  $region5: #{pallas_forward.18} parent=0 // loop_body
    %s15 = ssub.s32 %s10, 1
    %s16 = ssub.s32 %s10, 2
    %s23 = sadd.s32 1, %s18
    %p24 = scmp.ge.s32.totalorder %s23, 1
    %s25 = scalar_select %p24, 0, %s23
    %s26 = sadd.s32 1, %s17
    %s27 = scalar_select %p24, %s26, %s17
    %p28 = scmp.ge.s32.totalorder %s27, 2
    %s29 = scalar_select %p28, 0, %s27
    %s30 = ssub.s32 %s17, %s29
    %s31 = ssub.s32 %s18, %s25
    %s32 = sor.u32 %s30, %s31
    %p33 = scmp.eq.s32.totalorder %s32, 0
    %s35 = sadd.s32 %s34, 1
    %s36 = scalar_select %p33, %s34, %s35
    %p39 = pneg %p33
    %p40 = scmp.eq.s32.totalorder %s10, 1
    %p41 = por %p39, %p40
    %p42 = scmp.ne.s32.totalorder %s34, %s37
    %p43 = scmp.eq.s32.totalorder %s10, 0
    %p44 = por %p42, %p43
    %p45 = scmp.ne.s32.totalorder %s34, %s37
    %p46 = scmp.eq.s32.totalorder %s15, 1
    %p47 = por %p45, %p46
    %p48 = scmp.ne.s32.totalorder %s37, %s38
    %p49 = scmp.eq.s32.totalorder %s15, 0
    %p50 = por %p48, %p49
    %p51 = scmp.ne.s32.totalorder %s37, %s38
    %p52 = scmp.eq.s32.totalorder %s16, 1
    %p53 = por %p51, %p52
    %p55 = scmp.ne.s32.totalorder %s38, %s54
    %p56 = scmp.eq.s32.totalorder %s16, 0
    %p57 = por %p55, %p56
    %s58 = ssub.s32 %s17, %s29
    %p59 = scmp.eq.s32.totalorder %s58, 0
    %s61 = sadd.s32 %s60, 1
    %s62 = scalar_select %p59, %s60, %s61
    %p65 = pneg %p59
    %p66 = scmp.eq.s32.totalorder %s10, 1
    %p67 = por %p65, %p66
    %p68 = scmp.ne.s32.totalorder %s60, %s63
    %p69 = scmp.eq.s32.totalorder %s10, 0
    %p70 = por %p68, %p69
    %p71 = scmp.ne.s32.totalorder %s60, %s63
    %p72 = scmp.eq.s32.totalorder %s15, 1
    %p73 = por %p71, %p72
    %p74 = scmp.ne.s32.totalorder %s63, %s64
    %p75 = scmp.eq.s32.totalorder %s15, 0
    %p76 = por %p74, %p75
    %p77 = scmp.ne.s32.totalorder %s63, %s64
    %p78 = scmp.eq.s32.totalorder %s16, 1
    %p79 = por %p77, %p78
    %p81 = scmp.ne.s32.totalorder %s64, %s80
    %p82 = scmp.eq.s32.totalorder %s16, 0
    %p83 = por %p81, %p82
    %s84 = ssub.s32 %s17, %s29
    %s85 = ssub.s32 %s18, %s25
    %s86 = sor.u32 %s84, %s85
    %p87 = scmp.eq.s32.totalorder %s86, 0
    %s89 = sadd.s32 %s88, 1
    %s90 = scalar_select %p87, %s88, %s89
    %p93 = pneg %p87
    %p94 = scmp.eq.s32.totalorder %s10, 1
    %p95 = por %p93, %p94
    %p96 = scmp.ne.s32.totalorder %s88, %s91
    %p97 = scmp.eq.s32.totalorder %s10, 0
    %p98 = por %p96, %p97
    %p99 = scmp.ne.s32.totalorder %s88, %s91
    %p100 = scmp.eq.s32.totalorder %s15, 1
    %p101 = por %p99, %p100
    %p102 = scmp.ne.s32.totalorder %s91, %s92
    %p103 = scmp.eq.s32.totalorder %s15, 0
    %p104 = por %p102, %p103
    %p105 = scmp.ne.s32.totalorder %s91, %s92
    %p106 = scmp.eq.s32.totalorder %s16, 1
    %p107 = por %p105, %p106
    %p109 = scmp.ne.s32.totalorder %s92, %s108
    %p110 = scmp.eq.s32.totalorder %s16, 0
    %p111 = por %p109, %p110
    %s112 = ssub.s32 %s17, %s29
    %p113 = scmp.eq.s32.totalorder %s112, 0
    %s115 = sadd.s32 %s114, 1
    %s116 = scalar_select %p113, %s114, %s115
    %p119 = pneg %p113
    %p120 = scmp.eq.s32.totalorder %s10, 1
    %p121 = por %p119, %p120
    %p122 = scmp.ne.s32.totalorder %s114, %s117
    %p123 = scmp.eq.s32.totalorder %s10, 0
    %p124 = por %p122, %p123
    %p125 = scmp.ne.s32.totalorder %s114, %s117
    %p126 = scmp.eq.s32.totalorder %s15, 1
    %p127 = por %p125, %p126
    %p128 = scmp.ne.s32.totalorder %s117, %s118
    %p129 = scmp.eq.s32.totalorder %s15, 0
    %p130 = por %p128, %p129
    %p131 = scmp.ne.s32.totalorder %s117, %s118
    %p132 = scmp.eq.s32.totalorder %s16, 1
    %p133 = por %p131, %p132
    %p135 = scmp.ne.s32.totalorder %s118, %s134
    %p136 = scmp.eq.s32.totalorder %s16, 0
    %p137 = por %p135, %p136
    %s138 = ssub.s32 %s17, %s29
    %s139 = ssub.s32 %s18, %s25
    %s140 = sor.u32 %s138, %s139
    %p141 = scmp.eq.s32.totalorder %s140, 0
    %s143 = sadd.s32 %s142, 1
    %s144 = scalar_select %p141, %s142, %s143
    %p147 = pneg %p141
    %p148 = scmp.eq.s32.totalorder %s10, 1
    %p149 = por %p147, %p148
    %p150 = scmp.ne.s32.totalorder %s142, %s145
    %p151 = scmp.eq.s32.totalorder %s10, 0
    %p152 = por %p150, %p151
    %p153 = scmp.ne.s32.totalorder %s142, %s145
    %p154 = scmp.eq.s32.totalorder %s15, 1
    %p155 = por %p153, %p154
    %p156 = scmp.ne.s32.totalorder %s145, %s146
    %p157 = scmp.eq.s32.totalorder %s15, 0
    %p158 = por %p156, %p157
    %p159 = scmp.ne.s32.totalorder %s145, %s146
    %p160 = scmp.eq.s32.totalorder %s16, 1
    %p161 = por %p159, %p160
    %p163 = scmp.ne.s32.totalorder %s146, %s162
    %p164 = scmp.eq.s32.totalorder %s16, 0
    %p165 = por %p163, %p164
    %p166 = scmp.le.s32.totalorder 1, %s10
    %p167 = scmp.lt.s32.totalorder %s10, 3
    %p168 = pnand %p166, %p167
    %p169 = pneg %p168
    // Predicated region
    $region9: #{pallas_forward.18} parent=5 // pred_check
      _
    $region10: #{pallas_forward.18} parent=5 // pred_check_branch
      %171 = sbr.rel (%p168) target = $region12
    $region11: #{pallas_forward.18} parent=5 // pred_region
      %s172 = ssub.s32 %s10, 1
    $region12: #{pallas_forward.18} parent=5 // pred_fallthru
      _
    %p173 = scmp.lt.s32.totalorder %s10, 2
    // Predicated region
    $region13: #{pallas_forward.18} parent=5 // pred_check
      %p174 = pneg %p173
    $region14: #{pallas_forward.18} parent=5 // pred_check_branch
      %176 = sbr.rel (%p174) target = $region16
    $region15: #{pallas_forward.18} parent=5 // pred_region
      // Predicated region
      $region17: #{pallas_forward.18} parent=15 // pred_check
        %p177 = pneg %p44
      $region18: #{pallas_forward.18} parent=15 // pred_check_branch
        %179 = sbr.rel (%p177) target = $region20
      $region19: #{pallas_forward.18} parent=15 // pred_region
        %p180 = scmp.lt.s32.totalorder %s17, 1
        %s181 = scalar_select %p180, %s17, 1
        %p182 = scmp.lt.s32.totalorder %s18, 0
        %s183 = scalar_select %p182, %s18, 0
        %s184 = smul.addr %s181, 16
        %s185 = sadd.s32 %s183, %s184
        %s186 = smul.addr %s185, 8
        %s187 = scalar_lea.vmem %s0, %s186
      $region20: #{pallas_forward.18} parent=15 // pred_fallthru
        _
      // Predicated region
      $region21: #{pallas_forward.18} parent=15 // pred_check
        %p188 = pneg %p70
      $region22: #{pallas_forward.18} parent=15 // pred_check_branch
        %190 = sbr.rel (%p188) target = $region24
      $region23: #{pallas_forward.18} parent=15 // pred_region
        %p191 = scmp.lt.s32.totalorder %s17, 1
        %s192 = scalar_select %p191, %s17, 1
        %s193 = smul.addr %s192, 16
        %s194 = smul.addr %s193, 8
        %s195 = scalar_lea.vmem %s1, %s194
      $region24: #{pallas_forward.18} parent=15 // pred_fallthru
        _
      // Predicated region
      $region25: #{pallas_forward.18} parent=15 // pred_check
        %p196 = pneg %p98
      $region26: #{pallas_forward.18} parent=15 // pred_check_branch
        %198 = sbr.rel (%p196) target = $region28
      $region27: #{pallas_forward.18} parent=15 // pred_region
        %p199 = scmp.lt.s32.totalorder %s17, 1
        %s200 = scalar_select %p199, %s17, 1
        %p201 = scmp.lt.s32.totalorder %s18, 0
        %s202 = scalar_select %p201, %s18, 0
        %s203 = sadd.s32 %s202, %s200
        %s204 = smul.addr %s203, 8
        %s205 = scalar_lea.vmem %s2, %s204
      $region28: #{pallas_forward.18} parent=15 // pred_fallthru
        _
      // Predicated region
      $region29: #{pallas_forward.18} parent=15 // pred_check
        %p206 = pneg %p124
      $region30: #{pallas_forward.18} parent=15 // pred_check_branch
        %208 = sbr.rel (%p206) target = $region32
      $region31: #{pallas_forward.18} parent=15 // pred_region
        %p209 = scmp.lt.s32.totalorder %s17, 1
        %s210 = scalar_select %p209, %s17, 1
        %s211 = smul.addr %s210, 8
        %s212 = scalar_lea.vmem %s3, %s211
      $region32: #{pallas_forward.18} parent=15 // pred_fallthru
        _
    $region16: #{pallas_forward.18} parent=5 // pred_fallthru
      _
    %p213 = scmp.le.s32.totalorder 1, %s10
    %p214 = scmp.lt.s32.totalorder %s10, 3
    %p215 = pnand %p213, %p214
    %p216 = pneg %p215
    // Predicated region
    $region33: #{pallas_forward.18} parent=5 // pred_check
      _
    $region34: #{pallas_forward.18} parent=5 // pred_check_branch
      %218 = sbr.rel (%p215) target = $region36
    $region35: #{pallas_forward.18} parent=5 // pred_region
      %s219 = ssub.s32 %s10, 1
      %p220 = scmp.lt.s32.totalorder %s19, 1
      %s221 = scalar_select %p220, %s19, 1
      %p222 = scmp.lt.s32.totalorder %s20, 0
      %s223 = scalar_select %p222, %s20, 0
      %s224 = smul.addr %s221, 16
      %s225 = sadd.s32 %s223, %s224
      %s226 = smul.addr %s225, 8
      %s227 = scalar_lea.vmem %s0, %s226
      %p228 = pneg %p50
      %p229 = pneg %p47
      %p230 = scmp.lt.s32.totalorder %s19, 1
      %s231 = scalar_select %p230, %s19, 1
      %s232 = smul.addr %s231, 16
      %s233 = smul.addr %s232, 8
      %s234 = scalar_lea.vmem %s1, %s233
      %p235 = pneg %p76
      %p236 = pneg %p73
      %p237 = scmp.lt.s32.totalorder %s19, 1
      %s238 = scalar_select %p237, %s19, 1
      %p239 = scmp.lt.s32.totalorder %s20, 0
      %s240 = scalar_select %p239, %s20, 0
      %s241 = sadd.s32 %s240, %s238
      %s242 = smul.addr %s241, 8
      %s243 = scalar_lea.vmem %s2, %s242
      %p244 = pneg %p104
      %p245 = pneg %p101
      %p246 = scmp.lt.s32.totalorder %s19, 1
      %s247 = scalar_select %p246, %s19, 1
      %s248 = smul.addr %s247, 8
      %s249 = scalar_lea.vmem %s3, %s248
      %p250 = pneg %p130
      %p251 = pneg %p127
      %p252 = pneg %p158
      %p253 = pneg %p155
      %p254 = scmp.lt.s32.totalorder %s19, 1
      %s255 = scalar_select %p254, %s19, 1
      %p256 = scmp.lt.s32.totalorder %s20, 0
      %s257 = scalar_select %p256, %s20, 0
      %s258 = smul.addr %s255, 16
      %s259 = sadd.s32 %s257, %s258
      %s260 = smul.addr %s259, 8
      %s261 = scalar_lea.vmem %s4, %s260
      %p262 = scmp.lt.s32.totalorder %s19, 1
      %s263 = scalar_select %p262, %s19, 1
      %p264 = scmp.lt.s32.totalorder %s20, 0
      %s265 = scalar_select %p264, %s20, 0
      %s266 = smul.addr %s263, 16
      %s267 = sadd.s32 %s265, %s266
      %s268 = smul.addr %s267, 8
      %s269 = scalar_lea.vmem %s0, %s268
      %p270 = scmp.lt.s32.totalorder %s19, 1
      %s271 = scalar_select %p270, %s19, 1
      %s272 = smul.addr %s271, 16
      %s273 = smul.addr %s272, 8
      %s274 = scalar_lea.vmem %s1, %s273
      %p275 = scmp.lt.s32.totalorder %s19, 1
      %s276 = scalar_select %p275, %s19, 1
      %p277 = scmp.lt.s32.totalorder %s20, 0
      %s278 = scalar_select %p277, %s20, 0
      %s279 = sadd.s32 %s278, %s276
      %s280 = smul.addr %s279, 8
      %s281 = scalar_lea.vmem %s2, %s280
      %p282 = scmp.lt.s32.totalorder %s19, 1
      %s283 = scalar_select %p282, %s19, 1
      %s284 = smul.addr %s283, 8
      %s285 = scalar_lea.vmem %s3, %s284
      %p286 = scmp.lt.s32.totalorder %s19, 1
      %s287 = scalar_select %p286, %s19, 1
      %p288 = scmp.lt.s32.totalorder %s20, 0
      %s289 = scalar_select %p288, %s20, 0
      %s290 = smul.addr %s287, 16
      %s291 = sadd.s32 %s289, %s290
      %s292 = smul.addr %s291, 8
      %s293 = scalar_lea.vmem %s4, %s292
      %v294 = vld [vmem:[%s269] sm:$0xff]
      %v295 = vld [vmem:[%s269 + $0x8] sm:$0xff]
      %v296 = vld [vmem:[%s269 + $0x10] sm:$0xff]
      %v297 = vld [vmem:[%s269 + $0x18] sm:$0xff]
      %v298 = vld [vmem:[%s269 + $0x20] sm:$0xff]
      %v299 = vld [vmem:[%s269 + $0x28] sm:$0xff]
      %v300 = vld [vmem:[%s269 + $0x30] sm:$0xff]
      %v301 = vld [vmem:[%s269 + $0x38] sm:$0xff]
      %v302 = vld [vmem:[%s269 + $0x40] sm:$0xff]
      %v303 = vld [vmem:[%s269 + $0x48] sm:$0xff]
      %v304 = vld [vmem:[%s269 + $0x50] sm:$0xff]
      %v305 = vld [vmem:[%s269 + $0x58] sm:$0xff]
      %v306 = vld [vmem:[%s269 + $0x60] sm:$0xff]
      %v307 = vld [vmem:[%s269 + $0x68] sm:$0xff]
      %v308 = vld [vmem:[%s269 + $0x70] sm:$0xff]
      %v309 = vld [vmem:[%s269 + $0x78] sm:$0xff]
      %v310 = vld [vmem:[%s274] sm:$0xff]
      %v311 = vld [vmem:[%s274 + $0x8] sm:$0xff]
      %v312 = vld [vmem:[%s274 + $0x10] sm:$0xff]
      %v313 = vld [vmem:[%s274 + $0x18] sm:$0xff]
      %v314 = vld [vmem:[%s274 + $0x20] sm:$0xff]
      %v315 = vld [vmem:[%s274 + $0x28] sm:$0xff]
      %v316 = vld [vmem:[%s274 + $0x30] sm:$0xff]
      %v317 = vld [vmem:[%s274 + $0x38] sm:$0xff]
      %v318 = vld [vmem:[%s274 + $0x40] sm:$0xff]
      %v319 = vld [vmem:[%s274 + $0x48] sm:$0xff]
      %v320 = vld [vmem:[%s274 + $0x50] sm:$0xff]
      %v321 = vld [vmem:[%s274 + $0x58] sm:$0xff]
      %v322 = vld [vmem:[%s274 + $0x60] sm:$0xff]
      %v323 = vld [vmem:[%s274 + $0x68] sm:$0xff]
      %v324 = vld [vmem:[%s274 + $0x70] sm:$0xff]
      %v325 = vld [vmem:[%s274 + $0x78] sm:$0xff]
      %v326 = vld [vmem:[%s281] sm:$0xff]
      %v327 = vld [vmem:[%s285] sm:$0xff]
      %v328 = vmul.f32 %v294, %v326
      %v329 = vmul.f32 %v295, %v326
      %v330 = vmul.f32 %v296, %v326
      %v331 = vmul.f32 %v297, %v326
      %v332 = vmul.f32 %v298, %v326
      %v333 = vmul.f32 %v299, %v326
      %v334 = vmul.f32 %v300, %v326
      %v335 = vmul.f32 %v301, %v326
      %v336 = vmul.f32 %v302, %v326
      %v337 = vmul.f32 %v303, %v326
      %v338 = vmul.f32 %v304, %v326
      %v339 = vmul.f32 %v305, %v326
      %v340 = vmul.f32 %v306, %v326
      %v341 = vmul.f32 %v307, %v326
      %v342 = vmul.f32 %v308, %v326
      %v343 = vmul.f32 %v309, %v326
      %v344 = vmul.f32 %v310, %v327
      %v345 = vmul.f32 %v311, %v327
      %v346 = vmul.f32 %v312, %v327
      %v347 = vmul.f32 %v313, %v327
      %v348 = vmul.f32 %v314, %v327
      %v349 = vmul.f32 %v315, %v327
      %v350 = vmul.f32 %v316, %v327
      %v351 = vmul.f32 %v317, %v327
      %v352 = vmul.f32 %v318, %v327
      %v353 = vmul.f32 %v319, %v327
      %v354 = vmul.f32 %v320, %v327
      %v355 = vmul.f32 %v321, %v327
      %v356 = vmul.f32 %v322, %v327
      %v357 = vmul.f32 %v323, %v327
      %v358 = vmul.f32 %v324, %v327
      %v359 = vmul.f32 %v325, %v327
      %v360 = vsub.f32 %v310, %v344
      %v361 = vsub.f32 %v311, %v345
      %v362 = vsub.f32 %v312, %v346
      %v363 = vsub.f32 %v313, %v347
      %v364 = vsub.f32 %v314, %v348
      %v365 = vsub.f32 %v315, %v349
      %v366 = vsub.f32 %v316, %v350
      %v367 = vsub.f32 %v317, %v351
      %v368 = vsub.f32 %v318, %v352
      %v369 = vsub.f32 %v319, %v353
      %v370 = vsub.f32 %v320, %v354
      %v371 = vsub.f32 %v321, %v355
      %v372 = vsub.f32 %v322, %v356
      %v373 = vsub.f32 %v323, %v357
      %v374 = vsub.f32 %v324, %v358
      %v375 = vsub.f32 %v325, %v359
      %vm376 = vcmask 64512
      %v378 = vsel %vm376, %v294, 0
      %380 = vmatprep.subr.mxu0 0.0
      %381 = vmatpush1.msra.mxu0 %v344
      %382 = vmatprep.subr.mxu0 0.0
      %383 = vmatpush1.msra.mxu0 0.0
      %384 = vmatprep.subr.mxu0 0.0
      %385 = vmatpush1.msra.mxu0 0.0
      %386 = vmatprep.subr.mxu0 0.0
      %387 = vmatpush1.msra.mxu0 0.0
      %388 = vmatprep.subr.mxu0 0.0
      %389 = vmatpush1.msra.mxu0 0.0
      %390 = vmatprep.subr.mxu0 0.0
      %391 = vmatpush1.msra.mxu0 0.0
      %392 = vmatprep.subr.mxu0 0.0
      %393 = vmatpush1.msra.mxu0 0.0
      %394 = vmatprep.subr.mxu0 0.0
      %395 = vmatpush1.msra.mxu0 0.0
      %396 = vmatprep.subr.mxu0 0.0
      %397 = vmatpush1.msra.mxu0 0.0
      %398 = vmatprep.subr.mxu0 0.0
      %399 = vmatpush1.msra.mxu0 0.0
      %400 = vmatprep.subr.mxu0 0.0
      %401 = vmatpush1.msra.mxu0 0.0
      %402 = vmatprep.subr.mxu0 0.0
      %403 = vmatpush1.msra.mxu0 0.0
      %404 = vmatprep.subr.mxu0 0.0
      %405 = vmatpush1.msra.mxu0 0.0
      %406 = vmatprep.subr.mxu0 0.0
      %407 = vmatpush1.msra.mxu0 0.0
      %408 = vmatprep.subr.mxu0 0.0
      %409 = vmatpush1.msra.mxu0 0.0
      %410 = vmatprep.subr.mxu0 0.0
      %411 = vmatpush1.msra.mxu0 0.0
      %412 = vmatprep.subr.mxu0 0.0
      %413 = vmatpush1.msra.mxu0 0.0
      %414 = vmatprep.subr.mxu0 0.0
      %415 = vmatpush1.msra.mxu0 0.0
      %416 = vmatprep.subr.mxu0 0.0
      %417 = vmatpush1.msra.mxu0 0.0
      %418 = vmatprep.subr.mxu0 0.0
      %419 = vmatpush1.msra.mxu0 0.0
      %420 = vmatprep.subr.mxu0 0.0
      %421 = vmatpush1.msra.mxu0 0.0
      %422 = vmatprep.subr.mxu0 0.0
      %423 = vmatpush1.msra.mxu0 0.0
      %424 = vmatprep.subr.mxu0 0.0
      %425 = vmatpush1.msra.mxu0 0.0
      %426 = vmatprep.subr.mxu0 0.0
      %427 = vmatpush1.msra.mxu0 0.0
      %428 = vmatprep.subr.mxu0 0.0
      %429 = vmatpush1.msra.mxu0 0.0
      %430 = vmatprep.subr.mxu0 0.0
      %431 = vmatpush1.msra.mxu0 0.0
      %432 = vmatprep.subr.mxu0 0.0
      %433 = vmatpush1.msra.mxu0 0.0
      %434 = vmatprep.subr.mxu0 0.0
      %435 = vmatpush1.msra.mxu0 0.0
      %436 = vmatprep.subr.mxu0 0.0
      %437 = vmatpush1.msra.mxu0 0.0
      %438 = vmatprep.subr.mxu0 0.0
      %439 = vmatpush1.msra.mxu0 0.0
      %440 = vmatprep.subr.mxu0 0.0
      %441 = vmatpush1.msra.mxu0 0.0
      %442 = vmatprep.subr.mxu0 0.0
      %443 = vmatpush1.msra.mxu0 0.0
      %444 = vmatprep.mubr.f32.mxu0 0.0
      %445 = vmatmul.mubr.f32.gmra.mrb[0].mxu0 %v378
      %v446 = vpop.f32.mrb[0].mxu0
      %v447 = vadd.f32 0.0, %v446
      %v448 = vpop.f32.mrb[0].mxu0
      %449 = vdwg.mxu0
      %v451 = vsel %vm376, %v295, 0
      %453 = vmatprep.subr.mxu0 0.0
      %454 = vmatpush1.msra.mxu0 %v345
      %455 = vmatprep.subr.mxu0 0.0
      %456 = vmatpush1.msra.mxu0 0.0
      %457 = vmatprep.subr.mxu0 0.0
      %458 = vmatpush1.msra.mxu0 0.0
      %459 = vmatprep.subr.mxu0 0.0
      %460 = vmatpush1.msra.mxu0 0.0
      %461 = vmatprep.subr.mxu0 0.0
      %462 = vmatpush1.msra.mxu0 0.0
      %463 = vmatprep.subr.mxu0 0.0
      %464 = vmatpush1.msra.mxu0 0.0
      %465 = vmatprep.subr.mxu0 0.0
      %466 = vmatpush1.msra.mxu0 0.0
      %467 = vmatprep.subr.mxu0 0.0
      %468 = vmatpush1.msra.mxu0 0.0
      %469 = vmatprep.subr.mxu0 0.0
      %470 = vmatpush1.msra.mxu0 0.0
      %471 = vmatprep.subr.mxu0 0.0
      %472 = vmatpush1.msra.mxu0 0.0
      %473 = vmatprep.subr.mxu0 0.0
      %474 = vmatpush1.msra.mxu0 0.0
      %475 = vmatprep.subr.mxu0 0.0
      %476 = vmatpush1.msra.mxu0 0.0
      %477 = vmatprep.subr.mxu0 0.0
      %478 = vmatpush1.msra.mxu0 0.0
      %479 = vmatprep.subr.mxu0 0.0
      %480 = vmatpush1.msra.mxu0 0.0
      %481 = vmatprep.subr.mxu0 0.0
      %482 = vmatpush1.msra.mxu0 0.0
      %483 = vmatprep.subr.mxu0 0.0
      %484 = vmatpush1.msra.mxu0 0.0
      %485 = vmatprep.subr.mxu0 0.0
      %486 = vmatpush1.msra.mxu0 0.0
      %487 = vmatprep.subr.mxu0 0.0
      %488 = vmatpush1.msra.mxu0 0.0
      %489 = vmatprep.subr.mxu0 0.0
      %490 = vmatpush1.msra.mxu0 0.0
      %491 = vmatprep.subr.mxu0 0.0
      %492 = vmatpush1.msra.mxu0 0.0
      %493 = vmatprep.subr.mxu0 0.0
      %494 = vmatpush1.msra.mxu0 0.0
      %495 = vmatprep.subr.mxu0 0.0
      %496 = vmatpush1.msra.mxu0 0.0
      %497 = vmatprep.subr.mxu0 0.0
      %498 = vmatpush1.msra.mxu0 0.0
      %499 = vmatprep.subr.mxu0 0.0
      %500 = vmatpush1.msra.mxu0 0.0
      %501 = vmatprep.subr.mxu0 0.0
      %502 = vmatpush1.msra.mxu0 0.0
      %503 = vmatprep.subr.mxu0 0.0
      %504 = vmatpush1.msra.mxu0 0.0
      %505 = vmatprep.subr.mxu0 0.0
      %506 = vmatpush1.msra.mxu0 0.0
      %507 = vmatprep.subr.mxu0 0.0
      %508 = vmatpush1.msra.mxu0 0.0
      %509 = vmatprep.subr.mxu0 0.0
      %510 = vmatpush1.msra.mxu0 0.0
      %511 = vmatprep.subr.mxu0 0.0
      %512 = vmatpush1.msra.mxu0 0.0
      %513 = vmatprep.subr.mxu0 0.0
      %514 = vmatpush1.msra.mxu0 0.0
      %515 = vmatprep.subr.mxu0 0.0
      %516 = vmatpush1.msra.mxu0 0.0
      %517 = vmatprep.mubr.f32.mxu0 0.0
      %518 = vmatmul.mubr.f32.gmra.mrb[0].mxu0 %v451
      %v519 = vpop.f32.mrb[0].mxu0
      %v520 = vadd.f32 0.0, %v519
      %v521 = vpop.f32.mrb[0].mxu0
      %522 = vdwg.mxu0
      %v524 = vsel %vm376, %v296, 0
      %526 = vmatprep.subr.mxu0 0.0
      %527 = vmatpush1.msra.mxu0 %v346
      %528 = vmatprep.subr.mxu0 0.0
      %529 = vmatpush1.msra.mxu0 0.0
      %530 = vmatprep.subr.mxu0 0.0
      %531 = vmatpush1.msra.mxu0 0.0
      %532 = vmatprep.subr.mxu0 0.0
      %533 = vmatpush1.msra.mxu0 0.0
      %534 = vmatprep.subr.mxu0 0.0
      %535 = vmatpush1.msra.mxu0 0.0
      %536 = vmatprep.subr.mxu0 0.0
      %537 = vmatpush1.msra.mxu0 0.0
      %538 = vmatprep.subr.mxu0 0.0
      %539 = vmatpush1.msra.mxu0 0.0
      %540 = vmatprep.subr.mxu0 0.0
      %541 = vmatpush1.msra.mxu0 0.0
      %542 = vmatprep.subr.mxu0 0.0
      %543 = vmatpush1.msra.mxu0 0.0
      %544 = vmatprep.subr.mxu0 0.0
      %545 = vmatpush1.msra.mxu0 0.0
      %546 = vmatprep.subr.mxu0 0.0
      %547 = vmatpush1.msra.mxu0 0.0
      %548 = vmatprep.subr.mxu0 0.0
      %549 = vmatpush1.msra.mxu0 0.0
      %550 = vmatprep.subr.mxu0 0.0
      %551 = vmatpush1.msra.mxu0 0.0
      %552 = vmatprep.subr.mxu0 0.0
      %553 = vmatpush1.msra.mxu0 0.0
      %554 = vmatprep.subr.mxu0 0.0
      %555 = vmatpush1.msra.mxu0 0.0
      %556 = vmatprep.subr.mxu0 0.0
      %557 = vmatpush1.msra.mxu0 0.0
      %558 = vmatprep.subr.mxu0 0.0
      %559 = vmatpush1.msra.mxu0 0.0
      %560 = vmatprep.subr.mxu0 0.0
      %561 = vmatpush1.msra.mxu0 0.0
      %562 = vmatprep.subr.mxu0 0.0
      %563 = vmatpush1.msra.mxu0 0.0
      %564 = vmatprep.subr.mxu0 0.0
      %565 = vmatpush1.msra.mxu0 0.0
      %566 = vmatprep.subr.mxu0 0.0
      %567 = vmatpush1.msra.mxu0 0.0
      %568 = vmatprep.subr.mxu0 0.0
      %569 = vmatpush1.msra.mxu0 0.0
      %570 = vmatprep.subr.mxu0 0.0
      %571 = vmatpush1.msra.mxu0 0.0
      %572 = vmatprep.subr.mxu0 0.0
      %573 = vmatpush1.msra.mxu0 0.0
      %574 = vmatprep.subr.mxu0 0.0
      %575 = vmatpush1.msra.mxu0 0.0
      %576 = vmatprep.subr.mxu0 0.0
      %577 = vmatpush1.msra.mxu0 0.0
      %578 = vmatprep.subr.mxu0 0.0
      %579 = vmatpush1.msra.mxu0 0.0
      %580 = vmatprep.subr.mxu0 0.0
      %581 = vmatpush1.msra.mxu0 0.0
      %582 = vmatprep.subr.mxu0 0.0
      %583 = vmatpush1.msra.mxu0 0.0
      %584 = vmatprep.subr.mxu0 0.0
      %585 = vmatpush1.msra.mxu0 0.0
      %586 = vmatprep.subr.mxu0 0.0
      %587 = vmatpush1.msra.mxu0 0.0
      %588 = vmatprep.subr.mxu0 0.0
      %589 = vmatpush1.msra.mxu0 0.0
      %590 = vmatprep.mubr.f32.mxu0 0.0
      %591 = vmatmul.mubr.f32.gmra.mrb[0].mxu0 %v524
      %v592 = vpop.f32.mrb[0].mxu0
      %v593 = vadd.f32 0.0, %v592
      %v594 = vpop.f32.mrb[0].mxu0
      %595 = vdwg.mxu0
      %v597 = vsel %vm376, %v297, 0
      %599 = vmatprep.subr.mxu0 0.0
      %600 = vmatpush1.msra.mxu0 %v347
      %601 = vmatprep.subr.mxu0 0.0
      %602 = vmatpush1.msra.mxu0 0.0
      %603 = vmatprep.subr.mxu0 0.0
      %604 = vmatpush1.msra.mxu0 0.0
      %605 = vmatprep.subr.mxu0 0.0
      %606 = vmatpush1.msra.mxu0 0.0
      %607 = vmatprep.subr.mxu0 0.0
      %608 = vmatpush1.msra.mxu0 0.0
      %609 = vmatprep.subr.mxu0 0.0
      %610 = vmatpush1.msra.mxu0 0.0
      %611 = vmatprep.subr.mxu0 0.0
      %612 = vmatpush1.msra.mxu0 0.0
      %613 = vmatprep.subr.mxu0 0.0
      %614 = vmatpush1.msra.mxu0 0.0
      %615 = vmatprep.subr.mxu0 0.0
      %616 = vmatpush1.msra.mxu0 0.0
      %617 = vmatprep.subr.mxu0 0.0
      %618 = vmatpush1.msra.mxu0 0.0
      %619 = vmatprep.subr.mxu0 0.0
      %620 = vmatpush1.msra.mxu0 0.0
      %621 = vmatprep.subr.mxu0 0.0
      %622 = vmatpush1.msra.mxu0 0.0
      %623 = vmatprep.subr.mxu0 0.0
      %624 = vmatpush1.msra.mxu0 0.0
      %625 = vmatprep.subr.mxu0 0.0
      %626 = vmatpush1.msra.mxu0 0.0
      %627 = vmatprep.subr.mxu0 0.0
      %628 = vmatpush1.msra.mxu0 0.0
      %629 = vmatprep.subr.mxu0 0.0
      %630 = vmatpush1.msra.mxu0 0.0
      %631 = vmatprep.subr.mxu0 0.0
      %632 = vmatpush1.msra.mxu0 0.0
      %633 = vmatprep.subr.mxu0 0.0
      %634 = vmatpush1.msra.mxu0 0.0
      %635 = vmatprep.subr.mxu0 0.0
      %636 = vmatpush1.msra.mxu0 0.0
      %637 = vmatprep.subr.mxu0 0.0
      %638 = vmatpush1.msra.mxu0 0.0
      %639 = vmatprep.subr.mxu0 0.0
      %640 = vmatpush1.msra.mxu0 0.0
      %641 = vmatprep.subr.mxu0 0.0
      %642 = vmatpush1.msra.mxu0 0.0
      %643 = vmatprep.subr.mxu0 0.0
      %644 = vmatpush1.msra.mxu0 0.0
      %645 = vmatprep.subr.mxu0 0.0
      %646 = vmatpush1.msra.mxu0 0.0
      %647 = vmatprep.subr.mxu0 0.0
      %648 = vmatpush1.msra.mxu0 0.0
      %649 = vmatprep.subr.mxu0 0.0
      %650 = vmatpush1.msra.mxu0 0.0
      %651 = vmatprep.subr.mxu0 0.0
      %652 = vmatpush1.msra.mxu0 0.0
      %653 = vmatprep.subr.mxu0 0.0
      %654 = vmatpush1.msra.mxu0 0.0
      %655 = vmatprep.subr.mxu0 0.0
      %656 = vmatpush1.msra.mxu0 0.0
      %657 = vmatprep.subr.mxu0 0.0
      %658 = vmatpush1.msra.mxu0 0.0
      %659 = vmatprep.subr.mxu0 0.0
      %660 = vmatpush1.msra.mxu0 0.0
      %661 = vmatprep.subr.mxu0 0.0
      %662 = vmatpush1.msra.mxu0 0.0
      %663 = vmatprep.mubr.f32.mxu0 0.0
      %664 = vmatmul.mubr.f32.gmra.mrb[0].mxu0 %v597
      %v665 = vpop.f32.mrb[0].mxu0
      %v666 = vadd.f32 0.0, %v665
      %v667 = vpop.f32.mrb[0].mxu0
      %668 = vdwg.mxu0
      %v670 = vsel %vm376, %v298, 0
      %672 = vmatprep.subr.mxu0 0.0
      %673 = vmatpush1.msra.mxu0 %v348
      %674 = vmatprep.subr.mxu0 0.0
      %675 = vmatpush1.msra.mxu0 0.0
      %676 = vmatprep.subr.mxu0 0.0
      %677 = vmatpush1.msra.mxu0 0.0
      %678 = vmatprep.subr.mxu0 0.0
      %679 = vmatpush1.msra.mxu0 0.0
      %680 = vmatprep.subr.mxu0 0.0
      %681 = vmatpush1.msra.mxu0 0.0
      %682 = vmatprep.subr.mxu0 0.0
      %683 = vmatpush1.msra.mxu0 0.0
      %684 = vmatprep.subr.mxu0 0.0
      %685 = vmatpush1.msra.mxu0 0.0
      %686 = vmatprep.subr.mxu0 0.0
      %687 = vmatpush1.msra.mxu0 0.0
      %688 = vmatprep.subr.mxu0 0.0
      %689 = vmatpush1.msra.mxu0 0.0
      %690 = vmatprep.subr.mxu0 0.0
      %691 = vmatpush1.msra.mxu0 0.0
      %692 = vmatprep.subr.mxu0 0.0
      %693 = vmatpush1.msra.mxu0 0.0
      %694 = vmatprep.subr.mxu0 0.0
      %695 = vmatpush1.msra.mxu0 0.0
      %696 = vmatprep.subr.mxu0 0.0
      %697 = vmatpush1.msra.mxu0 0.0
      %698 = vmatprep.subr.mxu0 0.0
      %699 = vmatpush1.msra.mxu0 0.0
      %700 = vmatprep.subr.mxu0 0.0
      %701 = vmatpush1.msra.mxu0 0.0
      %702 = vmatprep.subr.mxu0 0.0
      %703 = vmatpush1.msra.mxu0 0.0
      %704 = vmatprep.subr.mxu0 0.0
      %705 = vmatpush1.msra.mxu0 0.0
      %706 = vmatprep.subr.mxu0 0.0
      %707 = vmatpush1.msra.mxu0 0.0
      %708 = vmatprep.subr.mxu0 0.0
      %709 = vmatpush1.msra.mxu0 0.0
      %710 = vmatprep.subr.mxu0 0.0
      %711 = vmatpush1.msra.mxu0 0.0
      %712 = vmatprep.subr.mxu0 0.0
      %713 = vmatpush1.msra.mxu0 0.0
      %714 = vmatprep.subr.mxu0 0.0
      %715 = vmatpush1.msra.mxu0 0.0
      %716 = vmatprep.subr.mxu0 0.0
      %717 = vmatpush1.msra.mxu0 0.0
      %718 = vmatprep.subr.mxu0 0.0
      %719 = vmatpush1.msra.mxu0 0.0
      %720 = vmatprep.subr.mxu0 0.0
      %721 = vmatpush1.msra.mxu0 0.0
      %722 = vmatprep.subr.mxu0 0.0
      %723 = vmatpush1.msra.mxu0 0.0
      %724 = vmatprep.subr.mxu0 0.0
      %725 = vmatpush1.msra.mxu0 0.0
      %726 = vmatprep.subr.mxu0 0.0
      %727 = vmatpush1.msra.mxu0 0.0
      %728 = vmatprep.subr.mxu0 0.0
      %729 = vmatpush1.msra.mxu0 0.0
      %730 = vmatprep.subr.mxu0 0.0
      %731 = vmatpush1.msra.mxu0 0.0
      %732 = vmatprep.subr.mxu0 0.0
      %733 = vmatpush1.msra.mxu0 0.0
      %734 = vmatprep.subr.mxu0 0.0
      %735 = vmatpush1.msra.mxu0 0.0
      %736 = vmatprep.mubr.f32.mxu0 0.0
      %737 = vmatmul.mubr.f32.gmra.mrb[0].mxu0 %v670
      %v738 = vpop.f32.mrb[0].mxu0
      %v739 = vadd.f32 0.0, %v738
      %v740 = vpop.f32.mrb[0].mxu0
      %741 = vdwg.mxu0
      %v743 = vsel %vm376, %v299, 0
      %745 = vmatprep.subr.mxu0 0.0
      %746 = vmatpush1.msra.mxu0 %v349
      %747 = vmatprep.subr.mxu0 0.0
      %748 = vmatpush1.msra.mxu0 0.0
      %749 = vmatprep.subr.mxu0 0.0
      %750 = vmatpush1.msra.mxu0 0.0
      %751 = vmatprep.subr.mxu0 0.0
      %752 = vmatpush1.msra.mxu0 0.0
      %753 = vmatprep.subr.mxu0 0.0
      %754 = vmatpush1.msra.mxu0 0.0
      %755 = vmatprep.subr.mxu0 0.0
      %756 = vmatpush1.msra.mxu0 0.0
      %757 = vmatprep.subr.mxu0 0.0
      %758 = vmatpush1.msra.mxu0 0.0
      %759 = vmatprep.subr.mxu0 0.0
      %760 = vmatpush1.msra.mxu0 0.0
      %761 = vmatprep.subr.mxu0 0.0
      %762 = vmatpush1.msra.mxu0 0.0
      %763 = vmatprep.subr.mxu0 0.0
      %764 = vmatpush1.msra.mxu0 0.0
      %765 = vmatprep.subr.mxu0 0.0
      %766 = vmatpush1.msra.mxu0 0.0
      %767 = vmatprep.subr.mxu0 0.0
      %768 = vmatpush1.msra.mxu0 0.0
      %769 = vmatprep.subr.mxu0 0.0
      %770 = vmatpush1.msra.mxu0 0.0
      %771 = vmatprep.subr.mxu0 0.0
      %772 = vmatpush1.msra.mxu0 0.0
      %773 = vmatprep.subr.mxu0 0.0
      %774 = vmatpush1.msra.mxu0 0.0
      %775 = vmatprep.subr.mxu0 0.0
      %776 = vmatpush1.msra.mxu0 0.0
      %777 = vmatprep.subr.mxu0 0.0
      %778 = vmatpush1.msra.mxu0 0.0
      %779 = vmatprep.subr.mxu0 0.0
      %780 = vmatpush1.msra.mxu0 0.0
      %781 = vmatprep.subr.mxu0 0.0
      %782 = vmatpush1.msra.mxu0 0.0
      %783 = vmatprep.subr.mxu0 0.0
      %784 = vmatpush1.msra.mxu0 0.0
      %785 = vmatprep.subr.mxu0 0.0
      %786 = vmatpush1.msra.mxu0 0.0
      %787 = vmatprep.subr.mxu0 0.0
      %788 = vmatpush1.msra.mxu0 0.0
      %789 = vmatprep.subr.mxu0 0.0
      %790 = vmatpush1.msra.mxu0 0.0
      %791 = vmatprep.subr.mxu0 0.0
      %792 = vmatpush1.msra.mxu0 0.0
      %793 = vmatprep.subr.mxu0 0.0
      %794 = vmatpush1.msra.mxu0 0.0
      %795 = vmatprep.subr.mxu0 0.0
      %796 = vmatpush1.msra.mxu0 0.0
      %797 = vmatprep.subr.mxu0 0.0
      %798 = vmatpush1.msra.mxu0 0.0
      %799 = vmatprep.subr.mxu0 0.0
      %800 = vmatpush1.msra.mxu0 0.0
      %801 = vmatprep.subr.mxu0 0.0
      %802 = vmatpush1.msra.mxu0 0.0
      %803 = vmatprep.subr.mxu0 0.0
      %804 = vmatpush1.msra.mxu0 0.0
      %805 = vmatprep.subr.mxu0 0.0
      %806 = vmatpush1.msra.mxu0 0.0
      %807 = vmatprep.subr.mxu0 0.0
      %808 = vmatpush1.msra.mxu0 0.0
      %809 = vmatprep.mubr.f32.mxu0 0.0
      %810 = vmatmul.mubr.f32.gmra.mrb[0].mxu0 %v743
      %v811 = vpop.f32.mrb[0].mxu0
      %v812 = vadd.f32 0.0, %v811
      %v813 = vpop.f32.mrb[0].mxu0
      %814 = vdwg.mxu0
      %v816 = vsel %vm376, %v300, 0
      %818 = vmatprep.subr.mxu0 0.0
      %819 = vmatpush1.msra.mxu0 %v350
      %820 = vmatprep.subr.mxu0 0.0
      %821 = vmatpush1.msra.mxu0 0.0
      %822 = vmatprep.subr.mxu0 0.0
      %823 = vmatpush1.msra.mxu0 0.0
      %824 = vmatprep.subr.mxu0 0.0
      %825 = vmatpush1.msra.mxu0 0.0
      %826 = vmatprep.subr.mxu0 0.0
      %827 = vmatpush1.msra.mxu0 0.0
      %828 = vmatprep.subr.mxu0 0.0
      %829 = vmatpush1.msra.mxu0 0.0
      %830 = vmatprep.subr.mxu0 0.0
      %831 = vmatpush1.msra.mxu0 0.0
      %832 = vmatprep.subr.mxu0 0.0
      %833 = vmatpush1.msra.mxu0 0.0
      %834 = vmatprep.subr.mxu0 0.0
      %835 = vmatpush1.msra.mxu0 0.0
      %836 = vmatprep.subr.mxu0 0.0
      %837 = vmatpush1.msra.mxu0 0.0
      %838 = vmatprep.subr.mxu0 0.0
      %839 = vmatpush1.msra.mxu0 0.0
      %840 = vmatprep.subr.mxu0 0.0
      %841 = vmatpush1.msra.mxu0 0.0
      %842 = vmatprep.subr.mxu0 0.0
      %843 = vmatpush1.msra.mxu0 0.0
      %844 = vmatprep.subr.mxu0 0.0
      %845 = vmatpush1.msra.mxu0 0.0
      %846 = vmatprep.subr.mxu0 0.0
      %847 = vmatpush1.msra.mxu0 0.0
      %848 = vmatprep.subr.mxu0 0.0
      %849 = vmatpush1.msra.mxu0 0.0
      %850 = vmatprep.subr.mxu0 0.0
      %851 = vmatpush1.msra.mxu0 0.0
      %852 = vmatprep.subr.mxu0 0.0
      %853 = vmatpush1.msra.mxu0 0.0
      %854 = vmatprep.subr.mxu0 0.0
      %855 = vmatpush1.msra.mxu0 0.0
      %856 = vmatprep.subr.mxu0 0.0
      %857 = vmatpush1.msra.mxu0 0.0
      %858 = vmatprep.subr.mxu0 0.0
      %859 = vmatpush1.msra.mxu0 0.0
      %860 = vmatprep.subr.mxu0 0.0
      %861 = vmatpush1.msra.mxu0 0.0
      %862 = vmatprep.subr.mxu0 0.0
      %863 = vmatpush1.msra.mxu0 0.0
      %864 = vmatprep.subr.mxu0 0.0
      %865 = vmatpush1.msra.mxu0 0.0
      %866 = vmatprep.subr.mxu0 0.0
      %867 = vmatpush1.msra.mxu0 0.0
      %868 = vmatprep.subr.mxu0 0.0
      %869 = vmatpush1.msra.mxu0 0.0
      %870 = vmatprep.subr.mxu0 0.0
      %871 = vmatpush1.msra.mxu0 0.0
      %872 = vmatprep.subr.mxu0 0.0
      %873 = vmatpush1.msra.mxu0 0.0
      %874 = vmatprep.subr.mxu0 0.0
      %875 = vmatpush1.msra.mxu0 0.0
      %876 = vmatprep.subr.mxu0 0.0
      %877 = vmatpush1.msra.mxu0 0.0
      %878 = vmatprep.subr.mxu0 0.0
      %879 = vmatpush1.msra.mxu0 0.0
      %880 = vmatprep.subr.mxu0 0.0
      %881 = vmatpush1.msra.mxu0 0.0
      %882 = vmatprep.mubr.f32.mxu0 0.0
      %883 = vmatmul.mubr.f32.gmra.mrb[0].mxu0 %v816
      %v884 = vpop.f32.mrb[0].mxu0
      %v885 = vadd.f32 0.0, %v884
      %v886 = vpop.f32.mrb[0].mxu0
      %887 = vdwg.mxu0
      %v889 = vsel %vm376, %v301, 0
      %891 = vmatprep.subr.mxu0 0.0
      %892 = vmatpush1.msra.mxu0 %v351
      %893 = vmatprep.subr.mxu0 0.0
      %894 = vmatpush1.msra.mxu0 0.0
      %895 = vmatprep.subr.mxu0 0.0
      %896 = vmatpush1.msra.mxu0 0.0
      %897 = vmatprep.subr.mxu0 0.0
      %898 = vmatpush1.msra.mxu0 0.0
      %899 = vmatprep.subr.mxu0 0.0
      %900 = vmatpush1.msra.mxu0 0.0
      %901 = vmatprep.subr.mxu0 0.0
      %902 = vmatpush1.msra.mxu0 0.0
      %903 = vmatprep.subr.mxu0 0.0
      %904 = vmatpush1.msra.mxu0 0.0
      %905 = vmatprep.subr.mxu0 0.0
      %906 = vmatpush1.msra.mxu0 0.0
      %907 = vmatprep.subr.mxu0 0.0
      %908 = vmatpush1.msra.mxu0 0.0
      %909 = vmatprep.subr.mxu0 0.0
      %910 = vmatpush1.msra.mxu0 0.0
      %911 = vmatprep.subr.mxu0 0.0
      %912 = vmatpush1.msra.mxu0 0.0
      %913 = vmatprep.subr.mxu0 0.0
      %914 = vmatpush1.msra.mxu0 0.0
      %915 = vmatprep.subr.mxu0 0.0
      %916 = vmatpush1.msra.mxu0 0.0
      %917 = vmatprep.subr.mxu0 0.0
      %918 = vmatpush1.msra.mxu0 0.0
      %919 = vmatprep.subr.mxu0 0.0
      %920 = vmatpush1.msra.mxu0 0.0
      %921 = vmatprep.subr.mxu0 0.0
      %922 = vmatpush1.msra.mxu0 0.0
      %923 = vmatprep.subr.mxu0 0.0
      %924 = vmatpush1.msra.mxu0 0.0
      %925 = vmatprep.subr.mxu0 0.0
      %926 = vmatpush1.msra.mxu0 0.0
      %927 = vmatprep.subr.mxu0 0.0
      %928 = vmatpush1.msra.mxu0 0.0
      %929 = vmatprep.subr.mxu0 0.0
      %930 = vmatpush1.msra.mxu0 0.0
      %931 = vmatprep.subr.mxu0 0.0
      %932 = vmatpush1.msra.mxu0 0.0
      %933 = vmatprep.subr.mxu0 0.0
      %934 = vmatpush1.msra.mxu0 0.0
      %935 = vmatprep.subr.mxu0 0.0
      %936 = vmatpush1.msra.mxu0 0.0
      %937 = vmatprep.subr.mxu0 0.0
      %938 = vmatpush1.msra.mxu0 0.0
      %939 = vmatprep.subr.mxu0 0.0
      %940 = vmatpush1.msra.mxu0 0.0
      %941 = vmatprep.subr.mxu0 0.0
      %942 = vmatpush1.msra.mxu0 0.0
      %943 = vmatprep.subr.mxu0 0.0
      %944 = vmatpush1.msra.mxu0 0.0
      %945 = vmatprep.subr.mxu0 0.0
      %946 = vmatpush1.msra.mxu0 0.0
      %947 = vmatprep.subr.mxu0 0.0
      %948 = vmatpush1.msra.mxu0 0.0
      %949 = vmatprep.subr.mxu0 0.0
      %950 = vmatpush1.msra.mxu0 0.0
      %951 = vmatprep.subr.mxu0 0.0
      %952 = vmatpush1.msra.mxu0 0.0
      %953 = vmatprep.subr.mxu0 0.0
      %954 = vmatpush1.msra.mxu0 0.0
      %955 = vmatprep.mubr.f32.mxu0 0.0
      %956 = vmatmul.mubr.f32.gmra.mrb[0].mxu0 %v889
      %v957 = vpop.f32.mrb[0].mxu0
      %v958 = vadd.f32 0.0, %v957
      %v959 = vpop.f32.mrb[0].mxu0
      %960 = vdwg.mxu0
      %v962 = vsel %vm376, %v302, 0
      %964 = vmatprep.subr.mxu0 0.0
      %965 = vmatpush1.msra.mxu0 %v352
      %966 = vmatprep.subr.mxu0 0.0
      %967 = vmatpush1.msra.mxu0 0.0
      %968 = vmatprep.subr.mxu0 0.0
      %969 = vmatpush1.msra.mxu0 0.0
      %970 = vmatprep.subr.mxu0 0.0
      %971 = vmatpush1.msra.mxu0 0.0
      %972 = vmatprep.subr.mxu0 0.0
      %973 = vmatpush1.msra.mxu0 0.0
      %974 = vmatprep.subr.mxu0 0.0
      %975 = vmatpush1.msra.mxu0 0.0
      %976 = vmatprep.subr.mxu0 0.0
      %977 = vmatpush1.msra.mxu0 0.0
      %978 = vmatprep.subr.mxu0 0.0
      %979 = vmatpush1.msra.mxu0 0.0
      %980 = vmatprep.subr.mxu0 0.0
      %981 = vmatpush1.msra.mxu0 0.0
      %982 = vmatprep.subr.mxu0 0.0
      %983 = vmatpush1.msra.mxu0 0.0
      %984 = vmatprep.subr.mxu0 0.0
      %985 = vmatpush1.msra.mxu0 0.0
      %986 = vmatprep.subr.mxu0 0.0
      %987 = vmatpush1.msra.mxu0 0.0
      %988 = vmatprep.subr.mxu0 0.0
      %989 = vmatpush1.msra.mxu0 0.0
      %990 = vmatprep.subr.mxu0 0.0
      %991 = vmatpush1.msra.mxu0 0.0
      %992 = vmatprep.subr.mxu0 0.0
      %993 = vmatpush1.msra.mxu0 0.0
      %994 = vmatprep.subr.mxu0 0.0
      %995 = vmatpush1.msra.mxu0 0.0
      %996 = vmatprep.subr.mxu0 0.0
      %997 = vmatpush1.msra.mxu0 0.0
      %998 = vmatprep.subr.mxu0 0.0
      %999 = vmatpush1.msra.mxu0 0.0
      %1000 = vmatprep.subr.mxu0 0.0
      %1001 = vmatpush1.msra.mxu0 0.0
      %1002 = vmatprep.subr.mxu0 0.0
      %1003 = vmatpush1.msra.mxu0 0.0
      %1004 = vmatprep.subr.mxu0 0.0
      %1005 = vmatpush1.msra.mxu0 0.0
      %1006 = vmatprep.subr.mxu0 0.0
      %1007 = vmatpush1.msra.mxu0 0.0
      %1008 = vmatprep.subr.mxu0 0.0
      %1009 = vmatpush1.msra.mxu0 0.0
      %1010 = vmatprep.subr.mxu0 0.0
      %1011 = vmatpush1.msra.mxu0 0.0
      %1012 = vmatprep.subr.mxu0 0.0
      %1013 = vmatpush1.msra.mxu0 0.0
      %1014 = vmatprep.subr.mxu0 0.0
      %1015 = vmatpush1.msra.mxu0 0.0
      %1016 = vmatprep.subr.mxu0 0.0
      %1017 = vmatpush1.msra.mxu0 0.0
      %1018 = vmatprep.subr.mxu0 0.0
      %1019 = vmatpush1.msra.mxu0 0.0
      %1020 = vmatprep.subr.mxu0 0.0
      %1021 = vmatpush1.msra.mxu0 0.0
      %1022 = vmatprep.subr.mxu0 0.0
      %1023 = vmatpush1.msra.mxu0 0.0
      %1024 = vmatprep.subr.mxu0 0.0
      %1025 = vmatpush1.msra.mxu0 0.0
      %1026 = vmatprep.subr.mxu0 0.0
      %1027 = vmatpush1.msra.mxu0 0.0
      %1028 = vmatprep.mubr.f32.mxu0 0.0
      %1029 = vmatmul.mubr.f32.gmra.mrb[0].mxu0 %v962
      %v1030 = vpop.f32.mrb[0].mxu0
      %v1031 = vadd.f32 0.0, %v1030
      %v1032 = vpop.f32.mrb[0].mxu0
      %1033 = vdwg.mxu0
      %v1035 = vsel %vm376, %v303, 0
      %1037 = vmatprep.subr.mxu0 0.0
      %1038 = vmatpush1.msra.mxu0 %v353
      %1039 = vmatprep.subr.mxu0 0.0
      %1040 = vmatpush1.msra.mxu0 0.0
      %1041 = vmatprep.subr.mxu0 0.0
      %1042 = vmatpush1.msra.mxu0 0.0
      %1043 = vmatprep.subr.mxu0 0.0
      %1044 = vmatpush1.msra.mxu0 0.0
      %1045 = vmatprep.subr.mxu0 0.0
      %1046 = vmatpush1.msra.mxu0 0.0
      %1047 = vmatprep.subr.mxu0 0.0
      %1048 = vmatpush1.msra.mxu0 0.0
      %1049 = vmatprep.subr.mxu0 0.0
      %1050 = vmatpush1.msra.mxu0 0.0
      %1051 = vmatprep.subr.mxu0 0.0
      %1052 = vmatpush1.msra.mxu0 0.0
      %1053 = vmatprep.subr.mxu0 0.0
      %1054 = vmatpush1.msra.mxu0 0.0
      %1055 = vmatprep.subr.mxu0 0.0
      %1056 = vmatpush1.msra.mxu0 0.0
      %1057 = vmatprep.subr.mxu0 0.0
      %1058 = vmatpush1.msra.mxu0 0.0
      %1059 = vmatprep.subr.mxu0 0.0
      %1060 = vmatpush1.msra.mxu0 0.0
      %1061 = vmatprep.subr.mxu0 0.0
      %1062 = vmatpush1.msra.mxu0 0.0
      %1063 = vmatprep.subr.mxu0 0.0
      %1064 = vmatpush1.msra.mxu0 0.0
      %1065 = vmatprep.subr.mxu0 0.0
      %1066 = vmatpush1.msra.mxu0 0.0
      %1067 = vmatprep.subr.mxu0 0.0
      %1068 = vmatpush1.msra.mxu0 0.0
      %1069 = vmatprep.subr.mxu0 0.0
      %1070 = vmatpush1.msra.mxu0 0.0
      %1071 = vmatprep.subr.mxu0 0.0
      %1072 = vmatpush1.msra.mxu0 0.0
      %1073 = vmatprep.subr.mxu0 0.0
      %1074 = vmatpush1.msra.mxu0 0.0
      %1075 = vmatprep.subr.mxu0 0.0
      %1076 = vmatpush1.msra.mxu0 0.0
      %1077 = vmatprep.subr.mxu0 0.0
      %1078 = vmatpush1.msra.mxu0 0.0
      %1079 = vmatprep.subr.mxu0 0.0
      %1080 = vmatpush1.msra.mxu0 0.0
      %1081 = vmatprep.subr.mxu0 0.0
      %1082 = vmatpush1.msra.mxu0 0.0
      %1083 = vmatprep.subr.mxu0 0.0
      %1084 = vmatpush1.msra.mxu0 0.0
      %1085 = vmatprep.subr.mxu0 0.0
      %1086 = vmatpush1.msra.mxu0 0.0
      %1087 = vmatprep.subr.mxu0 0.0
      %1088 = vmatpush1.msra.mxu0 0.0
      %1089 = vmatprep.subr.mxu0 0.0
      %1090 = vmatpush1.msra.mxu0 0.0
      %1091 = vmatprep.subr.mxu0 0.0
      %1092 = vmatpush1.msra.mxu0 0.0
      %1093 = vmatprep.subr.mxu0 0.0
      %1094 = vmatpush1.msra.mxu0 0.0
      %1095 = vmatprep.subr.mxu0 0.0
      %1096 = vmatpush1.msra.mxu0 0.0
      %1097 = vmatprep.subr.mxu0 0.0
      %1098 = vmatpush1.msra.mxu0 0.0
      %1099 = vmatprep.subr.mxu0 0.0
      %1100 = vmatpush1.msra.mxu0 0.0
      %1101 = vmatprep.mubr.f32.mxu0 0.0
      %1102 = vmatmul.mubr.f32.gmra.mrb[0].mxu0 %v1035
      %v1103 = vpop.f32.mrb[0].mxu0
      %v1104 = vadd.f32 0.0, %v1103
      %v1105 = vpop.f32.mrb[0].mxu0
      %1106 = vdwg.mxu0
      %v1108 = vsel %vm376, %v304, 0
      %1110 = vmatprep.subr.mxu0 0.0
      %1111 = vmatpush1.msra.mxu0 %v354
      %1112 = vmatprep.subr.mxu0 0.0
      %1113 = vmatpush1.msra.mxu0 0.0
      %1114 = vmatprep.subr.mxu0 0.0
      %1115 = vmatpush1.msra.mxu0 0.0
      %1116 = vmatprep.subr.mxu0 0.0
      %1117 = vmatpush1.msra.mxu0 0.0
      %1118 = vmatprep.subr.mxu0 0.0
      %1119 = vmatpush1.msra.mxu0 0.0
      %1120 = vmatprep.subr.mxu0 0.0
      %1121 = vmatpush1.msra.mxu0 0.0
      %1122 = vmatprep.subr.mxu0 0.0
      %1123 = vmatpush1.msra.mxu0 0.0
      %1124 = vmatprep.subr.mxu0 0.0
      %1125 = vmatpush1.msra.mxu0 0.0
      %1126 = vmatprep.subr.mxu0 0.0
      %1127 = vmatpush1.msra.mxu0 0.0
      %1128 = vmatprep.subr.mxu0 0.0
      %1129 = vmatpush1.msra.mxu0 0.0
      %1130 = vmatprep.subr.mxu0 0.0
      %1131 = vmatpush1.msra.mxu0 0.0
      %1132 = vmatprep.subr.mxu0 0.0
      %1133 = vmatpush1.msra.mxu0 0.0
      %1134 = vmatprep.subr.mxu0 0.0
      %1135 = vmatpush1.msra.mxu0 0.0
      %1136 = vmatprep.subr.mxu0 0.0
      %1137 = vmatpush1.msra.mxu0 0.0
      %1138 = vmatprep.subr.mxu0 0.0
      %1139 = vmatpush1.msra.mxu0 0.0
      %1140 = vmatprep.subr.mxu0 0.0
      %1141 = vmatpush1.msra.mxu0 0.0
      %1142 = vmatprep.subr.mxu0 0.0
      %1143 = vmatpush1.msra.mxu0 0.0
      %1144 = vmatprep.subr.mxu0 0.0
      %1145 = vmatpush1.msra.mxu0 0.0
      %1146 = vmatprep.subr.mxu0 0.0
      %1147 = vmatpush1.msra.mxu0 0.0
      %1148 = vmatprep.subr.mxu0 0.0
      %1149 = vmatpush1.msra.mxu0 0.0
      %1150 = vmatprep.subr.mxu0 0.0
      %1151 = vmatpush1.msra.mxu0 0.0
      %1152 = vmatprep.subr.mxu0 0.0
      %1153 = vmatpush1.msra.mxu0 0.0
      %1154 = vmatprep.subr.mxu0 0.0
      %1155 = vmatpush1.msra.mxu0 0.0
      %1156 = vmatprep.subr.mxu0 0.0
      %1157 = vmatpush1.msra.mxu0 0.0
      %1158 = vmatprep.subr.mxu0 0.0
      %1159 = vmatpush1.msra.mxu0 0.0
      %1160 = vmatprep.subr.mxu0 0.0
      %1161 = vmatpush1.msra.mxu0 0.0
      %1162 = vmatprep.subr.mxu0 0.0
      %1163 = vmatpush1.msra.mxu0 0.0
      %1164 = vmatprep.subr.mxu0 0.0
      %1165 = vmatpush1.msra.mxu0 0.0
      %1166 = vmatprep.subr.mxu0 0.0
      %1167 = vmatpush1.msra.mxu0 0.0
      %1168 = vmatprep.subr.mxu0 0.0
      %1169 = vmatpush1.msra.mxu0 0.0
      %1170 = vmatprep.subr.mxu0 0.0
      %1171 = vmatpush1.msra.mxu0 0.0
      %1172 = vmatprep.subr.mxu0 0.0
      %1173 = vmatpush1.msra.mxu0 0.0
      %1174 = vmatprep.mubr.f32.mxu0 0.0
      %1175 = vmatmul.mubr.f32.gmra.mrb[0].mxu0 %v1108
      %v1176 = vpop.f32.mrb[0].mxu0
      %v1177 = vadd.f32 0.0, %v1176
      %v1178 = vpop.f32.mrb[0].mxu0
      %1179 = vdwg.mxu0
      %v1181 = vsel %vm376, %v305, 0
      %1183 = vmatprep.subr.mxu0 0.0
      %1184 = vmatpush1.msra.mxu0 %v355
      %1185 = vmatprep.subr.mxu0 0.0
      %1186 = vmatpush1.msra.mxu0 0.0
      %1187 = vmatprep.subr.mxu0 0.0
      %1188 = vmatpush1.msra.mxu0 0.0
      %1189 = vmatprep.subr.mxu0 0.0
      %1190 = vmatpush1.msra.mxu0 0.0
      %1191 = vmatprep.subr.mxu0 0.0
      %1192 = vmatpush1.msra.mxu0 0.0
      %1193 = vmatprep.subr.mxu0 0.0
      %1194 = vmatpush1.msra.mxu0 0.0
      %1195 = vmatprep.subr.mxu0 0.0
      %1196 = vmatpush1.msra.mxu0 0.0
      %1197 = vmatprep.subr.mxu0 0.0
      %1198 = vmatpush1.msra.mxu0 0.0
      %1199 = vmatprep.subr.mxu0 0.0
      %1200 = vmatpush1.msra.mxu0 0.0
      %1201 = vmatprep.subr.mxu0 0.0
      %1202 = vmatpush1.msra.mxu0 0.0
      %1203 = vmatprep.subr.mxu0 0.0
      %1204 = vmatpush1.msra.mxu0 0.0
      %1205 = vmatprep.subr.mxu0 0.0
      %1206 = vmatpush1.msra.mxu0 0.0
      %1207 = vmatprep.subr.mxu0 0.0
      %1208 = vmatpush1.msra.mxu0 0.0
      %1209 = vmatprep.subr.mxu0 0.0
      %1210 = vmatpush1.msra.mxu0 0.0
      %1211 = vmatprep.subr.mxu0 0.0
      %1212 = vmatpush1.msra.mxu0 0.0
      %1213 = vmatprep.subr.mxu0 0.0
      %1214 = vmatpush1.msra.mxu0 0.0
      %1215 = vmatprep.subr.mxu0 0.0
      %1216 = vmatpush1.msra.mxu0 0.0
      %1217 = vmatprep.subr.mxu0 0.0
      %1218 = vmatpush1.msra.mxu0 0.0
      %1219 = vmatprep.subr.mxu0 0.0
      %1220 = vmatpush1.msra.mxu0 0.0
      %1221 = vmatprep.subr.mxu0 0.0
      %1222 = vmatpush1.msra.mxu0 0.0
      %1223 = vmatprep.subr.mxu0 0.0
      %1224 = vmatpush1.msra.mxu0 0.0
      %1225 = vmatprep.subr.mxu0 0.0
      %1226 = vmatpush1.msra.mxu0 0.0
      %1227 = vmatprep.subr.mxu0 0.0
      %1228 = vmatpush1.msra.mxu0 0.0
      %1229 = vmatprep.subr.mxu0 0.0
      %1230 = vmatpush1.msra.mxu0 0.0
      %1231 = vmatprep.subr.mxu0 0.0
      %1232 = vmatpush1.msra.mxu0 0.0
      %1233 = vmatprep.subr.mxu0 0.0
      %1234 = vmatpush1.msra.mxu0 0.0
      %1235 = vmatprep.subr.mxu0 0.0
      %1236 = vmatpush1.msra.mxu0 0.0
      %1237 = vmatprep.subr.mxu0 0.0
      %1238 = vmatpush1.msra.mxu0 0.0
      %1239 = vmatprep.subr.mxu0 0.0
      %1240 = vmatpush1.msra.mxu0 0.0
      %1241 = vmatprep.subr.mxu0 0.0
      %1242 = vmatpush1.msra.mxu0 0.0
      %1243 = vmatprep.subr.mxu0 0.0
      %1244 = vmatpush1.msra.mxu0 0.0
      %1245 = vmatprep.subr.mxu0 0.0
      %1246 = vmatpush1.msra.mxu0 0.0
      %1247 = vmatprep.mubr.f32.mxu0 0.0
      %1248 = vmatmul.mubr.f32.gmra.mrb[0].mxu0 %v1181
      %v1249 = vpop.f32.mrb[0].mxu0
      %v1250 = vadd.f32 0.0, %v1249
      %v1251 = vpop.f32.mrb[0].mxu0
      %1252 = vdwg.mxu0
      %v1254 = vsel %vm376, %v306, 0
      %1256 = vmatprep.subr.mxu0 0.0
      %1257 = vmatpush1.msra.mxu0 %v356
      %1258 = vmatprep.subr.mxu0 0.0
      %1259 = vmatpush1.msra.mxu0 0.0
      %1260 = vmatprep.subr.mxu0 0.0
      %1261 = vmatpush1.msra.mxu0 0.0
      %1262 = vmatprep.subr.mxu0 0.0
      %1263 = vmatpush1.msra.mxu0 0.0
      %1264 = vmatprep.subr.mxu0 0.0
      %1265 = vmatpush1.msra.mxu0 0.0
      %1266 = vmatprep.subr.mxu0 0.0
      %1267 = vmatpush1.msra.mxu0 0.0
      %1268 = vmatprep.subr.mxu0 0.0
      %1269 = vmatpush1.msra.mxu0 0.0
      %1270 = vmatprep.subr.mxu0 0.0
      %1271 = vmatpush1.msra.mxu0 0.0
      %1272 = vmatprep.subr.mxu0 0.0
      %1273 = vmatpush1.msra.mxu0 0.0
      %1274 = vmatprep.subr.mxu0 0.0
      %1275 = vmatpush1.msra.mxu0 0.0
      %1276 = vmatprep.subr.mxu0 0.0
      %1277 = vmatpush1.msra.mxu0 0.0
      %1278 = vmatprep.subr.mxu0 0.0
      %1279 = vmatpush1.msra.mxu0 0.0
      %1280 = vmatprep.subr.mxu0 0.0
      %1281 = vmatpush1.msra.mxu0 0.0
      %1282 = vmatprep.subr.mxu0 0.0
      %1283 = vmatpush1.msra.mxu0 0.0
      %1284 = vmatprep.subr.mxu0 0.0
      %1285 = vmatpush1.msra.mxu0 0.0
      %1286 = vmatprep.subr.mxu0 0.0
      %1287 = vmatpush1.msra.mxu0 0.0
      %1288 = vmatprep.subr.mxu0 0.0
      %1289 = vmatpush1.msra.mxu0 0.0
      %1290 = vmatprep.subr.mxu0 0.0
      %1291 = vmatpush1.msra.mxu0 0.0
      %1292 = vmatprep.subr.mxu0 0.0
      %1293 = vmatpush1.msra.mxu0 0.0
      %1294 = vmatprep.subr.mxu0 0.0
      %1295 = vmatpush1.msra.mxu0 0.0
      %1296 = vmatprep.subr.mxu0 0.0
      %1297 = vmatpush1.msra.mxu0 0.0
      %1298 = vmatprep.subr.mxu0 0.0
      %1299 = vmatpush1.msra.mxu0 0.0
      %1300 = vmatprep.subr.mxu0 0.0
      %1301 = vmatpush1.msra.mxu0 0.0
      %1302 = vmatprep.subr.mxu0 0.0
      %1303 = vmatpush1.msra.mxu0 0.0
      %1304 = vmatprep.subr.mxu0 0.0
      %1305 = vmatpush1.msra.mxu0 0.0
      %1306 = vmatprep.subr.mxu0 0.0
      %1307 = vmatpush1.msra.mxu0 0.0
      %1308 = vmatprep.subr.mxu0 0.0
      %1309 = vmatpush1.msra.mxu0 0.0
      %1310 = vmatprep.subr.mxu0 0.0
      %1311 = vmatpush1.msra.mxu0 0.0
      %1312 = vmatprep.subr.mxu0 0.0
      %1313 = vmatpush1.msra.mxu0 0.0
      %1314 = vmatprep.subr.mxu0 0.0
      %1315 = vmatpush1.msra.mxu0 0.0
      %1316 = vmatprep.subr.mxu0 0.0
      %1317 = vmatpush1.msra.mxu0 0.0
      %1318 = vmatprep.subr.mxu0 0.0
      %1319 = vmatpush1.msra.mxu0 0.0
      %1320 = vmatprep.mubr.f32.mxu0 0.0
      %1321 = vmatmul.mubr.f32.gmra.mrb[0].mxu0 %v1254
      %v1322 = vpop.f32.mrb[0].mxu0
      %v1323 = vadd.f32 0.0, %v1322
      %v1324 = vpop.f32.mrb[0].mxu0
      %1325 = vdwg.mxu0
      %v1327 = vsel %vm376, %v307, 0
      %1329 = vmatprep.subr.mxu0 0.0
      %1330 = vmatpush1.msra.mxu0 %v357
      %1331 = vmatprep.subr.mxu0 0.0
      %1332 = vmatpush1.msra.mxu0 0.0
      %1333 = vmatprep.subr.mxu0 0.0
      %1334 = vmatpush1.msra.mxu0 0.0
      %1335 = vmatprep.subr.mxu0 0.0
      %1336 = vmatpush1.msra.mxu0 0.0
      %1337 = vmatprep.subr.mxu0 0.0
      %1338 = vmatpush1.msra.mxu0 0.0
      %1339 = vmatprep.subr.mxu0 0.0
      %1340 = vmatpush1.msra.mxu0 0.0
      %1341 = vmatprep.subr.mxu0 0.0
      %1342 = vmatpush1.msra.mxu0 0.0
      %1343 = vmatprep.subr.mxu0 0.0
      %1344 = vmatpush1.msra.mxu0 0.0
      %1345 = vmatprep.subr.mxu0 0.0
      %1346 = vmatpush1.msra.mxu0 0.0
      %1347 = vmatprep.subr.mxu0 0.0
      %1348 = vmatpush1.msra.mxu0 0.0
      %1349 = vmatprep.subr.mxu0 0.0
      %1350 = vmatpush1.msra.mxu0 0.0
      %1351 = vmatprep.subr.mxu0 0.0
      %1352 = vmatpush1.msra.mxu0 0.0
      %1353 = vmatprep.subr.mxu0 0.0
      %1354 = vmatpush1.msra.mxu0 0.0
      %1355 = vmatprep.subr.mxu0 0.0
      %1356 = vmatpush1.msra.mxu0 0.0
      %1357 = vmatprep.subr.mxu0 0.0
      %1358 = vmatpush1.msra.mxu0 0.0
      %1359 = vmatprep.subr.mxu0 0.0
      %1360 = vmatpush1.msra.mxu0 0.0
      %1361 = vmatprep.subr.mxu0 0.0
      %1362 = vmatpush1.msra.mxu0 0.0
      %1363 = vmatprep.subr.mxu0 0.0
      %1364 = vmatpush1.msra.mxu0 0.0
      %1365 = vmatprep.subr.mxu0 0.0
      %1366 = vmatpush1.msra.mxu0 0.0
      %1367 = vmatprep.subr.mxu0 0.0
      %1368 = vmatpush1.msra.mxu0 0.0
      %1369 = vmatprep.subr.mxu0 0.0
      %1370 = vmatpush1.msra.mxu0 0.0
      %1371 = vmatprep.subr.mxu0 0.0
      %1372 = vmatpush1.msra.mxu0 0.0
      %1373 = vmatprep.subr.mxu0 0.0
      %1374 = vmatpush1.msra.mxu0 0.0
      %1375 = vmatprep.subr.mxu0 0.0
      %1376 = vmatpush1.msra.mxu0 0.0
      %1377 = vmatprep.subr.mxu0 0.0
      %1378 = vmatpush1.msra.mxu0 0.0
      %1379 = vmatprep.subr.mxu0 0.0
      %1380 = vmatpush1.msra.mxu0 0.0
      %1381 = vmatprep.subr.mxu0 0.0
      %1382 = vmatpush1.msra.mxu0 0.0
      %1383 = vmatprep.subr.mxu0 0.0
      %1384 = vmatpush1.msra.mxu0 0.0
      %1385 = vmatprep.subr.mxu0 0.0
      %1386 = vmatpush1.msra.mxu0 0.0
      %1387 = vmatprep.subr.mxu0 0.0
      %1388 = vmatpush1.msra.mxu0 0.0
      %1389 = vmatprep.subr.mxu0 0.0
      %1390 = vmatpush1.msra.mxu0 0.0
      %1391 = vmatprep.subr.mxu0 0.0
      %1392 = vmatpush1.msra.mxu0 0.0
      %1393 = vmatprep.mubr.f32.mxu0 0.0
      %1394 = vmatmul.mubr.f32.gmra.mrb[0].mxu0 %v1327
      %v1395 = vpop.f32.mrb[0].mxu0
      %v1396 = vadd.f32 0.0, %v1395
      %v1397 = vpop.f32.mrb[0].mxu0
      %1398 = vdwg.mxu0
      %v1400 = vsel %vm376, %v308, 0
      %1402 = vmatprep.subr.mxu0 0.0
      %1403 = vmatpush1.msra.mxu0 %v358
      %1404 = vmatprep.subr.mxu0 0.0
      %1405 = vmatpush1.msra.mxu0 0.0
      %1406 = vmatprep.subr.mxu0 0.0
      %1407 = vmatpush1.msra.mxu0 0.0
      %1408 = vmatprep.subr.mxu0 0.0
      %1409 = vmatpush1.msra.mxu0 0.0
      %1410 = vmatprep.subr.mxu0 0.0
      %1411 = vmatpush1.msra.mxu0 0.0
      %1412 = vmatprep.subr.mxu0 0.0
      %1413 = vmatpush1.msra.mxu0 0.0
      %1414 = vmatprep.subr.mxu0 0.0
      %1415 = vmatpush1.msra.mxu0 0.0
      %1416 = vmatprep.subr.mxu0 0.0
      %1417 = vmatpush1.msra.mxu0 0.0
      %1418 = vmatprep.subr.mxu0 0.0
      %1419 = vmatpush1.msra.mxu0 0.0
      %1420 = vmatprep.subr.mxu0 0.0
      %1421 = vmatpush1.msra.mxu0 0.0
      %1422 = vmatprep.subr.mxu0 0.0
      %1423 = vmatpush1.msra.mxu0 0.0
      %1424 = vmatprep.subr.mxu0 0.0
      %1425 = vmatpush1.msra.mxu0 0.0
      %1426 = vmatprep.subr.mxu0 0.0
      %1427 = vmatpush1.msra.mxu0 0.0
      %1428 = vmatprep.subr.mxu0 0.0
      %1429 = vmatpush1.msra.mxu0 0.0
      %1430 = vmatprep.subr.mxu0 0.0
      %1431 = vmatpush1.msra.mxu0 0.0
      %1432 = vmatprep.subr.mxu0 0.0
      %1433 = vmatpush1.msra.mxu0 0.0
      %1434 = vmatprep.subr.mxu0 0.0
      %1435 = vmatpush1.msra.mxu0 0.0
      %1436 = vmatprep.subr.mxu0 0.0
      %1437 = vmatpush1.msra.mxu0 0.0
      %1438 = vmatprep.subr.mxu0 0.0
      %1439 = vmatpush1.msra.mxu0 0.0
      %1440 = vmatprep.subr.mxu0 0.0
      %1441 = vmatpush1.msra.mxu0 0.0
      %1442 = vmatprep.subr.mxu0 0.0
      %1443 = vmatpush1.msra.mxu0 0.0
      %1444 = vmatprep.subr.mxu0 0.0
      %1445 = vmatpush1.msra.mxu0 0.0
      %1446 = vmatprep.subr.mxu0 0.0
      %1447 = vmatpush1.msra.mxu0 0.0
      %1448 = vmatprep.subr.mxu0 0.0
      %1449 = vmatpush1.msra.mxu0 0.0
      %1450 = vmatprep.subr.mxu0 0.0
      %1451 = vmatpush1.msra.mxu0 0.0
      %1452 = vmatprep.subr.mxu0 0.0
      %1453 = vmatpush1.msra.mxu0 0.0
      %1454 = vmatprep.subr.mxu0 0.0
      %1455 = vmatpush1.msra.mxu0 0.0
      %1456 = vmatprep.subr.mxu0 0.0
      %1457 = vmatpush1.msra.mxu0 0.0
      %1458 = vmatprep.subr.mxu0 0.0
      %1459 = vmatpush1.msra.mxu0 0.0
      %1460 = vmatprep.subr.mxu0 0.0
      %1461 = vmatpush1.msra.mxu0 0.0
      %1462 = vmatprep.subr.mxu0 0.0
      %1463 = vmatpush1.msra.mxu0 0.0
      %1464 = vmatprep.subr.mxu0 0.0
      %1465 = vmatpush1.msra.mxu0 0.0
      %1466 = vmatprep.mubr.f32.mxu0 0.0
      %1467 = vmatmul.mubr.f32.gmra.mrb[0].mxu0 %v1400
      %v1468 = vpop.f32.mrb[0].mxu0
      %v1469 = vadd.f32 0.0, %v1468
      %v1470 = vpop.f32.mrb[0].mxu0
      %1471 = vdwg.mxu0
      %v1473 = vsel %vm376, %v309, 0
      %1475 = vmatprep.subr.mxu0 0.0
      %1476 = vmatpush1.msra.mxu0 %v359
      %1477 = vmatprep.subr.mxu0 0.0
      %1478 = vmatpush1.msra.mxu0 0.0
      %1479 = vmatprep.subr.mxu0 0.0
      %1480 = vmatpush1.msra.mxu0 0.0
      %1481 = vmatprep.subr.mxu0 0.0
      %1482 = vmatpush1.msra.mxu0 0.0
      %1483 = vmatprep.subr.mxu0 0.0
      %1484 = vmatpush1.msra.mxu0 0.0
      %1485 = vmatprep.subr.mxu0 0.0
      %1486 = vmatpush1.msra.mxu0 0.0
      %1487 = vmatprep.subr.mxu0 0.0
      %1488 = vmatpush1.msra.mxu0 0.0
      %1489 = vmatprep.subr.mxu0 0.0
      %1490 = vmatpush1.msra.mxu0 0.0
      %1491 = vmatprep.subr.mxu0 0.0
      %1492 = vmatpush1.msra.mxu0 0.0
      %1493 = vmatprep.subr.mxu0 0.0
      %1494 = vmatpush1.msra.mxu0 0.0
      %1495 = vmatprep.subr.mxu0 0.0
      %1496 = vmatpush1.msra.mxu0 0.0
      %1497 = vmatprep.subr.mxu0 0.0
      %1498 = vmatpush1.msra.mxu0 0.0
      %1499 = vmatprep.subr.mxu0 0.0
      %1500 = vmatpush1.msra.mxu0 0.0
      %1501 = vmatprep.subr.mxu0 0.0
      %1502 = vmatpush1.msra.mxu0 0.0
      %1503 = vmatprep.subr.mxu0 0.0
      %1504 = vmatpush1.msra.mxu0 0.0
      %1505 = vmatprep.subr.mxu0 0.0
      %1506 = vmatpush1.msra.mxu0 0.0
      %1507 = vmatprep.subr.mxu0 0.0
      %1508 = vmatpush1.msra.mxu0 0.0
      %1509 = vmatprep.subr.mxu0 0.0
      %1510 = vmatpush1.msra.mxu0 0.0
      %1511 = vmatprep.subr.mxu0 0.0
      %1512 = vmatpush1.msra.mxu0 0.0
      %1513 = vmatprep.subr.mxu0 0.0
      %1514 = vmatpush1.msra.mxu0 0.0
      %1515 = vmatprep.subr.mxu0 0.0
      %1516 = vmatpush1.msra.mxu0 0.0
      %1517 = vmatprep.subr.mxu0 0.0
      %1518 = vmatpush1.msra.mxu0 0.0
      %1519 = vmatprep.subr.mxu0 0.0
      %1520 = vmatpush1.msra.mxu0 0.0
      %1521 = vmatprep.subr.mxu0 0.0
      %1522 = vmatpush1.msra.mxu0 0.0
      %1523 = vmatprep.subr.mxu0 0.0
      %1524 = vmatpush1.msra.mxu0 0.0
      %1525 = vmatprep.subr.mxu0 0.0
      %1526 = vmatpush1.msra.mxu0 0.0
      %1527 = vmatprep.subr.mxu0 0.0
      %1528 = vmatpush1.msra.mxu0 0.0
      %1529 = vmatprep.subr.mxu0 0.0
      %1530 = vmatpush1.msra.mxu0 0.0
      %1531 = vmatprep.subr.mxu0 0.0
      %1532 = vmatpush1.msra.mxu0 0.0
      %1533 = vmatprep.subr.mxu0 0.0
      %1534 = vmatpush1.msra.mxu0 0.0
      %1535 = vmatprep.subr.mxu0 0.0
      %1536 = vmatpush1.msra.mxu0 0.0
      %1537 = vmatprep.subr.mxu0 0.0
      %1538 = vmatpush1.msra.mxu0 0.0
      %1539 = vmatprep.mubr.f32.mxu0 0.0
      %1540 = vmatmul.mubr.f32.gmra.mrb[0].mxu0 %v1473
      %v1541 = vpop.f32.mrb[0].mxu0
      %v1542 = vadd.f32 0.0, %v1541
      %v1543 = vpop.f32.mrb[0].mxu0
      %1544 = vdwg.mxu0
      %v1546 = vsel %vm376, %v328, 0
      %1548 = vmatprep.subr.mxu0 0.0
      %1549 = vmatpush1.msra.mxu0 %v360
      %1550 = vmatprep.subr.mxu0 0.0
      %1551 = vmatpush1.msra.mxu0 0.0
      %1552 = vmatprep.subr.mxu0 0.0
      %1553 = vmatpush1.msra.mxu0 0.0
      %1554 = vmatprep.subr.mxu0 0.0
      %1555 = vmatpush1.msra.mxu0 0.0
      %1556 = vmatprep.subr.mxu0 0.0
      %1557 = vmatpush1.msra.mxu0 0.0
      %1558 = vmatprep.subr.mxu0 0.0
      %1559 = vmatpush1.msra.mxu0 0.0
      %1560 = vmatprep.subr.mxu0 0.0
      %1561 = vmatpush1.msra.mxu0 0.0
      %1562 = vmatprep.subr.mxu0 0.0
      %1563 = vmatpush1.msra.mxu0 0.0
      %1564 = vmatprep.subr.mxu0 0.0
      %1565 = vmatpush1.msra.mxu0 0.0
      %1566 = vmatprep.subr.mxu0 0.0
      %1567 = vmatpush1.msra.mxu0 0.0
      %1568 = vmatprep.subr.mxu0 0.0
      %1569 = vmatpush1.msra.mxu0 0.0
      %1570 = vmatprep.subr.mxu0 0.0
      %1571 = vmatpush1.msra.mxu0 0.0
      %1572 = vmatprep.subr.mxu0 0.0
      %1573 = vmatpush1.msra.mxu0 0.0
      %1574 = vmatprep.subr.mxu0 0.0
      %1575 = vmatpush1.msra.mxu0 0.0
      %1576 = vmatprep.subr.mxu0 0.0
      %1577 = vmatpush1.msra.mxu0 0.0
      %1578 = vmatprep.subr.mxu0 0.0
      %1579 = vmatpush1.msra.mxu0 0.0
      %1580 = vmatprep.subr.mxu0 0.0
      %1581 = vmatpush1.msra.mxu0 0.0
      %1582 = vmatprep.subr.mxu0 0.0
      %1583 = vmatpush1.msra.mxu0 0.0
      %1584 = vmatprep.subr.mxu0 0.0
      %1585 = vmatpush1.msra.mxu0 0.0
      %1586 = vmatprep.subr.mxu0 0.0
      %1587 = vmatpush1.msra.mxu0 0.0
      %1588 = vmatprep.subr.mxu0 0.0
      %1589 = vmatpush1.msra.mxu0 0.0
      %1590 = vmatprep.subr.mxu0 0.0
      %1591 = vmatpush1.msra.mxu0 0.0
      %1592 = vmatprep.subr.mxu0 0.0
      %1593 = vmatpush1.msra.mxu0 0.0
      %1594 = vmatprep.subr.mxu0 0.0
      %1595 = vmatpush1.msra.mxu0 0.0
      %1596 = vmatprep.subr.mxu0 0.0
      %1597 = vmatpush1.msra.mxu0 0.0
      %1598 = vmatprep.subr.mxu0 0.0
      %1599 = vmatpush1.msra.mxu0 0.0
      %1600 = vmatprep.subr.mxu0 0.0
      %1601 = vmatpush1.msra.mxu0 0.0
      %1602 = vmatprep.subr.mxu0 0.0
      %1603 = vmatpush1.msra.mxu0 0.0
      %1604 = vmatprep.subr.mxu0 0.0
      %1605 = vmatpush1.msra.mxu0 0.0
      %1606 = vmatprep.subr.mxu0 0.0
      %1607 = vmatpush1.msra.mxu0 0.0
      %1608 = vmatprep.subr.mxu0 0.0
      %1609 = vmatpush1.msra.mxu0 0.0
      %1610 = vmatprep.subr.mxu0 0.0
      %1611 = vmatpush1.msra.mxu0 0.0
      %1612 = vmatprep.mubr.f32.mxu0 0.0
      %1613 = vmatmul.mubr.f32.gmra.mrb[0].mxu0 %v1546
      %v1614 = vpop.f32.mrb[0].mxu0
      %v1615 = vadd.f32 %v447, %v1614
      %v1616 = vpop.f32.mrb[0].mxu0
      %1617 = vdwg.mxu0
      %v1619 = vsel %vm376, %v329, 0
      %1621 = vmatprep.subr.mxu0 0.0
      %1622 = vmatpush1.msra.mxu0 %v361
      %1623 = vmatprep.subr.mxu0 0.0
      %1624 = vmatpush1.msra.mxu0 0.0
      %1625 = vmatprep.subr.mxu0 0.0
      %1626 = vmatpush1.msra.mxu0 0.0
      %1627 = vmatprep.subr.mxu0 0.0
      %1628 = vmatpush1.msra.mxu0 0.0
      %1629 = vmatprep.subr.mxu0 0.0
      %1630 = vmatpush1.msra.mxu0 0.0
      %1631 = vmatprep.subr.mxu0 0.0
      %1632 = vmatpush1.msra.mxu0 0.0
      %1633 = vmatprep.subr.mxu0 0.0
      %1634 = vmatpush1.msra.mxu0 0.0
      %1635 = vmatprep.subr.mxu0 0.0
      %1636 = vmatpush1.msra.mxu0 0.0
      %1637 = vmatprep.subr.mxu0 0.0
      %1638 = vmatpush1.msra.mxu0 0.0
      %1639 = vmatprep.subr.mxu0 0.0
      %1640 = vmatpush1.msra.mxu0 0.0
      %1641 = vmatprep.subr.mxu0 0.0
      %1642 = vmatpush1.msra.mxu0 0.0
      %1643 = vmatprep.subr.mxu0 0.0
      %1644 = vmatpush1.msra.mxu0 0.0
      %1645 = vmatprep.subr.mxu0 0.0
      %1646 = vmatpush1.msra.mxu0 0.0
      %1647 = vmatprep.subr.mxu0 0.0
      %1648 = vmatpush1.msra.mxu0 0.0
      %1649 = vmatprep.subr.mxu0 0.0
      %1650 = vmatpush1.msra.mxu0 0.0
      %1651 = vmatprep.subr.mxu0 0.0
      %1652 = vmatpush1.msra.mxu0 0.0
      %1653 = vmatprep.subr.mxu0 0.0
      %1654 = vmatpush1.msra.mxu0 0.0
      %1655 = vmatprep.subr.mxu0 0.0
      %1656 = vmatpush1.msra.mxu0 0.0
      %1657 = vmatprep.subr.mxu0 0.0
      %1658 = vmatpush1.msra.mxu0 0.0
      %1659 = vmatprep.subr.mxu0 0.0
      %1660 = vmatpush1.msra.mxu0 0.0
      %1661 = vmatprep.subr.mxu0 0.0
      %1662 = vmatpush1.msra.mxu0 0.0
      %1663 = vmatprep.subr.mxu0 0.0
      %1664 = vmatpush1.msra.mxu0 0.0
      %1665 = vmatprep.subr.mxu0 0.0
      %1666 = vmatpush1.msra.mxu0 0.0
      %1667 = vmatprep.subr.mxu0 0.0
      %1668 = vmatpush1.msra.mxu0 0.0
      %1669 = vmatprep.subr.mxu0 0.0
      %1670 = vmatpush1.msra.mxu0 0.0
      %1671 = vmatprep.subr.mxu0 0.0
      %1672 = vmatpush1.msra.mxu0 0.0
      %1673 = vmatprep.subr.mxu0 0.0
      %1674 = vmatpush1.msra.mxu0 0.0
      %1675 = vmatprep.subr.mxu0 0.0
      %1676 = vmatpush1.msra.mxu0 0.0
      %1677 = vmatprep.subr.mxu0 0.0
      %1678 = vmatpush1.msra.mxu0 0.0
      %1679 = vmatprep.subr.mxu0 0.0
      %1680 = vmatpush1.msra.mxu0 0.0
      %1681 = vmatprep.subr.mxu0 0.0
      %1682 = vmatpush1.msra.mxu0 0.0
      %1683 = vmatprep.subr.mxu0 0.0
      %1684 = vmatpush1.msra.mxu0 0.0
      %1685 = vmatprep.mubr.f32.mxu0 0.0
      %1686 = vmatmul.mubr.f32.gmra.mrb[0].mxu0 %v1619
      %v1687 = vpop.f32.mrb[0].mxu0
      %v1688 = vadd.f32 %v520, %v1687
      %v1689 = vpop.f32.mrb[0].mxu0
      %1690 = vdwg.mxu0
      %v1692 = vsel %vm376, %v330, 0
      %1694 = vmatprep.subr.mxu0 0.0
      %1695 = vmatpush1.msra.mxu0 %v362
      %1696 = vmatprep.subr.mxu0 0.0
      %1697 = vmatpush1.msra.mxu0 0.0
      %1698 = vmatprep.subr.mxu0 0.0
      %1699 = vmatpush1.msra.mxu0 0.0
      %1700 = vmatprep.subr.mxu0 0.0
      %1701 = vmatpush1.msra.mxu0 0.0
      %1702 = vmatprep.subr.mxu0 0.0
      %1703 = vmatpush1.msra.mxu0 0.0
      %1704 = vmatprep.subr.mxu0 0.0
      %1705 = vmatpush1.msra.mxu0 0.0
      %1706 = vmatprep.subr.mxu0 0.0
      %1707 = vmatpush1.msra.mxu0 0.0
      %1708 = vmatprep.subr.mxu0 0.0
      %1709 = vmatpush1.msra.mxu0 0.0
      %1710 = vmatprep.subr.mxu0 0.0
      %1711 = vmatpush1.msra.mxu0 0.0
      %1712 = vmatprep.subr.mxu0 0.0
      %1713 = vmatpush1.msra.mxu0 0.0
      %1714 = vmatprep.subr.mxu0 0.0
      %1715 = vmatpush1.msra.mxu0 0.0
      %1716 = vmatprep.subr.mxu0 0.0
      %1717 = vmatpush1.msra.mxu0 0.0
      %1718 = vmatprep.subr.mxu0 0.0
      %1719 = vmatpush1.msra.mxu0 0.0
      %1720 = vmatprep.subr.mxu0 0.0
      %1721 = vmatpush1.msra.mxu0 0.0
      %1722 = vmatprep.subr.mxu0 0.0
      %1723 = vmatpush1.msra.mxu0 0.0
      %1724 = vmatprep.subr.mxu0 0.0
      %1725 = vmatpush1.msra.mxu0 0.0
      %1726 = vmatprep.subr.mxu0 0.0
      %1727 = vmatpush1.msra.mxu0 0.0
      %1728 = vmatprep.subr.mxu0 0.0
      %1729 = vmatpush1.msra.mxu0 0.0
      %1730 = vmatprep.subr.mxu0 0.0
      %1731 = vmatpush1.msra.mxu0 0.0
      %1732 = vmatprep.subr.mxu0 0.0
      %1733 = vmatpush1.msra.mxu0 0.0
      %1734 = vmatprep.subr.mxu0 0.0
      %1735 = vmatpush1.msra.mxu0 0.0
      %1736 = vmatprep.subr.mxu0 0.0
      %1737 = vmatpush1.msra.mxu0 0.0
      %1738 = vmatprep.subr.mxu0 0.0
      %1739 = vmatpush1.msra.mxu0 0.0
      %1740 = vmatprep.subr.mxu0 0.0
      %1741 = vmatpush1.msra.mxu0 0.0
      %1742 = vmatprep.subr.mxu0 0.0
      %1743 = vmatpush1.msra.mxu0 0.0
      %1744 = vmatprep.subr.mxu0 0.0
      %1745 = vmatpush1.msra.mxu0 0.0
      %1746 = vmatprep.subr.mxu0 0.0
      %1747 = vmatpush1.msra.mxu0 0.0
      %1748 = vmatprep.subr.mxu0 0.0
      %1749 = vmatpush1.msra.mxu0 0.0
      %1750 = vmatprep.subr.mxu0 0.0
      %1751 = vmatpush1.msra.mxu0 0.0
      %1752 = vmatprep.subr.mxu0 0.0
      %1753 = vmatpush1.msra.mxu0 0.0
      %1754 = vmatprep.subr.mxu0 0.0
      %1755 = vmatpush1.msra.mxu0 0.0
      %1756 = vmatprep.subr.mxu0 0.0
      %1757 = vmatpush1.msra.mxu0 0.0
      %1758 = vmatprep.mubr.f32.mxu0 0.0
      %1759 = vmatmul.mubr.f32.gmra.mrb[0].mxu0 %v1692
      %v1760 = vpop.f32.mrb[0].mxu0
      %v1761 = vadd.f32 %v593, %v1760
      %v1762 = vpop.f32.mrb[0].mxu0
      %1763 = vdwg.mxu0
      %v1765 = vsel %vm376, %v331, 0
      %1767 = vmatprep.subr.mxu0 0.0
      %1768 = vmatpush1.msra.mxu0 %v363
      %1769 = vmatprep.subr.mxu0 0.0
      %1770 = vmatpush1.msra.mxu0 0.0
      %1771 = vmatprep.subr.mxu0 0.0
      %1772 = vmatpush1.msra.mxu0 0.0
      %1773 = vmatprep.subr.mxu0 0.0
      %1774 = vmatpush1.msra.mxu0 0.0
      %1775 = vmatprep.subr.mxu0 0.0
      %1776 = vmatpush1.msra.mxu0 0.0
      %1777 = vmatprep.subr.mxu0 0.0
      %1778 = vmatpush1.msra.mxu0 0.0
      %1779 = vmatprep.subr.mxu0 0.0
      %1780 = vmatpush1.msra.mxu0 0.0
      %1781 = vmatprep.subr.mxu0 0.0
      %1782 = vmatpush1.msra.mxu0 0.0
      %1783 = vmatprep.subr.mxu0 0.0
      %1784 = vmatpush1.msra.mxu0 0.0
      %1785 = vmatprep.subr.mxu0 0.0
      %1786 = vmatpush1.msra.mxu0 0.0
      %1787 = vmatprep.subr.mxu0 0.0
      %1788 = vmatpush1.msra.mxu0 0.0
      %1789 = vmatprep.subr.mxu0 0.0
      %1790 = vmatpush1.msra.mxu0 0.0
      %1791 = vmatprep.subr.mxu0 0.0
      %1792 = vmatpush1.msra.mxu0 0.0
      %1793 = vmatprep.subr.mxu0 0.0
      %1794 = vmatpush1.msra.mxu0 0.0
      %1795 = vmatprep.subr.mxu0 0.0
      %1796 = vmatpush1.msra.mxu0 0.0
      %1797 = vmatprep.subr.mxu0 0.0
      %1798 = vmatpush1.msra.mxu0 0.0
      %1799 = vmatprep.subr.mxu0 0.0
      %1800 = vmatpush1.msra.mxu0 0.0
      %1801 = vmatprep.subr.mxu0 0.0
      %1802 = vmatpush1.msra.mxu0 0.0
      %1803 = vmatprep.subr.mxu0 0.0
      %1804 = vmatpush1.msra.mxu0 0.0
      %1805 = vmatprep.subr.mxu0 0.0
      %1806 = vmatpush1.msra.mxu0 0.0
      %1807 = vmatprep.subr.mxu0 0.0
      %1808 = vmatpush1.msra.mxu0 0.0
      %1809 = vmatprep.subr.mxu0 0.0
      %1810 = vmatpush1.msra.mxu0 0.0
      %1811 = vmatprep.subr.mxu0 0.0
      %1812 = vmatpush1.msra.mxu0 0.0
      %1813 = vmatprep.subr.mxu0 0.0
      %1814 = vmatpush1.msra.mxu0 0.0
      %1815 = vmatprep.subr.mxu0 0.0
      %1816 = vmatpush1.msra.mxu0 0.0
      %1817 = vmatprep.subr.mxu0 0.0
      %1818 = vmatpush1.msra.mxu0 0.0
      %1819 = vmatprep.subr.mxu0 0.0
      %1820 = vmatpush1.msra.mxu0 0.0
      %1821 = vmatprep.subr.mxu0 0.0
      %1822 = vmatpush1.msra.mxu0 0.0
      %1823 = vmatprep.subr.mxu0 0.0
      %1824 = vmatpush1.msra.mxu0 0.0
      %1825 = vmatprep.subr.mxu0 0.0
      %1826 = vmatpush1.msra.mxu0 0.0
      %1827 = vmatprep.subr.mxu0 0.0
      %1828 = vmatpush1.msra.mxu0 0.0
      %1829 = vmatprep.subr.mxu0 0.0
      %1830 = vmatpush1.msra.mxu0 0.0
      %1831 = vmatprep.mubr.f32.mxu0 0.0
      %1832 = vmatmul.mubr.f32.gmra.mrb[0].mxu0 %v1765
      %v1833 = vpop.f32.mrb[0].mxu0
      %v1834 = vadd.f32 %v666, %v1833
      %v1835 = vpop.f32.mrb[0].mxu0
      %1836 = vdwg.mxu0
      %v1838 = vsel %vm376, %v332, 0
      %1840 = vmatprep.subr.mxu0 0.0
      %1841 = vmatpush1.msra.mxu0 %v364
      %1842 = vmatprep.subr.mxu0 0.0
      %1843 = vmatpush1.msra.mxu0 0.0
      %1844 = vmatprep.subr.mxu0 0.0
      %1845 = vmatpush1.msra.mxu0 0.0
      %1846 = vmatprep.subr.mxu0 0.0
      %1847 = vmatpush1.msra.mxu0 0.0
      %1848 = vmatprep.subr.mxu0 0.0
      %1849 = vmatpush1.msra.mxu0 0.0
      %1850 = vmatprep.subr.mxu0 0.0
      %1851 = vmatpush1.msra.mxu0 0.0
      %1852 = vmatprep.subr.mxu0 0.0
      %1853 = vmatpush1.msra.mxu0 0.0
      %1854 = vmatprep.subr.mxu0 0.0
      %1855 = vmatpush1.msra.mxu0 0.0
      %1856 = vmatprep.subr.mxu0 0.0
      %1857 = vmatpush1.msra.mxu0 0.0
      %1858 = vmatprep.subr.mxu0 0.0
      %1859 = vmatpush1.msra.mxu0 0.0
      %1860 = vmatprep.subr.mxu0 0.0
      %1861 = vmatpush1.msra.mxu0 0.0
      %1862 = vmatprep.subr.mxu0 0.0
      %1863 = vmatpush1.msra.mxu0 0.0
      %1864 = vmatprep.subr.mxu0 0.0
      %1865 = vmatpush1.msra.mxu0 0.0
      %1866 = vmatprep.subr.mxu0 0.0
      %1867 = vmatpush1.msra.mxu0 0.0
      %1868 = vmatprep.subr.mxu0 0.0
      %1869 = vmatpush1.msra.mxu0 0.0
      %1870 = vmatprep.subr.mxu0 0.0
      %1871 = vmatpush1.msra.mxu0 0.0
      %1872 = vmatprep.subr.mxu0 0.0
      %1873 = vmatpush1.msra.mxu0 0.0
      %1874 = vmatprep.subr.mxu0 0.0
      %1875 = vmatpush1.msra.mxu0 0.0
      %1876 = vmatprep.subr.mxu0 0.0
      %1877 = vmatpush1.msra.mxu0 0.0
      %1878 = vmatprep.subr.mxu0 0.0
      %1879 = vmatpush1.msra.mxu0 0.0
      %1880 = vmatprep.subr.mxu0 0.0
      %1881 = vmatpush1.msra.mxu0 0.0
      %1882 = vmatprep.subr.mxu0 0.0
      %1883 = vmatpush1.msra.mxu0 0.0
      %1884 = vmatprep.subr.mxu0 0.0
      %1885 = vmatpush1.msra.mxu0 0.0
      %1886 = vmatprep.subr.mxu0 0.0
      %1887 = vmatpush1.msra.mxu0 0.0
      %1888 = vmatprep.subr.mxu0 0.0
      %1889 = vmatpush1.msra.mxu0 0.0
      %1890 = vmatprep.subr.mxu0 0.0
      %1891 = vmatpush1.msra.mxu0 0.0
      %1892 = vmatprep.subr.mxu0 0.0
      %1893 = vmatpush1.msra.mxu0 0.0
      %1894 = vmatprep.subr.mxu0 0.0
      %1895 = vmatpush1.msra.mxu0 0.0
      %1896 = vmatprep.subr.mxu0 0.0
      %1897 = vmatpush1.msra.mxu0 0.0
      %1898 = vmatprep.subr.mxu0 0.0
      %1899 = vmatpush1.msra.mxu0 0.0
      %1900 = vmatprep.subr.mxu0 0.0
      %1901 = vmatpush1.msra.mxu0 0.0
      %1902 = vmatprep.subr.mxu0 0.0
      %1903 = vmatpush1.msra.mxu0 0.0
      %1904 = vmatprep.mubr.f32.mxu0 0.0
      %1905 = vmatmul.mubr.f32.gmra.mrb[0].mxu0 %v1838
      %v1906 = vpop.f32.mrb[0].mxu0
      %v1907 = vadd.f32 %v739, %v1906
      %v1908 = vpop.f32.mrb[0].mxu0
      %1909 = vdwg.mxu0
      %v1911 = vsel %vm376, %v333, 0
      %1913 = vmatprep.subr.mxu0 0.0
      %1914 = vmatpush1.msra.mxu0 %v365
      %1915 = vmatprep.subr.mxu0 0.0
      %1916 = vmatpush1.msra.mxu0 0.0
      %1917 = vmatprep.subr.mxu0 0.0
      %1918 = vmatpush1.msra.mxu0 0.0
      %1919 = vmatprep.subr.mxu0 0.0
      %1920 = vmatpush1.msra.mxu0 0.0
      %1921 = vmatprep.subr.mxu0 0.0
      %1922 = vmatpush1.msra.mxu0 0.0
      %1923 = vmatprep.subr.mxu0 0.0
      %1924 = vmatpush1.msra.mxu0 0.0
      %1925 = vmatprep.subr.mxu0 0.0
      %1926 = vmatpush1.msra.mxu0 0.0
      %1927 = vmatprep.subr.mxu0 0.0
      %1928 = vmatpush1.msra.mxu0 0.0
      %1929 = vmatprep.subr.mxu0 0.0
      %1930 = vmatpush1.msra.mxu0 0.0
      %1931 = vmatprep.subr.mxu0 0.0
      %1932 = vmatpush1.msra.mxu0 0.0
      %1933 = vmatprep.subr.mxu0 0.0
      %1934 = vmatpush1.msra.mxu0 0.0
      %1935 = vmatprep.subr.mxu0 0.0
      %1936 = vmatpush1.msra.mxu0 0.0
      %1937 = vmatprep.subr.mxu0 0.0
      %1938 = vmatpush1.msra.mxu0 0.0
      %1939 = vmatprep.subr.mxu0 0.0
      %1940 = vmatpush1.msra.mxu0 0.0
      %1941 = vmatprep.subr.mxu0 0.0
      %1942 = vmatpush1.msra.mxu0 0.0
      %1943 = vmatprep.subr.mxu0 0.0
      %1944 = vmatpush1.msra.mxu0 0.0
      %1945 = vmatprep.subr.mxu0 0.0
      %1946 = vmatpush1.msra.mxu0 0.0
      %1947 = vmatprep.subr.mxu0 0.0
      %1948 = vmatpush1.msra.mxu0 0.0
      %1949 = vmatprep.subr.mxu0 0.0
      %1950 = vmatpush1.msra.mxu0 0.0
      %1951 = vmatprep.subr.mxu0 0.0
      %1952 = vmatpush1.msra.mxu0 0.0
      %1953 = vmatprep.subr.mxu0 0.0
      %1954 = vmatpush1.msra.mxu0 0.0
      %1955 = vmatprep.subr.mxu0 0.0
      %1956 = vmatpush1.msra.mxu0 0.0
      %1957 = vmatprep.subr.mxu0 0.0
      %1958 = vmatpush1.msra.mxu0 0.0
      %1959 = vmatprep.subr.mxu0 0.0
      %1960 = vmatpush1.msra.mxu0 0.0
      %1961 = vmatprep.subr.mxu0 0.0
      %1962 = vmatpush1.msra.mxu0 0.0
      %1963 = vmatprep.subr.mxu0 0.0
      %1964 = vmatpush1.msra.mxu0 0.0
      %1965 = vmatprep.subr.mxu0 0.0
      %1966 = vmatpush1.msra.mxu0 0.0
      %1967 = vmatprep.subr.mxu0 0.0
      %1968 = vmatpush1.msra.mxu0 0.0
      %1969 = vmatprep.subr.mxu0 0.0
      %1970 = vmatpush1.msra.mxu0 0.0
      %1971 = vmatprep.subr.mxu0 0.0
      %1972 = vmatpush1.msra.mxu0 0.0
      %1973 = vmatprep.subr.mxu0 0.0
      %1974 = vmatpush1.msra.mxu0 0.0
      %1975 = vmatprep.subr.mxu0 0.0
      %1976 = vmatpush1.msra.mxu0 0.0
      %1977 = vmatprep.mubr.f32.mxu0 0.0
      %1978 = vmatmul.mubr.f32.gmra.mrb[0].mxu0 %v1911
      %v1979 = vpop.f32.mrb[0].mxu0
      %v1980 = vadd.f32 %v812, %v1979
      %v1981 = vpop.f32.mrb[0].mxu0
      %1982 = vdwg.mxu0
      %v1984 = vsel %vm376, %v334, 0
      %1986 = vmatprep.subr.mxu0 0.0
      %1987 = vmatpush1.msra.mxu0 %v366
      %1988 = vmatprep.subr.mxu0 0.0
      %1989 = vmatpush1.msra.mxu0 0.0
      %1990 = vmatprep.subr.mxu0 0.0
      %1991 = vmatpush1.msra.mxu0 0.0
      %1992 = vmatprep.subr.mxu0 0.0
      %1993 = vmatpush1.msra.mxu0 0.0
      %1994 = vmatprep.subr.mxu0 0.0
      %1995 = vmatpush1.msra.mxu0 0.0
      %1996 = vmatprep.subr.mxu0 0.0
      %1997 = vmatpush1.msra.mxu0 0.0
      %1998 = vmatprep.subr.mxu0 0.0
      %1999 = vmatpush1.msra.mxu0 0.0
      %2000 = vmatprep.subr.mxu0 0.0
      %2001 = vmatpush1.msra.mxu0 0.0
      %2002 = vmatprep.subr.mxu0 0.0
      %2003 = vmatpush1.msra.mxu0 0.0
      %2004 = vmatprep.subr.mxu0 0.0
      %2005 = vmatpush1.msra.mxu0 0.0
      %2006 = vmatprep.subr.mxu0 0.0
      %2007 = vmatpush1.msra.mxu0 0.0
      %2008 = vmatprep.subr.mxu0 0.0
      %2009 = vmatpush1.msra.mxu0 0.0
      %2010 = vmatprep.subr.mxu0 0.0
      %2011 = vmatpush1.msra.mxu0 0.0
      %2012 = vmatprep.subr.mxu0 0.0
      %2013 = vmatpush1.msra.mxu0 0.0
      %2014 = vmatprep.subr.mxu0 0.0
      %2015 = vmatpush1.msra.mxu0 0.0
      %2016 = vmatprep.subr.mxu0 0.0
      %2017 = vmatpush1.msra.mxu0 0.0
      %2018 = vmatprep.subr.mxu0 0.0
      %2019 = vmatpush1.msra.mxu0 0.0
      %2020 = vmatprep.subr.mxu0 0.0
      %2021 = vmatpush1.msra.mxu0 0.0
      %2022 = vmatprep.subr.mxu0 0.0
      %2023 = vmatpush1.msra.mxu0 0.0
      %2024 = vmatprep.subr.mxu0 0.0
      %2025 = vmatpush1.msra.mxu0 0.0
      %2026 = vmatprep.subr.mxu0 0.0
      %2027 = vmatpush1.msra.mxu0 0.0
      %2028 = vmatprep.subr.mxu0 0.0
      %2029 = vmatpush1.msra.mxu0 0.0
      %2030 = vmatprep.subr.mxu0 0.0
      %2031 = vmatpush1.msra.mxu0 0.0
      %2032 = vmatprep.subr.mxu0 0.0
      %2033 = vmatpush1.msra.mxu0 0.0
      %2034 = vmatprep.subr.mxu0 0.0
      %2035 = vmatpush1.msra.mxu0 0.0
      %2036 = vmatprep.subr.mxu0 0.0
      %2037 = vmatpush1.msra.mxu0 0.0
      %2038 = vmatprep.subr.mxu0 0.0
      %2039 = vmatpush1.msra.mxu0 0.0
      %2040 = vmatprep.subr.mxu0 0.0
      %2041 = vmatpush1.msra.mxu0 0.0
      %2042 = vmatprep.subr.mxu0 0.0
      %2043 = vmatpush1.msra.mxu0 0.0
      %2044 = vmatprep.subr.mxu0 0.0
      %2045 = vmatpush1.msra.mxu0 0.0
      %2046 = vmatprep.subr.mxu0 0.0
      %2047 = vmatpush1.msra.mxu0 0.0
      %2048 = vmatprep.subr.mxu0 0.0
      %2049 = vmatpush1.msra.mxu0 0.0
      %2050 = vmatprep.mubr.f32.mxu0 0.0
      %2051 = vmatmul.mubr.f32.gmra.mrb[0].mxu0 %v1984
      %v2052 = vpop.f32.mrb[0].mxu0
      %v2053 = vadd.f32 %v885, %v2052
      %v2054 = vpop.f32.mrb[0].mxu0
      %2055 = vdwg.mxu0
      %v2057 = vsel %vm376, %v335, 0
      %2059 = vmatprep.subr.mxu0 0.0
      %2060 = vmatpush1.msra.mxu0 %v367
      %2061 = vmatprep.subr.mxu0 0.0
      %2062 = vmatpush1.msra.mxu0 0.0
      %2063 = vmatprep.subr.mxu0 0.0
      %2064 = vmatpush1.msra.mxu0 0.0
      %2065 = vmatprep.subr.mxu0 0.0
      %2066 = vmatpush1.msra.mxu0 0.0
      %2067 = vmatprep.subr.mxu0 0.0
      %2068 = vmatpush1.msra.mxu0 0.0
      %2069 = vmatprep.subr.mxu0 0.0
      %2070 = vmatpush1.msra.mxu0 0.0
      %2071 = vmatprep.subr.mxu0 0.0
      %2072 = vmatpush1.msra.mxu0 0.0
      %2073 = vmatprep.subr.mxu0 0.0
      %2074 = vmatpush1.msra.mxu0 0.0
      %2075 = vmatprep.subr.mxu0 0.0
      %2076 = vmatpush1.msra.mxu0 0.0
      %2077 = vmatprep.subr.mxu0 0.0
      %2078 = vmatpush1.msra.mxu0 0.0
      %2079 = vmatprep.subr.mxu0 0.0
      %2080 = vmatpush1.msra.mxu0 0.0
      %2081 = vmatprep.subr.mxu0 0.0
      %2082 = vmatpush1.msra.mxu0 0.0
      %2083 = vmatprep.subr.mxu0 0.0
      %2084 = vmatpush1.msra.mxu0 0.0
      %2085 = vmatprep.subr.mxu0 0.0
      %2086 = vmatpush1.msra.mxu0 0.0
      %2087 = vmatprep.subr.mxu0 0.0
      %2088 = vmatpush1.msra.mxu0 0.0
      %2089 = vmatprep.subr.mxu0 0.0
      %2090 = vmatpush1.msra.mxu0 0.0
      %2091 = vmatprep.subr.mxu0 0.0
      %2092 = vmatpush1.msra.mxu0 0.0
      %2093 = vmatprep.subr.mxu0 0.0
      %2094 = vmatpush1.msra.mxu0 0.0
      %2095 = vmatprep.subr.mxu0 0.0
      %2096 = vmatpush1.msra.mxu0 0.0
      %2097 = vmatprep.subr.mxu0 0.0
      %2098 = vmatpush1.msra.mxu0 0.0
      %2099 = vmatprep.subr.mxu0 0.0
      %2100 = vmatpush1.msra.mxu0 0.0
      %2101 = vmatprep.subr.mxu0 0.0
      %2102 = vmatpush1.msra.mxu0 0.0
      %2103 = vmatprep.subr.mxu0 0.0
      %2104 = vmatpush1.msra.mxu0 0.0
      %2105 = vmatprep.subr.mxu0 0.0
      %2106 = vmatpush1.msra.mxu0 0.0
      %2107 = vmatprep.subr.mxu0 0.0
      %2108 = vmatpush1.msra.mxu0 0.0
      %2109 = vmatprep.subr.mxu0 0.0
      %2110 = vmatpush1.msra.mxu0 0.0
      %2111 = vmatprep.subr.mxu0 0.0
      %2112 = vmatpush1.msra.mxu0 0.0
      %2113 = vmatprep.subr.mxu0 0.0
      %2114 = vmatpush1.msra.mxu0 0.0
      %2115 = vmatprep.subr.mxu0 0.0
      %2116 = vmatpush1.msra.mxu0 0.0
      %2117 = vmatprep.subr.mxu0 0.0
      %2118 = vmatpush1.msra.mxu0 0.0
      %2119 = vmatprep.subr.mxu0 0.0
      %2120 = vmatpush1.msra.mxu0 0.0
      %2121 = vmatprep.subr.mxu0 0.0
      %2122 = vmatpush1.msra.mxu0 0.0
      %2123 = vmatprep.mubr.f32.mxu0 0.0
      %2124 = vmatmul.mubr.f32.gmra.mrb[0].mxu0 %v2057
      %v2125 = vpop.f32.mrb[0].mxu0
      %v2126 = vadd.f32 %v958, %v2125
      %v2127 = vpop.f32.mrb[0].mxu0
      %2128 = vdwg.mxu0
      %v2130 = vsel %vm376, %v336, 0
      %2132 = vmatprep.subr.mxu0 0.0
      %2133 = vmatpush1.msra.mxu0 %v368
      %2134 = vmatprep.subr.mxu0 0.0
      %2135 = vmatpush1.msra.mxu0 0.0
      %2136 = vmatprep.subr.mxu0 0.0
      %2137 = vmatpush1.msra.mxu0 0.0
      %2138 = vmatprep.subr.mxu0 0.0
      %2139 = vmatpush1.msra.mxu0 0.0
      %2140 = vmatprep.subr.mxu0 0.0
      %2141 = vmatpush1.msra.mxu0 0.0
      %2142 = vmatprep.subr.mxu0 0.0
      %2143 = vmatpush1.msra.mxu0 0.0
      %2144 = vmatprep.subr.mxu0 0.0
      %2145 = vmatpush1.msra.mxu0 0.0
      %2146 = vmatprep.subr.mxu0 0.0
      %2147 = vmatpush1.msra.mxu0 0.0
      %2148 = vmatprep.subr.mxu0 0.0
      %2149 = vmatpush1.msra.mxu0 0.0
      %2150 = vmatprep.subr.mxu0 0.0
      %2151 = vmatpush1.msra.mxu0 0.0
      %2152 = vmatprep.subr.mxu0 0.0
      %2153 = vmatpush1.msra.mxu0 0.0
      %2154 = vmatprep.subr.mxu0 0.0
      %2155 = vmatpush1.msra.mxu0 0.0
      %2156 = vmatprep.subr.mxu0 0.0
      %2157 = vmatpush1.msra.mxu0 0.0
      %2158 = vmatprep.subr.mxu0 0.0
      %2159 = vmatpush1.msra.mxu0 0.0
      %2160 = vmatprep.subr.mxu0 0.0
      %2161 = vmatpush1.msra.mxu0 0.0
      %2162 = vmatprep.subr.mxu0 0.0
      %2163 = vmatpush1.msra.mxu0 0.0
      %2164 = vmatprep.subr.mxu0 0.0
      %2165 = vmatpush1.msra.mxu0 0.0
      %2166 = vmatprep.subr.mxu0 0.0
      %2167 = vmatpush1.msra.mxu0 0.0
      %2168 = vmatprep.subr.mxu0 0.0
      %2169 = vmatpush1.msra.mxu0 0.0
      %2170 = vmatprep.subr.mxu0 0.0
      %2171 = vmatpush1.msra.mxu0 0.0
      %2172 = vmatprep.subr.mxu0 0.0
      %2173 = vmatpush1.msra.mxu0 0.0
      %2174 = vmatprep.subr.mxu0 0.0
      %2175 = vmatpush1.msra.mxu0 0.0
      %2176 = vmatprep.subr.mxu0 0.0
      %2177 = vmatpush1.msra.mxu0 0.0
      %2178 = vmatprep.subr.mxu0 0.0
      %2179 = vmatpush1.msra.mxu0 0.0
      %2180 = vmatprep.subr.mxu0 0.0
      %2181 = vmatpush1.msra.mxu0 0.0
      %2182 = vmatprep.subr.mxu0 0.0
      %2183 = vmatpush1.msra.mxu0 0.0
      %2184 = vmatprep.subr.mxu0 0.0
      %2185 = vmatpush1.msra.mxu0 0.0
      %2186 = vmatprep.subr.mxu0 0.0
      %2187 = vmatpush1.msra.mxu0 0.0
      %2188 = vmatprep.subr.mxu0 0.0
      %2189 = vmatpush1.msra.mxu0 0.0
      %2190 = vmatprep.subr.mxu0 0.0
      %2191 = vmatpush1.msra.mxu0 0.0
      %2192 = vmatprep.subr.mxu0 0.0
      %2193 = vmatpush1.msra.mxu0 0.0
      %2194 = vmatprep.subr.mxu0 0.0
      %2195 = vmatpush1.msra.mxu0 0.0
      %2196 = vmatprep.mubr.f32.mxu0 0.0
      %2197 = vmatmul.mubr.f32.gmra.mrb[0].mxu0 %v2130
      %v2198 = vpop.f32.mrb[0].mxu0
      %v2199 = vadd.f32 %v1031, %v2198
      %v2200 = vpop.f32.mrb[0].mxu0
      %2201 = vdwg.mxu0
      %v2203 = vsel %vm376, %v337, 0
      %2205 = vmatprep.subr.mxu0 0.0
      %2206 = vmatpush1.msra.mxu0 %v369
      %2207 = vmatprep.subr.mxu0 0.0
      %2208 = vmatpush1.msra.mxu0 0.0
      %2209 = vmatprep.subr.mxu0 0.0
      %2210 = vmatpush1.msra.mxu0 0.0
      %2211 = vmatprep.subr.mxu0 0.0
      %2212 = vmatpush1.msra.mxu0 0.0
      %2213 = vmatprep.subr.mxu0 0.0
      %2214 = vmatpush1.msra.mxu0 0.0
      %2215 = vmatprep.subr.mxu0 0.0
      %2216 = vmatpush1.msra.mxu0 0.0
      %2217 = vmatprep.subr.mxu0 0.0
      %2218 = vmatpush1.msra.mxu0 0.0
      %2219 = vmatprep.subr.mxu0 0.0
      %2220 = vmatpush1.msra.mxu0 0.0
      %2221 = vmatprep.subr.mxu0 0.0
      %2222 = vmatpush1.msra.mxu0 0.0
      %2223 = vmatprep.subr.mxu0 0.0
      %2224 = vmatpush1.msra.mxu0 0.0
      %2225 = vmatprep.subr.mxu0 0.0
      %2226 = vmatpush1.msra.mxu0 0.0
      %2227 = vmatprep.subr.mxu0 0.0
      %2228 = vmatpush1.msra.mxu0 0.0
      %2229 = vmatprep.subr.mxu0 0.0
      %2230 = vmatpush1.msra.mxu0 0.0
      %2231 = vmatprep.subr.mxu0 0.0
      %2232 = vmatpush1.msra.mxu0 0.0
      %2233 = vmatprep.subr.mxu0 0.0
      %2234 = vmatpush1.msra.mxu0 0.0
      %2235 = vmatprep.subr.mxu0 0.0
      %2236 = vmatpush1.msra.mxu0 0.0
      %2237 = vmatprep.subr.mxu0 0.0
      %2238 = vmatpush1.msra.mxu0 0.0
      %2239 = vmatprep.subr.mxu0 0.0
      %2240 = vmatpush1.msra.mxu0 0.0
      %2241 = vmatprep.subr.mxu0 0.0
      %2242 = vmatpush1.msra.mxu0 0.0
      %2243 = vmatprep.subr.mxu0 0.0
      %2244 = vmatpush1.msra.mxu0 0.0
      %2245 = vmatprep.subr.mxu0 0.0
      %2246 = vmatpush1.msra.mxu0 0.0
      %2247 = vmatprep.subr.mxu0 0.0
      %2248 = vmatpush1.msra.mxu0 0.0
      %2249 = vmatprep.subr.mxu0 0.0
      %2250 = vmatpush1.msra.mxu0 0.0
      %2251 = vmatprep.subr.mxu0 0.0
      %2252 = vmatpush1.msra.mxu0 0.0
      %2253 = vmatprep.subr.mxu0 0.0
      %2254 = vmatpush1.msra.mxu0 0.0
      %2255 = vmatprep.subr.mxu0 0.0
      %2256 = vmatpush1.msra.mxu0 0.0
      %2257 = vmatprep.subr.mxu0 0.0
      %2258 = vmatpush1.msra.mxu0 0.0
      %2259 = vmatprep.subr.mxu0 0.0
      %2260 = vmatpush1.msra.mxu0 0.0
      %2261 = vmatprep.subr.mxu0 0.0
      %2262 = vmatpush1.msra.mxu0 0.0
      %2263 = vmatprep.subr.mxu0 0.0
      %2264 = vmatpush1.msra.mxu0 0.0
      %2265 = vmatprep.subr.mxu0 0.0
      %2266 = vmatpush1.msra.mxu0 0.0
      %2267 = vmatprep.subr.mxu0 0.0
      %2268 = vmatpush1.msra.mxu0 0.0
      %2269 = vmatprep.mubr.f32.mxu0 0.0
      %2270 = vmatmul.mubr.f32.gmra.mrb[0].mxu0 %v2203
      %v2271 = vpop.f32.mrb[0].mxu0
      %v2272 = vadd.f32 %v1104, %v2271
      %v2273 = vpop.f32.mrb[0].mxu0
      %2274 = vdwg.mxu0
      %v2276 = vsel %vm376, %v338, 0
      %2278 = vmatprep.subr.mxu0 0.0
      %2279 = vmatpush1.msra.mxu0 %v370
      %2280 = vmatprep.subr.mxu0 0.0
      %2281 = vmatpush1.msra.mxu0 0.0
      %2282 = vmatprep.subr.mxu0 0.0
      %2283 = vmatpush1.msra.mxu0 0.0
      %2284 = vmatprep.subr.mxu0 0.0
      %2285 = vmatpush1.msra.mxu0 0.0
      %2286 = vmatprep.subr.mxu0 0.0
      %2287 = vmatpush1.msra.mxu0 0.0
      %2288 = vmatprep.subr.mxu0 0.0
      %2289 = vmatpush1.msra.mxu0 0.0
      %2290 = vmatprep.subr.mxu0 0.0
      %2291 = vmatpush1.msra.mxu0 0.0
      %2292 = vmatprep.subr.mxu0 0.0
      %2293 = vmatpush1.msra.mxu0 0.0
      %2294 = vmatprep.subr.mxu0 0.0
      %2295 = vmatpush1.msra.mxu0 0.0
      %2296 = vmatprep.subr.mxu0 0.0
      %2297 = vmatpush1.msra.mxu0 0.0
      %2298 = vmatprep.subr.mxu0 0.0
      %2299 = vmatpush1.msra.mxu0 0.0
      %2300 = vmatprep.subr.mxu0 0.0
      %2301 = vmatpush1.msra.mxu0 0.0
      %2302 = vmatprep.subr.mxu0 0.0
      %2303 = vmatpush1.msra.mxu0 0.0
      %2304 = vmatprep.subr.mxu0 0.0
      %2305 = vmatpush1.msra.mxu0 0.0
      %2306 = vmatprep.subr.mxu0 0.0
      %2307 = vmatpush1.msra.mxu0 0.0
      %2308 = vmatprep.subr.mxu0 0.0
      %2309 = vmatpush1.msra.mxu0 0.0
      %2310 = vmatprep.subr.mxu0 0.0
      %2311 = vmatpush1.msra.mxu0 0.0
      %2312 = vmatprep.subr.mxu0 0.0
      %2313 = vmatpush1.msra.mxu0 0.0
      %2314 = vmatprep.subr.mxu0 0.0
      %2315 = vmatpush1.msra.mxu0 0.0
      %2316 = vmatprep.subr.mxu0 0.0
      %2317 = vmatpush1.msra.mxu0 0.0
      %2318 = vmatprep.subr.mxu0 0.0
      %2319 = vmatpush1.msra.mxu0 0.0
      %2320 = vmatprep.subr.mxu0 0.0
      %2321 = vmatpush1.msra.mxu0 0.0
      %2322 = vmatprep.subr.mxu0 0.0
      %2323 = vmatpush1.msra.mxu0 0.0
      %2324 = vmatprep.subr.mxu0 0.0
      %2325 = vmatpush1.msra.mxu0 0.0
      %2326 = vmatprep.subr.mxu0 0.0
      %2327 = vmatpush1.msra.mxu0 0.0
      %2328 = vmatprep.subr.mxu0 0.0
      %2329 = vmatpush1.msra.mxu0 0.0
      %2330 = vmatprep.subr.mxu0 0.0
      %2331 = vmatpush1.msra.mxu0 0.0
      %2332 = vmatprep.subr.mxu0 0.0
      %2333 = vmatpush1.msra.mxu0 0.0
      %2334 = vmatprep.subr.mxu0 0.0
      %2335 = vmatpush1.msra.mxu0 0.0
      %2336 = vmatprep.subr.mxu0 0.0
      %2337 = vmatpush1.msra.mxu0 0.0
      %2338 = vmatprep.subr.mxu0 0.0
      %2339 = vmatpush1.msra.mxu0 0.0
      %2340 = vmatprep.subr.mxu0 0.0
      %2341 = vmatpush1.msra.mxu0 0.0
      %2342 = vmatprep.mubr.f32.mxu0 0.0
      %2343 = vmatmul.mubr.f32.gmra.mrb[0].mxu0 %v2276
      %v2344 = vpop.f32.mrb[0].mxu0
      %v2345 = vadd.f32 %v1177, %v2344
      %v2346 = vpop.f32.mrb[0].mxu0
      %2347 = vdwg.mxu0
      %v2349 = vsel %vm376, %v339, 0
      %2351 = vmatprep.subr.mxu0 0.0
      %2352 = vmatpush1.msra.mxu0 %v371
      %2353 = vmatprep.subr.mxu0 0.0
      %2354 = vmatpush1.msra.mxu0 0.0
      %2355 = vmatprep.subr.mxu0 0.0
      %2356 = vmatpush1.msra.mxu0 0.0
      %2357 = vmatprep.subr.mxu0 0.0
      %2358 = vmatpush1.msra.mxu0 0.0
      %2359 = vmatprep.subr.mxu0 0.0
      %2360 = vmatpush1.msra.mxu0 0.0
      %2361 = vmatprep.subr.mxu0 0.0
      %2362 = vmatpush1.msra.mxu0 0.0
      %2363 = vmatprep.subr.mxu0 0.0
      %2364 = vmatpush1.msra.mxu0 0.0
      %2365 = vmatprep.subr.mxu0 0.0
      %2366 = vmatpush1.msra.mxu0 0.0
      %2367 = vmatprep.subr.mxu0 0.0
      %2368 = vmatpush1.msra.mxu0 0.0
      %2369 = vmatprep.subr.mxu0 0.0
      %2370 = vmatpush1.msra.mxu0 0.0
      %2371 = vmatprep.subr.mxu0 0.0
      %2372 = vmatpush1.msra.mxu0 0.0
      %2373 = vmatprep.subr.mxu0 0.0
      %2374 = vmatpush1.msra.mxu0 0.0
      %2375 = vmatprep.subr.mxu0 0.0
      %2376 = vmatpush1.msra.mxu0 0.0
      %2377 = vmatprep.subr.mxu0 0.0
      %2378 = vmatpush1.msra.mxu0 0.0
      %2379 = vmatprep.subr.mxu0 0.0
      %2380 = vmatpush1.msra.mxu0 0.0
      %2381 = vmatprep.subr.mxu0 0.0
      %2382 = vmatpush1.msra.mxu0 0.0
      %2383 = vmatprep.subr.mxu0 0.0
      %2384 = vmatpush1.msra.mxu0 0.0
      %2385 = vmatprep.subr.mxu0 0.0
      %2386 = vmatpush1.msra.mxu0 0.0
      %2387 = vmatprep.subr.mxu0 0.0
      %2388 = vmatpush1.msra.mxu0 0.0
      %2389 = vmatprep.subr.mxu0 0.0
      %2390 = vmatpush1.msra.mxu0 0.0
      %2391 = vmatprep.subr.mxu0 0.0
      %2392 = vmatpush1.msra.mxu0 0.0
      %2393 = vmatprep.subr.mxu0 0.0
      %2394 = vmatpush1.msra.mxu0 0.0
      %2395 = vmatprep.subr.mxu0 0.0
      %2396 = vmatpush1.msra.mxu0 0.0
      %2397 = vmatprep.subr.mxu0 0.0
      %2398 = vmatpush1.msra.mxu0 0.0
      %2399 = vmatprep.subr.mxu0 0.0
      %2400 = vmatpush1.msra.mxu0 0.0
      %2401 = vmatprep.subr.mxu0 0.0
      %2402 = vmatpush1.msra.mxu0 0.0
      %2403 = vmatprep.subr.mxu0 0.0
      %2404 = vmatpush1.msra.mxu0 0.0
      %2405 = vmatprep.subr.mxu0 0.0
      %2406 = vmatpush1.msra.mxu0 0.0
      %2407 = vmatprep.subr.mxu0 0.0
      %2408 = vmatpush1.msra.mxu0 0.0
      %2409 = vmatprep.subr.mxu0 0.0
      %2410 = vmatpush1.msra.mxu0 0.0
      %2411 = vmatprep.subr.mxu0 0.0
      %2412 = vmatpush1.msra.mxu0 0.0
      %2413 = vmatprep.subr.mxu0 0.0
      %2414 = vmatpush1.msra.mxu0 0.0
      %2415 = vmatprep.mubr.f32.mxu0 0.0
      %2416 = vmatmul.mubr.f32.gmra.mrb[0].mxu0 %v2349
      %v2417 = vpop.f32.mrb[0].mxu0
      %v2418 = vadd.f32 %v1250, %v2417
      %v2419 = vpop.f32.mrb[0].mxu0
      %2420 = vdwg.mxu0
      %v2422 = vsel %vm376, %v340, 0
      %2424 = vmatprep.subr.mxu0 0.0
      %2425 = vmatpush1.msra.mxu0 %v372
      %2426 = vmatprep.subr.mxu0 0.0
      %2427 = vmatpush1.msra.mxu0 0.0
      %2428 = vmatprep.subr.mxu0 0.0
      %2429 = vmatpush1.msra.mxu0 0.0
      %2430 = vmatprep.subr.mxu0 0.0
      %2431 = vmatpush1.msra.mxu0 0.0
      %2432 = vmatprep.subr.mxu0 0.0
      %2433 = vmatpush1.msra.mxu0 0.0
      %2434 = vmatprep.subr.mxu0 0.0
      %2435 = vmatpush1.msra.mxu0 0.0
      %2436 = vmatprep.subr.mxu0 0.0
      %2437 = vmatpush1.msra.mxu0 0.0
      %2438 = vmatprep.subr.mxu0 0.0
      %2439 = vmatpush1.msra.mxu0 0.0
      %2440 = vmatprep.subr.mxu0 0.0
      %2441 = vmatpush1.msra.mxu0 0.0
      %2442 = vmatprep.subr.mxu0 0.0
      %2443 = vmatpush1.msra.mxu0 0.0
      %2444 = vmatprep.subr.mxu0 0.0
      %2445 = vmatpush1.msra.mxu0 0.0
      %2446 = vmatprep.subr.mxu0 0.0
      %2447 = vmatpush1.msra.mxu0 0.0
      %2448 = vmatprep.subr.mxu0 0.0
      %2449 = vmatpush1.msra.mxu0 0.0
      %2450 = vmatprep.subr.mxu0 0.0
      %2451 = vmatpush1.msra.mxu0 0.0
      %2452 = vmatprep.subr.mxu0 0.0
      %2453 = vmatpush1.msra.mxu0 0.0
      %2454 = vmatprep.subr.mxu0 0.0
      %2455 = vmatpush1.msra.mxu0 0.0
      %2456 = vmatprep.subr.mxu0 0.0
      %2457 = vmatpush1.msra.mxu0 0.0
      %2458 = vmatprep.subr.mxu0 0.0
      %2459 = vmatpush1.msra.mxu0 0.0
      %2460 = vmatprep.subr.mxu0 0.0
      %2461 = vmatpush1.msra.mxu0 0.0
      %2462 = vmatprep.subr.mxu0 0.0
      %2463 = vmatpush1.msra.mxu0 0.0
      %2464 = vmatprep.subr.mxu0 0.0
      %2465 = vmatpush1.msra.mxu0 0.0
      %2466 = vmatprep.subr.mxu0 0.0
      %2467 = vmatpush1.msra.mxu0 0.0
      %2468 = vmatprep.subr.mxu0 0.0
      %2469 = vmatpush1.msra.mxu0 0.0
      %2470 = vmatprep.subr.mxu0 0.0
      %2471 = vmatpush1.msra.mxu0 0.0
      %2472 = vmatprep.subr.mxu0 0.0
      %2473 = vmatpush1.msra.mxu0 0.0
      %2474 = vmatprep.subr.mxu0 0.0
      %2475 = vmatpush1.msra.mxu0 0.0
      %2476 = vmatprep.subr.mxu0 0.0
      %2477 = vmatpush1.msra.mxu0 0.0
      %2478 = vmatprep.subr.mxu0 0.0
      %2479 = vmatpush1.msra.mxu0 0.0
      %2480 = vmatprep.subr.mxu0 0.0
      %2481 = vmatpush1.msra.mxu0 0.0
      %2482 = vmatprep.subr.mxu0 0.0
      %2483 = vmatpush1.msra.mxu0 0.0
      %2484 = vmatprep.subr.mxu0 0.0
      %2485 = vmatpush1.msra.mxu0 0.0
      %2486 = vmatprep.subr.mxu0 0.0
      %2487 = vmatpush1.msra.mxu0 0.0
      %2488 = vmatprep.mubr.f32.mxu0 0.0
      %2489 = vmatmul.mubr.f32.gmra.mrb[0].mxu0 %v2422
      %v2490 = vpop.f32.mrb[0].mxu0
      %v2491 = vadd.f32 %v1323, %v2490
      %v2492 = vpop.f32.mrb[0].mxu0
      %2493 = vdwg.mxu0
      %v2495 = vsel %vm376, %v341, 0
      %2497 = vmatprep.subr.mxu0 0.0
      %2498 = vmatpush1.msra.mxu0 %v373
      %2499 = vmatprep.subr.mxu0 0.0
      %2500 = vmatpush1.msra.mxu0 0.0
      %2501 = vmatprep.subr.mxu0 0.0
      %2502 = vmatpush1.msra.mxu0 0.0
      %2503 = vmatprep.subr.mxu0 0.0
      %2504 = vmatpush1.msra.mxu0 0.0
      %2505 = vmatprep.subr.mxu0 0.0
      %2506 = vmatpush1.msra.mxu0 0.0
      %2507 = vmatprep.subr.mxu0 0.0
      %2508 = vmatpush1.msra.mxu0 0.0
      %2509 = vmatprep.subr.mxu0 0.0
      %2510 = vmatpush1.msra.mxu0 0.0
      %2511 = vmatprep.subr.mxu0 0.0
      %2512 = vmatpush1.msra.mxu0 0.0
      %2513 = vmatprep.subr.mxu0 0.0
      %2514 = vmatpush1.msra.mxu0 0.0
      %2515 = vmatprep.subr.mxu0 0.0
      %2516 = vmatpush1.msra.mxu0 0.0
      %2517 = vmatprep.subr.mxu0 0.0
      %2518 = vmatpush1.msra.mxu0 0.0
      %2519 = vmatprep.subr.mxu0 0.0
      %2520 = vmatpush1.msra.mxu0 0.0
      %2521 = vmatprep.subr.mxu0 0.0
      %2522 = vmatpush1.msra.mxu0 0.0
      %2523 = vmatprep.subr.mxu0 0.0
      %2524 = vmatpush1.msra.mxu0 0.0
      %2525 = vmatprep.subr.mxu0 0.0
      %2526 = vmatpush1.msra.mxu0 0.0
      %2527 = vmatprep.subr.mxu0 0.0
      %2528 = vmatpush1.msra.mxu0 0.0
      %2529 = vmatprep.subr.mxu0 0.0
      %2530 = vmatpush1.msra.mxu0 0.0
      %2531 = vmatprep.subr.mxu0 0.0
      %2532 = vmatpush1.msra.mxu0 0.0
      %2533 = vmatprep.subr.mxu0 0.0
      %2534 = vmatpush1.msra.mxu0 0.0
      %2535 = vmatprep.subr.mxu0 0.0
      %2536 = vmatpush1.msra.mxu0 0.0
      %2537 = vmatprep.subr.mxu0 0.0
      %2538 = vmatpush1.msra.mxu0 0.0
      %2539 = vmatprep.subr.mxu0 0.0
      %2540 = vmatpush1.msra.mxu0 0.0
      %2541 = vmatprep.subr.mxu0 0.0
      %2542 = vmatpush1.msra.mxu0 0.0
      %2543 = vmatprep.subr.mxu0 0.0
      %2544 = vmatpush1.msra.mxu0 0.0
      %2545 = vmatprep.subr.mxu0 0.0
      %2546 = vmatpush1.msra.mxu0 0.0
      %2547 = vmatprep.subr.mxu0 0.0
      %2548 = vmatpush1.msra.mxu0 0.0
      %2549 = vmatprep.subr.mxu0 0.0
      %2550 = vmatpush1.msra.mxu0 0.0
      %2551 = vmatprep.subr.mxu0 0.0
      %2552 = vmatpush1.msra.mxu0 0.0
      %2553 = vmatprep.subr.mxu0 0.0
      %2554 = vmatpush1.msra.mxu0 0.0
      %2555 = vmatprep.subr.mxu0 0.0
      %2556 = vmatpush1.msra.mxu0 0.0
      %2557 = vmatprep.subr.mxu0 0.0
      %2558 = vmatpush1.msra.mxu0 0.0
      %2559 = vmatprep.subr.mxu0 0.0
      %2560 = vmatpush1.msra.mxu0 0.0
      %2561 = vmatprep.mubr.f32.mxu0 0.0
      %2562 = vmatmul.mubr.f32.gmra.mrb[0].mxu0 %v2495
      %v2563 = vpop.f32.mrb[0].mxu0
      %v2564 = vadd.f32 %v1396, %v2563
      %v2565 = vpop.f32.mrb[0].mxu0
      %2566 = vdwg.mxu0
      %v2568 = vsel %vm376, %v342, 0
      %2570 = vmatprep.subr.mxu0 0.0
      %2571 = vmatpush1.msra.mxu0 %v374
      %2572 = vmatprep.subr.mxu0 0.0
      %2573 = vmatpush1.msra.mxu0 0.0
      %2574 = vmatprep.subr.mxu0 0.0
      %2575 = vmatpush1.msra.mxu0 0.0
      %2576 = vmatprep.subr.mxu0 0.0
      %2577 = vmatpush1.msra.mxu0 0.0
      %2578 = vmatprep.subr.mxu0 0.0
      %2579 = vmatpush1.msra.mxu0 0.0
      %2580 = vmatprep.subr.mxu0 0.0
      %2581 = vmatpush1.msra.mxu0 0.0
      %2582 = vmatprep.subr.mxu0 0.0
      %2583 = vmatpush1.msra.mxu0 0.0
      %2584 = vmatprep.subr.mxu0 0.0
      %2585 = vmatpush1.msra.mxu0 0.0
      %2586 = vmatprep.subr.mxu0 0.0
      %2587 = vmatpush1.msra.mxu0 0.0
      %2588 = vmatprep.subr.mxu0 0.0
      %2589 = vmatpush1.msra.mxu0 0.0
      %2590 = vmatprep.subr.mxu0 0.0
      %2591 = vmatpush1.msra.mxu0 0.0
      %2592 = vmatprep.subr.mxu0 0.0
      %2593 = vmatpush1.msra.mxu0 0.0
      %2594 = vmatprep.subr.mxu0 0.0
      %2595 = vmatpush1.msra.mxu0 0.0
      %2596 = vmatprep.subr.mxu0 0.0
      %2597 = vmatpush1.msra.mxu0 0.0
      %2598 = vmatprep.subr.mxu0 0.0
      %2599 = vmatpush1.msra.mxu0 0.0
      %2600 = vmatprep.subr.mxu0 0.0
      %2601 = vmatpush1.msra.mxu0 0.0
      %2602 = vmatprep.subr.mxu0 0.0
      %2603 = vmatpush1.msra.mxu0 0.0
      %2604 = vmatprep.subr.mxu0 0.0
      %2605 = vmatpush1.msra.mxu0 0.0
      %2606 = vmatprep.subr.mxu0 0.0
      %2607 = vmatpush1.msra.mxu0 0.0
      %2608 = vmatprep.subr.mxu0 0.0
      %2609 = vmatpush1.msra.mxu0 0.0
      %2610 = vmatprep.subr.mxu0 0.0
      %2611 = vmatpush1.msra.mxu0 0.0
      %2612 = vmatprep.subr.mxu0 0.0
      %2613 = vmatpush1.msra.mxu0 0.0
      %2614 = vmatprep.subr.mxu0 0.0
      %2615 = vmatpush1.msra.mxu0 0.0
      %2616 = vmatprep.subr.mxu0 0.0
      %2617 = vmatpush1.msra.mxu0 0.0
      %2618 = vmatprep.subr.mxu0 0.0
      %2619 = vmatpush1.msra.mxu0 0.0
      %2620 = vmatprep.subr.mxu0 0.0
      %2621 = vmatpush1.msra.mxu0 0.0
      %2622 = vmatprep.subr.mxu0 0.0
      %2623 = vmatpush1.msra.mxu0 0.0
      %2624 = vmatprep.subr.mxu0 0.0
      %2625 = vmatpush1.msra.mxu0 0.0
      %2626 = vmatprep.subr.mxu0 0.0
      %2627 = vmatpush1.msra.mxu0 0.0
      %2628 = vmatprep.subr.mxu0 0.0
      %2629 = vmatpush1.msra.mxu0 0.0
      %2630 = vmatprep.subr.mxu0 0.0
      %2631 = vmatpush1.msra.mxu0 0.0
      %2632 = vmatprep.subr.mxu0 0.0
      %2633 = vmatpush1.msra.mxu0 0.0
      %2634 = vmatprep.mubr.f32.mxu0 0.0
      %2635 = vmatmul.mubr.f32.gmra.mrb[0].mxu0 %v2568
      %v2636 = vpop.f32.mrb[0].mxu0
      %v2637 = vadd.f32 %v1469, %v2636
      %v2638 = vpop.f32.mrb[0].mxu0
      %2639 = vdwg.mxu0
      %v2641 = vsel %vm376, %v343, 0
      %2643 = vmatprep.subr.mxu0 0.0
      %2644 = vmatpush1.msra.mxu0 %v375
      %2645 = vmatprep.subr.mxu0 0.0
      %2646 = vmatpush1.msra.mxu0 0.0
      %2647 = vmatprep.subr.mxu0 0.0
      %2648 = vmatpush1.msra.mxu0 0.0
      %2649 = vmatprep.subr.mxu0 0.0
      %2650 = vmatpush1.msra.mxu0 0.0
      %2651 = vmatprep.subr.mxu0 0.0
      %2652 = vmatpush1.msra.mxu0 0.0
      %2653 = vmatprep.subr.mxu0 0.0
      %2654 = vmatpush1.msra.mxu0 0.0
      %2655 = vmatprep.subr.mxu0 0.0
      %2656 = vmatpush1.msra.mxu0 0.0
      %2657 = vmatprep.subr.mxu0 0.0
      %2658 = vmatpush1.msra.mxu0 0.0
      %2659 = vmatprep.subr.mxu0 0.0
      %2660 = vmatpush1.msra.mxu0 0.0
      %2661 = vmatprep.subr.mxu0 0.0
      %2662 = vmatpush1.msra.mxu0 0.0
      %2663 = vmatprep.subr.mxu0 0.0
      %2664 = vmatpush1.msra.mxu0 0.0
      %2665 = vmatprep.subr.mxu0 0.0
      %2666 = vmatpush1.msra.mxu0 0.0
      %2667 = vmatprep.subr.mxu0 0.0
      %2668 = vmatpush1.msra.mxu0 0.0
      %2669 = vmatprep.subr.mxu0 0.0
      %2670 = vmatpush1.msra.mxu0 0.0
      %2671 = vmatprep.subr.mxu0 0.0
      %2672 = vmatpush1.msra.mxu0 0.0
      %2673 = vmatprep.subr.mxu0 0.0
      %2674 = vmatpush1.msra.mxu0 0.0
      %2675 = vmatprep.subr.mxu0 0.0
      %2676 = vmatpush1.msra.mxu0 0.0
      %2677 = vmatprep.subr.mxu0 0.0
      %2678 = vmatpush1.msra.mxu0 0.0
      %2679 = vmatprep.subr.mxu0 0.0
      %2680 = vmatpush1.msra.mxu0 0.0
      %2681 = vmatprep.subr.mxu0 0.0
      %2682 = vmatpush1.msra.mxu0 0.0
      %2683 = vmatprep.subr.mxu0 0.0
      %2684 = vmatpush1.msra.mxu0 0.0
      %2685 = vmatprep.subr.mxu0 0.0
      %2686 = vmatpush1.msra.mxu0 0.0
      %2687 = vmatprep.subr.mxu0 0.0
      %2688 = vmatpush1.msra.mxu0 0.0
      %2689 = vmatprep.subr.mxu0 0.0
      %2690 = vmatpush1.msra.mxu0 0.0
      %2691 = vmatprep.subr.mxu0 0.0
      %2692 = vmatpush1.msra.mxu0 0.0
      %2693 = vmatprep.subr.mxu0 0.0
      %2694 = vmatpush1.msra.mxu0 0.0
      %2695 = vmatprep.subr.mxu0 0.0
      %2696 = vmatpush1.msra.mxu0 0.0
      %2697 = vmatprep.subr.mxu0 0.0
      %2698 = vmatpush1.msra.mxu0 0.0
      %2699 = vmatprep.subr.mxu0 0.0
      %2700 = vmatpush1.msra.mxu0 0.0
      %2701 = vmatprep.subr.mxu0 0.0
      %2702 = vmatpush1.msra.mxu0 0.0
      %2703 = vmatprep.subr.mxu0 0.0
      %2704 = vmatpush1.msra.mxu0 0.0
      %2705 = vmatprep.subr.mxu0 0.0
      %2706 = vmatpush1.msra.mxu0 0.0
      %2707 = vmatprep.mubr.f32.mxu0 0.0
      %2708 = vmatmul.mubr.f32.gmra.mrb[0].mxu0 %v2641
      %v2709 = vpop.f32.mrb[0].mxu0
      %v2710 = vadd.f32 %v1542, %v2709
      %v2711 = vpop.f32.mrb[0].mxu0
      %2712 = vdwg.mxu0
      %2713 = vst.msk [vmem:[%s293] sm:$0xff] %vm376, %v1615
      %2714 = vst.msk [vmem:[%s293 + $0x8] sm:$0xff] %vm376, %v1688
      %2715 = vst.msk [vmem:[%s293 + $0x10] sm:$0xff] %vm376, %v1761
      %2716 = vst.msk [vmem:[%s293 + $0x18] sm:$0xff] %vm376, %v1834
      %2717 = vst.msk [vmem:[%s293 + $0x20] sm:$0xff] %vm376, %v1907
      %2718 = vst.msk [vmem:[%s293 + $0x28] sm:$0xff] %vm376, %v1980
      %2719 = vst.msk [vmem:[%s293 + $0x30] sm:$0xff] %vm376, %v2053
      %2720 = vst.msk [vmem:[%s293 + $0x38] sm:$0xff] %vm376, %v2126
      %2721 = vst.msk [vmem:[%s293 + $0x40] sm:$0xff] %vm376, %v2199
      %2722 = vst.msk [vmem:[%s293 + $0x48] sm:$0xff] %vm376, %v2272
      %2723 = vst.msk [vmem:[%s293 + $0x50] sm:$0xff] %vm376, %v2345
      %2724 = vst.msk [vmem:[%s293 + $0x58] sm:$0xff] %vm376, %v2418
      %2725 = vst.msk [vmem:[%s293 + $0x60] sm:$0xff] %vm376, %v2491
      %2726 = vst.msk [vmem:[%s293 + $0x68] sm:$0xff] %vm376, %v2564
      %2727 = vst.msk [vmem:[%s293 + $0x70] sm:$0xff] %vm376, %v2637
      %2728 = vst.msk [vmem:[%s293 + $0x78] sm:$0xff] %vm376, %v2710
      %p2729 = scmp.lt.s32.totalorder %s19, 1
      %s2730 = scalar_select %p2729, %s19, 1
      %p2731 = scmp.lt.s32.totalorder %s20, 0
      %s2732 = scalar_select %p2731, %s20, 0
      %s2733 = smul.addr %s2730, 16
      %s2734 = sadd.s32 %s2732, %s2733
      %s2735 = smul.addr %s2734, 8
      %s2736 = scalar_lea.vmem %s4, %s2735
      // Predicated region
      $region37: #{pallas_forward.18} parent=35 // pred_check
        %p2737 = pneg %p155
      $region38: #{pallas_forward.18} parent=35 // pred_check_branch
        %2739 = sbr.rel (%p2737) target = $region40
      $region39: #{pallas_forward.18} parent=35 // pred_region
        _
      $region40: #{pallas_forward.18} parent=35 // pred_fallthru
        _
    $region36: #{pallas_forward.18} parent=5 // pred_fallthru
      _
    %p2740 = scmp.le.s32.totalorder 2, %s10
    // Predicated region
    $region41: #{pallas_forward.18} parent=5 // pred_check
      %p2741 = pneg %p2740
    $region42: #{pallas_forward.18} parent=5 // pred_check_branch
      %2743 = sbr.rel (%p2741) target = $region44
    $region43: #{pallas_forward.18} parent=5 // pred_region
      %s2744 = ssub.s32 %s10, 2
      // Predicated region
      $region45: #{pallas_forward.18} parent=43 // pred_check
        %p2745 = pneg %p161
      $region46: #{pallas_forward.18} parent=43 // pred_check_branch
        %2747 = sbr.rel (%p2745) target = $region48
      $region47: #{pallas_forward.18} parent=43 // pred_region
        %p2748 = scmp.lt.s32.totalorder %s21, 1
        %s2749 = scalar_select %p2748, %s21, 1
        %p2750 = scmp.lt.s32.totalorder %s22, 0
        %s2751 = scalar_select %p2750, %s22, 0
        %s2752 = smul.addr %s2749, 16
        %s2753 = sadd.s32 %s2751, %s2752
        %s2754 = smul.addr %s2753, 8
        %s2755 = scalar_lea.vmem %s4, %s2754
      $region48: #{pallas_forward.18} parent=43 // pred_fallthru
        _
    $region44: #{pallas_forward.18} parent=5 // pred_fallthru
      _
  $region6: #{pallas_forward.18} parent=0 // loop_footer
    %s14 = sadd.s32 1, %s10
  $region7: #{pallas_forward.18} parent=0 // loop_footer_branch
    %9 = sbr.rel target = $region3
  $region8: #{pallas_forward.18} parent=0 // loop_exit
    _

// kernel: pallas_forward.19
$region0: #{pallas_forward.19}
  #allocation0 [shape = 'u32[]', space=smem, size = 0x4, offset = 0x4, fixed_abs, tag = 'smem constant byte address 0x4 - core index']
  #allocation1 [shape = 'u32[144,128]{1,0:T(1,128)}', space=vmem, size = 0x12000, scoped, tag = 'internal scratch']
  %s0 = inlined_call_operand.vmem [shape: f32[128,16], index: 0, kind: input, shape index: {}]
  %s1 = inlined_call_operand.vmem [shape: f32[128,16], index: 1, kind: input, shape index: {}]
  %s2 = inlined_call_operand.vmem [shape: f32[128,1], index: 2, kind: input, shape index: {}]
  %s3 = inlined_call_operand.vmem [shape: f32[16,16], index: 3, kind: input, shape index: {}]
  %s4 = inlined_call_operand.vmem [shape: f32[1,16], index: 4, kind: input, shape index: {}]
  %s5 = inlined_call_operand.vmem [shape: f32[1,16], index: 5, kind: input, shape index: {}]
  %s6 = inlined_call_operand.vmem [shape: f32[1,16], index: 6, kind: input, shape index: {}]
  %s7 = inlined_call_operand.vmem [shape: f32[16,32], index: 7, kind: input, shape index: {}]
  %s8 = inlined_call_operand.vmem [shape: f32[1,32], index: 8, kind: input, shape index: {}]
  %s9 = inlined_call_operand.vmem [shape: f32[32,16], index: 9, kind: input, shape index: {}]
  %s10 = inlined_call_operand.vmem [shape: f32[1,16], index: 10, kind: input, shape index: {}]
  %s11 = inlined_call_operand.vmem [shape: f32[128,16], index: 11, kind: output, shape index: {}]
  %s12 = sld [smem:[#allocation0]]
  $region54: #{pallas_forward.19} parent=0
    _
  %s14 = ssub.s32 1, %s12
  %s15 = scalar_select 0, %s14, %s12
  // Predicated region
  $region2: #{pallas_forward.19} parent=0 // pred_check
    _
  $region3: #{pallas_forward.19} parent=0 // pred_check_branch
    %17 = sbr.rel (0) target = $region5
  $region4: #{pallas_forward.19} parent=0 // pred_region
    _
  $region5: #{pallas_forward.19} parent=0 // pred_fallthru
    _
  // Predicated region
  $region6: #{pallas_forward.19} parent=0 // pred_check
    _
  $region7: #{pallas_forward.19} parent=0 // pred_check_branch
    %19 = sbr.rel (0) target = $region9
  $region8: #{pallas_forward.19} parent=0 // pred_region
    _
  $region9: #{pallas_forward.19} parent=0 // pred_fallthru
    _
  // Predicated region
  $region10: #{pallas_forward.19} parent=0 // pred_check
    _
  $region11: #{pallas_forward.19} parent=0 // pred_check_branch
    %21 = sbr.rel (0) target = $region13
  $region12: #{pallas_forward.19} parent=0 // pred_region
    _
  $region13: #{pallas_forward.19} parent=0 // pred_fallthru
    _
  // Predicated region
  $region14: #{pallas_forward.19} parent=0 // pred_check
    _
  $region15: #{pallas_forward.19} parent=0 // pred_check_branch
    %23 = sbr.rel (0) target = $region17
  $region16: #{pallas_forward.19} parent=0 // pred_region
    _
  $region17: #{pallas_forward.19} parent=0 // pred_fallthru
    _
  // Predicated region
  $region18: #{pallas_forward.19} parent=0 // pred_check
    _
  $region19: #{pallas_forward.19} parent=0 // pred_check_branch
    %25 = sbr.rel (0) target = $region21
  $region20: #{pallas_forward.19} parent=0 // pred_region
    _
  $region21: #{pallas_forward.19} parent=0 // pred_fallthru
    _
  // Predicated region
  $region22: #{pallas_forward.19} parent=0 // pred_check
    _
  $region23: #{pallas_forward.19} parent=0 // pred_check_branch
    %27 = sbr.rel (0) target = $region25
  $region24: #{pallas_forward.19} parent=0 // pred_region
    _
  $region25: #{pallas_forward.19} parent=0 // pred_fallthru
    _
  // Predicated region
  $region26: #{pallas_forward.19} parent=0 // pred_check
    _
  $region27: #{pallas_forward.19} parent=0 // pred_check_branch
    %29 = sbr.rel (0) target = $region29
  $region28: #{pallas_forward.19} parent=0 // pred_region
    _
  $region29: #{pallas_forward.19} parent=0 // pred_fallthru
    _
  // Predicated region
  $region30: #{pallas_forward.19} parent=0 // pred_check
    _
  $region31: #{pallas_forward.19} parent=0 // pred_check_branch
    %31 = sbr.rel (0) target = $region33
  $region32: #{pallas_forward.19} parent=0 // pred_region
    _
  $region33: #{pallas_forward.19} parent=0 // pred_fallthru
    _
  // Predicated region
  $region34: #{pallas_forward.19} parent=0 // pred_check
    _
  $region35: #{pallas_forward.19} parent=0 // pred_check_branch
    %33 = sbr.rel (0) target = $region37
  $region36: #{pallas_forward.19} parent=0 // pred_region
    _
  $region37: #{pallas_forward.19} parent=0 // pred_fallthru
    _
  // Predicated region
  $region38: #{pallas_forward.19} parent=0 // pred_check
    _
  $region39: #{pallas_forward.19} parent=0 // pred_check_branch
    %35 = sbr.rel (0) target = $region41
  $region40: #{pallas_forward.19} parent=0 // pred_region
    _
  $region41: #{pallas_forward.19} parent=0 // pred_fallthru
    _
  // Predicated region
  $region42: #{pallas_forward.19} parent=0 // pred_check
    _
  $region43: #{pallas_forward.19} parent=0 // pred_check_branch
    %37 = sbr.rel (0) target = $region45
  $region44: #{pallas_forward.19} parent=0 // pred_region
    _
  $region45: #{pallas_forward.19} parent=0 // pred_fallthru
    _
  %v38 = vld [vmem:[%s2] sm:$0xff]
  %v39 = vld [vmem:[%s2 + $0x8] sm:$0xff]
  %v40 = vld [vmem:[%s2 + $0x10] sm:$0xff]
  %v41 = vld [vmem:[%s2 + $0x18] sm:$0xff]
  %v42 = vld [vmem:[%s2 + $0x20] sm:$0xff]
  %v43 = vld [vmem:[%s2 + $0x28] sm:$0xff]
  %v44 = vld [vmem:[%s2 + $0x30] sm:$0xff]
  %v45 = vld [vmem:[%s2 + $0x38] sm:$0xff]
  %v46 = vld [vmem:[%s2 + $0x40] sm:$0xff]
  %v47 = vld [vmem:[%s2 + $0x48] sm:$0xff]
  %v48 = vld [vmem:[%s2 + $0x50] sm:$0xff]
  %v49 = vld [vmem:[%s2 + $0x58] sm:$0xff]
  %v50 = vld [vmem:[%s2 + $0x60] sm:$0xff]
  %v51 = vld [vmem:[%s2 + $0x68] sm:$0xff]
  %v52 = vld [vmem:[%s2 + $0x70] sm:$0xff]
  %v53 = vld [vmem:[%s2 + $0x78] sm:$0xff]
  %v54 = vld [vmem:[%s0] sm:$0xff]
  %v55 = vld [vmem:[%s0 + $0x8] sm:$0xff]
  %v56 = vld [vmem:[%s0 + $0x10] sm:$0xff]
  %v57 = vld [vmem:[%s0 + $0x18] sm:$0xff]
  %v58 = vld [vmem:[%s0 + $0x20] sm:$0xff]
  %v59 = vld [vmem:[%s0 + $0x28] sm:$0xff]
  %v60 = vld [vmem:[%s0 + $0x30] sm:$0xff]
  %v61 = vld [vmem:[%s0 + $0x38] sm:$0xff]
  %v62 = vld [vmem:[%s0 + $0x40] sm:$0xff]
  %v63 = vld [vmem:[%s0 + $0x48] sm:$0xff]
  %v64 = vld [vmem:[%s0 + $0x50] sm:$0xff]
  %v65 = vld [vmem:[%s0 + $0x58] sm:$0xff]
  %v66 = vld [vmem:[%s0 + $0x60] sm:$0xff]
  %v67 = vld [vmem:[%s0 + $0x68] sm:$0xff]
  %v68 = vld [vmem:[%s0 + $0x70] sm:$0xff]
  %v69 = vld [vmem:[%s0 + $0x78] sm:$0xff]
  %v70 = vld [vmem:[%s3] sm:$0xff]
  %v71 = vld [vmem:[%s3 + $0x8] sm:$0xff]
  %v72 = vld [vmem:[%s4] sm:$0x1]
  %v74 = vlaneseq
  %v75 = vshrl.u32 %v74, 7
  %v76 = vsub.s32 0, %v75
  %v77 = vrot.slane %v72, %v76
  %vm79 = vcmask 130048
  %v81 = vsel %vm79, %v54, 0
  %v84 = vsel %vm79, %v55, 0
  %v87 = vsel %vm79, %v56, 0
  %v90 = vsel %vm79, %v57, 0
  %v93 = vsel %vm79, %v58, 0
  %v96 = vsel %vm79, %v59, 0
  %v99 = vsel %vm79, %v60, 0
  %v102 = vsel %vm79, %v61, 0
  %v105 = vsel %vm79, %v62, 0
  %v108 = vsel %vm79, %v63, 0
  %v111 = vsel %vm79, %v64, 0
  %v114 = vsel %vm79, %v65, 0
  %v117 = vsel %vm79, %v66, 0
  %v120 = vsel %vm79, %v67, 0
  %v123 = vsel %vm79, %v68, 0
  %v126 = vsel %vm79, %v69, 0
  %128 = vmatprep.subr.mxu0 0.0
  %129 = vmatpush1.msra.mxu0 %v70
  %130 = vmatprep.subr.mxu0 0.0
  %131 = vmatpush1.msra.mxu0 %v71
  %132 = vmatprep.subr.mxu0 0.0
  %133 = vmatpush1.msra.mxu0 0.0
  %134 = vmatprep.subr.mxu0 0.0
  %135 = vmatpush1.msra.mxu0 0.0
  %136 = vmatprep.subr.mxu0 0.0
  %137 = vmatpush1.msra.mxu0 0.0
  %138 = vmatprep.subr.mxu0 0.0
  %139 = vmatpush1.msra.mxu0 0.0
  %140 = vmatprep.subr.mxu0 0.0
  %141 = vmatpush1.msra.mxu0 0.0
  %142 = vmatprep.subr.mxu0 0.0
  %143 = vmatpush1.msra.mxu0 0.0
  %144 = vmatprep.subr.mxu0 0.0
  %145 = vmatpush1.msra.mxu0 0.0
  %146 = vmatprep.subr.mxu0 0.0
  %147 = vmatpush1.msra.mxu0 0.0
  %148 = vmatprep.subr.mxu0 0.0
  %149 = vmatpush1.msra.mxu0 0.0
  %150 = vmatprep.subr.mxu0 0.0
  %151 = vmatpush1.msra.mxu0 0.0
  %152 = vmatprep.subr.mxu0 0.0
  %153 = vmatpush1.msra.mxu0 0.0
  %154 = vmatprep.subr.mxu0 0.0
  %155 = vmatpush1.msra.mxu0 0.0
  %156 = vmatprep.subr.mxu0 0.0
  %157 = vmatpush1.msra.mxu0 0.0
  %158 = vmatprep.subr.mxu0 0.0
  %159 = vmatpush1.msra.mxu0 0.0
  %160 = vmatprep.subr.mxu0 0.0
  %161 = vmatpush1.msra.mxu0 0.0
  %162 = vmatprep.subr.mxu0 0.0
  %163 = vmatpush1.msra.mxu0 0.0
  %164 = vmatprep.subr.mxu0 0.0
  %165 = vmatpush1.msra.mxu0 0.0
  %166 = vmatprep.subr.mxu0 0.0
  %167 = vmatpush1.msra.mxu0 0.0
  %168 = vmatprep.subr.mxu0 0.0
  %169 = vmatpush1.msra.mxu0 0.0
  %170 = vmatprep.subr.mxu0 0.0
  %171 = vmatpush1.msra.mxu0 0.0
  %172 = vmatprep.subr.mxu0 0.0
  %173 = vmatpush1.msra.mxu0 0.0
  %174 = vmatprep.subr.mxu0 0.0
  %175 = vmatpush1.msra.mxu0 0.0
  %176 = vmatprep.subr.mxu0 0.0
  %177 = vmatpush1.msra.mxu0 0.0
  %178 = vmatprep.subr.mxu0 0.0
  %179 = vmatpush1.msra.mxu0 0.0
  %180 = vmatprep.subr.mxu0 0.0
  %181 = vmatpush1.msra.mxu0 0.0
  %182 = vmatprep.subr.mxu0 0.0
  %183 = vmatpush1.msra.mxu0 0.0
  %184 = vmatprep.subr.mxu0 0.0
  %185 = vmatpush1.msra.mxu0 0.0
  %186 = vmatprep.subr.mxu0 0.0
  %187 = vmatpush1.msra.mxu0 0.0
  %188 = vmatprep.subr.mxu0 0.0
  %189 = vmatpush1.msra.mxu0 0.0
  %190 = vmatprep.subr.mxu0 0.0
  %191 = vmatpush1.msra.mxu0 0.0
  %192 = vmatprep.mubr.f32.mxu0 0.0
  %193 = vmatmul.mubr.f32.gmra.mrb[0].mxu0 %v81
  %v194 = vpop.f32.mrb[0].mxu0
  %v195 = vadd.f32 %v77, %v194
  %v196 = vpop.f32.mrb[0].mxu0
  %197 = vmatprep.mubr.f32.mxu0 0.0
  %198 = vmatmul.mubr.f32.gmra.mrb[0].mxu0 %v84
  %v199 = vpop.f32.mrb[0].mxu0
  %v200 = vadd.f32 %v77, %v199
  %v201 = vpop.f32.mrb[0].mxu0
  %202 = vmatprep.mubr.f32.mxu0 0.0
  %203 = vmatmul.mubr.f32.gmra.mrb[0].mxu0 %v87
  %v204 = vpop.f32.mrb[0].mxu0
  %v205 = vadd.f32 %v77, %v204
  %v206 = vpop.f32.mrb[0].mxu0
  %207 = vmatprep.mubr.f32.mxu0 0.0
  %208 = vmatmul.mubr.f32.gmra.mrb[0].mxu0 %v90
  %v209 = vpop.f32.mrb[0].mxu0
  %v210 = vadd.f32 %v77, %v209
  %v211 = vpop.f32.mrb[0].mxu0
  %212 = vmatprep.mubr.f32.mxu0 0.0
  %213 = vmatmul.mubr.f32.gmra.mrb[0].mxu0 %v93
  %v214 = vpop.f32.mrb[0].mxu0
  %v215 = vadd.f32 %v77, %v214
  %v216 = vpop.f32.mrb[0].mxu0
  %217 = vmatprep.mubr.f32.mxu0 0.0
  %218 = vmatmul.mubr.f32.gmra.mrb[0].mxu0 %v96
  %v219 = vpop.f32.mrb[0].mxu0
  %v220 = vadd.f32 %v77, %v219
  %v221 = vpop.f32.mrb[0].mxu0
  %222 = vmatprep.mubr.f32.mxu0 0.0
  %223 = vmatmul.mubr.f32.gmra.mrb[0].mxu0 %v99
  %v224 = vpop.f32.mrb[0].mxu0
  %v225 = vadd.f32 %v77, %v224
  %v226 = vpop.f32.mrb[0].mxu0
  %227 = vmatprep.mubr.f32.mxu0 0.0
  %228 = vmatmul.mubr.f32.gmra.mrb[0].mxu0 %v102
  %v229 = vpop.f32.mrb[0].mxu0
  %v230 = vadd.f32 %v77, %v229
  %v231 = vpop.f32.mrb[0].mxu0
  %232 = vmatprep.mubr.f32.mxu0 0.0
  %233 = vmatmul.mubr.f32.gmra.mrb[0].mxu0 %v105
  %v234 = vpop.f32.mrb[0].mxu0
  %v235 = vadd.f32 %v77, %v234
  %v236 = vpop.f32.mrb[0].mxu0
  %237 = vmatprep.mubr.f32.mxu0 0.0
  %238 = vmatmul.mubr.f32.gmra.mrb[0].mxu0 %v108
  %v239 = vpop.f32.mrb[0].mxu0
  %v240 = vadd.f32 %v77, %v239
  %v241 = vpop.f32.mrb[0].mxu0
  %242 = vmatprep.mubr.f32.mxu0 0.0
  %243 = vmatmul.mubr.f32.gmra.mrb[0].mxu0 %v111
  %v244 = vpop.f32.mrb[0].mxu0
  %v245 = vadd.f32 %v77, %v244
  %v246 = vpop.f32.mrb[0].mxu0
  %247 = vmatprep.mubr.f32.mxu0 0.0
  %248 = vmatmul.mubr.f32.gmra.mrb[0].mxu0 %v114
  %v249 = vpop.f32.mrb[0].mxu0
  %v250 = vadd.f32 %v77, %v249
  %v251 = vpop.f32.mrb[0].mxu0
  %252 = vmatprep.mubr.f32.mxu0 0.0
  %253 = vmatmul.mubr.f32.gmra.mrb[0].mxu0 %v117
  %v254 = vpop.f32.mrb[0].mxu0
  %v255 = vadd.f32 %v77, %v254
  %v256 = vpop.f32.mrb[0].mxu0
  %257 = vmatprep.mubr.f32.mxu0 0.0
  %258 = vmatmul.mubr.f32.gmra.mrb[0].mxu0 %v120
  %v259 = vpop.f32.mrb[0].mxu0
  %v260 = vadd.f32 %v77, %v259
  %v261 = vpop.f32.mrb[0].mxu0
  %262 = vmatprep.mubr.f32.mxu0 0.0
  %263 = vmatmul.mubr.f32.gmra.mrb[0].mxu0 %v123
  %v264 = vpop.f32.mrb[0].mxu0
  %v265 = vadd.f32 %v77, %v264
  %v266 = vpop.f32.mrb[0].mxu0
  %267 = vmatprep.mubr.f32.mxu0 0.0
  %268 = vmatmul.mubr.f32.gmra.mrb[0].mxu0 %v126
  %v269 = vpop.f32.mrb[0].mxu0
  %v270 = vadd.f32 %v77, %v269
  %v271 = vpop.f32.mrb[0].mxu0
  %272 = vdwg.mxu0
  %274 = vset.pattern.permute.xlu0 0
  %275 = vperm.xlu0 %274, %v38
  %v276 = vpop.permute.xlu0 %275
  %279 = vset.pattern.permute.xlu0 0
  %280 = vperm.xlu0 %279, %v39
  %v281 = vpop.permute.xlu0 %280
  %284 = vset.pattern.permute.xlu0 0
  %285 = vperm.xlu0 %284, %v40
  %v286 = vpop.permute.xlu0 %285
  %289 = vset.pattern.permute.xlu0 0
  %290 = vperm.xlu0 %289, %v41
  %v291 = vpop.permute.xlu0 %290
  %294 = vset.pattern.permute.xlu0 0
  %295 = vperm.xlu0 %294, %v42
  %v296 = vpop.permute.xlu0 %295
  %299 = vset.pattern.permute.xlu0 0
  %300 = vperm.xlu0 %299, %v43
  %v301 = vpop.permute.xlu0 %300
  %304 = vset.pattern.permute.xlu0 0
  %305 = vperm.xlu0 %304, %v44
  %v306 = vpop.permute.xlu0 %305
  %309 = vset.pattern.permute.xlu0 0
  %310 = vperm.xlu0 %309, %v45
  %v311 = vpop.permute.xlu0 %310
  %314 = vset.pattern.permute.xlu0 0
  %315 = vperm.xlu0 %314, %v46
  %v316 = vpop.permute.xlu0 %315
  %319 = vset.pattern.permute.xlu0 0
  %320 = vperm.xlu0 %319, %v47
  %v321 = vpop.permute.xlu0 %320
  %324 = vset.pattern.permute.xlu0 0
  %325 = vperm.xlu0 %324, %v48
  %v326 = vpop.permute.xlu0 %325
  %329 = vset.pattern.permute.xlu0 0
  %330 = vperm.xlu0 %329, %v49
  %v331 = vpop.permute.xlu0 %330
  %334 = vset.pattern.permute.xlu0 0
  %335 = vperm.xlu0 %334, %v50
  %v336 = vpop.permute.xlu0 %335
  %339 = vset.pattern.permute.xlu0 0
  %340 = vperm.xlu0 %339, %v51
  %v341 = vpop.permute.xlu0 %340
  %344 = vset.pattern.permute.xlu0 0
  %345 = vperm.xlu0 %344, %v52
  %v346 = vpop.permute.xlu0 %345
  %349 = vset.pattern.permute.xlu0 0
  %350 = vperm.xlu0 %349, %v53
  %v351 = vpop.permute.xlu0 %350
  %v353 = vmul.f32 %v195, %v276
  %v354 = vmul.f32 %v200, %v281
  %v355 = vmul.f32 %v205, %v286
  %v356 = vmul.f32 %v210, %v291
  %v357 = vmul.f32 %v215, %v296
  %v358 = vmul.f32 %v220, %v301
  %v359 = vmul.f32 %v225, %v306
  %v360 = vmul.f32 %v230, %v311
  %v361 = vmul.f32 %v235, %v316
  %v362 = vmul.f32 %v240, %v321
  %v363 = vmul.f32 %v245, %v326
  %v364 = vmul.f32 %v250, %v331
  %v365 = vmul.f32 %v255, %v336
  %v366 = vmul.f32 %v260, %v341
  %v367 = vmul.f32 %v265, %v346
  %v368 = vmul.f32 %v270, %v351
  %v369 = vld [vmem:[%s1] sm:$0xff]
  %v370 = vld [vmem:[%s1 + $0x8] sm:$0xff]
  %v371 = vld [vmem:[%s1 + $0x10] sm:$0xff]
  %v372 = vld [vmem:[%s1 + $0x18] sm:$0xff]
  %v373 = vld [vmem:[%s1 + $0x20] sm:$0xff]
  %v374 = vld [vmem:[%s1 + $0x28] sm:$0xff]
  %v375 = vld [vmem:[%s1 + $0x30] sm:$0xff]
  %v376 = vld [vmem:[%s1 + $0x38] sm:$0xff]
  %v377 = vld [vmem:[%s1 + $0x40] sm:$0xff]
  %v378 = vld [vmem:[%s1 + $0x48] sm:$0xff]
  %v379 = vld [vmem:[%s1 + $0x50] sm:$0xff]
  %v380 = vld [vmem:[%s1 + $0x58] sm:$0xff]
  %v381 = vld [vmem:[%s1 + $0x60] sm:$0xff]
  %v382 = vld [vmem:[%s1 + $0x68] sm:$0xff]
  %v383 = vld [vmem:[%s1 + $0x70] sm:$0xff]
  %v384 = vld [vmem:[%s1 + $0x78] sm:$0xff]
  %v385 = vadd.f32 %v353, %v369
  %v386 = vadd.f32 %v354, %v370
  %v387 = vadd.f32 %v355, %v371
  %v388 = vadd.f32 %v356, %v372
  %v389 = vadd.f32 %v357, %v373
  %v390 = vadd.f32 %v358, %v374
  %v391 = vadd.f32 %v359, %v375
  %v392 = vadd.f32 %v360, %v376
  %v393 = vadd.f32 %v361, %v377
  %v394 = vadd.f32 %v362, %v378
  %v395 = vadd.f32 %v363, %v379
  %v396 = vadd.f32 %v364, %v380
  %v397 = vadd.f32 %v365, %v381
  %v398 = vadd.f32 %v366, %v382
  %v399 = vadd.f32 %v367, %v383
  %v400 = vadd.f32 %v368, %v384
  %v401 = vld [vmem:[%s5] sm:$0x1]
  %v402 = vld [vmem:[%s6] sm:$0x1]
  %v403 = vsel %vm79, %v385, 0.0
  %404 = vadd.xlane.f32.xlu0 %v403
  %v405 = vpop.xlane.xlu0 %404
  %v406 = vsel %vm79, %v386, 0.0
  %407 = vadd.xlane.f32.xlu0 %v406
  %v408 = vpop.xlane.xlu0 %407
  %v409 = vsel %vm79, %v387, 0.0
  %410 = vadd.xlane.f32.xlu0 %v409
  %v411 = vpop.xlane.xlu0 %410
  %v412 = vsel %vm79, %v388, 0.0
  %413 = vadd.xlane.f32.xlu0 %v412
  %v414 = vpop.xlane.xlu0 %413
  %v415 = vsel %vm79, %v389, 0.0
  %416 = vadd.xlane.f32.xlu0 %v415
  %v417 = vpop.xlane.xlu0 %416
  %v418 = vsel %vm79, %v390, 0.0
  %419 = vadd.xlane.f32.xlu0 %v418
  %v420 = vpop.xlane.xlu0 %419
  %v421 = vsel %vm79, %v391, 0.0
  %422 = vadd.xlane.f32.xlu0 %v421
  %v423 = vpop.xlane.xlu0 %422
  %v424 = vsel %vm79, %v392, 0.0
  %425 = vadd.xlane.f32.xlu0 %v424
  %v426 = vpop.xlane.xlu0 %425
  %v427 = vsel %vm79, %v393, 0.0
  %428 = vadd.xlane.f32.xlu0 %v427
  %v429 = vpop.xlane.xlu0 %428
  %v430 = vsel %vm79, %v394, 0.0
  %431 = vadd.xlane.f32.xlu0 %v430
  %v432 = vpop.xlane.xlu0 %431
  %v433 = vsel %vm79, %v395, 0.0
  %434 = vadd.xlane.f32.xlu0 %v433
  %v435 = vpop.xlane.xlu0 %434
  %v436 = vsel %vm79, %v396, 0.0
  %437 = vadd.xlane.f32.xlu0 %v436
  %v438 = vpop.xlane.xlu0 %437
  %v439 = vsel %vm79, %v397, 0.0
  %440 = vadd.xlane.f32.xlu0 %v439
  %v441 = vpop.xlane.xlu0 %440
  %v442 = vsel %vm79, %v398, 0.0
  %443 = vadd.xlane.f32.xlu0 %v442
  %v444 = vpop.xlane.xlu0 %443
  %v445 = vsel %vm79, %v399, 0.0
  %446 = vadd.xlane.f32.xlu0 %v445
  %v447 = vpop.xlane.xlu0 %446
  %v448 = vsel %vm79, %v400, 0.0
  %449 = vadd.xlane.f32.xlu0 %v448
  %v450 = vpop.xlane.xlu0 %449
  %v451 = vrcp.pop 16.0
  %v452 = vmul.f32 %v405, %v451
  %v453 = vmul.f32 %v408, %v451
  %v454 = vmul.f32 %v411, %v451
  %v455 = vmul.f32 %v414, %v451
  %v456 = vmul.f32 %v417, %v451
  %v457 = vmul.f32 %v420, %v451
  %v458 = vmul.f32 %v423, %v451
  %v459 = vmul.f32 %v426, %v451
  %v460 = vmul.f32 %v429, %v451
  %v461 = vmul.f32 %v432, %v451
  %v462 = vmul.f32 %v435, %v451
  %v463 = vmul.f32 %v438, %v451
  %v464 = vmul.f32 %v441, %v451
  %v465 = vmul.f32 %v444, %v451
  %v466 = vmul.f32 %v447, %v451
  %v467 = vmul.f32 %v450, %v451
  %v468 = vsub.f32 %v385, %v452
  %v469 = vsub.f32 %v386, %v453
  %v470 = vsub.f32 %v387, %v454
  %v471 = vsub.f32 %v388, %v455
  %v472 = vsub.f32 %v389, %v456
  %v473 = vsub.f32 %v390, %v457
  %v474 = vsub.f32 %v391, %v458
  %v475 = vsub.f32 %v392, %v459
  %v476 = vsub.f32 %v393, %v460
  %v477 = vsub.f32 %v394, %v461
  %v478 = vsub.f32 %v395, %v462
  %v479 = vsub.f32 %v396, %v463
  %v480 = vsub.f32 %v397, %v464
  %v481 = vsub.f32 %v398, %v465
  %v482 = vsub.f32 %v399, %v466
  %v483 = vsub.f32 %v400, %v467
  %v484 = vmul.f32 %v468, %v468
  %v485 = vmul.f32 %v469, %v469
  %v486 = vmul.f32 %v470, %v470
  %v487 = vmul.f32 %v471, %v471
  %v488 = vmul.f32 %v472, %v472
  %v489 = vmul.f32 %v473, %v473
  %v490 = vmul.f32 %v474, %v474
  %v491 = vmul.f32 %v475, %v475
  %v492 = vmul.f32 %v476, %v476
  %v493 = vmul.f32 %v477, %v477
  %v494 = vmul.f32 %v478, %v478
  %v495 = vmul.f32 %v479, %v479
  %v496 = vmul.f32 %v480, %v480
  %v497 = vmul.f32 %v481, %v481
  %v498 = vmul.f32 %v482, %v482
  %v499 = vmul.f32 %v483, %v483
  %v500 = vsel %vm79, %v484, 0.0
  %501 = vadd.xlane.f32.xlu0 %v500
  %v502 = vpop.xlane.xlu0 %501
  %v503 = vsel %vm79, %v485, 0.0
  %504 = vadd.xlane.f32.xlu0 %v503
  %v505 = vpop.xlane.xlu0 %504
  %v506 = vsel %vm79, %v486, 0.0
  %507 = vadd.xlane.f32.xlu0 %v506
  %v508 = vpop.xlane.xlu0 %507
  %v509 = vsel %vm79, %v487, 0.0
  %510 = vadd.xlane.f32.xlu0 %v509
  %v511 = vpop.xlane.xlu0 %510
  %v512 = vsel %vm79, %v488, 0.0
  %513 = vadd.xlane.f32.xlu0 %v512
  %v514 = vpop.xlane.xlu0 %513
  %v515 = vsel %vm79, %v489, 0.0
  %516 = vadd.xlane.f32.xlu0 %v515
  %v517 = vpop.xlane.xlu0 %516
  %v518 = vsel %vm79, %v490, 0.0
  %519 = vadd.xlane.f32.xlu0 %v518
  %v520 = vpop.xlane.xlu0 %519
  %v521 = vsel %vm79, %v491, 0.0
  %522 = vadd.xlane.f32.xlu0 %v521
  %v523 = vpop.xlane.xlu0 %522
  %v524 = vsel %vm79, %v492, 0.0
  %525 = vadd.xlane.f32.xlu0 %v524
  %v526 = vpop.xlane.xlu0 %525
  %v527 = vsel %vm79, %v493, 0.0
  %528 = vadd.xlane.f32.xlu0 %v527
  %v529 = vpop.xlane.xlu0 %528
  %v530 = vsel %vm79, %v494, 0.0
  %531 = vadd.xlane.f32.xlu0 %v530
  %v532 = vpop.xlane.xlu0 %531
  %v533 = vsel %vm79, %v495, 0.0
  %534 = vadd.xlane.f32.xlu0 %v533
  %v535 = vpop.xlane.xlu0 %534
  %v536 = vsel %vm79, %v496, 0.0
  %537 = vadd.xlane.f32.xlu0 %v536
  %v538 = vpop.xlane.xlu0 %537
  %v539 = vsel %vm79, %v497, 0.0
  %540 = vadd.xlane.f32.xlu0 %v539
  %v541 = vpop.xlane.xlu0 %540
  %v542 = vsel %vm79, %v498, 0.0
  %543 = vadd.xlane.f32.xlu0 %v542
  %v544 = vpop.xlane.xlu0 %543
  %v545 = vsel %vm79, %v499, 0.0
  %546 = vadd.xlane.f32.xlu0 %v545
  %v547 = vpop.xlane.xlu0 %546
  %v548 = vmul.f32 %v502, %v451
  %v549 = vmul.f32 %v505, %v451
  %v550 = vmul.f32 %v508, %v451
  %v551 = vmul.f32 %v511, %v451
  %v552 = vmul.f32 %v514, %v451
  %v553 = vmul.f32 %v517, %v451
  %v554 = vmul.f32 %v520, %v451
  %v555 = vmul.f32 %v523, %v451
  %v556 = vmul.f32 %v526, %v451
  %v557 = vmul.f32 %v529, %v451
  %v558 = vmul.f32 %v532, %v451
  %v559 = vmul.f32 %v535, %v451
  %v560 = vmul.f32 %v538, %v451
  %v561 = vmul.f32 %v541, %v451
  %v562 = vmul.f32 %v544, %v451
  %v563 = vmul.f32 %v547, %v451
  %v564 = vadd.f32 %v548, 1e-05
  %v565 = vadd.f32 %v549, 1e-05
  %v566 = vadd.f32 %v550, 1e-05
  %v567 = vadd.f32 %v551, 1e-05
  %v568 = vadd.f32 %v552, 1e-05
  %v569 = vadd.f32 %v553, 1e-05
  %v570 = vadd.f32 %v554, 1e-05
  %v571 = vadd.f32 %v555, 1e-05
  %v572 = vadd.f32 %v556, 1e-05
  %v573 = vadd.f32 %v557, 1e-05
  %v574 = vadd.f32 %v558, 1e-05
  %v575 = vadd.f32 %v559, 1e-05
  %v576 = vadd.f32 %v560, 1e-05
  %v577 = vadd.f32 %v561, 1e-05
  %v578 = vadd.f32 %v562, 1e-05
  %v579 = vadd.f32 %v563, 1e-05
  %v580 = vrsqrt.pop %v564
  %v581 = vrsqrt.pop %v565
  %v582 = vrsqrt.pop %v566
  %v583 = vrsqrt.pop %v567
  %v584 = vrsqrt.pop %v568
  %v585 = vrsqrt.pop %v569
  %v586 = vrsqrt.pop %v570
  %v587 = vrsqrt.pop %v571
  %v588 = vrsqrt.pop %v572
  %v589 = vrsqrt.pop %v573
  %v590 = vrsqrt.pop %v574
  %v591 = vrsqrt.pop %v575
  %v592 = vrsqrt.pop %v576
  %v593 = vrsqrt.pop %v577
  %v594 = vrsqrt.pop %v578
  %v595 = vrsqrt.pop %v579
  %v596 = vmul.f32 %v468, %v580
  %v597 = vmul.f32 %v469, %v581
  %v598 = vmul.f32 %v470, %v582
  %v599 = vmul.f32 %v471, %v583
  %v600 = vmul.f32 %v472, %v584
  %v601 = vmul.f32 %v473, %v585
  %v602 = vmul.f32 %v474, %v586
  %v603 = vmul.f32 %v475, %v587
  %v604 = vmul.f32 %v476, %v588
  %v605 = vmul.f32 %v477, %v589
  %v606 = vmul.f32 %v478, %v590
  %v607 = vmul.f32 %v479, %v591
  %v608 = vmul.f32 %v480, %v592
  %v609 = vmul.f32 %v481, %v593
  %v610 = vmul.f32 %v482, %v594
  %v611 = vmul.f32 %v483, %v595
  %v613 = vlaneseq
  %v614 = vshrl.u32 %v613, 7
  %v615 = vsub.s32 0, %v614
  %v616 = vrot.slane %v401, %v615
  %v618 = vmul.f32 %v596, %v616
  %v619 = vmul.f32 %v597, %v616
  %v620 = vmul.f32 %v598, %v616
  %v621 = vmul.f32 %v599, %v616
  %v622 = vmul.f32 %v600, %v616
  %v623 = vmul.f32 %v601, %v616
  %v624 = vmul.f32 %v602, %v616
  %v625 = vmul.f32 %v603, %v616
  %v626 = vmul.f32 %v604, %v616
  %v627 = vmul.f32 %v605, %v616
  %v628 = vmul.f32 %v606, %v616
  %v629 = vmul.f32 %v607, %v616
  %v630 = vmul.f32 %v608, %v616
  %v631 = vmul.f32 %v609, %v616
  %v632 = vmul.f32 %v610, %v616
  %v633 = vmul.f32 %v611, %v616
  %v635 = vlaneseq
  %v636 = vshrl.u32 %v635, 7
  %v637 = vsub.s32 0, %v636
  %v638 = vrot.slane %v402, %v637
  %v640 = vadd.f32 %v618, %v638
  %v641 = vadd.f32 %v619, %v638
  %v642 = vadd.f32 %v620, %v638
  %v643 = vadd.f32 %v621, %v638
  %v644 = vadd.f32 %v622, %v638
  %v645 = vadd.f32 %v623, %v638
  %v646 = vadd.f32 %v624, %v638
  %v647 = vadd.f32 %v625, %v638
  %v648 = vadd.f32 %v626, %v638
  %v649 = vadd.f32 %v627, %v638
  %v650 = vadd.f32 %v628, %v638
  %v651 = vadd.f32 %v629, %v638
  %v652 = vadd.f32 %v630, %v638
  %v653 = vadd.f32 %v631, %v638
  %v654 = vadd.f32 %v632, %v638
  %v655 = vadd.f32 %v633, %v638
  %v656 = vld [vmem:[%s7] sm:$0xff]
  %v657 = vld [vmem:[%s7 + $0x8] sm:$0xff]
  %v658 = vld [vmem:[%s8] sm:$0x1]
  %v660 = vlaneseq
  %v661 = vshrl.u32 %v660, 7
  %v662 = vsub.s32 0, %v661
  %v663 = vrot.slane %v658, %v662
  %v666 = vsel %vm79, %v640, 0
  %v669 = vsel %vm79, %v641, 0
  %v672 = vsel %vm79, %v642, 0
  %v675 = vsel %vm79, %v643, 0
  %v678 = vsel %vm79, %v644, 0
  %v681 = vsel %vm79, %v645, 0
  %v684 = vsel %vm79, %v646, 0
  %v687 = vsel %vm79, %v647, 0
  %v690 = vsel %vm79, %v648, 0
  %v693 = vsel %vm79, %v649, 0
  %v696 = vsel %vm79, %v650, 0
  %v699 = vsel %vm79, %v651, 0
  %v702 = vsel %vm79, %v652, 0
  %v705 = vsel %vm79, %v653, 0
  %v708 = vsel %vm79, %v654, 0
  %v711 = vsel %vm79, %v655, 0
  %713 = vmatprep.subr.mxu0 0.0
  %714 = vmatpush1.msra.mxu0 %v656
  %715 = vmatprep.subr.mxu0 0.0
  %716 = vmatpush1.msra.mxu0 %v657
  %717 = vmatprep.subr.mxu0 0.0
  %718 = vmatpush1.msra.mxu0 0.0
  %719 = vmatprep.subr.mxu0 0.0
  %720 = vmatpush1.msra.mxu0 0.0
  %721 = vmatprep.subr.mxu0 0.0
  %722 = vmatpush1.msra.mxu0 0.0
  %723 = vmatprep.subr.mxu0 0.0
  %724 = vmatpush1.msra.mxu0 0.0
  %725 = vmatprep.subr.mxu0 0.0
  %726 = vmatpush1.msra.mxu0 0.0
  %727 = vmatprep.subr.mxu0 0.0
  %728 = vmatpush1.msra.mxu0 0.0
  %729 = vmatprep.subr.mxu0 0.0
  %730 = vmatpush1.msra.mxu0 0.0
  %731 = vmatprep.subr.mxu0 0.0
  %732 = vmatpush1.msra.mxu0 0.0
  %733 = vmatprep.subr.mxu0 0.0
  %734 = vmatpush1.msra.mxu0 0.0
  %735 = vmatprep.subr.mxu0 0.0
  %736 = vmatpush1.msra.mxu0 0.0
  %737 = vmatprep.subr.mxu0 0.0
  %738 = vmatpush1.msra.mxu0 0.0
  %739 = vmatprep.subr.mxu0 0.0
  %740 = vmatpush1.msra.mxu0 0.0
  %741 = vmatprep.subr.mxu0 0.0
  %742 = vmatpush1.msra.mxu0 0.0
  %743 = vmatprep.subr.mxu0 0.0
  %744 = vmatpush1.msra.mxu0 0.0
  %745 = vmatprep.subr.mxu0 0.0
  %746 = vmatpush1.msra.mxu0 0.0
  %747 = vmatprep.subr.mxu0 0.0
  %748 = vmatpush1.msra.mxu0 0.0
  %749 = vmatprep.subr.mxu0 0.0
  %750 = vmatpush1.msra.mxu0 0.0
  %751 = vmatprep.subr.mxu0 0.0
  %752 = vmatpush1.msra.mxu0 0.0
  %753 = vmatprep.subr.mxu0 0.0
  %754 = vmatpush1.msra.mxu0 0.0
  %755 = vmatprep.subr.mxu0 0.0
  %756 = vmatpush1.msra.mxu0 0.0
  %757 = vmatprep.subr.mxu0 0.0
  %758 = vmatpush1.msra.mxu0 0.0
  %759 = vmatprep.subr.mxu0 0.0
  %760 = vmatpush1.msra.mxu0 0.0
  %761 = vmatprep.subr.mxu0 0.0
  %762 = vmatpush1.msra.mxu0 0.0
  %763 = vmatprep.subr.mxu0 0.0
  %764 = vmatpush1.msra.mxu0 0.0
  %765 = vmatprep.subr.mxu0 0.0
  %766 = vmatpush1.msra.mxu0 0.0
  %767 = vmatprep.subr.mxu0 0.0
  %768 = vmatpush1.msra.mxu0 0.0
  %769 = vmatprep.subr.mxu0 0.0
  %770 = vmatpush1.msra.mxu0 0.0
  %771 = vmatprep.subr.mxu0 0.0
  %772 = vmatpush1.msra.mxu0 0.0
  %773 = vmatprep.subr.mxu0 0.0
  %774 = vmatpush1.msra.mxu0 0.0
  %775 = vmatprep.subr.mxu0 0.0
  %776 = vmatpush1.msra.mxu0 0.0
  %777 = vmatprep.mubr.f32.mxu0 0.0
  %778 = vmatmul.mubr.f32.gmra.mrb[0].mxu0 %v666
  %v779 = vpop.f32.mrb[0].mxu0
  %v780 = vadd.f32 %v663, %v779
  %v781 = vpop.f32.mrb[0].mxu0
  %782 = vmatprep.mubr.f32.mxu0 0.0
  %783 = vmatmul.mubr.f32.gmra.mrb[0].mxu0 %v669
  %v784 = vpop.f32.mrb[0].mxu0
  %v785 = vadd.f32 %v663, %v784
  %v786 = vpop.f32.mrb[0].mxu0
  %787 = vmatprep.mubr.f32.mxu0 0.0
  %788 = vmatmul.mubr.f32.gmra.mrb[0].mxu0 %v672
  %v789 = vpop.f32.mrb[0].mxu0
  %v790 = vadd.f32 %v663, %v789
  %v791 = vpop.f32.mrb[0].mxu0
  %792 = vmatprep.mubr.f32.mxu0 0.0
  %793 = vmatmul.mubr.f32.gmra.mrb[0].mxu0 %v675
  %v794 = vpop.f32.mrb[0].mxu0
  %v795 = vadd.f32 %v663, %v794
  %v796 = vpop.f32.mrb[0].mxu0
  %797 = vmatprep.mubr.f32.mxu0 0.0
  %798 = vmatmul.mubr.f32.gmra.mrb[0].mxu0 %v678
  %v799 = vpop.f32.mrb[0].mxu0
  %v800 = vadd.f32 %v663, %v799
  %v801 = vpop.f32.mrb[0].mxu0
  %802 = vmatprep.mubr.f32.mxu0 0.0
  %803 = vmatmul.mubr.f32.gmra.mrb[0].mxu0 %v681
  %v804 = vpop.f32.mrb[0].mxu0
  %v805 = vadd.f32 %v663, %v804
  %v806 = vpop.f32.mrb[0].mxu0
  %807 = vmatprep.mubr.f32.mxu0 0.0
  %808 = vmatmul.mubr.f32.gmra.mrb[0].mxu0 %v684
  %v809 = vpop.f32.mrb[0].mxu0
  %v810 = vadd.f32 %v663, %v809
  %v811 = vpop.f32.mrb[0].mxu0
  %812 = vmatprep.mubr.f32.mxu0 0.0
  %813 = vmatmul.mubr.f32.gmra.mrb[0].mxu0 %v687
  %v814 = vpop.f32.mrb[0].mxu0
  %v815 = vadd.f32 %v663, %v814
  %v816 = vpop.f32.mrb[0].mxu0
  %817 = vmatprep.mubr.f32.mxu0 0.0
  %818 = vmatmul.mubr.f32.gmra.mrb[0].mxu0 %v690
  %v819 = vpop.f32.mrb[0].mxu0
  %v820 = vadd.f32 %v663, %v819
  %v821 = vpop.f32.mrb[0].mxu0
  %822 = vmatprep.mubr.f32.mxu0 0.0
  %823 = vmatmul.mubr.f32.gmra.mrb[0].mxu0 %v693
  %v824 = vpop.f32.mrb[0].mxu0
  %v825 = vadd.f32 %v663, %v824
  %v826 = vpop.f32.mrb[0].mxu0
  %827 = vmatprep.mubr.f32.mxu0 0.0
  %828 = vmatmul.mubr.f32.gmra.mrb[0].mxu0 %v696
  %v829 = vpop.f32.mrb[0].mxu0
  %v830 = vadd.f32 %v663, %v829
  %v831 = vpop.f32.mrb[0].mxu0
  %832 = vmatprep.mubr.f32.mxu0 0.0
  %833 = vmatmul.mubr.f32.gmra.mrb[0].mxu0 %v699
  %v834 = vpop.f32.mrb[0].mxu0
  %v835 = vadd.f32 %v663, %v834
  %v836 = vpop.f32.mrb[0].mxu0
  %837 = vmatprep.mubr.f32.mxu0 0.0
  %838 = vmatmul.mubr.f32.gmra.mrb[0].mxu0 %v702
  %v839 = vpop.f32.mrb[0].mxu0
  %v840 = vadd.f32 %v663, %v839
  %v841 = vpop.f32.mrb[0].mxu0
  %842 = vmatprep.mubr.f32.mxu0 0.0
  %843 = vmatmul.mubr.f32.gmra.mrb[0].mxu0 %v705
  %v844 = vpop.f32.mrb[0].mxu0
  %v845 = vadd.f32 %v663, %v844
  %v846 = vpop.f32.mrb[0].mxu0
  %847 = vmatprep.mubr.f32.mxu0 0.0
  %848 = vmatmul.mubr.f32.gmra.mrb[0].mxu0 %v708
  %v849 = vpop.f32.mrb[0].mxu0
  %v850 = vadd.f32 %v663, %v849
  %v851 = vpop.f32.mrb[0].mxu0
  %852 = vmatprep.mubr.f32.mxu0 0.0
  %853 = vmatmul.mubr.f32.gmra.mrb[0].mxu0 %v711
  %v854 = vpop.f32.mrb[0].mxu0
  %v855 = vadd.f32 %v663, %v854
  %v856 = vpop.f32.mrb[0].mxu0
  %857 = vdwg.mxu0
  %v858 = vxor.u32 %v780, 2147483648
  %v859 = vxor.u32 %v785, 2147483648
  %v860 = vxor.u32 %v790, 2147483648
  %v861 = vxor.u32 %v795, 2147483648
  %v862 = vxor.u32 %v800, 2147483648
  %v863 = vxor.u32 %v805, 2147483648
  %v864 = vxor.u32 %v810, 2147483648
  %v865 = vxor.u32 %v815, 2147483648
  %v866 = vxor.u32 %v820, 2147483648
  %v867 = vxor.u32 %v825, 2147483648
  %v868 = vxor.u32 %v830, 2147483648
  %v869 = vxor.u32 %v835, 2147483648
  %v870 = vxor.u32 %v840, 2147483648
  %v871 = vxor.u32 %v845, 2147483648
  %v872 = vxor.u32 %v850, 2147483648
  %v873 = vxor.u32 %v855, 2147483648
  %v874 = vmul.f32 %v858, 1.442695
  %v875 = vpow.pop %v874
  %v876 = vmul.f32 %v859, 1.442695
  %v877 = vpow.pop %v876
  %v878 = vmul.f32 %v860, 1.442695
  %v879 = vpow.pop %v878
  %v880 = vmul.f32 %v861, 1.442695
  %v881 = vpow.pop %v880
  %v882 = vmul.f32 %v862, 1.442695
  %v883 = vpow.pop %v882
  %v884 = vmul.f32 %v863, 1.442695
  %v885 = vpow.pop %v884
  %v886 = vmul.f32 %v864, 1.442695
  %v887 = vpow.pop %v886
  %v888 = vmul.f32 %v865, 1.442695
  %v889 = vpow.pop %v888
  %v890 = vmul.f32 %v866, 1.442695
  %v891 = vpow.pop %v890
  %v892 = vmul.f32 %v867, 1.442695
  %v893 = vpow.pop %v892
  %v894 = vmul.f32 %v868, 1.442695
  %v895 = vpow.pop %v894
  %v896 = vmul.f32 %v869, 1.442695
  %v897 = vpow.pop %v896
  %v898 = vmul.f32 %v870, 1.442695
  %v899 = vpow.pop %v898
  %v900 = vmul.f32 %v871, 1.442695
  %v901 = vpow.pop %v900
  %v902 = vmul.f32 %v872, 1.442695
  %v903 = vpow.pop %v902
  %v904 = vmul.f32 %v873, 1.442695
  %v905 = vpow.pop %v904
  %v906 = vadd.f32 %v875, 1.0
  %v907 = vadd.f32 %v877, 1.0
  %v908 = vadd.f32 %v879, 1.0
  %v909 = vadd.f32 %v881, 1.0
  %v910 = vadd.f32 %v883, 1.0
  %v911 = vadd.f32 %v885, 1.0
  %v912 = vadd.f32 %v887, 1.0
  %v913 = vadd.f32 %v889, 1.0
  %v914 = vadd.f32 %v891, 1.0
  %v915 = vadd.f32 %v893, 1.0
  %v916 = vadd.f32 %v895, 1.0
  %v917 = vadd.f32 %v897, 1.0
  %v918 = vadd.f32 %v899, 1.0
  %v919 = vadd.f32 %v901, 1.0
  %v920 = vadd.f32 %v903, 1.0
  %v921 = vadd.f32 %v905, 1.0
  %v922 = vrcp.pop %v906
  %v923 = vmul.f32 1.0, %v922
  %v924 = vrcp.pop %v907
  %v925 = vmul.f32 1.0, %v924
  %v926 = vrcp.pop %v908
  %v927 = vmul.f32 1.0, %v926
  %v928 = vrcp.pop %v909
  %v929 = vmul.f32 1.0, %v928
  %v930 = vrcp.pop %v910
  %v931 = vmul.f32 1.0, %v930
  %v932 = vrcp.pop %v911
  %v933 = vmul.f32 1.0, %v932
  %v934 = vrcp.pop %v912
  %v935 = vmul.f32 1.0, %v934
  %v936 = vrcp.pop %v913
  %v937 = vmul.f32 1.0, %v936
  %v938 = vrcp.pop %v914
  %v939 = vmul.f32 1.0, %v938
  %v940 = vrcp.pop %v915
  %v941 = vmul.f32 1.0, %v940
  %v942 = vrcp.pop %v916
  %v943 = vmul.f32 1.0, %v942
  %v944 = vrcp.pop %v917
  %v945 = vmul.f32 1.0, %v944
  %v946 = vrcp.pop %v918
  %v947 = vmul.f32 1.0, %v946
  %v948 = vrcp.pop %v919
  %v949 = vmul.f32 1.0, %v948
  %v950 = vrcp.pop %v920
  %v951 = vmul.f32 1.0, %v950
  %v952 = vrcp.pop %v921
  %v953 = vmul.f32 1.0, %v952
  %v954 = vmul.f32 %v780, %v923
  %v955 = vmul.f32 %v785, %v925
  %v956 = vmul.f32 %v790, %v927
  %v957 = vmul.f32 %v795, %v929
  %v958 = vmul.f32 %v800, %v931
  %v959 = vmul.f32 %v805, %v933
  %v960 = vmul.f32 %v810, %v935
  %v961 = vmul.f32 %v815, %v937
  %v962 = vmul.f32 %v820, %v939
  %v963 = vmul.f32 %v825, %v941
  %v964 = vmul.f32 %v830, %v943
  %v965 = vmul.f32 %v835, %v945
  %v966 = vmul.f32 %v840, %v947
  %v967 = vmul.f32 %v845, %v949
  %v968 = vmul.f32 %v850, %v951
  %v969 = vmul.f32 %v855, %v953
  %v970 = vld [vmem:[%s9] sm:$0xff]
  %v971 = vld [vmem:[%s9 + $0x8] sm:$0xff]
  %v972 = vld [vmem:[%s9 + $0x10] sm:$0xff]
  %v973 = vld [vmem:[%s9 + $0x18] sm:$0xff]
  %v974 = vld [vmem:[%s10] sm:$0x1]
  %v976 = vlaneseq
  %v977 = vshrl.u32 %v976, 7
  %v978 = vsub.s32 0, %v977
  %v979 = vrot.slane %v974, %v978
  %vm981 = vcmask 261120
  %v983 = vsel %vm981, %v954, 0
  %v986 = vsel %vm981, %v955, 0
  %v989 = vsel %vm981, %v956, 0
  %v992 = vsel %vm981, %v957, 0
  %v995 = vsel %vm981, %v958, 0
  %v998 = vsel %vm981, %v959, 0
  %v1001 = vsel %vm981, %v960, 0
  %v1004 = vsel %vm981, %v961, 0
  %v1007 = vsel %vm981, %v962, 0
  %v1010 = vsel %vm981, %v963, 0
  %v1013 = vsel %vm981, %v964, 0
  %v1016 = vsel %vm981, %v965, 0
  %v1019 = vsel %vm981, %v966, 0
  %v1022 = vsel %vm981, %v967, 0
  %v1025 = vsel %vm981, %v968, 0
  %v1028 = vsel %vm981, %v969, 0
  %1030 = vmatprep.subr.mxu0 0.0
  %1031 = vmatpush1.msra.mxu0 %v970
  %1032 = vmatprep.subr.mxu0 0.0
  %1033 = vmatpush1.msra.mxu0 %v971
  %1034 = vmatprep.subr.mxu0 0.0
  %1035 = vmatpush1.msra.mxu0 %v972
  %1036 = vmatprep.subr.mxu0 0.0
  %1037 = vmatpush1.msra.mxu0 %v973
  %1038 = vmatprep.subr.mxu0 0.0
  %1039 = vmatpush1.msra.mxu0 0.0
  %1040 = vmatprep.subr.mxu0 0.0
  %1041 = vmatpush1.msra.mxu0 0.0
  %1042 = vmatprep.subr.mxu0 0.0
  %1043 = vmatpush1.msra.mxu0 0.0
  %1044 = vmatprep.subr.mxu0 0.0
  %1045 = vmatpush1.msra.mxu0 0.0
  %1046 = vmatprep.subr.mxu0 0.0
  %1047 = vmatpush1.msra.mxu0 0.0
  %1048 = vmatprep.subr.mxu0 0.0
  %1049 = vmatpush1.msra.mxu0 0.0
  %1050 = vmatprep.subr.mxu0 0.0
  %1051 = vmatpush1.msra.mxu0 0.0
  %1052 = vmatprep.subr.mxu0 0.0
  %1053 = vmatpush1.msra.mxu0 0.0
  %1054 = vmatprep.subr.mxu0 0.0
  %1055 = vmatpush1.msra.mxu0 0.0
  %1056 = vmatprep.subr.mxu0 0.0
  %1057 = vmatpush1.msra.mxu0 0.0
  %1058 = vmatprep.subr.mxu0 0.0
  %1059 = vmatpush1.msra.mxu0 0.0
  %1060 = vmatprep.subr.mxu0 0.0
  %1061 = vmatpush1.msra.mxu0 0.0
  %1062 = vmatprep.subr.mxu0 0.0
  %1063 = vmatpush1.msra.mxu0 0.0
  %1064 = vmatprep.subr.mxu0 0.0
  %1065 = vmatpush1.msra.mxu0 0.0
  %1066 = vmatprep.subr.mxu0 0.0
  %1067 = vmatpush1.msra.mxu0 0.0
  %1068 = vmatprep.subr.mxu0 0.0
  %1069 = vmatpush1.msra.mxu0 0.0
  %1070 = vmatprep.subr.mxu0 0.0
  %1071 = vmatpush1.msra.mxu0 0.0
  %1072 = vmatprep.subr.mxu0 0.0
  %1073 = vmatpush1.msra.mxu0 0.0
  %1074 = vmatprep.subr.mxu0 0.0
  %1075 = vmatpush1.msra.mxu0 0.0
  %1076 = vmatprep.subr.mxu0 0.0
  %1077 = vmatpush1.msra.mxu0 0.0
  %1078 = vmatprep.subr.mxu0 0.0
  %1079 = vmatpush1.msra.mxu0 0.0
  %1080 = vmatprep.subr.mxu0 0.0
  %1081 = vmatpush1.msra.mxu0 0.0
  %1082 = vmatprep.subr.mxu0 0.0
  %1083 = vmatpush1.msra.mxu0 0.0
  %1084 = vmatprep.subr.mxu0 0.0
  %1085 = vmatpush1.msra.mxu0 0.0
  %1086 = vmatprep.subr.mxu0 0.0
  %1087 = vmatpush1.msra.mxu0 0.0
  %1088 = vmatprep.subr.mxu0 0.0
  %1089 = vmatpush1.msra.mxu0 0.0
  %1090 = vmatprep.subr.mxu0 0.0
  %1091 = vmatpush1.msra.mxu0 0.0
  %1092 = vmatprep.subr.mxu0 0.0
  %1093 = vmatpush1.msra.mxu0 0.0
  %1094 = vmatprep.mubr.f32.mxu0 0.0
  %1095 = vmatmul.mubr.f32.gmra.mrb[0].mxu0 %v983
  %v1096 = vpop.f32.mrb[0].mxu0
  %v1097 = vadd.f32 %v979, %v1096
  %v1098 = vpop.f32.mrb[0].mxu0
  %1099 = vmatprep.mubr.f32.mxu0 0.0
  %1100 = vmatmul.mubr.f32.gmra.mrb[0].mxu0 %v986
  %v1101 = vpop.f32.mrb[0].mxu0
  %v1102 = vadd.f32 %v979, %v1101
  %v1103 = vpop.f32.mrb[0].mxu0
  %1104 = vmatprep.mubr.f32.mxu0 0.0
  %1105 = vmatmul.mubr.f32.gmra.mrb[0].mxu0 %v989
  %v1106 = vpop.f32.mrb[0].mxu0
  %v1107 = vadd.f32 %v979, %v1106
  %v1108 = vpop.f32.mrb[0].mxu0
  %1109 = vmatprep.mubr.f32.mxu0 0.0
  %1110 = vmatmul.mubr.f32.gmra.mrb[0].mxu0 %v992
  %v1111 = vpop.f32.mrb[0].mxu0
  %v1112 = vadd.f32 %v979, %v1111
  %v1113 = vpop.f32.mrb[0].mxu0
  %1114 = vmatprep.mubr.f32.mxu0 0.0
  %1115 = vmatmul.mubr.f32.gmra.mrb[0].mxu0 %v995
  %v1116 = vpop.f32.mrb[0].mxu0
  %v1117 = vadd.f32 %v979, %v1116
  %v1118 = vpop.f32.mrb[0].mxu0
  %1119 = vmatprep.mubr.f32.mxu0 0.0
  %1120 = vmatmul.mubr.f32.gmra.mrb[0].mxu0 %v998
  %v1121 = vpop.f32.mrb[0].mxu0
  %v1122 = vadd.f32 %v979, %v1121
  %v1123 = vpop.f32.mrb[0].mxu0
  %1124 = vmatprep.mubr.f32.mxu0 0.0
  %1125 = vmatmul.mubr.f32.gmra.mrb[0].mxu0 %v1001
  %v1126 = vpop.f32.mrb[0].mxu0
  %v1127 = vadd.f32 %v979, %v1126
  %v1128 = vpop.f32.mrb[0].mxu0
  %1129 = vmatprep.mubr.f32.mxu0 0.0
  %1130 = vmatmul.mubr.f32.gmra.mrb[0].mxu0 %v1004
  %v1131 = vpop.f32.mrb[0].mxu0
  %v1132 = vadd.f32 %v979, %v1131
  %v1133 = vpop.f32.mrb[0].mxu0
  %1134 = vmatprep.mubr.f32.mxu0 0.0
  %1135 = vmatmul.mubr.f32.gmra.mrb[0].mxu0 %v1007
  %v1136 = vpop.f32.mrb[0].mxu0
  %v1137 = vadd.f32 %v979, %v1136
  %v1138 = vpop.f32.mrb[0].mxu0
  %1139 = vmatprep.mubr.f32.mxu0 0.0
  %1140 = vmatmul.mubr.f32.gmra.mrb[0].mxu0 %v1010
  %v1141 = vpop.f32.mrb[0].mxu0
  %v1142 = vadd.f32 %v979, %v1141
  %v1143 = vpop.f32.mrb[0].mxu0
  %1144 = vmatprep.mubr.f32.mxu0 0.0
  %1145 = vmatmul.mubr.f32.gmra.mrb[0].mxu0 %v1013
  %v1146 = vpop.f32.mrb[0].mxu0
  %v1147 = vadd.f32 %v979, %v1146
  %v1148 = vpop.f32.mrb[0].mxu0
  %1149 = vmatprep.mubr.f32.mxu0 0.0
  %1150 = vmatmul.mubr.f32.gmra.mrb[0].mxu0 %v1016
  %v1151 = vpop.f32.mrb[0].mxu0
  %v1152 = vadd.f32 %v979, %v1151
  %v1153 = vpop.f32.mrb[0].mxu0
  %1154 = vmatprep.mubr.f32.mxu0 0.0
  %1155 = vmatmul.mubr.f32.gmra.mrb[0].mxu0 %v1019
  %v1156 = vpop.f32.mrb[0].mxu0
  %v1157 = vadd.f32 %v979, %v1156
  %v1158 = vpop.f32.mrb[0].mxu0
  %1159 = vmatprep.mubr.f32.mxu0 0.0
  %1160 = vmatmul.mubr.f32.gmra.mrb[0].mxu0 %v1022
  %v1161 = vpop.f32.mrb[0].mxu0
  %v1162 = vadd.f32 %v979, %v1161
  %v1163 = vpop.f32.mrb[0].mxu0
  %1164 = vmatprep.mubr.f32.mxu0 0.0
  %1165 = vmatmul.mubr.f32.gmra.mrb[0].mxu0 %v1025
  %v1166 = vpop.f32.mrb[0].mxu0
  %v1167 = vadd.f32 %v979, %v1166
  %v1168 = vpop.f32.mrb[0].mxu0
  %1169 = vmatprep.mubr.f32.mxu0 0.0
  %1170 = vmatmul.mubr.f32.gmra.mrb[0].mxu0 %v1028
  %v1171 = vpop.f32.mrb[0].mxu0
  %v1172 = vadd.f32 %v979, %v1171
  %v1173 = vpop.f32.mrb[0].mxu0
  %1174 = vdwg.mxu0
  %v1175 = vmul.f32 %v1097, %v276
  %v1176 = vmul.f32 %v1102, %v281
  %v1177 = vmul.f32 %v1107, %v286
  %v1178 = vmul.f32 %v1112, %v291
  %v1179 = vmul.f32 %v1117, %v296
  %v1180 = vmul.f32 %v1122, %v301
  %v1181 = vmul.f32 %v1127, %v306
  %v1182 = vmul.f32 %v1132, %v311
  %v1183 = vmul.f32 %v1137, %v316
  %v1184 = vmul.f32 %v1142, %v321
  %v1185 = vmul.f32 %v1147, %v326
  %v1186 = vmul.f32 %v1152, %v331
  %v1187 = vmul.f32 %v1157, %v336
  %v1188 = vmul.f32 %v1162, %v341
  %v1189 = vmul.f32 %v1167, %v346
  %v1190 = vmul.f32 %v1172, %v351
  %v1191 = vadd.f32 %v1175, %v385
  %v1192 = vadd.f32 %v1176, %v386
  %v1193 = vadd.f32 %v1177, %v387
  %v1194 = vadd.f32 %v1178, %v388
  %v1195 = vadd.f32 %v1179, %v389
  %v1196 = vadd.f32 %v1180, %v390
  %v1197 = vadd.f32 %v1181, %v391
  %v1198 = vadd.f32 %v1182, %v392
  %v1199 = vadd.f32 %v1183, %v393
  %v1200 = vadd.f32 %v1184, %v394
  %v1201 = vadd.f32 %v1185, %v395
  %v1202 = vadd.f32 %v1186, %v396
  %v1203 = vadd.f32 %v1187, %v397
  %v1204 = vadd.f32 %v1188, %v398
  %v1205 = vadd.f32 %v1189, %v399
  %v1206 = vadd.f32 %v1190, %v400
  %1207 = vst.msk [vmem:[%s11] sm:$0xff] %vm79, %v1191
  %1208 = vst.msk [vmem:[%s11 + $0x8] sm:$0xff] %vm79, %v1192
  %1209 = vst.msk [vmem:[%s11 + $0x10] sm:$0xff] %vm79, %v1193
  %1210 = vst.msk [vmem:[%s11 + $0x18] sm:$0xff] %vm79, %v1194
  %1211 = vst.msk [vmem:[%s11 + $0x20] sm:$0xff] %vm79, %v1195
  %1212 = vst.msk [vmem:[%s11 + $0x28] sm:$0xff] %vm79, %v1196
  %1213 = vst.msk [vmem:[%s11 + $0x30] sm:$0xff] %vm79, %v1197
  %1214 = vst.msk [vmem:[%s11 + $0x38] sm:$0xff] %vm79, %v1198
  %1215 = vst.msk [vmem:[%s11 + $0x40] sm:$0xff] %vm79, %v1199
  %1216 = vst.msk [vmem:[%s11 + $0x48] sm:$0xff] %vm79, %v1200
  %1217 = vst.msk [vmem:[%s11 + $0x50] sm:$0xff] %vm79, %v1201
  %1218 = vst.msk [vmem:[%s11 + $0x58] sm:$0xff] %vm79, %v1202
  %1219 = vst.msk [vmem:[%s11 + $0x60] sm:$0xff] %vm79, %v1203
  %1220 = vst.msk [vmem:[%s11 + $0x68] sm:$0xff] %vm79, %v1204
  %1221 = vst.msk [vmem:[%s11 + $0x70] sm:$0xff] %vm79, %v1205
  %1222 = vst.msk [vmem:[%s11 + $0x78] sm:$0xff] %vm79, %v1206
  // Predicated region
  $region46: #{pallas_forward.19} parent=0 // pred_check
    _
  $region47: #{pallas_forward.19} parent=0 // pred_check_branch
    %1224 = sbr.rel (0) target = $region49
  $region48: #{pallas_forward.19} parent=0 // pred_region
    _
  $region49: #{pallas_forward.19} parent=0 // pred_fallthru
    _
  // Predicated region
  $region50: #{pallas_forward.19} parent=0 // pred_check
    _
  $region51: #{pallas_forward.19} parent=0 // pred_check_branch
    %1226 = sbr.rel (0) target = $region53
  $region52: #{pallas_forward.19} parent=0 // pred_region
    _
  $region53: #{pallas_forward.19} parent=0 // pred_fallthru
    _

// kernel: pallas_forward.26
$region0: #{pallas_forward.26}
  #allocation0 [shape = 'u32[]', space=smem, size = 0x4, offset = 0x4, fixed_abs, tag = 'smem constant byte address 0x4 - core index']
  #allocation1 [shape = 'u32[144,128]{1,0:T(1,128)}', space=vmem, size = 0x12000, scoped, tag = 'internal scratch']
  %s0 = inlined_call_operand.vmem [shape: f32[16,32], index: 0, kind: input, shape index: {}]
  %s1 = inlined_call_operand.vmem [shape: f32[16,1], index: 1, kind: input, shape index: {}]
  %s2 = inlined_call_operand.vmem [shape: f32[1,32], index: 2, kind: input, shape index: {}]
  %s3 = inlined_call_operand.vmem [shape: f32[1,32], index: 3, kind: input, shape index: {}]
  %s4 = inlined_call_operand.vmem [shape: f32[32,32], index: 4, kind: input, shape index: {}]
  %s5 = inlined_call_operand.vmem [shape: f32[1,32], index: 5, kind: input, shape index: {}]
  %s6 = inlined_call_operand.vmem [shape: f32[32,32], index: 6, kind: input, shape index: {}]
  %s7 = inlined_call_operand.vmem [shape: f32[1,32], index: 7, kind: input, shape index: {}]
  %s8 = inlined_call_operand.hbm [shape: f32[16,32], index: 8, kind: output, shape index: {}]
  %s9 = sld [smem:[#allocation0]]
  $region42: #{pallas_forward.26} parent=0
    _
  %s11 = ssub.s32 1, %s9
  %s12 = scalar_select 0, %s11, %s9
  $region1: #{pallas_forward.26} parent=0
    #allocation2 [shape = 'u8[8192]{0}', space=vmem, size = 0x2000, scoped, tag = 'output window, operand 0, single buffered']
    #allocation3 [shape = 's32[1]{0}', space=sflag, size = 0x4, scoped, tag = 'scoped memory for pallas_forward.26']
    %13 = vsyncpa [#allocation3], 0
    // Predicated region
    $region2: #{pallas_forward.26} parent=1 // pred_check
      _
    $region3: #{pallas_forward.26} parent=1 // pred_check_branch
      %15 = sbr.rel (0) target = $region5
    $region4: #{pallas_forward.26} parent=1 // pred_region
      _
    $region5: #{pallas_forward.26} parent=1 // pred_fallthru
      _
    // Predicated region
    $region6: #{pallas_forward.26} parent=1 // pred_check
      _
    $region7: #{pallas_forward.26} parent=1 // pred_check_branch
      %17 = sbr.rel (0) target = $region9
    $region8: #{pallas_forward.26} parent=1 // pred_region
      _
    $region9: #{pallas_forward.26} parent=1 // pred_fallthru
      _
    // Predicated region
    $region10: #{pallas_forward.26} parent=1 // pred_check
      _
    $region11: #{pallas_forward.26} parent=1 // pred_check_branch
      %19 = sbr.rel (0) target = $region13
    $region12: #{pallas_forward.26} parent=1 // pred_region
      _
    $region13: #{pallas_forward.26} parent=1 // pred_fallthru
      _
    // Predicated region
    $region14: #{pallas_forward.26} parent=1 // pred_check
      _
    $region15: #{pallas_forward.26} parent=1 // pred_check_branch
      %21 = sbr.rel (0) target = $region17
    $region16: #{pallas_forward.26} parent=1 // pred_region
      _
    $region17: #{pallas_forward.26} parent=1 // pred_fallthru
      _
    // Predicated region
    $region18: #{pallas_forward.26} parent=1 // pred_check
      _
    $region19: #{pallas_forward.26} parent=1 // pred_check_branch
      %23 = sbr.rel (0) target = $region21
    $region20: #{pallas_forward.26} parent=1 // pred_region
      _
    $region21: #{pallas_forward.26} parent=1 // pred_fallthru
      _
    // Predicated region
    $region22: #{pallas_forward.26} parent=1 // pred_check
      _
    $region23: #{pallas_forward.26} parent=1 // pred_check_branch
      %25 = sbr.rel (0) target = $region25
    $region24: #{pallas_forward.26} parent=1 // pred_region
      _
    $region25: #{pallas_forward.26} parent=1 // pred_fallthru
      _
    // Predicated region
    $region26: #{pallas_forward.26} parent=1 // pred_check
      _
    $region27: #{pallas_forward.26} parent=1 // pred_check_branch
      %27 = sbr.rel (0) target = $region29
    $region28: #{pallas_forward.26} parent=1 // pred_region
      _
    $region29: #{pallas_forward.26} parent=1 // pred_fallthru
      _
    // Predicated region
    $region30: #{pallas_forward.26} parent=1 // pred_check
      _
    $region31: #{pallas_forward.26} parent=1 // pred_check_branch
      %29 = sbr.rel (0) target = $region33
    $region32: #{pallas_forward.26} parent=1 // pred_region
      _
    $region33: #{pallas_forward.26} parent=1 // pred_fallthru
      _
    %v30 = vld [vmem:[%s0] sm:$0xff]
    %v31 = vld [vmem:[%s0 + $0x8] sm:$0xff]
    %v32 = vld [vmem:[%s2] sm:$0x1]
    %v33 = vld [vmem:[%s3] sm:$0x1]
    %vm34 = vcmask 261120
    %v35 = vsel %vm34, %v30, 0.0
    %36 = vadd.xlane.f32.xlu0 %v35
    %v37 = vpop.xlane.xlu0 %36
    %v38 = vsel %vm34, %v31, 0.0
    %39 = vadd.xlane.f32.xlu0 %v38
    %v40 = vpop.xlane.xlu0 %39
    %v41 = vrcp.pop 32.0
    %v42 = vmul.f32 %v37, %v41
    %v43 = vmul.f32 %v40, %v41
    %v44 = vsub.f32 %v30, %v42
    %v45 = vsub.f32 %v31, %v43
    %v46 = vmul.f32 %v44, %v44
    %v47 = vmul.f32 %v45, %v45
    %v48 = vsel %vm34, %v46, 0.0
    %49 = vadd.xlane.f32.xlu0 %v48
    %v50 = vpop.xlane.xlu0 %49
    %v51 = vsel %vm34, %v47, 0.0
    %52 = vadd.xlane.f32.xlu0 %v51
    %v53 = vpop.xlane.xlu0 %52
    %v54 = vmul.f32 %v50, %v41
    %v55 = vmul.f32 %v53, %v41
    %v56 = vadd.f32 %v54, 1e-05
    %v57 = vadd.f32 %v55, 1e-05
    %v58 = vrsqrt.pop %v56
    %v59 = vrsqrt.pop %v57
    %v60 = vmul.f32 %v44, %v58
    %v61 = vmul.f32 %v45, %v59
    %v63 = vlaneseq
    %v64 = vshrl.u32 %v63, 7
    %v65 = vsub.s32 0, %v64
    %v66 = vrot.slane %v32, %v65
    %v68 = vmul.f32 %v60, %v66
    %v69 = vmul.f32 %v61, %v66
    %v71 = vlaneseq
    %v72 = vshrl.u32 %v71, 7
    %v73 = vsub.s32 0, %v72
    %v74 = vrot.slane %v33, %v73
    %v76 = vadd.f32 %v68, %v74
    %v77 = vadd.f32 %v69, %v74
    %v78 = vld [vmem:[%s4] sm:$0xff]
    %v79 = vld [vmem:[%s4 + $0x8] sm:$0xff]
    %v80 = vld [vmem:[%s4 + $0x10] sm:$0xff]
    %v81 = vld [vmem:[%s4 + $0x18] sm:$0xff]
    %v82 = vld [vmem:[%s5] sm:$0x1]
    %v84 = vlaneseq
    %v85 = vshrl.u32 %v84, 7
    %v86 = vsub.s32 0, %v85
    %v87 = vrot.slane %v82, %v86
    %v90 = vsel %vm34, %v76, 0
    %v93 = vsel %vm34, %v77, 0
    %95 = vmatprep.subr.mxu0 0.0
    %96 = vmatpush1.msra.mxu0 %v78
    %97 = vmatprep.subr.mxu0 0.0
    %98 = vmatpush1.msra.mxu0 %v79
    %99 = vmatprep.subr.mxu0 0.0
    %100 = vmatpush1.msra.mxu0 %v80
    %101 = vmatprep.subr.mxu0 0.0
    %102 = vmatpush1.msra.mxu0 %v81
    %103 = vmatprep.subr.mxu0 0.0
    %104 = vmatpush1.msra.mxu0 0.0
    %105 = vmatprep.subr.mxu0 0.0
    %106 = vmatpush1.msra.mxu0 0.0
    %107 = vmatprep.subr.mxu0 0.0
    %108 = vmatpush1.msra.mxu0 0.0
    %109 = vmatprep.subr.mxu0 0.0
    %110 = vmatpush1.msra.mxu0 0.0
    %111 = vmatprep.subr.mxu0 0.0
    %112 = vmatpush1.msra.mxu0 0.0
    %113 = vmatprep.subr.mxu0 0.0
    %114 = vmatpush1.msra.mxu0 0.0
    %115 = vmatprep.subr.mxu0 0.0
    %116 = vmatpush1.msra.mxu0 0.0
    %117 = vmatprep.subr.mxu0 0.0
    %118 = vmatpush1.msra.mxu0 0.0
    %119 = vmatprep.subr.mxu0 0.0
    %120 = vmatpush1.msra.mxu0 0.0
    %121 = vmatprep.subr.mxu0 0.0
    %122 = vmatpush1.msra.mxu0 0.0
    %123 = vmatprep.subr.mxu0 0.0
    %124 = vmatpush1.msra.mxu0 0.0
    %125 = vmatprep.subr.mxu0 0.0
    %126 = vmatpush1.msra.mxu0 0.0
    %127 = vmatprep.subr.mxu0 0.0
    %128 = vmatpush1.msra.mxu0 0.0
    %129 = vmatprep.subr.mxu0 0.0
    %130 = vmatpush1.msra.mxu0 0.0
    %131 = vmatprep.subr.mxu0 0.0
    %132 = vmatpush1.msra.mxu0 0.0
    %133 = vmatprep.subr.mxu0 0.0
    %134 = vmatpush1.msra.mxu0 0.0
    %135 = vmatprep.subr.mxu0 0.0
    %136 = vmatpush1.msra.mxu0 0.0
    %137 = vmatprep.subr.mxu0 0.0
    %138 = vmatpush1.msra.mxu0 0.0
    %139 = vmatprep.subr.mxu0 0.0
    %140 = vmatpush1.msra.mxu0 0.0
    %141 = vmatprep.subr.mxu0 0.0
    %142 = vmatpush1.msra.mxu0 0.0
    %143 = vmatprep.subr.mxu0 0.0
    %144 = vmatpush1.msra.mxu0 0.0
    %145 = vmatprep.subr.mxu0 0.0
    %146 = vmatpush1.msra.mxu0 0.0
    %147 = vmatprep.subr.mxu0 0.0
    %148 = vmatpush1.msra.mxu0 0.0
    %149 = vmatprep.subr.mxu0 0.0
    %150 = vmatpush1.msra.mxu0 0.0
    %151 = vmatprep.subr.mxu0 0.0
    %152 = vmatpush1.msra.mxu0 0.0
    %153 = vmatprep.subr.mxu0 0.0
    %154 = vmatpush1.msra.mxu0 0.0
    %155 = vmatprep.subr.mxu0 0.0
    %156 = vmatpush1.msra.mxu0 0.0
    %157 = vmatprep.subr.mxu0 0.0
    %158 = vmatpush1.msra.mxu0 0.0
    %159 = vmatprep.mubr.f32.mxu0 0.0
    %160 = vmatmul.mubr.f32.gmra.mrb[0].mxu0 %v90
    %v161 = vpop.f32.mrb[0].mxu0
    %v162 = vadd.f32 %v87, %v161
    %v163 = vpop.f32.mrb[0].mxu0
    %164 = vmatprep.mubr.f32.mxu0 0.0
    %165 = vmatmul.mubr.f32.gmra.mrb[0].mxu0 %v93
    %v166 = vpop.f32.mrb[0].mxu0
    %v167 = vadd.f32 %v87, %v166
    %v168 = vpop.f32.mrb[0].mxu0
    %169 = vdwg.mxu0
    %v170 = vxor.u32 %v162, 2147483648
    %v171 = vxor.u32 %v167, 2147483648
    %v172 = vmul.f32 %v170, 1.442695
    %v173 = vpow.pop %v172
    %v174 = vmul.f32 %v171, 1.442695
    %v175 = vpow.pop %v174
    %v176 = vadd.f32 %v173, 1.0
    %v177 = vadd.f32 %v175, 1.0
    %v178 = vrcp.pop %v176
    %v179 = vmul.f32 1.0, %v178
    %v180 = vrcp.pop %v177
    %v181 = vmul.f32 1.0, %v180
    %v182 = vmul.f32 %v162, %v179
    %v183 = vmul.f32 %v167, %v181
    %v184 = vld [vmem:[%s6] sm:$0xff]
    %v185 = vld [vmem:[%s6 + $0x8] sm:$0xff]
    %v186 = vld [vmem:[%s6 + $0x10] sm:$0xff]
    %v187 = vld [vmem:[%s6 + $0x18] sm:$0xff]
    %v188 = vld [vmem:[%s7] sm:$0x1]
    %v190 = vlaneseq
    %v191 = vshrl.u32 %v190, 7
    %v192 = vsub.s32 0, %v191
    %v193 = vrot.slane %v188, %v192
    %v196 = vsel %vm34, %v182, 0
    %v199 = vsel %vm34, %v183, 0
    %201 = vmatprep.subr.mxu0 0.0
    %202 = vmatpush1.msra.mxu0 %v184
    %203 = vmatprep.subr.mxu0 0.0
    %204 = vmatpush1.msra.mxu0 %v185
    %205 = vmatprep.subr.mxu0 0.0
    %206 = vmatpush1.msra.mxu0 %v186
    %207 = vmatprep.subr.mxu0 0.0
    %208 = vmatpush1.msra.mxu0 %v187
    %209 = vmatprep.subr.mxu0 0.0
    %210 = vmatpush1.msra.mxu0 0.0
    %211 = vmatprep.subr.mxu0 0.0
    %212 = vmatpush1.msra.mxu0 0.0
    %213 = vmatprep.subr.mxu0 0.0
    %214 = vmatpush1.msra.mxu0 0.0
    %215 = vmatprep.subr.mxu0 0.0
    %216 = vmatpush1.msra.mxu0 0.0
    %217 = vmatprep.subr.mxu0 0.0
    %218 = vmatpush1.msra.mxu0 0.0
    %219 = vmatprep.subr.mxu0 0.0
    %220 = vmatpush1.msra.mxu0 0.0
    %221 = vmatprep.subr.mxu0 0.0
    %222 = vmatpush1.msra.mxu0 0.0
    %223 = vmatprep.subr.mxu0 0.0
    %224 = vmatpush1.msra.mxu0 0.0
    %225 = vmatprep.subr.mxu0 0.0
    %226 = vmatpush1.msra.mxu0 0.0
    %227 = vmatprep.subr.mxu0 0.0
    %228 = vmatpush1.msra.mxu0 0.0
    %229 = vmatprep.subr.mxu0 0.0
    %230 = vmatpush1.msra.mxu0 0.0
    %231 = vmatprep.subr.mxu0 0.0
    %232 = vmatpush1.msra.mxu0 0.0
    %233 = vmatprep.subr.mxu0 0.0
    %234 = vmatpush1.msra.mxu0 0.0
    %235 = vmatprep.subr.mxu0 0.0
    %236 = vmatpush1.msra.mxu0 0.0
    %237 = vmatprep.subr.mxu0 0.0
    %238 = vmatpush1.msra.mxu0 0.0
    %239 = vmatprep.subr.mxu0 0.0
    %240 = vmatpush1.msra.mxu0 0.0
    %241 = vmatprep.subr.mxu0 0.0
    %242 = vmatpush1.msra.mxu0 0.0
    %243 = vmatprep.subr.mxu0 0.0
    %244 = vmatpush1.msra.mxu0 0.0
    %245 = vmatprep.subr.mxu0 0.0
    %246 = vmatpush1.msra.mxu0 0.0
    %247 = vmatprep.subr.mxu0 0.0
    %248 = vmatpush1.msra.mxu0 0.0
    %249 = vmatprep.subr.mxu0 0.0
    %250 = vmatpush1.msra.mxu0 0.0
    %251 = vmatprep.subr.mxu0 0.0
    %252 = vmatpush1.msra.mxu0 0.0
    %253 = vmatprep.subr.mxu0 0.0
    %254 = vmatpush1.msra.mxu0 0.0
    %255 = vmatprep.subr.mxu0 0.0
    %256 = vmatpush1.msra.mxu0 0.0
    %257 = vmatprep.subr.mxu0 0.0
    %258 = vmatpush1.msra.mxu0 0.0
    %259 = vmatprep.subr.mxu0 0.0
    %260 = vmatpush1.msra.mxu0 0.0
    %261 = vmatprep.subr.mxu0 0.0
    %262 = vmatpush1.msra.mxu0 0.0
    %263 = vmatprep.subr.mxu0 0.0
    %264 = vmatpush1.msra.mxu0 0.0
    %265 = vmatprep.mubr.f32.mxu0 0.0
    %266 = vmatmul.mubr.f32.gmra.mrb[0].mxu0 %v196
    %v267 = vpop.f32.mrb[0].mxu0
    %v268 = vadd.f32 %v193, %v267
    %v269 = vpop.f32.mrb[0].mxu0
    %270 = vmatprep.mubr.f32.mxu0 0.0
    %271 = vmatmul.mubr.f32.gmra.mrb[0].mxu0 %v199
    %v272 = vpop.f32.mrb[0].mxu0
    %v273 = vadd.f32 %v193, %v272
    %v274 = vpop.f32.mrb[0].mxu0
    %275 = vdwg.mxu0
    %v276 = vld [vmem:[%s1] sm:$0xff]
    %v277 = vld [vmem:[%s1 + $0x8] sm:$0xff]
    %279 = vset.pattern.permute.xlu0 0
    %280 = vperm.xlu0 %279, %v276
    %v281 = vpop.permute.xlu0 %280
    %284 = vset.pattern.permute.xlu0 0
    %285 = vperm.xlu0 %284, %v277
    %v286 = vpop.permute.xlu0 %285
    %v288 = vmul.f32 %v268, %v281
    %v289 = vmul.f32 %v273, %v286
    %290 = vst.msk [vmem:[#allocation2] sm:$0xff] %vm34, %v288
    %291 = vst.msk [vmem:[#allocation2 + $0x8] sm:$0xff] %vm34, %v289
    // Predicated region
    $region34: #{pallas_forward.26} parent=1 // pred_check
      _
    $region35: #{pallas_forward.26} parent=1 // pred_check_branch
      %293 = sbr.rel (0) target = $region37
    $region36: #{pallas_forward.26} parent=1 // pred_region
      %s295 = ssub.s32 256, 256
      %296 = vsyncadd [#allocation3], %s295
      %s297 = sshll.u32 [#allocation2], 4
      %s298 = int_to_ptr.vmem [resolvable:$true] %s297
      %303 = dma.vmem_to_hbm [thread:$0]  %s298, 256, %s8, [#allocation3], 128, 128, 8
    $region37: #{pallas_forward.26} parent=1 // pred_fallthru
      _
    // Predicated region
    $region38: #{pallas_forward.26} parent=1 // pred_check
      _
    $region39: #{pallas_forward.26} parent=1 // pred_check_branch
      %305 = sbr.rel (0) target = $region41
    $region40: #{pallas_forward.26} parent=1 // pred_region
      %306 = dma.done [#allocation3], 256
    $region41: #{pallas_forward.26} parent=1 // pred_fallthru
      _
    %307 = vsyncpa [#allocation3], 1

// kernel: pallas_forward.16
$region0: #{pallas_forward.16}
  #allocation0 [shape = 'u32[]', space=smem, size = 0x4, offset = 0x4, fixed_abs, tag = 'smem constant byte address 0x4 - core index']
  #allocation1 [shape = 'u32[144,128]{1,0:T(1,128)}', space=vmem, size = 0x12000, scoped, tag = 'internal scratch']
  %s0 = inlined_call_operand.vmem [shape: f32[16,32], index: 0, kind: input, shape index: {}]
  %s1 = inlined_call_operand.vmem [shape: f32[16,1], index: 1, kind: input, shape index: {}]
  %s2 = inlined_call_operand.vmem [shape: f32[1,32], index: 2, kind: input, shape index: {}]
  %s3 = inlined_call_operand.vmem [shape: f32[1,32], index: 3, kind: input, shape index: {}]
  %s4 = inlined_call_operand.vmem [shape: f32[32,64], index: 4, kind: input, shape index: {}]
  %s5 = inlined_call_operand.vmem [shape: f32[1,64], index: 5, kind: input, shape index: {}]
  %s6 = inlined_call_operand.vmem [shape: f32[64,32], index: 6, kind: input, shape index: {}]
  %s7 = inlined_call_operand.vmem [shape: f32[1,32], index: 7, kind: input, shape index: {}]
  %s8 = inlined_call_operand.vmem [shape: f32[16,32], index: 8, kind: output, shape index: {}]
  %s9 = sld [smem:[#allocation0]]
  $region42: #{pallas_forward.16} parent=0
    _
  %s11 = ssub.s32 1, %s9
  %s12 = scalar_select 0, %s11, %s9
  // Predicated region
  $region2: #{pallas_forward.16} parent=0 // pred_check
    _
  $region3: #{pallas_forward.16} parent=0 // pred_check_branch
    %14 = sbr.rel (0) target = $region5
  $region4: #{pallas_forward.16} parent=0 // pred_region
    _
  $region5: #{pallas_forward.16} parent=0 // pred_fallthru
    _
  // Predicated region
  $region6: #{pallas_forward.16} parent=0 // pred_check
    _
  $region7: #{pallas_forward.16} parent=0 // pred_check_branch
    %16 = sbr.rel (0) target = $region9
  $region8: #{pallas_forward.16} parent=0 // pred_region
    _
  $region9: #{pallas_forward.16} parent=0 // pred_fallthru
    _
  // Predicated region
  $region10: #{pallas_forward.16} parent=0 // pred_check
    _
  $region11: #{pallas_forward.16} parent=0 // pred_check_branch
    %18 = sbr.rel (0) target = $region13
  $region12: #{pallas_forward.16} parent=0 // pred_region
    _
  $region13: #{pallas_forward.16} parent=0 // pred_fallthru
    _
  // Predicated region
  $region14: #{pallas_forward.16} parent=0 // pred_check
    _
  $region15: #{pallas_forward.16} parent=0 // pred_check_branch
    %20 = sbr.rel (0) target = $region17
  $region16: #{pallas_forward.16} parent=0 // pred_region
    _
  $region17: #{pallas_forward.16} parent=0 // pred_fallthru
    _
  // Predicated region
  $region18: #{pallas_forward.16} parent=0 // pred_check
    _
  $region19: #{pallas_forward.16} parent=0 // pred_check_branch
    %22 = sbr.rel (0) target = $region21
  $region20: #{pallas_forward.16} parent=0 // pred_region
    _
  $region21: #{pallas_forward.16} parent=0 // pred_fallthru
    _
  // Predicated region
  $region22: #{pallas_forward.16} parent=0 // pred_check
    _
  $region23: #{pallas_forward.16} parent=0 // pred_check_branch
    %24 = sbr.rel (0) target = $region25
  $region24: #{pallas_forward.16} parent=0 // pred_region
    _
  $region25: #{pallas_forward.16} parent=0 // pred_fallthru
    _
  // Predicated region
  $region26: #{pallas_forward.16} parent=0 // pred_check
    _
  $region27: #{pallas_forward.16} parent=0 // pred_check_branch
    %26 = sbr.rel (0) target = $region29
  $region28: #{pallas_forward.16} parent=0 // pred_region
    _
  $region29: #{pallas_forward.16} parent=0 // pred_fallthru
    _
  // Predicated region
  $region30: #{pallas_forward.16} parent=0 // pred_check
    _
  $region31: #{pallas_forward.16} parent=0 // pred_check_branch
    %28 = sbr.rel (0) target = $region33
  $region32: #{pallas_forward.16} parent=0 // pred_region
    _
  $region33: #{pallas_forward.16} parent=0 // pred_fallthru
    _
  %v29 = vld [vmem:[%s0] sm:$0xff]
  %v30 = vld [vmem:[%s0 + $0x8] sm:$0xff]
  %v31 = vld [vmem:[%s2] sm:$0x1]
  %v32 = vld [vmem:[%s3] sm:$0x1]
  %vm33 = vcmask 261120
  %v34 = vsel %vm33, %v29, 0.0
  %35 = vadd.xlane.f32.xlu0 %v34
  %v36 = vpop.xlane.xlu0 %35
  %v37 = vsel %vm33, %v30, 0.0
  %38 = vadd.xlane.f32.xlu0 %v37
  %v39 = vpop.xlane.xlu0 %38
  %v40 = vrcp.pop 32.0
  %v41 = vmul.f32 %v36, %v40
  %v42 = vmul.f32 %v39, %v40
  %v43 = vsub.f32 %v29, %v41
  %v44 = vsub.f32 %v30, %v42
  %v45 = vmul.f32 %v43, %v43
  %v46 = vmul.f32 %v44, %v44
  %v47 = vsel %vm33, %v45, 0.0
  %48 = vadd.xlane.f32.xlu0 %v47
  %v49 = vpop.xlane.xlu0 %48
  %v50 = vsel %vm33, %v46, 0.0
  %51 = vadd.xlane.f32.xlu0 %v50
  %v52 = vpop.xlane.xlu0 %51
  %v53 = vmul.f32 %v49, %v40
  %v54 = vmul.f32 %v52, %v40
  %v55 = vadd.f32 %v53, 1e-05
  %v56 = vadd.f32 %v54, 1e-05
  %v57 = vrsqrt.pop %v55
  %v58 = vrsqrt.pop %v56
  %v59 = vmul.f32 %v43, %v57
  %v60 = vmul.f32 %v44, %v58
  %v62 = vlaneseq
  %v63 = vshrl.u32 %v62, 7
  %v64 = vsub.s32 0, %v63
  %v65 = vrot.slane %v31, %v64
  %v67 = vmul.f32 %v59, %v65
  %v68 = vmul.f32 %v60, %v65
  %v70 = vlaneseq
  %v71 = vshrl.u32 %v70, 7
  %v72 = vsub.s32 0, %v71
  %v73 = vrot.slane %v32, %v72
  %v75 = vadd.f32 %v67, %v73
  %v76 = vadd.f32 %v68, %v73
  %v77 = vld [vmem:[%s4] sm:$0xff]
  %v78 = vld [vmem:[%s4 + $0x8] sm:$0xff]
  %v79 = vld [vmem:[%s4 + $0x10] sm:$0xff]
  %v80 = vld [vmem:[%s4 + $0x18] sm:$0xff]
  %v81 = vld [vmem:[%s5] sm:$0x1]
  %v83 = vlaneseq
  %v84 = vshrl.u32 %v83, 7
  %v85 = vsub.s32 0, %v84
  %v86 = vrot.slane %v81, %v85
  %v89 = vsel %vm33, %v75, 0
  %v92 = vsel %vm33, %v76, 0
  %94 = vmatprep.subr.mxu0 0.0
  %95 = vmatpush1.msra.mxu0 %v77
  %96 = vmatprep.subr.mxu0 0.0
  %97 = vmatpush1.msra.mxu0 %v78
  %98 = vmatprep.subr.mxu0 0.0
  %99 = vmatpush1.msra.mxu0 %v79
  %100 = vmatprep.subr.mxu0 0.0
  %101 = vmatpush1.msra.mxu0 %v80
  %102 = vmatprep.subr.mxu0 0.0
  %103 = vmatpush1.msra.mxu0 0.0
  %104 = vmatprep.subr.mxu0 0.0
  %105 = vmatpush1.msra.mxu0 0.0
  %106 = vmatprep.subr.mxu0 0.0
  %107 = vmatpush1.msra.mxu0 0.0
  %108 = vmatprep.subr.mxu0 0.0
  %109 = vmatpush1.msra.mxu0 0.0
  %110 = vmatprep.subr.mxu0 0.0
  %111 = vmatpush1.msra.mxu0 0.0
  %112 = vmatprep.subr.mxu0 0.0
  %113 = vmatpush1.msra.mxu0 0.0
  %114 = vmatprep.subr.mxu0 0.0
  %115 = vmatpush1.msra.mxu0 0.0
  %116 = vmatprep.subr.mxu0 0.0
  %117 = vmatpush1.msra.mxu0 0.0
  %118 = vmatprep.subr.mxu0 0.0
  %119 = vmatpush1.msra.mxu0 0.0
  %120 = vmatprep.subr.mxu0 0.0
  %121 = vmatpush1.msra.mxu0 0.0
  %122 = vmatprep.subr.mxu0 0.0
  %123 = vmatpush1.msra.mxu0 0.0
  %124 = vmatprep.subr.mxu0 0.0
  %125 = vmatpush1.msra.mxu0 0.0
  %126 = vmatprep.subr.mxu0 0.0
  %127 = vmatpush1.msra.mxu0 0.0
  %128 = vmatprep.subr.mxu0 0.0
  %129 = vmatpush1.msra.mxu0 0.0
  %130 = vmatprep.subr.mxu0 0.0
  %131 = vmatpush1.msra.mxu0 0.0
  %132 = vmatprep.subr.mxu0 0.0
  %133 = vmatpush1.msra.mxu0 0.0
  %134 = vmatprep.subr.mxu0 0.0
  %135 = vmatpush1.msra.mxu0 0.0
  %136 = vmatprep.subr.mxu0 0.0
  %137 = vmatpush1.msra.mxu0 0.0
  %138 = vmatprep.subr.mxu0 0.0
  %139 = vmatpush1.msra.mxu0 0.0
  %140 = vmatprep.subr.mxu0 0.0
  %141 = vmatpush1.msra.mxu0 0.0
  %142 = vmatprep.subr.mxu0 0.0
  %143 = vmatpush1.msra.mxu0 0.0
  %144 = vmatprep.subr.mxu0 0.0
  %145 = vmatpush1.msra.mxu0 0.0
  %146 = vmatprep.subr.mxu0 0.0
  %147 = vmatpush1.msra.mxu0 0.0
  %148 = vmatprep.subr.mxu0 0.0
  %149 = vmatpush1.msra.mxu0 0.0
  %150 = vmatprep.subr.mxu0 0.0
  %151 = vmatpush1.msra.mxu0 0.0
  %152 = vmatprep.subr.mxu0 0.0
  %153 = vmatpush1.msra.mxu0 0.0
  %154 = vmatprep.subr.mxu0 0.0
  %155 = vmatpush1.msra.mxu0 0.0
  %156 = vmatprep.subr.mxu0 0.0
  %157 = vmatpush1.msra.mxu0 0.0
  %158 = vmatprep.mubr.f32.mxu0 0.0
  %159 = vmatmul.mubr.f32.gmra.mrb[0].mxu0 %v89
  %v160 = vpop.f32.mrb[0].mxu0
  %v161 = vadd.f32 %v86, %v160
  %v162 = vpop.f32.mrb[0].mxu0
  %163 = vmatprep.mubr.f32.mxu0 0.0
  %164 = vmatmul.mubr.f32.gmra.mrb[0].mxu0 %v92
  %v165 = vpop.f32.mrb[0].mxu0
  %v166 = vadd.f32 %v86, %v165
  %v167 = vpop.f32.mrb[0].mxu0
  %168 = vdwg.mxu0
  %v169 = vxor.u32 %v161, 2147483648
  %v170 = vxor.u32 %v166, 2147483648
  %v171 = vmul.f32 %v169, 1.442695
  %v172 = vpow.pop %v171
  %v173 = vmul.f32 %v170, 1.442695
  %v174 = vpow.pop %v173
  %v175 = vadd.f32 %v172, 1.0
  %v176 = vadd.f32 %v174, 1.0
  %v177 = vrcp.pop %v175
  %v178 = vmul.f32 1.0, %v177
  %v179 = vrcp.pop %v176
  %v180 = vmul.f32 1.0, %v179
  %v181 = vmul.f32 %v161, %v178
  %v182 = vmul.f32 %v166, %v180
  %v183 = vld [vmem:[%s6] sm:$0xff]
  %v184 = vld [vmem:[%s6 + $0x8] sm:$0xff]
  %v185 = vld [vmem:[%s6 + $0x10] sm:$0xff]
  %v186 = vld [vmem:[%s6 + $0x18] sm:$0xff]
  %v187 = vld [vmem:[%s6 + $0x20] sm:$0xff]
  %v188 = vld [vmem:[%s6 + $0x28] sm:$0xff]
  %v189 = vld [vmem:[%s6 + $0x30] sm:$0xff]
  %v190 = vld [vmem:[%s6 + $0x38] sm:$0xff]
  %v191 = vld [vmem:[%s7] sm:$0x1]
  %v193 = vlaneseq
  %v194 = vshrl.u32 %v193, 7
  %v195 = vsub.s32 0, %v194
  %v196 = vrot.slane %v191, %v195
  %vm198 = vcmask 523264
  %v200 = vsel %vm198, %v181, 0
  %v203 = vsel %vm198, %v182, 0
  %205 = vmatprep.subr.mxu0 0.0
  %206 = vmatpush1.msra.mxu0 %v183
  %207 = vmatprep.subr.mxu0 0.0
  %208 = vmatpush1.msra.mxu0 %v184
  %209 = vmatprep.subr.mxu0 0.0
  %210 = vmatpush1.msra.mxu0 %v185
  %211 = vmatprep.subr.mxu0 0.0
  %212 = vmatpush1.msra.mxu0 %v186
  %213 = vmatprep.subr.mxu0 0.0
  %214 = vmatpush1.msra.mxu0 %v187
  %215 = vmatprep.subr.mxu0 0.0
  %216 = vmatpush1.msra.mxu0 %v188
  %217 = vmatprep.subr.mxu0 0.0
  %218 = vmatpush1.msra.mxu0 %v189
  %219 = vmatprep.subr.mxu0 0.0
  %220 = vmatpush1.msra.mxu0 %v190
  %221 = vmatprep.subr.mxu0 0.0
  %222 = vmatpush1.msra.mxu0 0.0
  %223 = vmatprep.subr.mxu0 0.0
  %224 = vmatpush1.msra.mxu0 0.0
  %225 = vmatprep.subr.mxu0 0.0
  %226 = vmatpush1.msra.mxu0 0.0
  %227 = vmatprep.subr.mxu0 0.0
  %228 = vmatpush1.msra.mxu0 0.0
  %229 = vmatprep.subr.mxu0 0.0
  %230 = vmatpush1.msra.mxu0 0.0
  %231 = vmatprep.subr.mxu0 0.0
  %232 = vmatpush1.msra.mxu0 0.0
  %233 = vmatprep.subr.mxu0 0.0
  %234 = vmatpush1.msra.mxu0 0.0
  %235 = vmatprep.subr.mxu0 0.0
  %236 = vmatpush1.msra.mxu0 0.0
  %237 = vmatprep.subr.mxu0 0.0
  %238 = vmatpush1.msra.mxu0 0.0
  %239 = vmatprep.subr.mxu0 0.0
  %240 = vmatpush1.msra.mxu0 0.0
  %241 = vmatprep.subr.mxu0 0.0
  %242 = vmatpush1.msra.mxu0 0.0
  %243 = vmatprep.subr.mxu0 0.0
  %244 = vmatpush1.msra.mxu0 0.0
  %245 = vmatprep.subr.mxu0 0.0
  %246 = vmatpush1.msra.mxu0 0.0
  %247 = vmatprep.subr.mxu0 0.0
  %248 = vmatpush1.msra.mxu0 0.0
  %249 = vmatprep.subr.mxu0 0.0
  %250 = vmatpush1.msra.mxu0 0.0
  %251 = vmatprep.subr.mxu0 0.0
  %252 = vmatpush1.msra.mxu0 0.0
  %253 = vmatprep.subr.mxu0 0.0
  %254 = vmatpush1.msra.mxu0 0.0
  %255 = vmatprep.subr.mxu0 0.0
  %256 = vmatpush1.msra.mxu0 0.0
  %257 = vmatprep.subr.mxu0 0.0
  %258 = vmatpush1.msra.mxu0 0.0
  %259 = vmatprep.subr.mxu0 0.0
  %260 = vmatpush1.msra.mxu0 0.0
  %261 = vmatprep.subr.mxu0 0.0
  %262 = vmatpush1.msra.mxu0 0.0
  %263 = vmatprep.subr.mxu0 0.0
  %264 = vmatpush1.msra.mxu0 0.0
  %265 = vmatprep.subr.mxu0 0.0
  %266 = vmatpush1.msra.mxu0 0.0
  %267 = vmatprep.subr.mxu0 0.0
  %268 = vmatpush1.msra.mxu0 0.0
  %269 = vmatprep.mubr.f32.mxu0 0.0
  %270 = vmatmul.mubr.f32.gmra.mrb[0].mxu0 %v200
  %v271 = vpop.f32.mrb[0].mxu0
  %v272 = vadd.f32 %v196, %v271
  %v273 = vpop.f32.mrb[0].mxu0
  %274 = vmatprep.mubr.f32.mxu0 0.0
  %275 = vmatmul.mubr.f32.gmra.mrb[0].mxu0 %v203
  %v276 = vpop.f32.mrb[0].mxu0
  %v277 = vadd.f32 %v196, %v276
  %v278 = vpop.f32.mrb[0].mxu0
  %279 = vdwg.mxu0
  %v280 = vld [vmem:[%s1] sm:$0xff]
  %v281 = vld [vmem:[%s1 + $0x8] sm:$0xff]
  %283 = vset.pattern.permute.xlu0 0
  %284 = vperm.xlu0 %283, %v280
  %v285 = vpop.permute.xlu0 %284
  %288 = vset.pattern.permute.xlu0 0
  %289 = vperm.xlu0 %288, %v281
  %v290 = vpop.permute.xlu0 %289
  %v292 = vmul.f32 %v272, %v285
  %v293 = vmul.f32 %v277, %v290
  %v294 = vadd.f32 %v29, %v292
  %v295 = vadd.f32 %v30, %v293
  %296 = vst.msk [vmem:[%s8] sm:$0xff] %vm33, %v294
  %297 = vst.msk [vmem:[%s8 + $0x8] sm:$0xff] %vm33, %v295
  // Predicated region
  $region34: #{pallas_forward.16} parent=0 // pred_check
    _
  $region35: #{pallas_forward.16} parent=0 // pred_check_branch
    %299 = sbr.rel (0) target = $region37
  $region36: #{pallas_forward.16} parent=0 // pred_region
    _
  $region37: #{pallas_forward.16} parent=0 // pred_fallthru
    _
  // Predicated region
  $region38: #{pallas_forward.16} parent=0 // pred_check
    _
  $region39: #{pallas_forward.16} parent=0 // pred_check_branch
    %301 = sbr.rel (0) target = $region41
  $region40: #{pallas_forward.16} parent=0 // pred_region
    _
  $region41: #{pallas_forward.16} parent=0 // pred_fallthru
    _

// kernel: pallas_forward.27
$region0: #{pallas_forward.27}
  #allocation0 [shape = 'u32[]', space=smem, size = 0x4, offset = 0x4, fixed_abs, tag = 'smem constant byte address 0x4 - core index']
  #allocation1 [shape = 'u32[144,128]{1,0:T(1,128)}', space=vmem, size = 0x12000, scoped, tag = 'internal scratch']
  %s0 = inlined_call_operand.vmem [shape: f32[128,16], index: 0, kind: input, shape index: {}]
  %s1 = inlined_call_operand.vmem [shape: f32[128,1], index: 1, kind: input, shape index: {}]
  %s2 = inlined_call_operand.vmem [shape: f32[1,16], index: 2, kind: input, shape index: {}]
  %s3 = inlined_call_operand.vmem [shape: f32[1,16], index: 3, kind: input, shape index: {}]
  %s4 = inlined_call_operand.vmem [shape: f32[16,16], index: 4, kind: input, shape index: {}]
  %s5 = inlined_call_operand.vmem [shape: f32[1,16], index: 5, kind: input, shape index: {}]
  %s6 = inlined_call_operand.vmem [shape: f32[16,16], index: 6, kind: input, shape index: {}]
  %s7 = inlined_call_operand.vmem [shape: f32[1,16], index: 7, kind: input, shape index: {}]
  %s8 = inlined_call_operand.hbm [shape: f32[128,16], index: 8, kind: output, shape index: {}]
  %s9 = sld [smem:[#allocation0]]
  $region42: #{pallas_forward.27} parent=0
    _
  %s11 = ssub.s32 1, %s9
  %s12 = scalar_select 0, %s11, %s9
  $region1: #{pallas_forward.27} parent=0
    #allocation2 [shape = 'u8[65536]{0}', space=vmem, size = 0x10000, scoped, tag = 'output window, operand 0, single buffered']
    #allocation3 [shape = 's32[1]{0}', space=sflag, size = 0x4, scoped, tag = 'scoped memory for pallas_forward.27']
    %13 = vsyncpa [#allocation3], 0
    // Predicated region
    $region2: #{pallas_forward.27} parent=1 // pred_check
      _
    $region3: #{pallas_forward.27} parent=1 // pred_check_branch
      %15 = sbr.rel (0) target = $region5
    $region4: #{pallas_forward.27} parent=1 // pred_region
      _
    $region5: #{pallas_forward.27} parent=1 // pred_fallthru
      _
    // Predicated region
    $region6: #{pallas_forward.27} parent=1 // pred_check
      _
    $region7: #{pallas_forward.27} parent=1 // pred_check_branch
      %17 = sbr.rel (0) target = $region9
    $region8: #{pallas_forward.27} parent=1 // pred_region
      _
    $region9: #{pallas_forward.27} parent=1 // pred_fallthru
      _
    // Predicated region
    $region10: #{pallas_forward.27} parent=1 // pred_check
      _
    $region11: #{pallas_forward.27} parent=1 // pred_check_branch
      %19 = sbr.rel (0) target = $region13
    $region12: #{pallas_forward.27} parent=1 // pred_region
      _
    $region13: #{pallas_forward.27} parent=1 // pred_fallthru
      _
    // Predicated region
    $region14: #{pallas_forward.27} parent=1 // pred_check
      _
    $region15: #{pallas_forward.27} parent=1 // pred_check_branch
      %21 = sbr.rel (0) target = $region17
    $region16: #{pallas_forward.27} parent=1 // pred_region
      _
    $region17: #{pallas_forward.27} parent=1 // pred_fallthru
      _
    // Predicated region
    $region18: #{pallas_forward.27} parent=1 // pred_check
      _
    $region19: #{pallas_forward.27} parent=1 // pred_check_branch
      %23 = sbr.rel (0) target = $region21
    $region20: #{pallas_forward.27} parent=1 // pred_region
      _
    $region21: #{pallas_forward.27} parent=1 // pred_fallthru
      _
    // Predicated region
    $region22: #{pallas_forward.27} parent=1 // pred_check
      _
    $region23: #{pallas_forward.27} parent=1 // pred_check_branch
      %25 = sbr.rel (0) target = $region25
    $region24: #{pallas_forward.27} parent=1 // pred_region
      _
    $region25: #{pallas_forward.27} parent=1 // pred_fallthru
      _
    // Predicated region
    $region26: #{pallas_forward.27} parent=1 // pred_check
      _
    $region27: #{pallas_forward.27} parent=1 // pred_check_branch
      %27 = sbr.rel (0) target = $region29
    $region28: #{pallas_forward.27} parent=1 // pred_region
      _
    $region29: #{pallas_forward.27} parent=1 // pred_fallthru
      _
    // Predicated region
    $region30: #{pallas_forward.27} parent=1 // pred_check
      _
    $region31: #{pallas_forward.27} parent=1 // pred_check_branch
      %29 = sbr.rel (0) target = $region33
    $region32: #{pallas_forward.27} parent=1 // pred_region
      _
    $region33: #{pallas_forward.27} parent=1 // pred_fallthru
      _
    %v30 = vld [vmem:[%s0] sm:$0xff]
    %v31 = vld [vmem:[%s0 + $0x8] sm:$0xff]
    %v32 = vld [vmem:[%s0 + $0x10] sm:$0xff]
    %v33 = vld [vmem:[%s0 + $0x18] sm:$0xff]
    %v34 = vld [vmem:[%s0 + $0x20] sm:$0xff]
    %v35 = vld [vmem:[%s0 + $0x28] sm:$0xff]
    %v36 = vld [vmem:[%s0 + $0x30] sm:$0xff]
    %v37 = vld [vmem:[%s0 + $0x38] sm:$0xff]
    %v38 = vld [vmem:[%s0 + $0x40] sm:$0xff]
    %v39 = vld [vmem:[%s0 + $0x48] sm:$0xff]
    %v40 = vld [vmem:[%s0 + $0x50] sm:$0xff]
    %v41 = vld [vmem:[%s0 + $0x58] sm:$0xff]
    %v42 = vld [vmem:[%s0 + $0x60] sm:$0xff]
    %v43 = vld [vmem:[%s0 + $0x68] sm:$0xff]
    %v44 = vld [vmem:[%s0 + $0x70] sm:$0xff]
    %v45 = vld [vmem:[%s0 + $0x78] sm:$0xff]
    %v46 = vld [vmem:[%s2] sm:$0x1]
    %v47 = vld [vmem:[%s3] sm:$0x1]
    %vm48 = vcmask 130048
    %v49 = vsel %vm48, %v30, 0.0
    %50 = vadd.xlane.f32.xlu0 %v49
    %v51 = vpop.xlane.xlu0 %50
    %v52 = vsel %vm48, %v31, 0.0
    %53 = vadd.xlane.f32.xlu0 %v52
    %v54 = vpop.xlane.xlu0 %53
    %v55 = vsel %vm48, %v32, 0.0
    %56 = vadd.xlane.f32.xlu0 %v55
    %v57 = vpop.xlane.xlu0 %56
    %v58 = vsel %vm48, %v33, 0.0
    %59 = vadd.xlane.f32.xlu0 %v58
    %v60 = vpop.xlane.xlu0 %59
    %v61 = vsel %vm48, %v34, 0.0
    %62 = vadd.xlane.f32.xlu0 %v61
    %v63 = vpop.xlane.xlu0 %62
    %v64 = vsel %vm48, %v35, 0.0
    %65 = vadd.xlane.f32.xlu0 %v64
    %v66 = vpop.xlane.xlu0 %65
    %v67 = vsel %vm48, %v36, 0.0
    %68 = vadd.xlane.f32.xlu0 %v67
    %v69 = vpop.xlane.xlu0 %68
    %v70 = vsel %vm48, %v37, 0.0
    %71 = vadd.xlane.f32.xlu0 %v70
    %v72 = vpop.xlane.xlu0 %71
    %v73 = vsel %vm48, %v38, 0.0
    %74 = vadd.xlane.f32.xlu0 %v73
    %v75 = vpop.xlane.xlu0 %74
    %v76 = vsel %vm48, %v39, 0.0
    %77 = vadd.xlane.f32.xlu0 %v76
    %v78 = vpop.xlane.xlu0 %77
    %v79 = vsel %vm48, %v40, 0.0
    %80 = vadd.xlane.f32.xlu0 %v79
    %v81 = vpop.xlane.xlu0 %80
    %v82 = vsel %vm48, %v41, 0.0
    %83 = vadd.xlane.f32.xlu0 %v82
    %v84 = vpop.xlane.xlu0 %83
    %v85 = vsel %vm48, %v42, 0.0
    %86 = vadd.xlane.f32.xlu0 %v85
    %v87 = vpop.xlane.xlu0 %86
    %v88 = vsel %vm48, %v43, 0.0
    %89 = vadd.xlane.f32.xlu0 %v88
    %v90 = vpop.xlane.xlu0 %89
    %v91 = vsel %vm48, %v44, 0.0
    %92 = vadd.xlane.f32.xlu0 %v91
    %v93 = vpop.xlane.xlu0 %92
    %v94 = vsel %vm48, %v45, 0.0
    %95 = vadd.xlane.f32.xlu0 %v94
    %v96 = vpop.xlane.xlu0 %95
    %v97 = vrcp.pop 16.0
    %v98 = vmul.f32 %v51, %v97
    %v99 = vmul.f32 %v54, %v97
    %v100 = vmul.f32 %v57, %v97
    %v101 = vmul.f32 %v60, %v97
    %v102 = vmul.f32 %v63, %v97
    %v103 = vmul.f32 %v66, %v97
    %v104 = vmul.f32 %v69, %v97
    %v105 = vmul.f32 %v72, %v97
    %v106 = vmul.f32 %v75, %v97
    %v107 = vmul.f32 %v78, %v97
    %v108 = vmul.f32 %v81, %v97
    %v109 = vmul.f32 %v84, %v97
    %v110 = vmul.f32 %v87, %v97
    %v111 = vmul.f32 %v90, %v97
    %v112 = vmul.f32 %v93, %v97
    %v113 = vmul.f32 %v96, %v97
    %v114 = vsub.f32 %v30, %v98
    %v115 = vsub.f32 %v31, %v99
    %v116 = vsub.f32 %v32, %v100
    %v117 = vsub.f32 %v33, %v101
    %v118 = vsub.f32 %v34, %v102
    %v119 = vsub.f32 %v35, %v103
    %v120 = vsub.f32 %v36, %v104
    %v121 = vsub.f32 %v37, %v105
    %v122 = vsub.f32 %v38, %v106
    %v123 = vsub.f32 %v39, %v107
    %v124 = vsub.f32 %v40, %v108
    %v125 = vsub.f32 %v41, %v109
    %v126 = vsub.f32 %v42, %v110
    %v127 = vsub.f32 %v43, %v111
    %v128 = vsub.f32 %v44, %v112
    %v129 = vsub.f32 %v45, %v113
    %v130 = vmul.f32 %v114, %v114
    %v131 = vmul.f32 %v115, %v115
    %v132 = vmul.f32 %v116, %v116
    %v133 = vmul.f32 %v117, %v117
    %v134 = vmul.f32 %v118, %v118
    %v135 = vmul.f32 %v119, %v119
    %v136 = vmul.f32 %v120, %v120
    %v137 = vmul.f32 %v121, %v121
    %v138 = vmul.f32 %v122, %v122
    %v139 = vmul.f32 %v123, %v123
    %v140 = vmul.f32 %v124, %v124
    %v141 = vmul.f32 %v125, %v125
    %v142 = vmul.f32 %v126, %v126
    %v143 = vmul.f32 %v127, %v127
    %v144 = vmul.f32 %v128, %v128
    %v145 = vmul.f32 %v129, %v129
    %v146 = vsel %vm48, %v130, 0.0
    %147 = vadd.xlane.f32.xlu0 %v146
    %v148 = vpop.xlane.xlu0 %147
    %v149 = vsel %vm48, %v131, 0.0
    %150 = vadd.xlane.f32.xlu0 %v149
    %v151 = vpop.xlane.xlu0 %150
    %v152 = vsel %vm48, %v132, 0.0
    %153 = vadd.xlane.f32.xlu0 %v152
    %v154 = vpop.xlane.xlu0 %153
    %v155 = vsel %vm48, %v133, 0.0
    %156 = vadd.xlane.f32.xlu0 %v155
    %v157 = vpop.xlane.xlu0 %156
    %v158 = vsel %vm48, %v134, 0.0
    %159 = vadd.xlane.f32.xlu0 %v158
    %v160 = vpop.xlane.xlu0 %159
    %v161 = vsel %vm48, %v135, 0.0
    %162 = vadd.xlane.f32.xlu0 %v161
    %v163 = vpop.xlane.xlu0 %162
    %v164 = vsel %vm48, %v136, 0.0
    %165 = vadd.xlane.f32.xlu0 %v164
    %v166 = vpop.xlane.xlu0 %165
    %v167 = vsel %vm48, %v137, 0.0
    %168 = vadd.xlane.f32.xlu0 %v167
    %v169 = vpop.xlane.xlu0 %168
    %v170 = vsel %vm48, %v138, 0.0
    %171 = vadd.xlane.f32.xlu0 %v170
    %v172 = vpop.xlane.xlu0 %171
    %v173 = vsel %vm48, %v139, 0.0
    %174 = vadd.xlane.f32.xlu0 %v173
    %v175 = vpop.xlane.xlu0 %174
    %v176 = vsel %vm48, %v140, 0.0
    %177 = vadd.xlane.f32.xlu0 %v176
    %v178 = vpop.xlane.xlu0 %177
    %v179 = vsel %vm48, %v141, 0.0
    %180 = vadd.xlane.f32.xlu0 %v179
    %v181 = vpop.xlane.xlu0 %180
    %v182 = vsel %vm48, %v142, 0.0
    %183 = vadd.xlane.f32.xlu0 %v182
    %v184 = vpop.xlane.xlu0 %183
    %v185 = vsel %vm48, %v143, 0.0
    %186 = vadd.xlane.f32.xlu0 %v185
    %v187 = vpop.xlane.xlu0 %186
    %v188 = vsel %vm48, %v144, 0.0
    %189 = vadd.xlane.f32.xlu0 %v188
    %v190 = vpop.xlane.xlu0 %189
    %v191 = vsel %vm48, %v145, 0.0
    %192 = vadd.xlane.f32.xlu0 %v191
    %v193 = vpop.xlane.xlu0 %192
    %v194 = vmul.f32 %v148, %v97
    %v195 = vmul.f32 %v151, %v97
    %v196 = vmul.f32 %v154, %v97
    %v197 = vmul.f32 %v157, %v97
    %v198 = vmul.f32 %v160, %v97
    %v199 = vmul.f32 %v163, %v97
    %v200 = vmul.f32 %v166, %v97
    %v201 = vmul.f32 %v169, %v97
    %v202 = vmul.f32 %v172, %v97
    %v203 = vmul.f32 %v175, %v97
    %v204 = vmul.f32 %v178, %v97
    %v205 = vmul.f32 %v181, %v97
    %v206 = vmul.f32 %v184, %v97
    %v207 = vmul.f32 %v187, %v97
    %v208 = vmul.f32 %v190, %v97
    %v209 = vmul.f32 %v193, %v97
    %v210 = vadd.f32 %v194, 1e-05
    %v211 = vadd.f32 %v195, 1e-05
    %v212 = vadd.f32 %v196, 1e-05
    %v213 = vadd.f32 %v197, 1e-05
    %v214 = vadd.f32 %v198, 1e-05
    %v215 = vadd.f32 %v199, 1e-05
    %v216 = vadd.f32 %v200, 1e-05
    %v217 = vadd.f32 %v201, 1e-05
    %v218 = vadd.f32 %v202, 1e-05
    %v219 = vadd.f32 %v203, 1e-05
    %v220 = vadd.f32 %v204, 1e-05
    %v221 = vadd.f32 %v205, 1e-05
    %v222 = vadd.f32 %v206, 1e-05
    %v223 = vadd.f32 %v207, 1e-05
    %v224 = vadd.f32 %v208, 1e-05
    %v225 = vadd.f32 %v209, 1e-05
    %v226 = vrsqrt.pop %v210
    %v227 = vrsqrt.pop %v211
    %v228 = vrsqrt.pop %v212
    %v229 = vrsqrt.pop %v213
    %v230 = vrsqrt.pop %v214
    %v231 = vrsqrt.pop %v215
    %v232 = vrsqrt.pop %v216
    %v233 = vrsqrt.pop %v217
    %v234 = vrsqrt.pop %v218
    %v235 = vrsqrt.pop %v219
    %v236 = vrsqrt.pop %v220
    %v237 = vrsqrt.pop %v221
    %v238 = vrsqrt.pop %v222
    %v239 = vrsqrt.pop %v223
    %v240 = vrsqrt.pop %v224
    %v241 = vrsqrt.pop %v225
    %v242 = vmul.f32 %v114, %v226
    %v243 = vmul.f32 %v115, %v227
    %v244 = vmul.f32 %v116, %v228
    %v245 = vmul.f32 %v117, %v229
    %v246 = vmul.f32 %v118, %v230
    %v247 = vmul.f32 %v119, %v231
    %v248 = vmul.f32 %v120, %v232
    %v249 = vmul.f32 %v121, %v233
    %v250 = vmul.f32 %v122, %v234
    %v251 = vmul.f32 %v123, %v235
    %v252 = vmul.f32 %v124, %v236
    %v253 = vmul.f32 %v125, %v237
    %v254 = vmul.f32 %v126, %v238
    %v255 = vmul.f32 %v127, %v239
    %v256 = vmul.f32 %v128, %v240
    %v257 = vmul.f32 %v129, %v241
    %v259 = vlaneseq
    %v260 = vshrl.u32 %v259, 7
    %v261 = vsub.s32 0, %v260
    %v262 = vrot.slane %v46, %v261
    %v264 = vmul.f32 %v242, %v262
    %v265 = vmul.f32 %v243, %v262
    %v266 = vmul.f32 %v244, %v262
    %v267 = vmul.f32 %v245, %v262
    %v268 = vmul.f32 %v246, %v262
    %v269 = vmul.f32 %v247, %v262
    %v270 = vmul.f32 %v248, %v262
    %v271 = vmul.f32 %v249, %v262
    %v272 = vmul.f32 %v250, %v262
    %v273 = vmul.f32 %v251, %v262
    %v274 = vmul.f32 %v252, %v262
    %v275 = vmul.f32 %v253, %v262
    %v276 = vmul.f32 %v254, %v262
    %v277 = vmul.f32 %v255, %v262
    %v278 = vmul.f32 %v256, %v262
    %v279 = vmul.f32 %v257, %v262
    %v281 = vlaneseq
    %v282 = vshrl.u32 %v281, 7
    %v283 = vsub.s32 0, %v282
    %v284 = vrot.slane %v47, %v283
    %v286 = vadd.f32 %v264, %v284
    %v287 = vadd.f32 %v265, %v284
    %v288 = vadd.f32 %v266, %v284
    %v289 = vadd.f32 %v267, %v284
    %v290 = vadd.f32 %v268, %v284
    %v291 = vadd.f32 %v269, %v284
    %v292 = vadd.f32 %v270, %v284
    %v293 = vadd.f32 %v271, %v284
    %v294 = vadd.f32 %v272, %v284
    %v295 = vadd.f32 %v273, %v284
    %v296 = vadd.f32 %v274, %v284
    %v297 = vadd.f32 %v275, %v284
    %v298 = vadd.f32 %v276, %v284
    %v299 = vadd.f32 %v277, %v284
    %v300 = vadd.f32 %v278, %v284
    %v301 = vadd.f32 %v279, %v284
    %v302 = vld [vmem:[%s4] sm:$0xff]
    %v303 = vld [vmem:[%s4 + $0x8] sm:$0xff]
    %v304 = vld [vmem:[%s5] sm:$0x1]
    %v306 = vlaneseq
    %v307 = vshrl.u32 %v306, 7
    %v308 = vsub.s32 0, %v307
    %v309 = vrot.slane %v304, %v308
    %v312 = vsel %vm48, %v286, 0
    %v315 = vsel %vm48, %v287, 0
    %v318 = vsel %vm48, %v288, 0
    %v321 = vsel %vm48, %v289, 0
    %v324 = vsel %vm48, %v290, 0
    %v327 = vsel %vm48, %v291, 0
    %v330 = vsel %vm48, %v292, 0
    %v333 = vsel %vm48, %v293, 0
    %v336 = vsel %vm48, %v294, 0
    %v339 = vsel %vm48, %v295, 0
    %v342 = vsel %vm48, %v296, 0
    %v345 = vsel %vm48, %v297, 0
    %v348 = vsel %vm48, %v298, 0
    %v351 = vsel %vm48, %v299, 0
    %v354 = vsel %vm48, %v300, 0
    %v357 = vsel %vm48, %v301, 0
    %359 = vmatprep.subr.mxu0 0.0
    %360 = vmatpush1.msra.mxu0 %v302
    %361 = vmatprep.subr.mxu0 0.0
    %362 = vmatpush1.msra.mxu0 %v303
    %363 = vmatprep.subr.mxu0 0.0
    %364 = vmatpush1.msra.mxu0 0.0
    %365 = vmatprep.subr.mxu0 0.0
    %366 = vmatpush1.msra.mxu0 0.0
    %367 = vmatprep.subr.mxu0 0.0
    %368 = vmatpush1.msra.mxu0 0.0
    %369 = vmatprep.subr.mxu0 0.0
    %370 = vmatpush1.msra.mxu0 0.0
    %371 = vmatprep.subr.mxu0 0.0
    %372 = vmatpush1.msra.mxu0 0.0
    %373 = vmatprep.subr.mxu0 0.0
    %374 = vmatpush1.msra.mxu0 0.0
    %375 = vmatprep.subr.mxu0 0.0
    %376 = vmatpush1.msra.mxu0 0.0
    %377 = vmatprep.subr.mxu0 0.0
    %378 = vmatpush1.msra.mxu0 0.0
    %379 = vmatprep.subr.mxu0 0.0
    %380 = vmatpush1.msra.mxu0 0.0
    %381 = vmatprep.subr.mxu0 0.0
    %382 = vmatpush1.msra.mxu0 0.0
    %383 = vmatprep.subr.mxu0 0.0
    %384 = vmatpush1.msra.mxu0 0.0
    %385 = vmatprep.subr.mxu0 0.0
    %386 = vmatpush1.msra.mxu0 0.0
    %387 = vmatprep.subr.mxu0 0.0
    %388 = vmatpush1.msra.mxu0 0.0
    %389 = vmatprep.subr.mxu0 0.0
    %390 = vmatpush1.msra.mxu0 0.0
    %391 = vmatprep.subr.mxu0 0.0
    %392 = vmatpush1.msra.mxu0 0.0
    %393 = vmatprep.subr.mxu0 0.0
    %394 = vmatpush1.msra.mxu0 0.0
    %395 = vmatprep.subr.mxu0 0.0
    %396 = vmatpush1.msra.mxu0 0.0
    %397 = vmatprep.subr.mxu0 0.0
    %398 = vmatpush1.msra.mxu0 0.0
    %399 = vmatprep.subr.mxu0 0.0
    %400 = vmatpush1.msra.mxu0 0.0
    %401 = vmatprep.subr.mxu0 0.0
    %402 = vmatpush1.msra.mxu0 0.0
    %403 = vmatprep.subr.mxu0 0.0
    %404 = vmatpush1.msra.mxu0 0.0
    %405 = vmatprep.subr.mxu0 0.0
    %406 = vmatpush1.msra.mxu0 0.0
    %407 = vmatprep.subr.mxu0 0.0
    %408 = vmatpush1.msra.mxu0 0.0
    %409 = vmatprep.subr.mxu0 0.0
    %410 = vmatpush1.msra.mxu0 0.0
    %411 = vmatprep.subr.mxu0 0.0
    %412 = vmatpush1.msra.mxu0 0.0
    %413 = vmatprep.subr.mxu0 0.0
    %414 = vmatpush1.msra.mxu0 0.0
    %415 = vmatprep.subr.mxu0 0.0
    %416 = vmatpush1.msra.mxu0 0.0
    %417 = vmatprep.subr.mxu0 0.0
    %418 = vmatpush1.msra.mxu0 0.0
    %419 = vmatprep.subr.mxu0 0.0
    %420 = vmatpush1.msra.mxu0 0.0
    %421 = vmatprep.subr.mxu0 0.0
    %422 = vmatpush1.msra.mxu0 0.0
    %423 = vmatprep.mubr.f32.mxu0 0.0
    %424 = vmatmul.mubr.f32.gmra.mrb[0].mxu0 %v312
    %v425 = vpop.f32.mrb[0].mxu0
    %v426 = vadd.f32 %v309, %v425
    %v427 = vpop.f32.mrb[0].mxu0
    %428 = vmatprep.mubr.f32.mxu0 0.0
    %429 = vmatmul.mubr.f32.gmra.mrb[0].mxu0 %v315
    %v430 = vpop.f32.mrb[0].mxu0
    %v431 = vadd.f32 %v309, %v430
    %v432 = vpop.f32.mrb[0].mxu0
    %433 = vmatprep.mubr.f32.mxu0 0.0
    %434 = vmatmul.mubr.f32.gmra.mrb[0].mxu0 %v318
    %v435 = vpop.f32.mrb[0].mxu0
    %v436 = vadd.f32 %v309, %v435
    %v437 = vpop.f32.mrb[0].mxu0
    %438 = vmatprep.mubr.f32.mxu0 0.0
    %439 = vmatmul.mubr.f32.gmra.mrb[0].mxu0 %v321
    %v440 = vpop.f32.mrb[0].mxu0
    %v441 = vadd.f32 %v309, %v440
    %v442 = vpop.f32.mrb[0].mxu0
    %443 = vmatprep.mubr.f32.mxu0 0.0
    %444 = vmatmul.mubr.f32.gmra.mrb[0].mxu0 %v324
    %v445 = vpop.f32.mrb[0].mxu0
    %v446 = vadd.f32 %v309, %v445
    %v447 = vpop.f32.mrb[0].mxu0
    %448 = vmatprep.mubr.f32.mxu0 0.0
    %449 = vmatmul.mubr.f32.gmra.mrb[0].mxu0 %v327
    %v450 = vpop.f32.mrb[0].mxu0
    %v451 = vadd.f32 %v309, %v450
    %v452 = vpop.f32.mrb[0].mxu0
    %453 = vmatprep.mubr.f32.mxu0 0.0
    %454 = vmatmul.mubr.f32.gmra.mrb[0].mxu0 %v330
    %v455 = vpop.f32.mrb[0].mxu0
    %v456 = vadd.f32 %v309, %v455
    %v457 = vpop.f32.mrb[0].mxu0
    %458 = vmatprep.mubr.f32.mxu0 0.0
    %459 = vmatmul.mubr.f32.gmra.mrb[0].mxu0 %v333
    %v460 = vpop.f32.mrb[0].mxu0
    %v461 = vadd.f32 %v309, %v460
    %v462 = vpop.f32.mrb[0].mxu0
    %463 = vmatprep.mubr.f32.mxu0 0.0
    %464 = vmatmul.mubr.f32.gmra.mrb[0].mxu0 %v336
    %v465 = vpop.f32.mrb[0].mxu0
    %v466 = vadd.f32 %v309, %v465
    %v467 = vpop.f32.mrb[0].mxu0
    %468 = vmatprep.mubr.f32.mxu0 0.0
    %469 = vmatmul.mubr.f32.gmra.mrb[0].mxu0 %v339
    %v470 = vpop.f32.mrb[0].mxu0
    %v471 = vadd.f32 %v309, %v470
    %v472 = vpop.f32.mrb[0].mxu0
    %473 = vmatprep.mubr.f32.mxu0 0.0
    %474 = vmatmul.mubr.f32.gmra.mrb[0].mxu0 %v342
    %v475 = vpop.f32.mrb[0].mxu0
    %v476 = vadd.f32 %v309, %v475
    %v477 = vpop.f32.mrb[0].mxu0
    %478 = vmatprep.mubr.f32.mxu0 0.0
    %479 = vmatmul.mubr.f32.gmra.mrb[0].mxu0 %v345
    %v480 = vpop.f32.mrb[0].mxu0
    %v481 = vadd.f32 %v309, %v480
    %v482 = vpop.f32.mrb[0].mxu0
    %483 = vmatprep.mubr.f32.mxu0 0.0
    %484 = vmatmul.mubr.f32.gmra.mrb[0].mxu0 %v348
    %v485 = vpop.f32.mrb[0].mxu0
    %v486 = vadd.f32 %v309, %v485
    %v487 = vpop.f32.mrb[0].mxu0
    %488 = vmatprep.mubr.f32.mxu0 0.0
    %489 = vmatmul.mubr.f32.gmra.mrb[0].mxu0 %v351
    %v490 = vpop.f32.mrb[0].mxu0
    %v491 = vadd.f32 %v309, %v490
    %v492 = vpop.f32.mrb[0].mxu0
    %493 = vmatprep.mubr.f32.mxu0 0.0
    %494 = vmatmul.mubr.f32.gmra.mrb[0].mxu0 %v354
    %v495 = vpop.f32.mrb[0].mxu0
    %v496 = vadd.f32 %v309, %v495
    %v497 = vpop.f32.mrb[0].mxu0
    %498 = vmatprep.mubr.f32.mxu0 0.0
    %499 = vmatmul.mubr.f32.gmra.mrb[0].mxu0 %v357
    %v500 = vpop.f32.mrb[0].mxu0
    %v501 = vadd.f32 %v309, %v500
    %v502 = vpop.f32.mrb[0].mxu0
    %503 = vdwg.mxu0
    %v504 = vxor.u32 %v426, 2147483648
    %v505 = vxor.u32 %v431, 2147483648
    %v506 = vxor.u32 %v436, 2147483648
    %v507 = vxor.u32 %v441, 2147483648
    %v508 = vxor.u32 %v446, 2147483648
    %v509 = vxor.u32 %v451, 2147483648
    %v510 = vxor.u32 %v456, 2147483648
    %v511 = vxor.u32 %v461, 2147483648
    %v512 = vxor.u32 %v466, 2147483648
    %v513 = vxor.u32 %v471, 2147483648
    %v514 = vxor.u32 %v476, 2147483648
    %v515 = vxor.u32 %v481, 2147483648
    %v516 = vxor.u32 %v486, 2147483648
    %v517 = vxor.u32 %v491, 2147483648
    %v518 = vxor.u32 %v496, 2147483648
    %v519 = vxor.u32 %v501, 2147483648
    %v520 = vmul.f32 %v504, 1.442695
    %v521 = vpow.pop %v520
    %v522 = vmul.f32 %v505, 1.442695
    %v523 = vpow.pop %v522
    %v524 = vmul.f32 %v506, 1.442695
    %v525 = vpow.pop %v524
    %v526 = vmul.f32 %v507, 1.442695
    %v527 = vpow.pop %v526
    %v528 = vmul.f32 %v508, 1.442695
    %v529 = vpow.pop %v528
    %v530 = vmul.f32 %v509, 1.442695
    %v531 = vpow.pop %v530
    %v532 = vmul.f32 %v510, 1.442695
    %v533 = vpow.pop %v532
    %v534 = vmul.f32 %v511, 1.442695
    %v535 = vpow.pop %v534
    %v536 = vmul.f32 %v512, 1.442695
    %v537 = vpow.pop %v536
    %v538 = vmul.f32 %v513, 1.442695
    %v539 = vpow.pop %v538
    %v540 = vmul.f32 %v514, 1.442695
    %v541 = vpow.pop %v540
    %v542 = vmul.f32 %v515, 1.442695
    %v543 = vpow.pop %v542
    %v544 = vmul.f32 %v516, 1.442695
    %v545 = vpow.pop %v544
    %v546 = vmul.f32 %v517, 1.442695
    %v547 = vpow.pop %v546
    %v548 = vmul.f32 %v518, 1.442695
    %v549 = vpow.pop %v548
    %v550 = vmul.f32 %v519, 1.442695
    %v551 = vpow.pop %v550
    %v552 = vadd.f32 %v521, 1.0
    %v553 = vadd.f32 %v523, 1.0
    %v554 = vadd.f32 %v525, 1.0
    %v555 = vadd.f32 %v527, 1.0
    %v556 = vadd.f32 %v529, 1.0
    %v557 = vadd.f32 %v531, 1.0
    %v558 = vadd.f32 %v533, 1.0
    %v559 = vadd.f32 %v535, 1.0
    %v560 = vadd.f32 %v537, 1.0
    %v561 = vadd.f32 %v539, 1.0
    %v562 = vadd.f32 %v541, 1.0
    %v563 = vadd.f32 %v543, 1.0
    %v564 = vadd.f32 %v545, 1.0
    %v565 = vadd.f32 %v547, 1.0
    %v566 = vadd.f32 %v549, 1.0
    %v567 = vadd.f32 %v551, 1.0
    %v568 = vrcp.pop %v552
    %v569 = vmul.f32 1.0, %v568
    %v570 = vrcp.pop %v553
    %v571 = vmul.f32 1.0, %v570
    %v572 = vrcp.pop %v554
    %v573 = vmul.f32 1.0, %v572
    %v574 = vrcp.pop %v555
    %v575 = vmul.f32 1.0, %v574
    %v576 = vrcp.pop %v556
    %v577 = vmul.f32 1.0, %v576
    %v578 = vrcp.pop %v557
    %v579 = vmul.f32 1.0, %v578
    %v580 = vrcp.pop %v558
    %v581 = vmul.f32 1.0, %v580
    %v582 = vrcp.pop %v559
    %v583 = vmul.f32 1.0, %v582
    %v584 = vrcp.pop %v560
    %v585 = vmul.f32 1.0, %v584
    %v586 = vrcp.pop %v561
    %v587 = vmul.f32 1.0, %v586
    %v588 = vrcp.pop %v562
    %v589 = vmul.f32 1.0, %v588
    %v590 = vrcp.pop %v563
    %v591 = vmul.f32 1.0, %v590
    %v592 = vrcp.pop %v564
    %v593 = vmul.f32 1.0, %v592
    %v594 = vrcp.pop %v565
    %v595 = vmul.f32 1.0, %v594
    %v596 = vrcp.pop %v566
    %v597 = vmul.f32 1.0, %v596
    %v598 = vrcp.pop %v567
    %v599 = vmul.f32 1.0, %v598
    %v600 = vmul.f32 %v426, %v569
    %v601 = vmul.f32 %v431, %v571
    %v602 = vmul.f32 %v436, %v573
    %v603 = vmul.f32 %v441, %v575
    %v604 = vmul.f32 %v446, %v577
    %v605 = vmul.f32 %v451, %v579
    %v606 = vmul.f32 %v456, %v581
    %v607 = vmul.f32 %v461, %v583
    %v608 = vmul.f32 %v466, %v585
    %v609 = vmul.f32 %v471, %v587
    %v610 = vmul.f32 %v476, %v589
    %v611 = vmul.f32 %v481, %v591
    %v612 = vmul.f32 %v486, %v593
    %v613 = vmul.f32 %v491, %v595
    %v614 = vmul.f32 %v496, %v597
    %v615 = vmul.f32 %v501, %v599
    %v616 = vld [vmem:[%s6] sm:$0xff]
    %v617 = vld [vmem:[%s6 + $0x8] sm:$0xff]
    %v618 = vld [vmem:[%s7] sm:$0x1]
    %v620 = vlaneseq
    %v621 = vshrl.u32 %v620, 7
    %v622 = vsub.s32 0, %v621
    %v623 = vrot.slane %v618, %v622
    %v626 = vsel %vm48, %v600, 0
    %v629 = vsel %vm48, %v601, 0
    %v632 = vsel %vm48, %v602, 0
    %v635 = vsel %vm48, %v603, 0
    %v638 = vsel %vm48, %v604, 0
    %v641 = vsel %vm48, %v605, 0
    %v644 = vsel %vm48, %v606, 0
    %v647 = vsel %vm48, %v607, 0
    %v650 = vsel %vm48, %v608, 0
    %v653 = vsel %vm48, %v609, 0
    %v656 = vsel %vm48, %v610, 0
    %v659 = vsel %vm48, %v611, 0
    %v662 = vsel %vm48, %v612, 0
    %v665 = vsel %vm48, %v613, 0
    %v668 = vsel %vm48, %v614, 0
    %v671 = vsel %vm48, %v615, 0
    %673 = vmatprep.subr.mxu0 0.0
    %674 = vmatpush1.msra.mxu0 %v616
    %675 = vmatprep.subr.mxu0 0.0
    %676 = vmatpush1.msra.mxu0 %v617
    %677 = vmatprep.subr.mxu0 0.0
    %678 = vmatpush1.msra.mxu0 0.0
    %679 = vmatprep.subr.mxu0 0.0
    %680 = vmatpush1.msra.mxu0 0.0
    %681 = vmatprep.subr.mxu0 0.0
    %682 = vmatpush1.msra.mxu0 0.0
    %683 = vmatprep.subr.mxu0 0.0
    %684 = vmatpush1.msra.mxu0 0.0
    %685 = vmatprep.subr.mxu0 0.0
    %686 = vmatpush1.msra.mxu0 0.0
    %687 = vmatprep.subr.mxu0 0.0
    %688 = vmatpush1.msra.mxu0 0.0
    %689 = vmatprep.subr.mxu0 0.0
    %690 = vmatpush1.msra.mxu0 0.0
    %691 = vmatprep.subr.mxu0 0.0
    %692 = vmatpush1.msra.mxu0 0.0
    %693 = vmatprep.subr.mxu0 0.0
    %694 = vmatpush1.msra.mxu0 0.0
    %695 = vmatprep.subr.mxu0 0.0
    %696 = vmatpush1.msra.mxu0 0.0
    %697 = vmatprep.subr.mxu0 0.0
    %698 = vmatpush1.msra.mxu0 0.0
    %699 = vmatprep.subr.mxu0 0.0
    %700 = vmatpush1.msra.mxu0 0.0
    %701 = vmatprep.subr.mxu0 0.0
    %702 = vmatpush1.msra.mxu0 0.0
    %703 = vmatprep.subr.mxu0 0.0
    %704 = vmatpush1.msra.mxu0 0.0
    %705 = vmatprep.subr.mxu0 0.0
    %706 = vmatpush1.msra.mxu0 0.0
    %707 = vmatprep.subr.mxu0 0.0
    %708 = vmatpush1.msra.mxu0 0.0
    %709 = vmatprep.subr.mxu0 0.0
    %710 = vmatpush1.msra.mxu0 0.0
    %711 = vmatprep.subr.mxu0 0.0
    %712 = vmatpush1.msra.mxu0 0.0
    %713 = vmatprep.subr.mxu0 0.0
    %714 = vmatpush1.msra.mxu0 0.0
    %715 = vmatprep.subr.mxu0 0.0
    %716 = vmatpush1.msra.mxu0 0.0
    %717 = vmatprep.subr.mxu0 0.0
    %718 = vmatpush1.msra.mxu0 0.0
    %719 = vmatprep.subr.mxu0 0.0
    %720 = vmatpush1.msra.mxu0 0.0
    %721 = vmatprep.subr.mxu0 0.0
    %722 = vmatpush1.msra.mxu0 0.0
    %723 = vmatprep.subr.mxu0 0.0
    %724 = vmatpush1.msra.mxu0 0.0
    %725 = vmatprep.subr.mxu0 0.0
    %726 = vmatpush1.msra.mxu0 0.0
    %727 = vmatprep.subr.mxu0 0.0
    %728 = vmatpush1.msra.mxu0 0.0
    %729 = vmatprep.subr.mxu0 0.0
    %730 = vmatpush1.msra.mxu0 0.0
    %731 = vmatprep.subr.mxu0 0.0
    %732 = vmatpush1.msra.mxu0 0.0
    %733 = vmatprep.subr.mxu0 0.0
    %734 = vmatpush1.msra.mxu0 0.0
    %735 = vmatprep.subr.mxu0 0.0
    %736 = vmatpush1.msra.mxu0 0.0
    %737 = vmatprep.mubr.f32.mxu0 0.0
    %738 = vmatmul.mubr.f32.gmra.mrb[0].mxu0 %v626
    %v739 = vpop.f32.mrb[0].mxu0
    %v740 = vadd.f32 %v623, %v739
    %v741 = vpop.f32.mrb[0].mxu0
    %742 = vmatprep.mubr.f32.mxu0 0.0
    %743 = vmatmul.mubr.f32.gmra.mrb[0].mxu0 %v629
    %v744 = vpop.f32.mrb[0].mxu0
    %v745 = vadd.f32 %v623, %v744
    %v746 = vpop.f32.mrb[0].mxu0
    %747 = vmatprep.mubr.f32.mxu0 0.0
    %748 = vmatmul.mubr.f32.gmra.mrb[0].mxu0 %v632
    %v749 = vpop.f32.mrb[0].mxu0
    %v750 = vadd.f32 %v623, %v749
    %v751 = vpop.f32.mrb[0].mxu0
    %752 = vmatprep.mubr.f32.mxu0 0.0
    %753 = vmatmul.mubr.f32.gmra.mrb[0].mxu0 %v635
    %v754 = vpop.f32.mrb[0].mxu0
    %v755 = vadd.f32 %v623, %v754
    %v756 = vpop.f32.mrb[0].mxu0
    %757 = vmatprep.mubr.f32.mxu0 0.0
    %758 = vmatmul.mubr.f32.gmra.mrb[0].mxu0 %v638
    %v759 = vpop.f32.mrb[0].mxu0
    %v760 = vadd.f32 %v623, %v759
    %v761 = vpop.f32.mrb[0].mxu0
    %762 = vmatprep.mubr.f32.mxu0 0.0
    %763 = vmatmul.mubr.f32.gmra.mrb[0].mxu0 %v641
    %v764 = vpop.f32.mrb[0].mxu0
    %v765 = vadd.f32 %v623, %v764
    %v766 = vpop.f32.mrb[0].mxu0
    %767 = vmatprep.mubr.f32.mxu0 0.0
    %768 = vmatmul.mubr.f32.gmra.mrb[0].mxu0 %v644
    %v769 = vpop.f32.mrb[0].mxu0
    %v770 = vadd.f32 %v623, %v769
    %v771 = vpop.f32.mrb[0].mxu0
    %772 = vmatprep.mubr.f32.mxu0 0.0
    %773 = vmatmul.mubr.f32.gmra.mrb[0].mxu0 %v647
    %v774 = vpop.f32.mrb[0].mxu0
    %v775 = vadd.f32 %v623, %v774
    %v776 = vpop.f32.mrb[0].mxu0
    %777 = vmatprep.mubr.f32.mxu0 0.0
    %778 = vmatmul.mubr.f32.gmra.mrb[0].mxu0 %v650
    %v779 = vpop.f32.mrb[0].mxu0
    %v780 = vadd.f32 %v623, %v779
    %v781 = vpop.f32.mrb[0].mxu0
    %782 = vmatprep.mubr.f32.mxu0 0.0
    %783 = vmatmul.mubr.f32.gmra.mrb[0].mxu0 %v653
    %v784 = vpop.f32.mrb[0].mxu0
    %v785 = vadd.f32 %v623, %v784
    %v786 = vpop.f32.mrb[0].mxu0
    %787 = vmatprep.mubr.f32.mxu0 0.0
    %788 = vmatmul.mubr.f32.gmra.mrb[0].mxu0 %v656
    %v789 = vpop.f32.mrb[0].mxu0
    %v790 = vadd.f32 %v623, %v789
    %v791 = vpop.f32.mrb[0].mxu0
    %792 = vmatprep.mubr.f32.mxu0 0.0
    %793 = vmatmul.mubr.f32.gmra.mrb[0].mxu0 %v659
    %v794 = vpop.f32.mrb[0].mxu0
    %v795 = vadd.f32 %v623, %v794
    %v796 = vpop.f32.mrb[0].mxu0
    %797 = vmatprep.mubr.f32.mxu0 0.0
    %798 = vmatmul.mubr.f32.gmra.mrb[0].mxu0 %v662
    %v799 = vpop.f32.mrb[0].mxu0
    %v800 = vadd.f32 %v623, %v799
    %v801 = vpop.f32.mrb[0].mxu0
    %802 = vmatprep.mubr.f32.mxu0 0.0
    %803 = vmatmul.mubr.f32.gmra.mrb[0].mxu0 %v665
    %v804 = vpop.f32.mrb[0].mxu0
    %v805 = vadd.f32 %v623, %v804
    %v806 = vpop.f32.mrb[0].mxu0
    %807 = vmatprep.mubr.f32.mxu0 0.0
    %808 = vmatmul.mubr.f32.gmra.mrb[0].mxu0 %v668
    %v809 = vpop.f32.mrb[0].mxu0
    %v810 = vadd.f32 %v623, %v809
    %v811 = vpop.f32.mrb[0].mxu0
    %812 = vmatprep.mubr.f32.mxu0 0.0
    %813 = vmatmul.mubr.f32.gmra.mrb[0].mxu0 %v671
    %v814 = vpop.f32.mrb[0].mxu0
    %v815 = vadd.f32 %v623, %v814
    %v816 = vpop.f32.mrb[0].mxu0
    %817 = vdwg.mxu0
    %v818 = vld [vmem:[%s1] sm:$0xff]
    %v819 = vld [vmem:[%s1 + $0x8] sm:$0xff]
    %v820 = vld [vmem:[%s1 + $0x10] sm:$0xff]
    %v821 = vld [vmem:[%s1 + $0x18] sm:$0xff]
    %v822 = vld [vmem:[%s1 + $0x20] sm:$0xff]
    %v823 = vld [vmem:[%s1 + $0x28] sm:$0xff]
    %v824 = vld [vmem:[%s1 + $0x30] sm:$0xff]
    %v825 = vld [vmem:[%s1 + $0x38] sm:$0xff]
    %v826 = vld [vmem:[%s1 + $0x40] sm:$0xff]
    %v827 = vld [vmem:[%s1 + $0x48] sm:$0xff]
    %v828 = vld [vmem:[%s1 + $0x50] sm:$0xff]
    %v829 = vld [vmem:[%s1 + $0x58] sm:$0xff]
    %v830 = vld [vmem:[%s1 + $0x60] sm:$0xff]
    %v831 = vld [vmem:[%s1 + $0x68] sm:$0xff]
    %v832 = vld [vmem:[%s1 + $0x70] sm:$0xff]
    %v833 = vld [vmem:[%s1 + $0x78] sm:$0xff]
    %835 = vset.pattern.permute.xlu0 0
    %836 = vperm.xlu0 %835, %v818
    %v837 = vpop.permute.xlu0 %836
    %840 = vset.pattern.permute.xlu0 0
    %841 = vperm.xlu0 %840, %v819
    %v842 = vpop.permute.xlu0 %841
    %845 = vset.pattern.permute.xlu0 0
    %846 = vperm.xlu0 %845, %v820
    %v847 = vpop.permute.xlu0 %846
    %850 = vset.pattern.permute.xlu0 0
    %851 = vperm.xlu0 %850, %v821
    %v852 = vpop.permute.xlu0 %851
    %855 = vset.pattern.permute.xlu0 0
    %856 = vperm.xlu0 %855, %v822
    %v857 = vpop.permute.xlu0 %856
    %860 = vset.pattern.permute.xlu0 0
    %861 = vperm.xlu0 %860, %v823
    %v862 = vpop.permute.xlu0 %861
    %865 = vset.pattern.permute.xlu0 0
    %866 = vperm.xlu0 %865, %v824
    %v867 = vpop.permute.xlu0 %866
    %870 = vset.pattern.permute.xlu0 0
    %871 = vperm.xlu0 %870, %v825
    %v872 = vpop.permute.xlu0 %871
    %875 = vset.pattern.permute.xlu0 0
    %876 = vperm.xlu0 %875, %v826
    %v877 = vpop.permute.xlu0 %876
    %880 = vset.pattern.permute.xlu0 0
    %881 = vperm.xlu0 %880, %v827
    %v882 = vpop.permute.xlu0 %881
    %885 = vset.pattern.permute.xlu0 0
    %886 = vperm.xlu0 %885, %v828
    %v887 = vpop.permute.xlu0 %886
    %890 = vset.pattern.permute.xlu0 0
    %891 = vperm.xlu0 %890, %v829
    %v892 = vpop.permute.xlu0 %891
    %895 = vset.pattern.permute.xlu0 0
    %896 = vperm.xlu0 %895, %v830
    %v897 = vpop.permute.xlu0 %896
    %900 = vset.pattern.permute.xlu0 0
    %901 = vperm.xlu0 %900, %v831
    %v902 = vpop.permute.xlu0 %901
    %905 = vset.pattern.permute.xlu0 0
    %906 = vperm.xlu0 %905, %v832
    %v907 = vpop.permute.xlu0 %906
    %910 = vset.pattern.permute.xlu0 0
    %911 = vperm.xlu0 %910, %v833
    %v912 = vpop.permute.xlu0 %911
    %v914 = vmul.f32 %v740, %v837
    %v915 = vmul.f32 %v745, %v842
    %v916 = vmul.f32 %v750, %v847
    %v917 = vmul.f32 %v755, %v852
    %v918 = vmul.f32 %v760, %v857
    %v919 = vmul.f32 %v765, %v862
    %v920 = vmul.f32 %v770, %v867
    %v921 = vmul.f32 %v775, %v872
    %v922 = vmul.f32 %v780, %v877
    %v923 = vmul.f32 %v785, %v882
    %v924 = vmul.f32 %v790, %v887
    %v925 = vmul.f32 %v795, %v892
    %v926 = vmul.f32 %v800, %v897
    %v927 = vmul.f32 %v805, %v902
    %v928 = vmul.f32 %v810, %v907
    %v929 = vmul.f32 %v815, %v912
    %930 = vst.msk [vmem:[#allocation2] sm:$0xff] %vm48, %v914
    %931 = vst.msk [vmem:[#allocation2 + $0x8] sm:$0xff] %vm48, %v915
    %932 = vst.msk [vmem:[#allocation2 + $0x10] sm:$0xff] %vm48, %v916
    %933 = vst.msk [vmem:[#allocation2 + $0x18] sm:$0xff] %vm48, %v917
    %934 = vst.msk [vmem:[#allocation2 + $0x20] sm:$0xff] %vm48, %v918
    %935 = vst.msk [vmem:[#allocation2 + $0x28] sm:$0xff] %vm48, %v919
    %936 = vst.msk [vmem:[#allocation2 + $0x30] sm:$0xff] %vm48, %v920
    %937 = vst.msk [vmem:[#allocation2 + $0x38] sm:$0xff] %vm48, %v921
    %938 = vst.msk [vmem:[#allocation2 + $0x40] sm:$0xff] %vm48, %v922
    %939 = vst.msk [vmem:[#allocation2 + $0x48] sm:$0xff] %vm48, %v923
    %940 = vst.msk [vmem:[#allocation2 + $0x50] sm:$0xff] %vm48, %v924
    %941 = vst.msk [vmem:[#allocation2 + $0x58] sm:$0xff] %vm48, %v925
    %942 = vst.msk [vmem:[#allocation2 + $0x60] sm:$0xff] %vm48, %v926
    %943 = vst.msk [vmem:[#allocation2 + $0x68] sm:$0xff] %vm48, %v927
    %944 = vst.msk [vmem:[#allocation2 + $0x70] sm:$0xff] %vm48, %v928
    %945 = vst.msk [vmem:[#allocation2 + $0x78] sm:$0xff] %vm48, %v929
    // Predicated region
    $region34: #{pallas_forward.27} parent=1 // pred_check
      _
    $region35: #{pallas_forward.27} parent=1 // pred_check_branch
      %947 = sbr.rel (0) target = $region37
    $region36: #{pallas_forward.27} parent=1 // pred_region
      %s949 = ssub.s32 2048, 2048
      %950 = vsyncadd [#allocation3], %s949
      %s951 = sshll.u32 [#allocation2], 4
      %s952 = int_to_ptr.vmem [resolvable:$true] %s951
      %957 = dma.vmem_to_hbm [thread:$0]  %s952, 2048, %s8, [#allocation3], 128, 128, 8
    $region37: #{pallas_forward.27} parent=1 // pred_fallthru
      _
    // Predicated region
    $region38: #{pallas_forward.27} parent=1 // pred_check
      _
    $region39: #{pallas_forward.27} parent=1 // pred_check_branch
      %959 = sbr.rel (0) target = $region41
    $region40: #{pallas_forward.27} parent=1 // pred_region
      %960 = dma.done [#allocation3], 2048
    $region41: #{pallas_forward.27} parent=1 // pred_fallthru
      _
    %961 = vsyncpa [#allocation3], 1

</llo_original>
